<compile_context>
chip_gen: v6e
topology: v6e:2x2x1
jax: 0.10.0
libtpu: 0.0.40
codegen_flags: <defaults>
</compile_context>

<pallas_src>
import math

import jax
import jax.numpy as jnp
from jax import lax
from jax.experimental import pallas as pl
from jax.experimental.pallas import tpu as pltpu

EPS = 1e-5     # torch.nn.GroupNorm default eps
GROUPS = 32    # hard-coded in the PyTorch module


def _pick_vmem_limit():
    """Generation-aware VMEM budget: ~96 MiB on v5e/v6e, ~48 MiB on v7x."""
    cap = 128 * 1024 * 1024
    try:
        cap = int(pltpu.get_tpu_info().vmem_capacity_bytes)
    except Exception:
        pass
    return max(32 * 1024 * 1024, min(cap * 3 // 4, 100 * 1024 * 1024))


VMEM_LIMIT = _pick_vmem_limit()


# ----------------------------- Pallas kernels ------------------------------

def _gn_stats_kernel(x_ref, s1_ref, s2_ref):
    """Per-(n, c) sum / sum-of-squares of one whole image (f32 accumulation)."""
    v = x_ref[0].astype(jnp.float32)
    h, w, c = v.shape
    flat = v.reshape(h * w, c)
    s1_ref[0] = jnp.sum(flat, axis=0, keepdims=True)
    s2_ref[0] = jnp.sum(flat * flat, axis=0, keepdims=True)


def _make_fused_conv_kernel(do_gn, do_upsample, res_mode, emit_stats):
    """[GN+SiLU] -> [nearest 2x up] -> 3x3 conv -> [+residual] -> [GN stats]."""

    def kernel(*refs):
        it = iter(refs)
        x_ref = next(it)
        if do_gn:
            scale_ref = next(it)
            shift_ref = next(it)
        w_ref = next(it)                       # (3*Cin, 3*Cout) bf16, tap-packed
        b_ref = next(it)                       # (1, Cout) f32
        if res_mode is not None:
            r_ref = next(it)
        if res_mode == 'proj':
            wsc_ref = next(it)                 # (Cr, Cout) bf16
            bsc_ref = next(it)                 # (1, Cout) f32
        o_ref = next(it)
        if emit_stats:
            s1_ref = next(it)
            s2_ref = next(it)

        a = x_ref[0]
        if do_gn:                              # folded GroupNorm + SiLU in f32
            a = a.astype(jnp.float32)
            a = a * scale_ref[0] + shift_ref[0]
            a = a * jax.nn.sigmoid(a)
        a = a.astype(jnp.bfloat16)             # MXU operands in bf16

        if do_upsample:
            # Nearest-2x entirely in VMEM via broadcast + reshape: O(H*W*C)
            # VPU/XLU copies, no quadratic one-hot gather matmul.
            hs, ws, c = a.shape
            a = jnp.broadcast_to(a[:, None, :, :], (hs, 2, ws, c))
            a = a.reshape(2 * hs, ws, c)
            a = jnp.broadcast_to(a[:, :, None, :], (2 * hs, ws, 2, c))
            a = a.reshape(2 * hs, 2 * ws, c)

        H, W, Cin = a.shape
        Cout = b_ref.shape[-1]

        # Vertical taps packed along K: B[h, w, dy*Cin:(dy+1)*Cin] = x[h+dy-1, w].
        zrow = jnp.zeros((1, W, Cin), jnp.bfloat16)
        B = jnp.concatenate(
            [jnp.concatenate([zrow, a[:H - 1]], axis=0),     # dy = 0
             a,                                              # dy = 1
             jnp.concatenate([a[1:], zrow], axis=0)],        # dy = 2
            axis=-1)                                         # (H, W, 3*Cin)

        # Horizontal taps packed along N: ONE matmul, K = 3*Cin, N = 3*Cout.
        y = jnp.dot(B.reshape(H * W, 3 * Cin), w_ref[...],
                    preferred_element_type=jnp.float32).reshape(H, W, 3 * Cout)

        # +-1 column shifts applied to the narrow Cout-wide f32 results (not
        # to 3*Cin-wide input copies); the zero halo never leaves VMEM.
        zcol = jnp.zeros((H, 1, Cout), jnp.float32)
        acc = y[:, :, Cout:2 * Cout]                                         # dx = 1
        acc = acc + jnp.concatenate([zcol, y[:, :W - 1, :Cout]], axis=1)     # dx = 0
        acc = acc + jnp.concatenate([y[:, 1:, 2 * Cout:], zcol], axis=1)     # dx = 2
        acc = acc + b_ref[...].reshape(1, 1, Cout)

        if res_mode == 'proj':        # fused 1x1 shortcut + residual add
            r = r_ref[0].astype(jnp.bfloat16).reshape(H * W, r_ref.shape[-1])
            p = jnp.dot(r, wsc_ref[...], preferred_element_type=jnp.float32)
            acc = acc + (p + bsc_ref[...]).reshape(H, W, Cout)
        elif res_mode == 'add':       # identity shortcut
            acc = acc + r_ref[0].astype(jnp.float32)

        o_ref[0] = acc.astype(o_ref.dtype)

        if emit_stats:                # GN stats for the NEXT layer, for free
            flat = acc.reshape(H * W, Cout)
            s1_ref[0] = jnp.sum(flat, axis=0, keepdims=True)
            s2_ref[0] = jnp.sum(flat * flat, axis=0, keepdims=True)

    return kernel


# ------------------------------- wrappers -----------------------------------

def gn_stats(x):
    """Standalone per-(n, c) sum / sumsq (only used for the decoder input)."""
    N, H, W, C = x.shape
    return pl.pallas_call(
        _gn_stats_kernel,
        out_shape=(jax.ShapeDtypeStruct((N, 1, C), jnp.float32),
                   jax.ShapeDtypeStruct((N, 1, C), jnp.float32)),
        grid=(N,),
        in_specs=[pl.BlockSpec((1, H, W, C), lambda n: (n, 0, 0, 0))],
        out_specs=(pl.BlockSpec((1, 1, C), lambda n: (n, 0, 0)),
                   pl.BlockSpec((1, 1, C), lambda n: (n, 0, 0))),
        compiler_params=pltpu.CompilerParams(
            dimension_semantics=("parallel",),
            vmem_limit_bytes=VMEM_LIMIT),
    )(x)


def gn_fold(s1, s2, hw, gamma, beta, groups=GROUPS):
    """Fold group mean/var into per-channel scale & shift.  O(N*C) JAX glue."""
    n, _, c = s1.shape
    cg = c // groups
    g1 = s1.reshape(n, groups, cg).sum(-1)
    g2 = s2.reshape(n, groups, cg).sum(-1)
    cnt = float(hw * cg)
    mean = g1 / cnt
    var = jnp.maximum(g2 / cnt - mean * mean, 0.0)
    inv = lax.rsqrt(var + EPS)
    mean_c = jnp.repeat(mean, cg, axis=-1)               # (N, C)
    inv_c = jnp.repeat(inv, cg, axis=-1)
    scale = inv_c * gamma[None, :]
    shift = beta[None, :] - mean_c * scale
    return scale.reshape(n, 1, c), shift.reshape(n, 1, c)


def fused_conv3x3(x, w_cat, b, *, scale=None, shift=None, upsample=False,
                  residual=None, sc_w=None, sc_b=None, emit_stats=False,
                  out_dtype=jnp.bfloat16):
    """One pallas_call: [GN+SiLU] -> [up2x] -> conv3x3 -> [+res] -> [stats]."""
    N, H, W, Cin = x.shape
    Cout = b.shape[-1]
    Ho, Wo = (2 * H, 2 * W) if upsample else (H, W)
    do_gn = scale is not None
    res_mode = None
    if residual is not None:
        res_mode = 'proj' if sc_w is not None else 'add'

    in_specs = [pl.BlockSpec((1, H, W, Cin), lambda n: (n, 0, 0, 0))]
    args = [x]
    if do_gn:
        in_specs += [pl.BlockSpec((1, 1, Cin), lambda n: (n, 0, 0)),
                     pl.BlockSpec((1, 1, Cin), lambda n: (n, 0, 0))]
        args += [scale, shift]
    in_specs += [pl.BlockSpec((3 * Cin, 3 * Cout), lambda n: (0, 0)),
                 pl.BlockSpec((1, Cout), lambda n: (0, 0))]
    args += [w_cat, b]
    if res_mode is not None:
        _, Hr, Wr, Cr = residual.shape
        in_specs.append(pl.BlockSpec((1, Hr, Wr, Cr), lambda n: (n, 0, 0, 0)))
        args.append(residual)
        if res_mode == 'proj':
            in_specs += [pl.BlockSpec((Cr, Cout), lambda n: (0, 0)),
                         pl.BlockSpec((1, Cout), lambda n: (0, 0))]
            args += [sc_w, sc_b]

    out_shape = jax.ShapeDtypeStruct((N, Ho, Wo, Cout), out_dtype)
    out_spec = pl.BlockSpec((1, Ho, Wo, Cout), lambda n: (n, 0, 0, 0))
    if emit_stats:
        out_shape = (out_shape,
                     jax.ShapeDtypeStruct((N, 1, Cout), jnp.float32),
                     jax.ShapeDtypeStruct((N, 1, Cout), jnp.float32))
        out_spec = (out_spec,
                    pl.BlockSpec((1, 1, Cout), lambda n: (n, 0, 0)),
                    pl.BlockSpec((1, 1, Cout), lambda n: (n, 0, 0)))

    kernel = _make_fused_conv_kernel(do_gn, upsample, res_mode, emit_stats)
    return pl.pallas_call(
        kernel,
        out_shape=out_shape,
        grid=(N,),
        in_specs=in_specs,
        out_specs=out_spec,
        compiler_params=pltpu.CompilerParams(
            dimension_semantics=("parallel",),
            vmem_limit_bytes=VMEM_LIMIT),
    )(*args)


# ------------------------------ model pieces --------------------------------

def resblock_forward(x, s1, s2, p):
    """x plus its precomputed per-channel sum / sumsq (for GN1)."""
    n, h, w, _ = x.shape
    sc, sh = gn_fold(s1, s2, h * w, p['gn1_gamma'], p['gn1_beta'])
    hmid, t1, t2 = fused_conv3x3(x, p['c1_w'], p['c1_b'], scale=sc, shift=sh,
                                 emit_stats=True)
    sc, sh = gn_fold(t1, t2, h * w, p['gn2_gamma'], p['gn2_beta'])
    # Dropout(p=0.0) is the identity.  GN2+SiLU+conv2 and the residual path
    # (identity or fused 1x1 shortcut) all run inside one kernel.
    return fused_conv3x3(hmid, p['c2_w'], p['c2_b'], scale=sc, shift=sh,
                         residual=x, sc_w=p.get('sc_w'), sc_b=p.get('sc_b'))


def decoder_forward(x, params):
    # Only the decoder input needs a standalone stats pass; every other
    # GroupNorm gets its sum / sumsq from the producing kernel's epilogue.
    s1, s2 = gn_stats(x)
    nblk = len(params['blocks'])
    for i, blk in enumerate(params['blocks']):
        y = resblock_forward(x, s1, s2, blk['res'])
        need_stats = i + 1 < nblk          # next ResBlock's GN1 needs them
        out = fused_conv3x3(y, blk['up_w'], blk['up_b'], upsample=True,
                            emit_stats=need_stats)
        if need_stats:
            x, s1, s2 = out
        else:
            x = out
    return fused_conv3x3(x, params['out_w'], params['out_b'],
                         out_dtype=jnp.float32)


# ------------------------------ param init ----------------------------------

def _conv3x3_params(key, cin, cout):
    k1, k2 = jax.random.split(key)
    bound = 1.0 / math.sqrt(9 * cin)
    w = jax.random.uniform(k1, (3, 3, cin, cout), jnp.float32, -bound, bound)
    b = jax.random.uniform(k2, (cout,), jnp.float32, -bound, bound)
    # tap-packed: w_cat[dy*cin + ci, dx*cout + co] = w[dy, dx, ci, co]
    w_cat = jnp.transpose(w, (0, 2, 1, 3)).reshape(3 * cin, 3 * cout)
    return w_cat.astype(jnp.bfloat16), b.reshape(1, cout)


def _conv1x1_params(key, cin, cout):
    k1, k2 = jax.random.split(key)
    bound = 1.0 / math.sqrt(cin)
    w = jax.random.uniform(k1, (cin, cout), jnp.float32, -bound, bound)
    b = jax.random.uniform(k2, (cout,), jnp.float32, -bound, bound)
    return w.astype(jnp.bfloat16), b.reshape(1, cout)


def _init_resblock(key, cin, cout):
    k1, k2, k3 = jax.random.split(key, 3)
    p = {
        'gn1_gamma': jnp.ones((cin,), jnp.float32),
        'gn1_beta': jnp.zeros((cin,), jnp.float32),
        'gn2_gamma': jnp.ones((cout,), jnp.float32),
        'gn2_beta': jnp.zeros((cout,), jnp.float32),
    }
    p['c1_w'], p['c1_b'] = _conv3x3_params(k1, cin, cout)
    p['c2_w'], p['c2_b'] = _conv3x3_params(k2, cout, cout)
    if cin != cout:
        p['sc_w'], p['sc_b'] = _conv1x1_params(k3, cin, cout)
    return p


def init_decoder(key, ch_in, bs_chanel, ch_muls):
    params = {'blocks': []}
    ch = bs_chanel * ch_muls[-1]
    for ch_mul in ch_muls[::-1]:
        ch_out = bs_chanel * ch_mul
        key, k_rb, k_up = jax.random.split(key, 3)
        up_w, up_b = _conv3x3_params(k_up, ch_out, ch_out)
        params['blocks'].append({'res': _init_resblock(k_rb, ch, ch_out),
                                 'up_w': up_w, 'up_b': up_b})
        ch = ch_out
    key, k_out = jax.random.split(key)
    params['out_w'], params['out_b'] = _conv3x3_params(k_out, bs_chanel, ch_in)
    return params


# --------------------------------- main --------------------------------------

if __name__ == "__main__":
    # Small but GroupNorm(32)-compatible config: channels are multiples of 32.
    ch_in, bs_chanel, resolution, ch_muls = 3, 32, 16, [1, 2]
    latent_ch = bs_chanel * ch_muls[-1]            # 64
    latent_res = resolution // 2 ** len(ch_muls)   # 4

    key = jax.random.PRNGKey(0)
    k_x, k_p = jax.random.split(key)
    x_nchw = jax.random.normal(k_x, (2, latent_ch, latent_res, latent_res),
                               jnp.float32)
    params = init_decoder(k_p, ch_in, bs_chanel, ch_muls)

    decode = jax.jit(decoder_forward)
    x_nhwc = jnp.transpose(x_nchw, (0, 2, 3, 1))       # NCHW -> NHWC
    y_nhwc = decode(x_nhwc, params)
    y_nchw = jnp.transpose(y_nhwc, (0, 3, 1, 2))       # back to PyTorch layout

    jax.block_until_ready(y_nchw)
    assert y_nchw.shape == (2, ch_in, resolution, resolution), y_nchw.shape
    print("KERNEL_OK")
</pallas_src>

<mosaic_0001>
module attributes {stable_mosaic.version = 11 : i64} {
  func.func @_gn_stats_kernel(%arg0: i32, %arg1: memref<1x4x4x64xf32, #tpu.memory_space<vmem>>, %arg2: memref<1x1x64xf32, #tpu.memory_space<vmem>>, %arg3: memref<1x1x64xf32, #tpu.memory_space<vmem>>) attributes {dimension_semantics = [#tpu.dimension_semantics<parallel>], iteration_bounds = array<i64: 2>, scalar_prefetch = 0 : i64, scratch_operands = 0 : i64, tpu.core_type = #tpu.core_type<tc>, window_params = [{transform_indices = @transform_0, window_bounds = array<i64: 1, 4, 4, 64>}, {transform_indices = @transform_1, window_bounds = array<i64: 1, 1, 64>}, {transform_indices = @transform_2, window_bounds = array<i64: 1, 1, 64>}]} {
    %c0 = arith.constant 0 : index
    %c0_0 = arith.constant 0 : index
    %c0_1 = arith.constant 0 : index
    %c0_2 = arith.constant 0 : index
    %0 = vector.load %arg1[%c0, %c0_0, %c0_1, %c0_2] : memref<1x4x4x64xf32, #tpu.memory_space<vmem>>, vector<1x4x4x64xf32>
    %1 = vector.shape_cast %0 : vector<1x4x4x64xf32> to vector<4x4x64xf32>
    %2 = vector.shape_cast %1 : vector<4x4x64xf32> to vector<16x64xf32>
    %cst = arith.constant dense<0.000000e+00> : vector<64xf32>
    %3 = vector.multi_reduction <add>, %2, %cst [0] : vector<16x64xf32> to vector<64xf32>
    %4 = vector.shape_cast %3 : vector<64xf32> to vector<1x64xf32>
    %c0_3 = arith.constant 0 : index
    %c0_4 = arith.constant 0 : index
    %c0_5 = arith.constant 0 : index
    %5 = vector.load %arg2[%c0_3, %c0_4, %c0_5] : memref<1x1x64xf32, #tpu.memory_space<vmem>>, vector<1x1x64xf32>
    %6 = vector.shape_cast %5 : vector<1x1x64xf32> to vector<1x64xf32>
    %7 = vector.shape_cast %4 : vector<1x64xf32> to vector<1x1x64xf32>
    tpu.vector_store %arg2[%c0_3, %c0_4, %c0_5], %7 {strides = array<i32>} : memref<1x1x64xf32, #tpu.memory_space<vmem>>, vector<1x1x64xf32>,
    %8 = arith.mulf %2, %2 : vector<16x64xf32>
    %cst_6 = arith.constant dense<0.000000e+00> : vector<64xf32>
    %9 = vector.multi_reduction <add>, %8, %cst_6 [0] : vector<16x64xf32> to vector<64xf32>
    %10 = vector.shape_cast %9 : vector<64xf32> to vector<1x64xf32>
    %c0_7 = arith.constant 0 : index
    %c0_8 = arith.constant 0 : index
    %c0_9 = arith.constant 0 : index
    %11 = vector.load %arg3[%c0_7, %c0_8, %c0_9] : memref<1x1x64xf32, #tpu.memory_space<vmem>>, vector<1x1x64xf32>
    %12 = vector.shape_cast %11 : vector<1x1x64xf32> to vector<1x64xf32>
    %13 = vector.shape_cast %10 : vector<1x64xf32> to vector<1x1x64xf32>
    tpu.vector_store %arg3[%c0_7, %c0_8, %c0_9], %13 {strides = array<i32>} : memref<1x1x64xf32, #tpu.memory_space<vmem>>, vector<1x1x64xf32>,
    return
  }
  func.func @transform_0(%arg0: i32) -> (i32, i32, i32, i32) {
    %c0_i32 = arith.constant 0 : i32
    %c0_i32_0 = arith.constant 0 : i32
    %c0_i32_1 = arith.constant 0 : i32
    %c0_i32_2 = arith.constant 0 : i32
    return %arg0, %c0_i32, %c0_i32_0, %c0_i32_1 : i32, i32, i32, i32
  }
  func.func @transform_1(%arg0: i32) -> (i32, i32, i32) {
    %c0_i32 = arith.constant 0 : i32
    %c0_i32_0 = arith.constant 0 : i32
    %c0_i32_1 = arith.constant 0 : i32
    return %arg0, %c0_i32, %c0_i32_0 : i32, i32, i32
  }
  func.func @transform_2(%arg0: i32) -> (i32, i32, i32) {
    %c0_i32 = arith.constant 0 : i32
    %c0_i32_0 = arith.constant 0 : i32
    %c0_i32_1 = arith.constant 0 : i32
    return %arg0, %c0_i32, %c0_i32_0 : i32, i32, i32
  }
}

module attributes {stable_mosaic.version = 11 : i64} {
  func.func @kernel(%arg0: i32, %arg1: memref<1x4x4x64xbf16, #tpu.memory_space<vmem>>, %arg2: memref<1x1x64xf32, #tpu.memory_space<vmem>>, %arg3: memref<1x1x64xf32, #tpu.memory_space<vmem>>, %arg4: memref<192x192xbf16, #tpu.memory_space<vmem>>, %arg5: memref<1x64xf32, #tpu.memory_space<vmem>>, %arg6: memref<1x4x4x64xf32, #tpu.memory_space<vmem>>, %arg7: memref<1x4x4x64xbf16, #tpu.memory_space<vmem>>) attributes {dimension_semantics = [#tpu.dimension_semantics<parallel>], iteration_bounds = array<i64: 2>, scalar_prefetch = 0 : i64, scratch_operands = 0 : i64, tpu.core_type = #tpu.core_type<tc>, window_params = [{transform_indices = @transform_0, window_bounds = array<i64: 1, 4, 4, 64>}, {transform_indices = @transform_1, window_bounds = array<i64: 1, 1, 64>}, {transform_indices = @transform_2, window_bounds = array<i64: 1, 1, 64>}, {pipeline_mode = #tpu.pipeline_mode<synchronous>, transform_indices = @transform_3, window_bounds = array<i64: 192, 192>}, {pipeline_mode = #tpu.pipeline_mode<synchronous>, transform_indices = @transform_4, window_bounds = array<i64: 1, 64>}, {transform_indices = @transform_5, window_bounds = array<i64: 1, 4, 4, 64>}, {transform_indices = @transform_6, window_bounds = array<i64: 1, 4, 4, 64>}]} {
    %c0 = arith.constant 0 : index
    %c0_0 = arith.constant 0 : index
    %c0_1 = arith.constant 0 : index
    %c0_2 = arith.constant 0 : index
    %0 = vector.load %arg1[%c0, %c0_0, %c0_1, %c0_2] : memref<1x4x4x64xbf16, #tpu.memory_space<vmem>>, vector<1x4x4x64xbf16>
    %1 = vector.shape_cast %0 : vector<1x4x4x64xbf16> to vector<4x4x64xbf16>
    %2 = arith.extf %1 : vector<4x4x64xbf16> to vector<4x4x64xf32>
    %c0_3 = arith.constant 0 : index
    %c0_4 = arith.constant 0 : index
    %c0_5 = arith.constant 0 : index
    %3 = vector.load %arg2[%c0_3, %c0_4, %c0_5] : memref<1x1x64xf32, #tpu.memory_space<vmem>>, vector<1x1x64xf32>
    %4 = vector.shape_cast %3 : vector<1x1x64xf32> to vector<1x64xf32>
    %5 = vector.shape_cast %4 : vector<1x64xf32> to vector<1x1x64xf32>
    %6 = vector.broadcast %5 : vector<1x1x64xf32> to vector<4x4x64xf32>
    %7 = arith.mulf %2, %6 : vector<4x4x64xf32>
    %c0_6 = arith.constant 0 : index
    %c0_7 = arith.constant 0 : index
    %c0_8 = arith.constant 0 : index
    %8 = vector.load %arg3[%c0_6, %c0_7, %c0_8] : memref<1x1x64xf32, #tpu.memory_space<vmem>>, vector<1x1x64xf32>
    %9 = vector.shape_cast %8 : vector<1x1x64xf32> to vector<1x64xf32>
    %10 = vector.shape_cast %9 : vector<1x64xf32> to vector<1x1x64xf32>
    %11 = vector.broadcast %10 : vector<1x1x64xf32> to vector<4x4x64xf32>
    %12 = arith.addf %7, %11 : vector<4x4x64xf32>
    %13 = arith.negf %12 : vector<4x4x64xf32>
    %14 = math.exp %13 : vector<4x4x64xf32>
    %cst = arith.constant 1.000000e+00 : f32
    %15 = vector.broadcast %cst : f32 to vector<4x4x64xf32>
    %16 = arith.addf %15, %14 : vector<4x4x64xf32>
    %17 = arith.divf %15, %16 : vector<4x4x64xf32>
    %18 = arith.mulf %12, %17 : vector<4x4x64xf32>
    %19 = arith.truncf %18 : vector<4x4x64xf32> to vector<4x4x64xbf16>
    %cst_9 = arith.constant 0.000000e+00 : bf16
    %20 = vector.broadcast %cst_9 : bf16 to vector<1x4x64xbf16>
    %21 = vector.extract_strided_slice %19 {offsets = [0, 0, 0], sizes = [3, 4, 64], strides = [1, 1, 1]} : vector<4x4x64xbf16> to vector<3x4x64xbf16>
    %22 = tpu.concatenate %20, %21 in 0 : vector<1x4x64xbf16>, vector<3x4x64xbf16> -> vector<4x4x64xbf16>
    %23 = vector.extract_strided_slice %19 {offsets = [1, 0, 0], sizes = [3, 4, 64], strides = [1, 1, 1]} : vector<4x4x64xbf16> to vector<3x4x64xbf16>
    %24 = tpu.concatenate %23, %20 in 0 : vector<3x4x64xbf16>, vector<1x4x64xbf16> -> vector<4x4x64xbf16>
    %25 = tpu.concatenate %22, %19, %24 in 2 : vector<4x4x64xbf16>, vector<4x4x64xbf16>, vector<4x4x64xbf16> -> vector<4x4x192xbf16>
    %26 = vector.shape_cast %25 : vector<4x4x192xbf16> to vector<16x192xbf16>
    %c0_10 = arith.constant 0 : index
    %c0_11 = arith.constant 0 : index
    %27 = vector.load %arg4[%c0_10, %c0_11] : memref<192x192xbf16, #tpu.memory_space<vmem>>, vector<192x192xbf16>
    %cst_12 = arith.constant dense<0.000000e+00> : vector<16x192xf32>
    %28 = tpu.matmul %26, %27, %cst_12 {dimension_numbers = #tpu.dot_dimension_numbers<[1], [0], [0], [1], [0, 0, 1, 1], [], []>} : vector<16x192xbf16>, vector<192x192xbf16>, vector<16x192xf32> -> vector<16x192xf32>
    %29 = vector.shape_cast %28 : vector<16x192xf32> to vector<4x4x192xf32>
    %cst_13 = arith.constant 0.000000e+00 : f32
    %30 = vector.broadcast %cst_13 : f32 to vector<4x1x64xf32>
    %31 = vector.extract_strided_slice %29 {offsets = [0, 0, 64], sizes = [4, 4, 64], strides = [1, 1, 1]} : vector<4x4x192xf32> to vector<4x4x64xf32>
    %32 = vector.extract_strided_slice %29 {offsets = [0, 0, 0], sizes = [4, 3, 64], strides = [1, 1, 1]} : vector<4x4x192xf32> to vector<4x3x64xf32>
    %33 = tpu.concatenate %30, %32 in 1 : vector<4x1x64xf32>, vector<4x3x64xf32> -> vector<4x4x64xf32>
    %34 = arith.addf %31, %33 : vector<4x4x64xf32>
    %35 = vector.extract_strided_slice %29 {offsets = [0, 1, 128], sizes = [4, 3, 64], strides = [1, 1, 1]} : vector<4x4x192xf32> to vector<4x3x64xf32>
    %36 = tpu.concatenate %35, %30 in 1 : vector<4x3x64xf32>, vector<4x1x64xf32> -> vector<4x4x64xf32>
    %37 = arith.addf %34, %36 : vector<4x4x64xf32>
    %c0_14 = arith.constant 0 : index
    %c0_15 = arith.constant 0 : index
    %38 = vector.load %arg5[%c0_14, %c0_15] : memref<1x64xf32, #tpu.memory_space<vmem>>, vector<1x64xf32>
    %39 = vector.shape_cast %38 : vector<1x64xf32> to vector<1x1x64xf32>
    %40 = vector.broadcast %39 : vector<1x1x64xf32> to vector<4x4x64xf32>
    %41 = arith.addf %37, %40 : vector<4x4x64xf32>
    %c0_16 = arith.constant 0 : index
    %c0_17 = arith.constant 0 : index
    %c0_18 = arith.constant 0 : index
    %c0_19 = arith.constant 0 : index
    %42 = vector.load %arg6[%c0_16, %c0_17, %c0_18, %c0_19] : memref<1x4x4x64xf32, #tpu.memory_space<vmem>>, vector<1x4x4x64xf32>
    %43 = vector.shape_cast %42 : vector<1x4x4x64xf32> to vector<4x4x64xf32>
    %44 = arith.addf %41, %43 : vector<4x4x64xf32>
    %45 = arith.truncf %44 : vector<4x4x64xf32> to vector<4x4x64xbf16>
    %c0_20 = arith.constant 0 : index
    %c0_21 = arith.constant 0 : index
    %c0_22 = arith.constant 0 : index
    %c0_23 = arith.constant 0 : index
    %46 = vector.load %arg7[%c0_20, %c0_21, %c0_22, %c0_23] : memref<1x4x4x64xbf16, #tpu.memory_space<vmem>>, vector<1x4x4x64xbf16>
    %47 = vector.shape_cast %46 : vector<1x4x4x64xbf16> to vector<4x4x64xbf16>
    %48 = vector.shape_cast %45 : vector<4x4x64xbf16> to vector<1x4x4x64xbf16>
    tpu.vector_store %arg7[%c0_20, %c0_21, %c0_22, %c0_23], %48 {strides = array<i32>} : memref<1x4x4x64xbf16, #tpu.memory_space<vmem>>, vector<1x4x4x64xbf16>,
    return
  }
  func.func @transform_0(%arg0: i32) -> (i32, i32, i32, i32) {
    %c0_i32 = arith.constant 0 : i32
    %c0_i32_0 = arith.constant 0 : i32
    %c0_i32_1 = arith.constant 0 : i32
    %c0_i32_2 = arith.constant 0 : i32
    return %arg0, %c0_i32, %c0_i32_0, %c0_i32_1 : i32, i32, i32, i32
  }
  func.func @transform_1(%arg0: i32) -> (i32, i32, i32) {
    %c0_i32 = arith.constant 0 : i32
    %c0_i32_0 = arith.constant 0 : i32
    %c0_i32_1 = arith.constant 0 : i32
    return %arg0, %c0_i32, %c0_i32_0 : i32, i32, i32
  }
  func.func @transform_2(%arg0: i32) -> (i32, i32, i32) {
    %c0_i32 = arith.constant 0 : i32
    %c0_i32_0 = arith.constant 0 : i32
    %c0_i32_1 = arith.constant 0 : i32
    return %arg0, %c0_i32, %c0_i32_0 : i32, i32, i32
  }
  func.func @transform_3(%arg0: i32) -> (i32, i32) {
    %c0_i32 = arith.constant 0 : i32
    %c0_i32_0 = arith.constant 0 : i32
    %c0_i32_1 = arith.constant 0 : i32
    return %c0_i32, %c0_i32_0 : i32, i32
  }
  func.func @transform_4(%arg0: i32) -> (i32, i32) {
    %c0_i32 = arith.constant 0 : i32
    %c0_i32_0 = arith.constant 0 : i32
    %c0_i32_1 = arith.constant 0 : i32
    return %c0_i32, %c0_i32_0 : i32, i32
  }
  func.func @transform_5(%arg0: i32) -> (i32, i32, i32, i32) {
    %c0_i32 = arith.constant 0 : i32
    %c0_i32_0 = arith.constant 0 : i32
    %c0_i32_1 = arith.constant 0 : i32
    %c0_i32_2 = arith.constant 0 : i32
    return %arg0, %c0_i32, %c0_i32_0, %c0_i32_1 : i32, i32, i32, i32
  }
  func.func @transform_6(%arg0: i32) -> (i32, i32, i32, i32) {
    %c0_i32 = arith.constant 0 : i32
    %c0_i32_0 = arith.constant 0 : i32
    %c0_i32_1 = arith.constant 0 : i32
    %c0_i32_2 = arith.constant 0 : i32
    return %arg0, %c0_i32, %c0_i32_0, %c0_i32_1 : i32, i32, i32, i32
  }
}

module attributes {stable_mosaic.version = 11 : i64} {
  func.func @kernel(%arg0: i32, %arg1: memref<1x4x4x64xf32, #tpu.memory_space<vmem>>, %arg2: memref<1x1x64xf32, #tpu.memory_space<vmem>>, %arg3: memref<1x1x64xf32, #tpu.memory_space<vmem>>, %arg4: memref<192x192xbf16, #tpu.memory_space<vmem>>, %arg5: memref<1x64xf32, #tpu.memory_space<vmem>>, %arg6: memref<1x4x4x64xbf16, #tpu.memory_space<vmem>>, %arg7: memref<1x1x64xf32, #tpu.memory_space<vmem>>, %arg8: memref<1x1x64xf32, #tpu.memory_space<vmem>>) attributes {dimension_semantics = [#tpu.dimension_semantics<parallel>], iteration_bounds = array<i64: 2>, scalar_prefetch = 0 : i64, scratch_operands = 0 : i64, tpu.core_type = #tpu.core_type<tc>, window_params = [{transform_indices = @transform_0, window_bounds = array<i64: 1, 4, 4, 64>}, {transform_indices = @transform_1, window_bounds = array<i64: 1, 1, 64>}, {transform_indices = @transform_2, window_bounds = array<i64: 1, 1, 64>}, {pipeline_mode = #tpu.pipeline_mode<synchronous>, transform_indices = @transform_3, window_bounds = array<i64: 192, 192>}, {pipeline_mode = #tpu.pipeline_mode<synchronous>, transform_indices = @transform_4, window_bounds = array<i64: 1, 64>}, {transform_indices = @transform_5, window_bounds = array<i64: 1, 4, 4, 64>}, {transform_indices = @transform_6, window_bounds = array<i64: 1, 1, 64>}, {transform_indices = @transform_7, window_bounds = array<i64: 1, 1, 64>}]} {
    %c0 = arith.constant 0 : index
    %c0_0 = arith.constant 0 : index
    %c0_1 = arith.constant 0 : index
    %c0_2 = arith.constant 0 : index
    %0 = vector.load %arg1[%c0, %c0_0, %c0_1, %c0_2] : memref<1x4x4x64xf32, #tpu.memory_space<vmem>>, vector<1x4x4x64xf32>
    %1 = vector.shape_cast %0 : vector<1x4x4x64xf32> to vector<4x4x64xf32>
    %c0_3 = arith.constant 0 : index
    %c0_4 = arith.constant 0 : index
    %c0_5 = arith.constant 0 : index
    %2 = vector.load %arg2[%c0_3, %c0_4, %c0_5] : memref<1x1x64xf32, #tpu.memory_space<vmem>>, vector<1x1x64xf32>
    %3 = vector.shape_cast %2 : vector<1x1x64xf32> to vector<1x64xf32>
    %4 = vector.shape_cast %3 : vector<1x64xf32> to vector<1x1x64xf32>
    %5 = vector.broadcast %4 : vector<1x1x64xf32> to vector<4x4x64xf32>
    %6 = arith.mulf %1, %5 : vector<4x4x64xf32>
    %c0_6 = arith.constant 0 : index
    %c0_7 = arith.constant 0 : index
    %c0_8 = arith.constant 0 : index
    %7 = vector.load %arg3[%c0_6, %c0_7, %c0_8] : memref<1x1x64xf32, #tpu.memory_space<vmem>>, vector<1x1x64xf32>
    %8 = vector.shape_cast %7 : vector<1x1x64xf32> to vector<1x64xf32>
    %9 = vector.shape_cast %8 : vector<1x64xf32> to vector<1x1x64xf32>
    %10 = vector.broadcast %9 : vector<1x1x64xf32> to vector<4x4x64xf32>
    %11 = arith.addf %6, %10 : vector<4x4x64xf32>
    %12 = arith.negf %11 : vector<4x4x64xf32>
    %13 = math.exp %12 : vector<4x4x64xf32>
    %cst = arith.constant 1.000000e+00 : f32
    %14 = vector.broadcast %cst : f32 to vector<4x4x64xf32>
    %15 = arith.addf %14, %13 : vector<4x4x64xf32>
    %16 = arith.divf %14, %15 : vector<4x4x64xf32>
    %17 = arith.mulf %11, %16 : vector<4x4x64xf32>
    %18 = arith.truncf %17 : vector<4x4x64xf32> to vector<4x4x64xbf16>
    %cst_9 = arith.constant 0.000000e+00 : bf16
    %19 = vector.broadcast %cst_9 : bf16 to vector<1x4x64xbf16>
    %20 = vector.extract_strided_slice %18 {offsets = [0, 0, 0], sizes = [3, 4, 64], strides = [1, 1, 1]} : vector<4x4x64xbf16> to vector<3x4x64xbf16>
    %21 = tpu.concatenate %19, %20 in 0 : vector<1x4x64xbf16>, vector<3x4x64xbf16> -> vector<4x4x64xbf16>
    %22 = vector.extract_strided_slice %18 {offsets = [1, 0, 0], sizes = [3, 4, 64], strides = [1, 1, 1]} : vector<4x4x64xbf16> to vector<3x4x64xbf16>
    %23 = tpu.concatenate %22, %19 in 0 : vector<3x4x64xbf16>, vector<1x4x64xbf16> -> vector<4x4x64xbf16>
    %24 = tpu.concatenate %21, %18, %23 in 2 : vector<4x4x64xbf16>, vector<4x4x64xbf16>, vector<4x4x64xbf16> -> vector<4x4x192xbf16>
    %25 = vector.shape_cast %24 : vector<4x4x192xbf16> to vector<16x192xbf16>
    %c0_10 = arith.constant 0 : index
    %c0_11 = arith.constant 0 : index
    %26 = vector.load %arg4[%c0_10, %c0_11] : memref<192x192xbf16, #tpu.memory_space<vmem>>, vector<192x192xbf16>
    %cst_12 = arith.constant dense<0.000000e+00> : vector<16x192xf32>
    %27 = tpu.matmul %25, %26, %cst_12 {dimension_numbers = #tpu.dot_dimension_numbers<[1], [0], [0], [1], [0, 0, 1, 1], [], []>} : vector<16x192xbf16>, vector<192x192xbf16>, vector<16x192xf32> -> vector<16x192xf32>
    %28 = vector.shape_cast %27 : vector<16x192xf32> to vector<4x4x192xf32>
    %cst_13 = arith.constant 0.000000e+00 : f32
    %29 = vector.broadcast %cst_13 : f32 to vector<4x1x64xf32>
    %30 = vector.extract_strided_slice %28 {offsets = [0, 0, 64], sizes = [4, 4, 64], strides = [1, 1, 1]} : vector<4x4x192xf32> to vector<4x4x64xf32>
    %31 = vector.extract_strided_slice %28 {offsets = [0, 0, 0], sizes = [4, 3, 64], strides = [1, 1, 1]} : vector<4x4x192xf32> to vector<4x3x64xf32>
    %32 = tpu.concatenate %29, %31 in 1 : vector<4x1x64xf32>, vector<4x3x64xf32> -> vector<4x4x64xf32>
    %33 = arith.addf %30, %32 : vector<4x4x64xf32>
    %34 = vector.extract_strided_slice %28 {offsets = [0, 1, 128], sizes = [4, 3, 64], strides = [1, 1, 1]} : vector<4x4x192xf32> to vector<4x3x64xf32>
    %35 = tpu.concatenate %34, %29 in 1 : vector<4x3x64xf32>, vector<4x1x64xf32> -> vector<4x4x64xf32>
    %36 = arith.addf %33, %35 : vector<4x4x64xf32>
    %c0_14 = arith.constant 0 : index
    %c0_15 = arith.constant 0 : index
    %37 = vector.load %arg5[%c0_14, %c0_15] : memref<1x64xf32, #tpu.memory_space<vmem>>, vector<1x64xf32>
    %38 = vector.shape_cast %37 : vector<1x64xf32> to vector<1x1x64xf32>
    %39 = vector.broadcast %38 : vector<1x1x64xf32> to vector<4x4x64xf32>
    %40 = arith.addf %36, %39 : vector<4x4x64xf32>
    %41 = arith.truncf %40 : vector<4x4x64xf32> to vector<4x4x64xbf16>
    %c0_16 = arith.constant 0 : index
    %c0_17 = arith.constant 0 : index
    %c0_18 = arith.constant 0 : index
    %c0_19 = arith.constant 0 : index
    %42 = vector.load %arg6[%c0_16, %c0_17, %c0_18, %c0_19] : memref<1x4x4x64xbf16, #tpu.memory_space<vmem>>, vector<1x4x4x64xbf16>
    %43 = vector.shape_cast %42 : vector<1x4x4x64xbf16> to vector<4x4x64xbf16>
    %44 = vector.shape_cast %41 : vector<4x4x64xbf16> to vector<1x4x4x64xbf16>
    tpu.vector_store %arg6[%c0_16, %c0_17, %c0_18, %c0_19], %44 {strides = array<i32>} : memref<1x4x4x64xbf16, #tpu.memory_space<vmem>>, vector<1x4x4x64xbf16>,
    %45 = vector.shape_cast %40 : vector<4x4x64xf32> to vector<16x64xf32>
    %cst_20 = arith.constant dense<0.000000e+00> : vector<64xf32>
    %46 = vector.multi_reduction <add>, %45, %cst_20 [0] : vector<16x64xf32> to vector<64xf32>
    %47 = vector.shape_cast %46 : vector<64xf32> to vector<1x64xf32>
    %c0_21 = arith.constant 0 : index
    %c0_22 = arith.constant 0 : index
    %c0_23 = arith.constant 0 : index
    %48 = vector.load %arg7[%c0_21, %c0_22, %c0_23] : memref<1x1x64xf32, #tpu.memory_space<vmem>>, vector<1x1x64xf32>
    %49 = vector.shape_cast %48 : vector<1x1x64xf32> to vector<1x64xf32>
    %50 = vector.shape_cast %47 : vector<1x64xf32> to vector<1x1x64xf32>
    tpu.vector_store %arg7[%c0_21, %c0_22, %c0_23], %50 {strides = array<i32>} : memref<1x1x64xf32, #tpu.memory_space<vmem>>, vector<1x1x64xf32>,
    %51 = arith.mulf %45, %45 : vector<16x64xf32>
    %cst_24 = arith.constant dense<0.000000e+00> : vector<64xf32>
    %52 = vector.multi_reduction <add>, %51, %cst_24 [0] : vector<16x64xf32> to vector<64xf32>
    %53 = vector.shape_cast %52 : vector<64xf32> to vector<1x64xf32>
    %c0_25 = arith.constant 0 : index
    %c0_26 = arith.constant 0 : index
    %c0_27 = arith.constant 0 : index
    %54 = vector.load %arg8[%c0_25, %c0_26, %c0_27] : memref<1x1x64xf32, #tpu.memory_space<vmem>>, vector<1x1x64xf32>
    %55 = vector.shape_cast %54 : vector<1x1x64xf32> to vector<1x64xf32>
    %56 = vector.shape_cast %53 : vector<1x64xf32> to vector<1x1x64xf32>
    tpu.vector_store %arg8[%c0_25, %c0_26, %c0_27], %56 {strides = array<i32>} : memref<1x1x64xf32, #tpu.memory_space<vmem>>, vector<1x1x64xf32>,
    return
  }
  func.func @transform_0(%arg0: i32) -> (i32, i32, i32, i32) {
    %c0_i32 = arith.constant 0 : i32
    %c0_i32_0 = arith.constant 0 : i32
    %c0_i32_1 = arith.constant 0 : i32
    %c0_i32_2 = arith.constant 0 : i32
    return %arg0, %c0_i32, %c0_i32_0, %c0_i32_1 : i32, i32, i32, i32
  }
  func.func @transform_1(%arg0: i32) -> (i32, i32, i32) {
    %c0_i32 = arith.constant 0 : i32
    %c0_i32_0 = arith.constant 0 : i32
    %c0_i32_1 = arith.constant 0 : i32
    return %arg0, %c0_i32, %c0_i32_0 : i32, i32, i32
  }
  func.func @transform_2(%arg0: i32) -> (i32, i32, i32) {
    %c0_i32 = arith.constant 0 : i32
    %c0_i32_0 = arith.constant 0 : i32
    %c0_i32_1 = arith.constant 0 : i32
    return %arg0, %c0_i32, %c0_i32_0 : i32, i32, i32
  }
  func.func @transform_3(%arg0: i32) -> (i32, i32) {
    %c0_i32 = arith.constant 0 : i32
    %c0_i32_0 = arith.constant 0 : i32
    %c0_i32_1 = arith.constant 0 : i32
    return %c0_i32, %c0_i32_0 : i32, i32
  }
  func.func @transform_4(%arg0: i32) -> (i32, i32) {
    %c0_i32 = arith.constant 0 : i32
    %c0_i32_0 = arith.constant 0 : i32
    %c0_i32_1 = arith.constant 0 : i32
    return %c0_i32, %c0_i32_0 : i32, i32
  }
  func.func @transform_5(%arg0: i32) -> (i32, i32, i32, i32) {
    %c0_i32 = arith.constant 0 : i32
    %c0_i32_0 = arith.constant 0 : i32
    %c0_i32_1 = arith.constant 0 : i32
    %c0_i32_2 = arith.constant 0 : i32
    return %arg0, %c0_i32, %c0_i32_0, %c0_i32_1 : i32, i32, i32, i32
  }
  func.func @transform_6(%arg0: i32) -> (i32, i32, i32) {
    %c0_i32 = arith.constant 0 : i32
    %c0_i32_0 = arith.constant 0 : i32
    %c0_i32_1 = arith.constant 0 : i32
    return %arg0, %c0_i32, %c0_i32_0 : i32, i32, i32
  }
  func.func @transform_7(%arg0: i32) -> (i32, i32, i32) {
    %c0_i32 = arith.constant 0 : i32
    %c0_i32_0 = arith.constant 0 : i32
    %c0_i32_1 = arith.constant 0 : i32
    return %arg0, %c0_i32, %c0_i32_0 : i32, i32, i32
  }
}

module attributes {stable_mosaic.version = 11 : i64} {
  func.func @kernel(%arg0: i32, %arg1: memref<1x4x4x64xbf16, #tpu.memory_space<vmem>>, %arg2: memref<192x192xbf16, #tpu.memory_space<vmem>>, %arg3: memref<1x64xf32, #tpu.memory_space<vmem>>, %arg4: memref<1x8x8x64xbf16, #tpu.memory_space<vmem>>, %arg5: memref<1x1x64xf32, #tpu.memory_space<vmem>>, %arg6: memref<1x1x64xf32, #tpu.memory_space<vmem>>) attributes {dimension_semantics = [#tpu.dimension_semantics<parallel>], iteration_bounds = array<i64: 2>, scalar_prefetch = 0 : i64, scratch_operands = 0 : i64, tpu.core_type = #tpu.core_type<tc>, window_params = [{transform_indices = @transform_0, window_bounds = array<i64: 1, 4, 4, 64>}, {pipeline_mode = #tpu.pipeline_mode<synchronous>, transform_indices = @transform_1, window_bounds = array<i64: 192, 192>}, {pipeline_mode = #tpu.pipeline_mode<synchronous>, transform_indices = @transform_2, window_bounds = array<i64: 1, 64>}, {transform_indices = @transform_3, window_bounds = array<i64: 1, 8, 8, 64>}, {transform_indices = @transform_4, window_bounds = array<i64: 1, 1, 64>}, {transform_indices = @transform_5, window_bounds = array<i64: 1, 1, 64>}]} {
    %c0 = arith.constant 0 : index
    %c0_0 = arith.constant 0 : index
    %c0_1 = arith.constant 0 : index
    %c0_2 = arith.constant 0 : index
    %0 = vector.load %arg1[%c0, %c0_0, %c0_1, %c0_2] : memref<1x4x4x64xbf16, #tpu.memory_space<vmem>>, vector<1x4x4x64xbf16>
    %1 = vector.shape_cast %0 : vector<1x4x4x64xbf16> to vector<4x4x64xbf16>
    %2 = vector.shape_cast %1 : vector<4x4x64xbf16> to vector<4x1x4x64xbf16>
    %3 = vector.shape_cast %2 : vector<4x1x4x64xbf16> to vector<4x1x4x64xbf16>
    %4 = vector.broadcast %3 : vector<4x1x4x64xbf16> to vector<4x2x4x64xbf16>
    %5 = vector.shape_cast %4 : vector<4x2x4x64xbf16> to vector<8x4x64xbf16>
    %6 = vector.shape_cast %5 : vector<8x4x64xbf16> to vector<8x4x1x64xbf16>
    %7 = vector.shape_cast %6 : vector<8x4x1x64xbf16> to vector<8x4x1x64xbf16>
    %8 = vector.broadcast %7 : vector<8x4x1x64xbf16> to vector<8x4x2x64xbf16>
    %9 = vector.shape_cast %8 : vector<8x4x2x64xbf16> to vector<8x8x64xbf16>
    %cst = arith.constant 0.000000e+00 : bf16
    %10 = vector.broadcast %cst : bf16 to vector<1x8x64xbf16>
    %11 = vector.extract_strided_slice %9 {offsets = [0, 0, 0], sizes = [7, 8, 64], strides = [1, 1, 1]} : vector<8x8x64xbf16> to vector<7x8x64xbf16>
    %12 = tpu.concatenate %10, %11 in 0 : vector<1x8x64xbf16>, vector<7x8x64xbf16> -> vector<8x8x64xbf16>
    %13 = vector.extract_strided_slice %9 {offsets = [1, 0, 0], sizes = [7, 8, 64], strides = [1, 1, 1]} : vector<8x8x64xbf16> to vector<7x8x64xbf16>
    %14 = tpu.concatenate %13, %10 in 0 : vector<7x8x64xbf16>, vector<1x8x64xbf16> -> vector<8x8x64xbf16>
    %15 = tpu.concatenate %12, %9, %14 in 2 : vector<8x8x64xbf16>, vector<8x8x64xbf16>, vector<8x8x64xbf16> -> vector<8x8x192xbf16>
    %16 = vector.shape_cast %15 : vector<8x8x192xbf16> to vector<64x192xbf16>
    %c0_3 = arith.constant 0 : index
    %c0_4 = arith.constant 0 : index
    %17 = vector.load %arg2[%c0_3, %c0_4] : memref<192x192xbf16, #tpu.memory_space<vmem>>, vector<192x192xbf16>
    %cst_5 = arith.constant dense<0.000000e+00> : vector<64x192xf32>
    %18 = tpu.matmul %16, %17, %cst_5 {dimension_numbers = #tpu.dot_dimension_numbers<[1], [0], [0], [1], [0, 0, 1, 1], [], []>} : vector<64x192xbf16>, vector<192x192xbf16>, vector<64x192xf32> -> vector<64x192xf32>
    %19 = vector.shape_cast %18 : vector<64x192xf32> to vector<8x8x192xf32>
    %cst_6 = arith.constant 0.000000e+00 : f32
    %20 = vector.broadcast %cst_6 : f32 to vector<8x1x64xf32>
    %21 = vector.extract_strided_slice %19 {offsets = [0, 0, 64], sizes = [8, 8, 64], strides = [1, 1, 1]} : vector<8x8x192xf32> to vector<8x8x64xf32>
    %22 = vector.extract_strided_slice %19 {offsets = [0, 0, 0], sizes = [8, 7, 64], strides = [1, 1, 1]} : vector<8x8x192xf32> to vector<8x7x64xf32>
    %23 = tpu.concatenate %20, %22 in 1 : vector<8x1x64xf32>, vector<8x7x64xf32> -> vector<8x8x64xf32>
    %24 = arith.addf %21, %23 : vector<8x8x64xf32>
    %25 = vector.extract_strided_slice %19 {offsets = [0, 1, 128], sizes = [8, 7, 64], strides = [1, 1, 1]} : vector<8x8x192xf32> to vector<8x7x64xf32>
    %26 = tpu.concatenate %25, %20 in 1 : vector<8x7x64xf32>, vector<8x1x64xf32> -> vector<8x8x64xf32>
    %27 = arith.addf %24, %26 : vector<8x8x64xf32>
    %c0_7 = arith.constant 0 : index
    %c0_8 = arith.constant 0 : index
    %28 = vector.load %arg3[%c0_7, %c0_8] : memref<1x64xf32, #tpu.memory_space<vmem>>, vector<1x64xf32>
    %29 = vector.shape_cast %28 : vector<1x64xf32> to vector<1x1x64xf32>
    %30 = vector.broadcast %29 : vector<1x1x64xf32> to vector<8x8x64xf32>
    %31 = arith.addf %27, %30 : vector<8x8x64xf32>
    %32 = arith.truncf %31 : vector<8x8x64xf32> to vector<8x8x64xbf16>
    %c0_9 = arith.constant 0 : index
    %c0_10 = arith.constant 0 : index
    %c0_11 = arith.constant 0 : index
    %c0_12 = arith.constant 0 : index
    %33 = vector.load %arg4[%c0_9, %c0_10, %c0_11, %c0_12] : memref<1x8x8x64xbf16, #tpu.memory_space<vmem>>, vector<1x8x8x64xbf16>
    %34 = vector.shape_cast %33 : vector<1x8x8x64xbf16> to vector<8x8x64xbf16>
    %35 = vector.shape_cast %32 : vector<8x8x64xbf16> to vector<1x8x8x64xbf16>
    tpu.vector_store %arg4[%c0_9, %c0_10, %c0_11, %c0_12], %35 {strides = array<i32>} : memref<1x8x8x64xbf16, #tpu.memory_space<vmem>>, vector<1x8x8x64xbf16>,
    %36 = vector.shape_cast %31 : vector<8x8x64xf32> to vector<64x64xf32>
    %cst_13 = arith.constant dense<0.000000e+00> : vector<64xf32>
    %37 = vector.multi_reduction <add>, %36, %cst_13 [0] : vector<64x64xf32> to vector<64xf32>
    %38 = vector.shape_cast %37 : vector<64xf32> to vector<1x64xf32>
    %c0_14 = arith.constant 0 : index
    %c0_15 = arith.constant 0 : index
    %c0_16 = arith.constant 0 : index
    %39 = vector.load %arg5[%c0_14, %c0_15, %c0_16] : memref<1x1x64xf32, #tpu.memory_space<vmem>>, vector<1x1x64xf32>
    %40 = vector.shape_cast %39 : vector<1x1x64xf32> to vector<1x64xf32>
    %41 = vector.shape_cast %38 : vector<1x64xf32> to vector<1x1x64xf32>
    tpu.vector_store %arg5[%c0_14, %c0_15, %c0_16], %41 {strides = array<i32>} : memref<1x1x64xf32, #tpu.memory_space<vmem>>, vector<1x1x64xf32>,
    %42 = arith.mulf %36, %36 : vector<64x64xf32>
    %cst_17 = arith.constant dense<0.000000e+00> : vector<64xf32>
    %43 = vector.multi_reduction <add>, %42, %cst_17 [0] : vector<64x64xf32> to vector<64xf32>
    %44 = vector.shape_cast %43 : vector<64xf32> to vector<1x64xf32>
    %c0_18 = arith.constant 0 : index
    %c0_19 = arith.constant 0 : index
    %c0_20 = arith.constant 0 : index
    %45 = vector.load %arg6[%c0_18, %c0_19, %c0_20] : memref<1x1x64xf32, #tpu.memory_space<vmem>>, vector<1x1x64xf32>
    %46 = vector.shape_cast %45 : vector<1x1x64xf32> to vector<1x64xf32>
    %47 = vector.shape_cast %44 : vector<1x64xf32> to vector<1x1x64xf32>
    tpu.vector_store %arg6[%c0_18, %c0_19, %c0_20], %47 {strides = array<i32>} : memref<1x1x64xf32, #tpu.memory_space<vmem>>, vector<1x1x64xf32>,
    return
  }
  func.func @transform_0(%arg0: i32) -> (i32, i32, i32, i32) {
    %c0_i32 = arith.constant 0 : i32
    %c0_i32_0 = arith.constant 0 : i32
    %c0_i32_1 = arith.constant 0 : i32
    %c0_i32_2 = arith.constant 0 : i32
    return %arg0, %c0_i32, %c0_i32_0, %c0_i32_1 : i32, i32, i32, i32
  }
  func.func @transform_1(%arg0: i32) -> (i32, i32) {
    %c0_i32 = arith.constant 0 : i32
    %c0_i32_0 = arith.constant 0 : i32
    %c0_i32_1 = arith.constant 0 : i32
    return %c0_i32, %c0_i32_0 : i32, i32
  }
  func.func @transform_2(%arg0: i32) -> (i32, i32) {
    %c0_i32 = arith.constant 0 : i32
    %c0_i32_0 = arith.constant 0 : i32
    %c0_i32_1 = arith.constant 0 : i32
    return %c0_i32, %c0_i32_0 : i32, i32
  }
  func.func @transform_3(%arg0: i32) -> (i32, i32, i32, i32) {
    %c0_i32 = arith.constant 0 : i32
    %c0_i32_0 = arith.constant 0 : i32
    %c0_i32_1 = arith.constant 0 : i32
    %c0_i32_2 = arith.constant 0 : i32
    return %arg0, %c0_i32, %c0_i32_0, %c0_i32_1 : i32, i32, i32, i32
  }
  func.func @transform_4(%arg0: i32) -> (i32, i32, i32) {
    %c0_i32 = arith.constant 0 : i32
    %c0_i32_0 = arith.constant 0 : i32
    %c0_i32_1 = arith.constant 0 : i32
    return %arg0, %c0_i32, %c0_i32_0 : i32, i32, i32
  }
  func.func @transform_5(%arg0: i32) -> (i32, i32, i32) {
    %c0_i32 = arith.constant 0 : i32
    %c0_i32_0 = arith.constant 0 : i32
    %c0_i32_1 = arith.constant 0 : i32
    return %arg0, %c0_i32, %c0_i32_0 : i32, i32, i32
  }
}

module attributes {stable_mosaic.version = 11 : i64} {
  func.func @kernel(%arg0: i32, %arg1: memref<1x8x8x64xbf16, #tpu.memory_space<vmem>>, %arg2: memref<1x1x64xf32, #tpu.memory_space<vmem>>, %arg3: memref<1x1x64xf32, #tpu.memory_space<vmem>>, %arg4: memref<192x96xbf16, #tpu.memory_space<vmem>>, %arg5: memref<1x32xf32, #tpu.memory_space<vmem>>, %arg6: memref<1x8x8x32xbf16, #tpu.memory_space<vmem>>, %arg7: memref<1x1x32xf32, #tpu.memory_space<vmem>>, %arg8: memref<1x1x32xf32, #tpu.memory_space<vmem>>) attributes {dimension_semantics = [#tpu.dimension_semantics<parallel>], iteration_bounds = array<i64: 2>, scalar_prefetch = 0 : i64, scratch_operands = 0 : i64, tpu.core_type = #tpu.core_type<tc>, window_params = [{transform_indices = @transform_0, window_bounds = array<i64: 1, 8, 8, 64>}, {transform_indices = @transform_1, window_bounds = array<i64: 1, 1, 64>}, {transform_indices = @transform_2, window_bounds = array<i64: 1, 1, 64>}, {pipeline_mode = #tpu.pipeline_mode<synchronous>, transform_indices = @transform_3, window_bounds = array<i64: 192, 96>}, {pipeline_mode = #tpu.pipeline_mode<synchronous>, transform_indices = @transform_4, window_bounds = array<i64: 1, 32>}, {transform_indices = @transform_5, window_bounds = array<i64: 1, 8, 8, 32>}, {transform_indices = @transform_6, window_bounds = array<i64: 1, 1, 32>}, {transform_indices = @transform_7, window_bounds = array<i64: 1, 1, 32>}]} {
    %c0 = arith.constant 0 : index
    %c0_0 = arith.constant 0 : index
    %c0_1 = arith.constant 0 : index
    %c0_2 = arith.constant 0 : index
    %0 = vector.load %arg1[%c0, %c0_0, %c0_1, %c0_2] : memref<1x8x8x64xbf16, #tpu.memory_space<vmem>>, vector<1x8x8x64xbf16>
    %1 = vector.shape_cast %0 : vector<1x8x8x64xbf16> to vector<8x8x64xbf16>
    %2 = arith.extf %1 : vector<8x8x64xbf16> to vector<8x8x64xf32>
    %c0_3 = arith.constant 0 : index
    %c0_4 = arith.constant 0 : index
    %c0_5 = arith.constant 0 : index
    %3 = vector.load %arg2[%c0_3, %c0_4, %c0_5] : memref<1x1x64xf32, #tpu.memory_space<vmem>>, vector<1x1x64xf32>
    %4 = vector.shape_cast %3 : vector<1x1x64xf32> to vector<1x64xf32>
    %5 = vector.shape_cast %4 : vector<1x64xf32> to vector<1x1x64xf32>
    %6 = vector.broadcast %5 : vector<1x1x64xf32> to vector<8x8x64xf32>
    %7 = arith.mulf %2, %6 : vector<8x8x64xf32>
    %c0_6 = arith.constant 0 : index
    %c0_7 = arith.constant 0 : index
    %c0_8 = arith.constant 0 : index
    %8 = vector.load %arg3[%c0_6, %c0_7, %c0_8] : memref<1x1x64xf32, #tpu.memory_space<vmem>>, vector<1x1x64xf32>
    %9 = vector.shape_cast %8 : vector<1x1x64xf32> to vector<1x64xf32>
    %10 = vector.shape_cast %9 : vector<1x64xf32> to vector<1x1x64xf32>
    %11 = vector.broadcast %10 : vector<1x1x64xf32> to vector<8x8x64xf32>
    %12 = arith.addf %7, %11 : vector<8x8x64xf32>
    %13 = arith.negf %12 : vector<8x8x64xf32>
    %14 = math.exp %13 : vector<8x8x64xf32>
    %cst = arith.constant 1.000000e+00 : f32
    %15 = vector.broadcast %cst : f32 to vector<8x8x64xf32>
    %16 = arith.addf %15, %14 : vector<8x8x64xf32>
    %17 = arith.divf %15, %16 : vector<8x8x64xf32>
    %18 = arith.mulf %12, %17 : vector<8x8x64xf32>
    %19 = arith.truncf %18 : vector<8x8x64xf32> to vector<8x8x64xbf16>
    %cst_9 = arith.constant 0.000000e+00 : bf16
    %20 = vector.broadcast %cst_9 : bf16 to vector<1x8x64xbf16>
    %21 = vector.extract_strided_slice %19 {offsets = [0, 0, 0], sizes = [7, 8, 64], strides = [1, 1, 1]} : vector<8x8x64xbf16> to vector<7x8x64xbf16>
    %22 = tpu.concatenate %20, %21 in 0 : vector<1x8x64xbf16>, vector<7x8x64xbf16> -> vector<8x8x64xbf16>
    %23 = vector.extract_strided_slice %19 {offsets = [1, 0, 0], sizes = [7, 8, 64], strides = [1, 1, 1]} : vector<8x8x64xbf16> to vector<7x8x64xbf16>
    %24 = tpu.concatenate %23, %20 in 0 : vector<7x8x64xbf16>, vector<1x8x64xbf16> -> vector<8x8x64xbf16>
    %25 = tpu.concatenate %22, %19, %24 in 2 : vector<8x8x64xbf16>, vector<8x8x64xbf16>, vector<8x8x64xbf16> -> vector<8x8x192xbf16>
    %26 = vector.shape_cast %25 : vector<8x8x192xbf16> to vector<64x192xbf16>
    %c0_10 = arith.constant 0 : index
    %c0_11 = arith.constant 0 : index
    %27 = vector.load %arg4[%c0_10, %c0_11] : memref<192x96xbf16, #tpu.memory_space<vmem>>, vector<192x96xbf16>
    %cst_12 = arith.constant dense<0.000000e+00> : vector<64x96xf32>
    %28 = tpu.matmul %26, %27, %cst_12 {dimension_numbers = #tpu.dot_dimension_numbers<[1], [0], [0], [1], [0, 0, 1, 1], [], []>} : vector<64x192xbf16>, vector<192x96xbf16>, vector<64x96xf32> -> vector<64x96xf32>
    %29 = vector.shape_cast %28 : vector<64x96xf32> to vector<8x8x96xf32>
    %cst_13 = arith.constant 0.000000e+00 : f32
    %30 = vector.broadcast %cst_13 : f32 to vector<8x1x32xf32>
    %31 = vector.extract_strided_slice %29 {offsets = [0, 0, 32], sizes = [8, 8, 32], strides = [1, 1, 1]} : vector<8x8x96xf32> to vector<8x8x32xf32>
    %32 = vector.extract_strided_slice %29 {offsets = [0, 0, 0], sizes = [8, 7, 32], strides = [1, 1, 1]} : vector<8x8x96xf32> to vector<8x7x32xf32>
    %33 = tpu.concatenate %30, %32 in 1 : vector<8x1x32xf32>, vector<8x7x32xf32> -> vector<8x8x32xf32>
    %34 = arith.addf %31, %33 : vector<8x8x32xf32>
    %35 = vector.extract_strided_slice %29 {offsets = [0, 1, 64], sizes = [8, 7, 32], strides = [1, 1, 1]} : vector<8x8x96xf32> to vector<8x7x32xf32>
    %36 = tpu.concatenate %35, %30 in 1 : vector<8x7x32xf32>, vector<8x1x32xf32> -> vector<8x8x32xf32>
    %37 = arith.addf %34, %36 : vector<8x8x32xf32>
    %c0_14 = arith.constant 0 : index
    %c0_15 = arith.constant 0 : index
    %38 = vector.load %arg5[%c0_14, %c0_15] : memref<1x32xf32, #tpu.memory_space<vmem>>, vector<1x32xf32>
    %39 = vector.shape_cast %38 : vector<1x32xf32> to vector<1x1x32xf32>
    %40 = vector.broadcast %39 : vector<1x1x32xf32> to vector<8x8x32xf32>
    %41 = arith.addf %37, %40 : vector<8x8x32xf32>
    %42 = arith.truncf %41 : vector<8x8x32xf32> to vector<8x8x32xbf16>
    %c0_16 = arith.constant 0 : index
    %c0_17 = arith.constant 0 : index
    %c0_18 = arith.constant 0 : index
    %c0_19 = arith.constant 0 : index
    %43 = vector.load %arg6[%c0_16, %c0_17, %c0_18, %c0_19] : memref<1x8x8x32xbf16, #tpu.memory_space<vmem>>, vector<1x8x8x32xbf16>
    %44 = vector.shape_cast %43 : vector<1x8x8x32xbf16> to vector<8x8x32xbf16>
    %45 = vector.shape_cast %42 : vector<8x8x32xbf16> to vector<1x8x8x32xbf16>
    tpu.vector_store %arg6[%c0_16, %c0_17, %c0_18, %c0_19], %45 {strides = array<i32>} : memref<1x8x8x32xbf16, #tpu.memory_space<vmem>>, vector<1x8x8x32xbf16>,
    %46 = vector.shape_cast %41 : vector<8x8x32xf32> to vector<64x32xf32>
    %cst_20 = arith.constant dense<0.000000e+00> : vector<32xf32>
    %47 = vector.multi_reduction <add>, %46, %cst_20 [0] : vector<64x32xf32> to vector<32xf32>
    %48 = vector.shape_cast %47 : vector<32xf32> to vector<1x32xf32>
    %c0_21 = arith.constant 0 : index
    %c0_22 = arith.constant 0 : index
    %c0_23 = arith.constant 0 : index
    %49 = vector.load %arg7[%c0_21, %c0_22, %c0_23] : memref<1x1x32xf32, #tpu.memory_space<vmem>>, vector<1x1x32xf32>
    %50 = vector.shape_cast %49 : vector<1x1x32xf32> to vector<1x32xf32>
    %51 = vector.shape_cast %48 : vector<1x32xf32> to vector<1x1x32xf32>
    tpu.vector_store %arg7[%c0_21, %c0_22, %c0_23], %51 {strides = array<i32>} : memref<1x1x32xf32, #tpu.memory_space<vmem>>, vector<1x1x32xf32>,
    %52 = arith.mulf %46, %46 : vector<64x32xf32>
    %cst_24 = arith.constant dense<0.000000e+00> : vector<32xf32>
    %53 = vector.multi_reduction <add>, %52, %cst_24 [0] : vector<64x32xf32> to vector<32xf32>
    %54 = vector.shape_cast %53 : vector<32xf32> to vector<1x32xf32>
    %c0_25 = arith.constant 0 : index
    %c0_26 = arith.constant 0 : index
    %c0_27 = arith.constant 0 : index
    %55 = vector.load %arg8[%c0_25, %c0_26, %c0_27] : memref<1x1x32xf32, #tpu.memory_space<vmem>>, vector<1x1x32xf32>
    %56 = vector.shape_cast %55 : vector<1x1x32xf32> to vector<1x32xf32>
    %57 = vector.shape_cast %54 : vector<1x32xf32> to vector<1x1x32xf32>
    tpu.vector_store %arg8[%c0_25, %c0_26, %c0_27], %57 {strides = array<i32>} : memref<1x1x32xf32, #tpu.memory_space<vmem>>, vector<1x1x32xf32>,
    return
  }
  func.func @transform_0(%arg0: i32) -> (i32, i32, i32, i32) {
    %c0_i32 = arith.constant 0 : i32
    %c0_i32_0 = arith.constant 0 : i32
    %c0_i32_1 = arith.constant 0 : i32
    %c0_i32_2 = arith.constant 0 : i32
    return %arg0, %c0_i32, %c0_i32_0, %c0_i32_1 : i32, i32, i32, i32
  }
  func.func @transform_1(%arg0: i32) -> (i32, i32, i32) {
    %c0_i32 = arith.constant 0 : i32
    %c0_i32_0 = arith.constant 0 : i32
    %c0_i32_1 = arith.constant 0 : i32
    return %arg0, %c0_i32, %c0_i32_0 : i32, i32, i32
  }
  func.func @transform_2(%arg0: i32) -> (i32, i32, i32) {
    %c0_i32 = arith.constant 0 : i32
    %c0_i32_0 = arith.constant 0 : i32
    %c0_i32_1 = arith.constant 0 : i32
    return %arg0, %c0_i32, %c0_i32_0 : i32, i32, i32
  }
  func.func @transform_3(%arg0: i32) -> (i32, i32) {
    %c0_i32 = arith.constant 0 : i32
    %c0_i32_0 = arith.constant 0 : i32
    %c0_i32_1 = arith.constant 0 : i32
    return %c0_i32, %c0_i32_0 : i32, i32
  }
  func.func @transform_4(%arg0: i32) -> (i32, i32) {
    %c0_i32 = arith.constant 0 : i32
    %c0_i32_0 = arith.constant 0 : i32
    %c0_i32_1 = arith.constant 0 : i32
    return %c0_i32, %c0_i32_0 : i32, i32
  }
  func.func @transform_5(%arg0: i32) -> (i32, i32, i32, i32) {
    %c0_i32 = arith.constant 0 : i32
    %c0_i32_0 = arith.constant 0 : i32
    %c0_i32_1 = arith.constant 0 : i32
    %c0_i32_2 = arith.constant 0 : i32
    return %arg0, %c0_i32, %c0_i32_0, %c0_i32_1 : i32, i32, i32, i32
  }
  func.func @transform_6(%arg0: i32) -> (i32, i32, i32) {
    %c0_i32 = arith.constant 0 : i32
    %c0_i32_0 = arith.constant 0 : i32
    %c0_i32_1 = arith.constant 0 : i32
    return %arg0, %c0_i32, %c0_i32_0 : i32, i32, i32
  }
  func.func @transform_7(%arg0: i32) -> (i32, i32, i32) {
    %c0_i32 = arith.constant 0 : i32
    %c0_i32_0 = arith.constant 0 : i32
    %c0_i32_1 = arith.constant 0 : i32
    return %arg0, %c0_i32, %c0_i32_0 : i32, i32, i32
  }
}

module attributes {stable_mosaic.version = 11 : i64} {
  func.func @kernel(%arg0: i32, %arg1: memref<1x8x8x32xbf16, #tpu.memory_space<vmem>>, %arg2: memref<1x1x32xf32, #tpu.memory_space<vmem>>, %arg3: memref<1x1x32xf32, #tpu.memory_space<vmem>>, %arg4: memref<96x96xbf16, #tpu.memory_space<vmem>>, %arg5: memref<1x32xf32, #tpu.memory_space<vmem>>, %arg6: memref<1x8x8x64xbf16, #tpu.memory_space<vmem>>, %arg7: memref<64x32xbf16, #tpu.memory_space<vmem>>, %arg8: memref<1x32xf32, #tpu.memory_space<vmem>>, %arg9: memref<1x8x8x32xbf16, #tpu.memory_space<vmem>>) attributes {dimension_semantics = [#tpu.dimension_semantics<parallel>], iteration_bounds = array<i64: 2>, scalar_prefetch = 0 : i64, scratch_operands = 0 : i64, tpu.core_type = #tpu.core_type<tc>, window_params = [{transform_indices = @transform_0, window_bounds = array<i64: 1, 8, 8, 32>}, {transform_indices = @transform_1, window_bounds = array<i64: 1, 1, 32>}, {transform_indices = @transform_2, window_bounds = array<i64: 1, 1, 32>}, {pipeline_mode = #tpu.pipeline_mode<synchronous>, transform_indices = @transform_3, window_bounds = array<i64: 96, 96>}, {pipeline_mode = #tpu.pipeline_mode<synchronous>, transform_indices = @transform_4, window_bounds = array<i64: 1, 32>}, {transform_indices = @transform_5, window_bounds = array<i64: 1, 8, 8, 64>}, {pipeline_mode = #tpu.pipeline_mode<synchronous>, transform_indices = @transform_6, window_bounds = array<i64: 64, 32>}, {pipeline_mode = #tpu.pipeline_mode<synchronous>, transform_indices = @transform_7, window_bounds = array<i64: 1, 32>}, {transform_indices = @transform_8, window_bounds = array<i64: 1, 8, 8, 32>}]} {
    %c0 = arith.constant 0 : index
    %c0_0 = arith.constant 0 : index
    %c0_1 = arith.constant 0 : index
    %c0_2 = arith.constant 0 : index
    %0 = vector.load %arg1[%c0, %c0_0, %c0_1, %c0_2] : memref<1x8x8x32xbf16, #tpu.memory_space<vmem>>, vector<1x8x8x32xbf16>
    %1 = vector.shape_cast %0 : vector<1x8x8x32xbf16> to vector<8x8x32xbf16>
    %2 = arith.extf %1 : vector<8x8x32xbf16> to vector<8x8x32xf32>
    %c0_3 = arith.constant 0 : index
    %c0_4 = arith.constant 0 : index
    %c0_5 = arith.constant 0 : index
    %3 = vector.load %arg2[%c0_3, %c0_4, %c0_5] : memref<1x1x32xf32, #tpu.memory_space<vmem>>, vector<1x1x32xf32>
    %4 = vector.shape_cast %3 : vector<1x1x32xf32> to vector<1x32xf32>
    %5 = vector.shape_cast %4 : vector<1x32xf32> to vector<1x1x32xf32>
    %6 = vector.broadcast %5 : vector<1x1x32xf32> to vector<8x8x32xf32>
    %7 = arith.mulf %2, %6 : vector<8x8x32xf32>
    %c0_6 = arith.constant 0 : index
    %c0_7 = arith.constant 0 : index
    %c0_8 = arith.constant 0 : index
    %8 = vector.load %arg3[%c0_6, %c0_7, %c0_8] : memref<1x1x32xf32, #tpu.memory_space<vmem>>, vector<1x1x32xf32>
    %9 = vector.shape_cast %8 : vector<1x1x32xf32> to vector<1x32xf32>
    %10 = vector.shape_cast %9 : vector<1x32xf32> to vector<1x1x32xf32>
    %11 = vector.broadcast %10 : vector<1x1x32xf32> to vector<8x8x32xf32>
    %12 = arith.addf %7, %11 : vector<8x8x32xf32>
    %13 = arith.negf %12 : vector<8x8x32xf32>
    %14 = math.exp %13 : vector<8x8x32xf32>
    %cst = arith.constant 1.000000e+00 : f32
    %15 = vector.broadcast %cst : f32 to vector<8x8x32xf32>
    %16 = arith.addf %15, %14 : vector<8x8x32xf32>
    %17 = arith.divf %15, %16 : vector<8x8x32xf32>
    %18 = arith.mulf %12, %17 : vector<8x8x32xf32>
    %19 = arith.truncf %18 : vector<8x8x32xf32> to vector<8x8x32xbf16>
    %cst_9 = arith.constant 0.000000e+00 : bf16
    %20 = vector.broadcast %cst_9 : bf16 to vector<1x8x32xbf16>
    %21 = vector.extract_strided_slice %19 {offsets = [0, 0, 0], sizes = [7, 8, 32], strides = [1, 1, 1]} : vector<8x8x32xbf16> to vector<7x8x32xbf16>
    %22 = tpu.concatenate %20, %21 in 0 : vector<1x8x32xbf16>, vector<7x8x32xbf16> -> vector<8x8x32xbf16>
    %23 = vector.extract_strided_slice %19 {offsets = [1, 0, 0], sizes = [7, 8, 32], strides = [1, 1, 1]} : vector<8x8x32xbf16> to vector<7x8x32xbf16>
    %24 = tpu.concatenate %23, %20 in 0 : vector<7x8x32xbf16>, vector<1x8x32xbf16> -> vector<8x8x32xbf16>
    %25 = tpu.concatenate %22, %19, %24 in 2 : vector<8x8x32xbf16>, vector<8x8x32xbf16>, vector<8x8x32xbf16> -> vector<8x8x96xbf16>
    %26 = vector.shape_cast %25 : vector<8x8x96xbf16> to vector<64x96xbf16>
    %c0_10 = arith.constant 0 : index
    %c0_11 = arith.constant 0 : index
    %27 = vector.load %arg4[%c0_10, %c0_11] : memref<96x96xbf16, #tpu.memory_space<vmem>>, vector<96x96xbf16>
    %cst_12 = arith.constant dense<0.000000e+00> : vector<64x96xf32>
    %28 = tpu.matmul %26, %27, %cst_12 {dimension_numbers = #tpu.dot_dimension_numbers<[1], [0], [0], [1], [0, 0, 1, 1], [], []>} : vector<64x96xbf16>, vector<96x96xbf16>, vector<64x96xf32> -> vector<64x96xf32>
    %29 = vector.shape_cast %28 : vector<64x96xf32> to vector<8x8x96xf32>
    %cst_13 = arith.constant 0.000000e+00 : f32
    %30 = vector.broadcast %cst_13 : f32 to vector<8x1x32xf32>
    %31 = vector.extract_strided_slice %29 {offsets = [0, 0, 32], sizes = [8, 8, 32], strides = [1, 1, 1]} : vector<8x8x96xf32> to vector<8x8x32xf32>
    %32 = vector.extract_strided_slice %29 {offsets = [0, 0, 0], sizes = [8, 7, 32], strides = [1, 1, 1]} : vector<8x8x96xf32> to vector<8x7x32xf32>
    %33 = tpu.concatenate %30, %32 in 1 : vector<8x1x32xf32>, vector<8x7x32xf32> -> vector<8x8x32xf32>
    %34 = arith.addf %31, %33 : vector<8x8x32xf32>
    %35 = vector.extract_strided_slice %29 {offsets = [0, 1, 64], sizes = [8, 7, 32], strides = [1, 1, 1]} : vector<8x8x96xf32> to vector<8x7x32xf32>
    %36 = tpu.concatenate %35, %30 in 1 : vector<8x7x32xf32>, vector<8x1x32xf32> -> vector<8x8x32xf32>
    %37 = arith.addf %34, %36 : vector<8x8x32xf32>
    %c0_14 = arith.constant 0 : index
    %c0_15 = arith.constant 0 : index
    %38 = vector.load %arg5[%c0_14, %c0_15] : memref<1x32xf32, #tpu.memory_space<vmem>>, vector<1x32xf32>
    %39 = vector.shape_cast %38 : vector<1x32xf32> to vector<1x1x32xf32>
    %40 = vector.broadcast %39 : vector<1x1x32xf32> to vector<8x8x32xf32>
    %41 = arith.addf %37, %40 : vector<8x8x32xf32>
    %c0_16 = arith.constant 0 : index
    %c0_17 = arith.constant 0 : index
    %c0_18 = arith.constant 0 : index
    %c0_19 = arith.constant 0 : index
    %42 = vector.load %arg6[%c0_16, %c0_17, %c0_18, %c0_19] : memref<1x8x8x64xbf16, #tpu.memory_space<vmem>>, vector<1x8x8x64xbf16>
    %43 = vector.shape_cast %42 : vector<1x8x8x64xbf16> to vector<8x8x64xbf16>
    %44 = vector.shape_cast %43 : vector<8x8x64xbf16> to vector<64x64xbf16>
    %c0_20 = arith.constant 0 : index
    %c0_21 = arith.constant 0 : index
    %45 = vector.load %arg7[%c0_20, %c0_21] : memref<64x32xbf16, #tpu.memory_space<vmem>>, vector<64x32xbf16>
    %cst_22 = arith.constant dense<0.000000e+00> : vector<64x32xf32>
    %46 = tpu.matmul %44, %45, %cst_22 {dimension_numbers = #tpu.dot_dimension_numbers<[1], [0], [0], [1], [0, 0, 1, 1], [], []>} : vector<64x64xbf16>, vector<64x32xbf16>, vector<64x32xf32> -> vector<64x32xf32>
    %c0_23 = arith.constant 0 : index
    %c0_24 = arith.constant 0 : index
    %47 = vector.load %arg8[%c0_23, %c0_24] : memref<1x32xf32, #tpu.memory_space<vmem>>, vector<1x32xf32>
    %48 = vector.broadcast %47 : vector<1x32xf32> to vector<64x32xf32>
    %49 = arith.addf %46, %48 : vector<64x32xf32>
    %50 = vector.shape_cast %49 : vector<64x32xf32> to vector<8x8x32xf32>
    %51 = arith.addf %41, %50 : vector<8x8x32xf32>
    %52 = arith.truncf %51 : vector<8x8x32xf32> to vector<8x8x32xbf16>
    %c0_25 = arith.constant 0 : index
    %c0_26 = arith.constant 0 : index
    %c0_27 = arith.constant 0 : index
    %c0_28 = arith.constant 0 : index
    %53 = vector.load %arg9[%c0_25, %c0_26, %c0_27, %c0_28] : memref<1x8x8x32xbf16, #tpu.memory_space<vmem>>, vector<1x8x8x32xbf16>
    %54 = vector.shape_cast %53 : vector<1x8x8x32xbf16> to vector<8x8x32xbf16>
    %55 = vector.shape_cast %52 : vector<8x8x32xbf16> to vector<1x8x8x32xbf16>
    tpu.vector_store %arg9[%c0_25, %c0_26, %c0_27, %c0_28], %55 {strides = array<i32>} : memref<1x8x8x32xbf16, #tpu.memory_space<vmem>>, vector<1x8x8x32xbf16>,
    return
  }
  func.func @transform_0(%arg0: i32) -> (i32, i32, i32, i32) {
    %c0_i32 = arith.constant 0 : i32
    %c0_i32_0 = arith.constant 0 : i32
    %c0_i32_1 = arith.constant 0 : i32
    %c0_i32_2 = arith.constant 0 : i32
    return %arg0, %c0_i32, %c0_i32_0, %c0_i32_1 : i32, i32, i32, i32
  }
  func.func @transform_1(%arg0: i32) -> (i32, i32, i32) {
    %c0_i32 = arith.constant 0 : i32
    %c0_i32_0 = arith.constant 0 : i32
    %c0_i32_1 = arith.constant 0 : i32
    return %arg0, %c0_i32, %c0_i32_0 : i32, i32, i32
  }
  func.func @transform_2(%arg0: i32) -> (i32, i32, i32) {
    %c0_i32 = arith.constant 0 : i32
    %c0_i32_0 = arith.constant 0 : i32
    %c0_i32_1 = arith.constant 0 : i32
    return %arg0, %c0_i32, %c0_i32_0 : i32, i32, i32
  }
  func.func @transform_3(%arg0: i32) -> (i32, i32) {
    %c0_i32 = arith.constant 0 : i32
    %c0_i32_0 = arith.constant 0 : i32
    %c0_i32_1 = arith.constant 0 : i32
    return %c0_i32, %c0_i32_0 : i32, i32
  }
  func.func @transform_4(%arg0: i32) -> (i32, i32) {
    %c0_i32 = arith.constant 0 : i32
    %c0_i32_0 = arith.constant 0 : i32
    %c0_i32_1 = arith.constant 0 : i32
    return %c0_i32, %c0_i32_0 : i32, i32
  }
  func.func @transform_5(%arg0: i32) -> (i32, i32, i32, i32) {
    %c0_i32 = arith.constant 0 : i32
    %c0_i32_0 = arith.constant 0 : i32
    %c0_i32_1 = arith.constant 0 : i32
    %c0_i32_2 = arith.constant 0 : i32
    return %arg0, %c0_i32, %c0_i32_0, %c0_i32_1 : i32, i32, i32, i32
  }
  func.func @transform_6(%arg0: i32) -> (i32, i32) {
    %c0_i32 = arith.constant 0 : i32
    %c0_i32_0 = arith.constant 0 : i32
    %c0_i32_1 = arith.constant 0 : i32
    return %c0_i32, %c0_i32_0 : i32, i32
  }
  func.func @transform_7(%arg0: i32) -> (i32, i32) {
    %c0_i32 = arith.constant 0 : i32
    %c0_i32_0 = arith.constant 0 : i32
    %c0_i32_1 = arith.constant 0 : i32
    return %c0_i32, %c0_i32_0 : i32, i32
  }
  func.func @transform_8(%arg0: i32) -> (i32, i32, i32, i32) {
    %c0_i32 = arith.constant 0 : i32
    %c0_i32_0 = arith.constant 0 : i32
    %c0_i32_1 = arith.constant 0 : i32
    %c0_i32_2 = arith.constant 0 : i32
    return %arg0, %c0_i32, %c0_i32_0, %c0_i32_1 : i32, i32, i32, i32
  }
}

module attributes {stable_mosaic.version = 11 : i64} {
  func.func @kernel(%arg0: i32, %arg1: memref<1x8x8x32xbf16, #tpu.memory_space<vmem>>, %arg2: memref<96x96xbf16, #tpu.memory_space<vmem>>, %arg3: memref<1x32xf32, #tpu.memory_space<vmem>>, %arg4: memref<1x16x16x32xbf16, #tpu.memory_space<vmem>>) attributes {dimension_semantics = [#tpu.dimension_semantics<parallel>], iteration_bounds = array<i64: 2>, scalar_prefetch = 0 : i64, scratch_operands = 0 : i64, tpu.core_type = #tpu.core_type<tc>, window_params = [{transform_indices = @transform_0, window_bounds = array<i64: 1, 8, 8, 32>}, {pipeline_mode = #tpu.pipeline_mode<synchronous>, transform_indices = @transform_1, window_bounds = array<i64: 96, 96>}, {pipeline_mode = #tpu.pipeline_mode<synchronous>, transform_indices = @transform_2, window_bounds = array<i64: 1, 32>}, {transform_indices = @transform_3, window_bounds = array<i64: 1, 16, 16, 32>}]} {
    %c0 = arith.constant 0 : index
    %c0_0 = arith.constant 0 : index
    %c0_1 = arith.constant 0 : index
    %c0_2 = arith.constant 0 : index
    %0 = vector.load %arg1[%c0, %c0_0, %c0_1, %c0_2] : memref<1x8x8x32xbf16, #tpu.memory_space<vmem>>, vector<1x8x8x32xbf16>
    %1 = vector.shape_cast %0 : vector<1x8x8x32xbf16> to vector<8x8x32xbf16>
    %2 = vector.shape_cast %1 : vector<8x8x32xbf16> to vector<8x1x8x32xbf16>
    %3 = vector.shape_cast %2 : vector<8x1x8x32xbf16> to vector<8x1x8x32xbf16>
    %4 = vector.broadcast %3 : vector<8x1x8x32xbf16> to vector<8x2x8x32xbf16>
    %5 = vector.shape_cast %4 : vector<8x2x8x32xbf16> to vector<16x8x32xbf16>
    %6 = vector.shape_cast %5 : vector<16x8x32xbf16> to vector<16x8x1x32xbf16>
    %7 = vector.shape_cast %6 : vector<16x8x1x32xbf16> to vector<16x8x1x32xbf16>
    %8 = vector.broadcast %7 : vector<16x8x1x32xbf16> to vector<16x8x2x32xbf16>
    %9 = vector.shape_cast %8 : vector<16x8x2x32xbf16> to vector<16x16x32xbf16>
    %cst = arith.constant 0.000000e+00 : bf16
    %10 = vector.broadcast %cst : bf16 to vector<1x16x32xbf16>
    %11 = vector.extract_strided_slice %9 {offsets = [0, 0, 0], sizes = [15, 16, 32], strides = [1, 1, 1]} : vector<16x16x32xbf16> to vector<15x16x32xbf16>
    %12 = tpu.concatenate %10, %11 in 0 : vector<1x16x32xbf16>, vector<15x16x32xbf16> -> vector<16x16x32xbf16>
    %13 = vector.extract_strided_slice %9 {offsets = [1, 0, 0], sizes = [15, 16, 32], strides = [1, 1, 1]} : vector<16x16x32xbf16> to vector<15x16x32xbf16>
    %14 = tpu.concatenate %13, %10 in 0 : vector<15x16x32xbf16>, vector<1x16x32xbf16> -> vector<16x16x32xbf16>
    %15 = tpu.concatenate %12, %9, %14 in 2 : vector<16x16x32xbf16>, vector<16x16x32xbf16>, vector<16x16x32xbf16> -> vector<16x16x96xbf16>
    %16 = vector.shape_cast %15 : vector<16x16x96xbf16> to vector<256x96xbf16>
    %c0_3 = arith.constant 0 : index
    %c0_4 = arith.constant 0 : index
    %17 = vector.load %arg2[%c0_3, %c0_4] : memref<96x96xbf16, #tpu.memory_space<vmem>>, vector<96x96xbf16>
    %cst_5 = arith.constant dense<0.000000e+00> : vector<256x96xf32>
    %18 = tpu.matmul %16, %17, %cst_5 {dimension_numbers = #tpu.dot_dimension_numbers<[1], [0], [0], [1], [0, 0, 1, 1], [], []>} : vector<256x96xbf16>, vector<96x96xbf16>, vector<256x96xf32> -> vector<256x96xf32>
    %19 = vector.shape_cast %18 : vector<256x96xf32> to vector<16x16x96xf32>
    %cst_6 = arith.constant 0.000000e+00 : f32
    %20 = vector.broadcast %cst_6 : f32 to vector<16x1x32xf32>
    %21 = vector.extract_strided_slice %19 {offsets = [0, 0, 32], sizes = [16, 16, 32], strides = [1, 1, 1]} : vector<16x16x96xf32> to vector<16x16x32xf32>
    %22 = vector.extract_strided_slice %19 {offsets = [0, 0, 0], sizes = [16, 15, 32], strides = [1, 1, 1]} : vector<16x16x96xf32> to vector<16x15x32xf32>
    %23 = tpu.concatenate %20, %22 in 1 : vector<16x1x32xf32>, vector<16x15x32xf32> -> vector<16x16x32xf32>
    %24 = arith.addf %21, %23 : vector<16x16x32xf32>
    %25 = vector.extract_strided_slice %19 {offsets = [0, 1, 64], sizes = [16, 15, 32], strides = [1, 1, 1]} : vector<16x16x96xf32> to vector<16x15x32xf32>
    %26 = tpu.concatenate %25, %20 in 1 : vector<16x15x32xf32>, vector<16x1x32xf32> -> vector<16x16x32xf32>
    %27 = arith.addf %24, %26 : vector<16x16x32xf32>
    %c0_7 = arith.constant 0 : index
    %c0_8 = arith.constant 0 : index
    %28 = vector.load %arg3[%c0_7, %c0_8] : memref<1x32xf32, #tpu.memory_space<vmem>>, vector<1x32xf32>
    %29 = vector.shape_cast %28 : vector<1x32xf32> to vector<1x1x32xf32>
    %30 = vector.broadcast %29 : vector<1x1x32xf32> to vector<16x16x32xf32>
    %31 = arith.addf %27, %30 : vector<16x16x32xf32>
    %32 = arith.truncf %31 : vector<16x16x32xf32> to vector<16x16x32xbf16>
    %c0_9 = arith.constant 0 : index
    %c0_10 = arith.constant 0 : index
    %c0_11 = arith.constant 0 : index
    %c0_12 = arith.constant 0 : index
    %33 = vector.load %arg4[%c0_9, %c0_10, %c0_11, %c0_12] : memref<1x16x16x32xbf16, #tpu.memory_space<vmem>>, vector<1x16x16x32xbf16>
    %34 = vector.shape_cast %33 : vector<1x16x16x32xbf16> to vector<16x16x32xbf16>
    %35 = vector.shape_cast %32 : vector<16x16x32xbf16> to vector<1x16x16x32xbf16>
    tpu.vector_store %arg4[%c0_9, %c0_10, %c0_11, %c0_12], %35 {strides = array<i32>} : memref<1x16x16x32xbf16, #tpu.memory_space<vmem>>, vector<1x16x16x32xbf16>,
    return
  }
  func.func @transform_0(%arg0: i32) -> (i32, i32, i32, i32) {
    %c0_i32 = arith.constant 0 : i32
    %c0_i32_0 = arith.constant 0 : i32
    %c0_i32_1 = arith.constant 0 : i32
    %c0_i32_2 = arith.constant 0 : i32
    return %arg0, %c0_i32, %c0_i32_0, %c0_i32_1 : i32, i32, i32, i32
  }
  func.func @transform_1(%arg0: i32) -> (i32, i32) {
    %c0_i32 = arith.constant 0 : i32
    %c0_i32_0 = arith.constant 0 : i32
    %c0_i32_1 = arith.constant 0 : i32
    return %c0_i32, %c0_i32_0 : i32, i32
  }
  func.func @transform_2(%arg0: i32) -> (i32, i32) {
    %c0_i32 = arith.constant 0 : i32
    %c0_i32_0 = arith.constant 0 : i32
    %c0_i32_1 = arith.constant 0 : i32
    return %c0_i32, %c0_i32_0 : i32, i32
  }
  func.func @transform_3(%arg0: i32) -> (i32, i32, i32, i32) {
    %c0_i32 = arith.constant 0 : i32
    %c0_i32_0 = arith.constant 0 : i32
    %c0_i32_1 = arith.constant 0 : i32
    %c0_i32_2 = arith.constant 0 : i32
    return %arg0, %c0_i32, %c0_i32_0, %c0_i32_1 : i32, i32, i32, i32
  }
}

module attributes {stable_mosaic.version = 11 : i64} {
  func.func @kernel(%arg0: i32, %arg1: memref<1x16x16x32xbf16, #tpu.memory_space<vmem>>, %arg2: memref<96x9xbf16, #tpu.memory_space<vmem>>, %arg3: memref<1x3xf32, #tpu.memory_space<vmem>>, %arg4: memref<1x16x16x3xf32, #tpu.memory_space<vmem>>) attributes {dimension_semantics = [#tpu.dimension_semantics<parallel>], iteration_bounds = array<i64: 2>, scalar_prefetch = 0 : i64, scratch_operands = 0 : i64, tpu.core_type = #tpu.core_type<tc>, window_params = [{transform_indices = @transform_0, window_bounds = array<i64: 1, 16, 16, 32>}, {pipeline_mode = #tpu.pipeline_mode<synchronous>, transform_indices = @transform_1, window_bounds = array<i64: 96, 9>}, {pipeline_mode = #tpu.pipeline_mode<synchronous>, transform_indices = @transform_2, window_bounds = array<i64: 1, 3>}, {transform_indices = @transform_3, window_bounds = array<i64: 1, 16, 16, 3>}]} {
    %c0 = arith.constant 0 : index
    %c0_0 = arith.constant 0 : index
    %c0_1 = arith.constant 0 : index
    %c0_2 = arith.constant 0 : index
    %0 = vector.load %arg1[%c0, %c0_0, %c0_1, %c0_2] : memref<1x16x16x32xbf16, #tpu.memory_space<vmem>>, vector<1x16x16x32xbf16>
    %1 = vector.shape_cast %0 : vector<1x16x16x32xbf16> to vector<16x16x32xbf16>
    %cst = arith.constant 0.000000e+00 : bf16
    %2 = vector.broadcast %cst : bf16 to vector<1x16x32xbf16>
    %3 = vector.extract_strided_slice %1 {offsets = [0, 0, 0], sizes = [15, 16, 32], strides = [1, 1, 1]} : vector<16x16x32xbf16> to vector<15x16x32xbf16>
    %4 = tpu.concatenate %2, %3 in 0 : vector<1x16x32xbf16>, vector<15x16x32xbf16> -> vector<16x16x32xbf16>
    %5 = vector.extract_strided_slice %1 {offsets = [1, 0, 0], sizes = [15, 16, 32], strides = [1, 1, 1]} : vector<16x16x32xbf16> to vector<15x16x32xbf16>
    %6 = tpu.concatenate %5, %2 in 0 : vector<15x16x32xbf16>, vector<1x16x32xbf16> -> vector<16x16x32xbf16>
    %7 = tpu.concatenate %4, %1, %6 in 2 : vector<16x16x32xbf16>, vector<16x16x32xbf16>, vector<16x16x32xbf16> -> vector<16x16x96xbf16>
    %8 = vector.shape_cast %7 : vector<16x16x96xbf16> to vector<256x96xbf16>
    %c0_3 = arith.constant 0 : index
    %c0_4 = arith.constant 0 : index
    %9 = vector.load %arg2[%c0_3, %c0_4] : memref<96x9xbf16, #tpu.memory_space<vmem>>, vector<96x9xbf16>
    %cst_5 = arith.constant dense<0.000000e+00> : vector<256x9xf32>
    %10 = tpu.matmul %8, %9, %cst_5 {dimension_numbers = #tpu.dot_dimension_numbers<[1], [0], [0], [1], [0, 0, 1, 1], [], []>} : vector<256x96xbf16>, vector<96x9xbf16>, vector<256x9xf32> -> vector<256x9xf32>
    %11 = vector.shape_cast %10 : vector<256x9xf32> to vector<16x16x9xf32>
    %cst_6 = arith.constant 0.000000e+00 : f32
    %12 = vector.broadcast %cst_6 : f32 to vector<16x1x3xf32>
    %13 = vector.extract_strided_slice %11 {offsets = [0, 0, 3], sizes = [16, 16, 3], strides = [1, 1, 1]} : vector<16x16x9xf32> to vector<16x16x3xf32>
    %14 = vector.extract_strided_slice %11 {offsets = [0, 0, 0], sizes = [16, 15, 3], strides = [1, 1, 1]} : vector<16x16x9xf32> to vector<16x15x3xf32>
    %15 = tpu.concatenate %12, %14 in 1 : vector<16x1x3xf32>, vector<16x15x3xf32> -> vector<16x16x3xf32>
    %16 = arith.addf %13, %15 : vector<16x16x3xf32>
    %17 = vector.extract_strided_slice %11 {offsets = [0, 1, 6], sizes = [16, 15, 3], strides = [1, 1, 1]} : vector<16x16x9xf32> to vector<16x15x3xf32>
    %18 = tpu.concatenate %17, %12 in 1 : vector<16x15x3xf32>, vector<16x1x3xf32> -> vector<16x16x3xf32>
    %19 = arith.addf %16, %18 : vector<16x16x3xf32>
    %c0_7 = arith.constant 0 : index
    %c0_8 = arith.constant 0 : index
    %20 = vector.load %arg3[%c0_7, %c0_8] : memref<1x3xf32, #tpu.memory_space<vmem>>, vector<1x3xf32>
    %21 = vector.shape_cast %20 : vector<1x3xf32> to vector<1x1x3xf32>
    %22 = vector.broadcast %21 : vector<1x1x3xf32> to vector<16x16x3xf32>
    %23 = arith.addf %19, %22 : vector<16x16x3xf32>
    %c0_9 = arith.constant 0 : index
    %c0_10 = arith.constant 0 : index
    %c0_11 = arith.constant 0 : index
    %c0_12 = arith.constant 0 : index
    %24 = vector.load %arg4[%c0_9, %c0_10, %c0_11, %c0_12] : memref<1x16x16x3xf32, #tpu.memory_space<vmem>>, vector<1x16x16x3xf32>
    %25 = vector.shape_cast %24 : vector<1x16x16x3xf32> to vector<16x16x3xf32>
    %26 = vector.shape_cast %23 : vector<16x16x3xf32> to vector<1x16x16x3xf32>
    tpu.vector_store %arg4[%c0_9, %c0_10, %c0_11, %c0_12], %26 {strides = array<i32>} : memref<1x16x16x3xf32, #tpu.memory_space<vmem>>, vector<1x16x16x3xf32>,
    return
  }
  func.func @transform_0(%arg0: i32) -> (i32, i32, i32, i32) {
    %c0_i32 = arith.constant 0 : i32
    %c0_i32_0 = arith.constant 0 : i32
    %c0_i32_1 = arith.constant 0 : i32
    %c0_i32_2 = arith.constant 0 : i32
    return %arg0, %c0_i32, %c0_i32_0, %c0_i32_1 : i32, i32, i32, i32
  }
  func.func @transform_1(%arg0: i32) -> (i32, i32) {
    %c0_i32 = arith.constant 0 : i32
    %c0_i32_0 = arith.constant 0 : i32
    %c0_i32_1 = arith.constant 0 : i32
    return %c0_i32, %c0_i32_0 : i32, i32
  }
  func.func @transform_2(%arg0: i32) -> (i32, i32) {
    %c0_i32 = arith.constant 0 : i32
    %c0_i32_0 = arith.constant 0 : i32
    %c0_i32_1 = arith.constant 0 : i32
    return %c0_i32, %c0_i32_0 : i32, i32
  }
  func.func @transform_3(%arg0: i32) -> (i32, i32, i32, i32) {
    %c0_i32 = arith.constant 0 : i32
    %c0_i32_0 = arith.constant 0 : i32
    %c0_i32_1 = arith.constant 0 : i32
    %c0_i32_2 = arith.constant 0 : i32
    return %arg0, %c0_i32, %c0_i32_0, %c0_i32_1 : i32, i32, i32, i32
  }
}

</mosaic_0001>

<llo_original>
// kernel: decoder_forward.8
$region0: #{decoder_forward.8}
  #allocation0 [shape = 'u32[]', space=smem, size = 0x4, offset = 0x4, fixed_abs, tag = 'smem constant byte address 0x4 - core index']
  #allocation1 [shape = 'u32[144,128]{1,0:T(1,128)}', space=vmem, size = 0x12000, scoped, tag = 'internal scratch']
  %s0 = inlined_call_operand.vmem [shape: f32[2,4,4,64], index: 0, kind: input, shape index: {}]
  %s1 = inlined_call_operand.vmem [shape: f32[2,1,64], index: 1, kind: output, shape index: {0}]
  %s2 = inlined_call_operand.vmem [shape: f32[2,1,64], index: 2, kind: output, shape index: {1}]
  %3 = xla_tuple %s1, %s2
  %s4 = sld [smem:[#allocation0]]
  $region45: #{decoder_forward.8} parent=0
    _
  %s6 = ssub.s32 1, %s4
  %s7 = scalar_select 0, %s6, %s4
  loop: start=0, step=1, limit=4
  $region2: #{decoder_forward.8} parent=0 // loop_pre_header
    _
  $region3: #{decoder_forward.8} parent=0 // loop_header
    %s9 = sphi 0, %s13
    %p10 = scmp.ge.s32.totalorder %s9, 4
    %s19 = sphi 0, %s21
    %s22 = sphi 0, %s19
    %s23 = sphi 0, %s22
    %s39 = sphi 0, %s23
    %s45 = sphi 0, %s47
    %s48 = sphi 0, %s45
    %s49 = sphi 0, %s48
    %s65 = sphi 0, %s49
    %s71 = sphi 0, %s73
    %s74 = sphi 0, %s71
    %s75 = sphi 0, %s74
    %s91 = sphi 0, %s75
  $region4: #{decoder_forward.8} parent=0 // loop_header_branch
    %12 = sbr.rel (%p10) target = $region8
  $region5: #{decoder_forward.8} parent=0 // loop_body
    %s14 = ssub.s32 %s9, 1
    %s15 = ssub.s32 %s9, 2
    %s16 = sadd.s32 %s9, 1
    %s17 = ssub.s32 %s9, %s16
    %p18 = scmp.eq.s32.totalorder %s17, 0
    %s20 = sadd.s32 %s19, 1
    %s21 = scalar_select %p18, %s19, %s20
    %p24 = pneg %p18
    %p25 = scmp.eq.s32.totalorder %s9, 1
    %p26 = por %p24, %p25
    %p27 = scmp.ne.s32.totalorder %s19, %s22
    %p28 = scmp.eq.s32.totalorder %s9, 0
    %p29 = por %p27, %p28
    %p30 = scmp.ne.s32.totalorder %s19, %s22
    %p31 = scmp.eq.s32.totalorder %s14, 1
    %p32 = por %p30, %p31
    %p33 = scmp.ne.s32.totalorder %s22, %s23
    %p34 = scmp.eq.s32.totalorder %s14, 0
    %p35 = por %p33, %p34
    %p36 = scmp.ne.s32.totalorder %s22, %s23
    %p37 = scmp.eq.s32.totalorder %s15, 1
    %p38 = por %p36, %p37
    %p40 = scmp.ne.s32.totalorder %s23, %s39
    %p41 = scmp.eq.s32.totalorder %s15, 0
    %p42 = por %p40, %p41
    %s43 = ssub.s32 %s9, %s16
    %p44 = scmp.eq.s32.totalorder %s43, 0
    %s46 = sadd.s32 %s45, 1
    %s47 = scalar_select %p44, %s45, %s46
    %p50 = pneg %p44
    %p51 = scmp.eq.s32.totalorder %s9, 1
    %p52 = por %p50, %p51
    %p53 = scmp.ne.s32.totalorder %s45, %s48
    %p54 = scmp.eq.s32.totalorder %s9, 0
    %p55 = por %p53, %p54
    %p56 = scmp.ne.s32.totalorder %s45, %s48
    %p57 = scmp.eq.s32.totalorder %s14, 1
    %p58 = por %p56, %p57
    %p59 = scmp.ne.s32.totalorder %s48, %s49
    %p60 = scmp.eq.s32.totalorder %s14, 0
    %p61 = por %p59, %p60
    %p62 = scmp.ne.s32.totalorder %s48, %s49
    %p63 = scmp.eq.s32.totalorder %s15, 1
    %p64 = por %p62, %p63
    %p66 = scmp.ne.s32.totalorder %s49, %s65
    %p67 = scmp.eq.s32.totalorder %s15, 0
    %p68 = por %p66, %p67
    %s69 = ssub.s32 %s9, %s16
    %p70 = scmp.eq.s32.totalorder %s69, 0
    %s72 = sadd.s32 %s71, 1
    %s73 = scalar_select %p70, %s71, %s72
    %p76 = pneg %p70
    %p77 = scmp.eq.s32.totalorder %s9, 1
    %p78 = por %p76, %p77
    %p79 = scmp.ne.s32.totalorder %s71, %s74
    %p80 = scmp.eq.s32.totalorder %s9, 0
    %p81 = por %p79, %p80
    %p82 = scmp.ne.s32.totalorder %s71, %s74
    %p83 = scmp.eq.s32.totalorder %s14, 1
    %p84 = por %p82, %p83
    %p85 = scmp.ne.s32.totalorder %s74, %s75
    %p86 = scmp.eq.s32.totalorder %s14, 0
    %p87 = por %p85, %p86
    %p88 = scmp.ne.s32.totalorder %s74, %s75
    %p89 = scmp.eq.s32.totalorder %s15, 1
    %p90 = por %p88, %p89
    %p92 = scmp.ne.s32.totalorder %s75, %s91
    %p93 = scmp.eq.s32.totalorder %s15, 0
    %p94 = por %p92, %p93
    %p95 = scmp.le.s32.totalorder 1, %s9
    %p96 = scmp.lt.s32.totalorder %s9, 3
    %p97 = pnand %p95, %p96
    %p98 = pneg %p97
    // Predicated region
    $region9: #{decoder_forward.8} parent=5 // pred_check
      _
    $region10: #{decoder_forward.8} parent=5 // pred_check_branch
      %100 = sbr.rel (%p97) target = $region12
    $region11: #{decoder_forward.8} parent=5 // pred_region
      %s101 = ssub.s32 %s9, 1
    $region12: #{decoder_forward.8} parent=5 // pred_fallthru
      _
    %p102 = scmp.lt.s32.totalorder %s9, 2
    // Predicated region
    $region13: #{decoder_forward.8} parent=5 // pred_check
      %p103 = pneg %p102
    $region14: #{decoder_forward.8} parent=5 // pred_check_branch
      %105 = sbr.rel (%p103) target = $region16
    $region15: #{decoder_forward.8} parent=5 // pred_region
      // Predicated region
      $region17: #{decoder_forward.8} parent=15 // pred_check
        %p106 = pneg %p29
      $region18: #{decoder_forward.8} parent=15 // pred_check_branch
        %108 = sbr.rel (%p106) target = $region20
      $region19: #{decoder_forward.8} parent=15 // pred_region
        %p109 = scmp.lt.s32.totalorder %s9, 1
        %s110 = scalar_select %p109, %s9, 1
        %s111 = smul.addr %s110, 4
        %s112 = smul.addr %s111, 4
        %s113 = scalar_lea.vmem %s0, %s112
      $region20: #{decoder_forward.8} parent=15 // pred_fallthru
        _
    $region16: #{decoder_forward.8} parent=5 // pred_fallthru
      _
    %p114 = scmp.le.s32.totalorder 1, %s9
    %p115 = scmp.lt.s32.totalorder %s9, 3
    %p116 = pnand %p114, %p115
    %p117 = pneg %p116
    // Predicated region
    $region21: #{decoder_forward.8} parent=5 // pred_check
      _
    $region22: #{decoder_forward.8} parent=5 // pred_check_branch
      %119 = sbr.rel (%p116) target = $region24
    $region23: #{decoder_forward.8} parent=5 // pred_region
      %s120 = ssub.s32 %s9, 1
      %p121 = scmp.lt.s32.totalorder %s14, 1
      %s122 = scalar_select %p121, %s14, 1
      %s123 = smul.addr %s122, 4
      %s124 = smul.addr %s123, 4
      %s125 = scalar_lea.vmem %s0, %s124
      %p126 = pneg %p35
      %p127 = pneg %p32
      %p128 = pneg %p61
      %p129 = pneg %p58
      %p130 = scmp.lt.s32.totalorder %s14, 1
      %s131 = scalar_select %p130, %s14, 1
      %s132 = scalar_lea.vmem %s1, %s131
      %p133 = pneg %p87
      %p134 = pneg %p84
      %p135 = scmp.lt.s32.totalorder %s14, 1
      %s136 = scalar_select %p135, %s14, 1
      %s137 = scalar_lea.vmem %s2, %s136
      %p138 = scmp.lt.s32.totalorder %s14, 1
      %s139 = scalar_select %p138, %s14, 1
      %s140 = smul.addr %s139, 4
      %s141 = smul.addr %s140, 4
      %s142 = scalar_lea.vmem %s0, %s141
      %p143 = scmp.lt.s32.totalorder %s14, 1
      %s144 = scalar_select %p143, %s14, 1
      %s145 = scalar_lea.vmem %s1, %s144
      %p146 = scmp.lt.s32.totalorder %s14, 1
      %s147 = scalar_select %p146, %s14, 1
      %s148 = scalar_lea.vmem %s2, %s147
      %v149 = vld [vmem:[%s142] sm:$0xf]
      %v150 = vld [vmem:[%s142 + $0x4] sm:$0xf]
      %v151 = vld [vmem:[%s142 + $0x8] sm:$0xf]
      %v152 = vld [vmem:[%s142 + $0xc] sm:$0xf]
      %v157 = vcombine.low %v149, %v150
      %v158 = vcombine.low %v151, %v152
      %vm161 = vcmask 523264
      %v162 = vsel %vm161, %v157, 0.0
      %v163 = vsel %vm161, %v158, 0.0
      %v164 = vadd.f32 %v162, %v163
      %v165 = vrot.slane %v164, 4
      %v166 = vadd.f32 %v164, %v165
      %v167 = vrot.slane %v166, 2
      %v168 = vadd.f32 %v166, %v167
      %v169 = vrot.slane %v168, 1
      %v170 = vadd.f32 %v168, %v169
      %vm171 = vcmask 516096
      %172 = vst.msk [vmem:[%s145] sm:$0x1] %vm171, %v170
      %v173 = vmul.f32 %v149, %v149
      %v174 = vmul.f32 %v150, %v150
      %v175 = vmul.f32 %v151, %v151
      %v176 = vmul.f32 %v152, %v152
      %v181 = vcombine.low %v173, %v174
      %v182 = vcombine.low %v175, %v176
      %v185 = vsel %vm161, %v181, 0.0
      %v186 = vsel %vm161, %v182, 0.0
      %v187 = vadd.f32 %v185, %v186
      %v188 = vrot.slane %v187, 4
      %v189 = vadd.f32 %v187, %v188
      %v190 = vrot.slane %v189, 2
      %v191 = vadd.f32 %v189, %v190
      %v192 = vrot.slane %v191, 1
      %v193 = vadd.f32 %v191, %v192
      %194 = vst.msk [vmem:[%s148] sm:$0x1] %vm171, %v193
      %p195 = scmp.lt.s32.totalorder %s14, 1
      %s196 = scalar_select %p195, %s14, 1
      %s197 = scalar_lea.vmem %s1, %s196
      %p198 = scmp.lt.s32.totalorder %s14, 1
      %s199 = scalar_select %p198, %s14, 1
      %s200 = scalar_lea.vmem %s2, %s199
      // Predicated region
      $region25: #{decoder_forward.8} parent=23 // pred_check
        %p201 = pneg %p58
      $region26: #{decoder_forward.8} parent=23 // pred_check_branch
        %203 = sbr.rel (%p201) target = $region28
      $region27: #{decoder_forward.8} parent=23 // pred_region
        _
      $region28: #{decoder_forward.8} parent=23 // pred_fallthru
        _
      // Predicated region
      $region29: #{decoder_forward.8} parent=23 // pred_check
        %p204 = pneg %p84
      $region30: #{decoder_forward.8} parent=23 // pred_check_branch
        %206 = sbr.rel (%p204) target = $region32
      $region31: #{decoder_forward.8} parent=23 // pred_region
        _
      $region32: #{decoder_forward.8} parent=23 // pred_fallthru
        _
    $region24: #{decoder_forward.8} parent=5 // pred_fallthru
      _
    %p207 = scmp.le.s32.totalorder 2, %s9
    // Predicated region
    $region33: #{decoder_forward.8} parent=5 // pred_check
      %p208 = pneg %p207
    $region34: #{decoder_forward.8} parent=5 // pred_check_branch
      %210 = sbr.rel (%p208) target = $region36
    $region35: #{decoder_forward.8} parent=5 // pred_region
      %s211 = ssub.s32 %s9, 2
      // Predicated region
      $region37: #{decoder_forward.8} parent=35 // pred_check
        %p212 = pneg %p64
      $region38: #{decoder_forward.8} parent=35 // pred_check_branch
        %214 = sbr.rel (%p212) target = $region40
      $region39: #{decoder_forward.8} parent=35 // pred_region
        %p215 = scmp.lt.s32.totalorder %s15, 1
        %s216 = scalar_select %p215, %s15, 1
        %s217 = scalar_lea.vmem %s1, %s216
      $region40: #{decoder_forward.8} parent=35 // pred_fallthru
        _
      // Predicated region
      $region41: #{decoder_forward.8} parent=35 // pred_check
        %p218 = pneg %p90
      $region42: #{decoder_forward.8} parent=35 // pred_check_branch
        %220 = sbr.rel (%p218) target = $region44
      $region43: #{decoder_forward.8} parent=35 // pred_region
        %p221 = scmp.lt.s32.totalorder %s15, 1
        %s222 = scalar_select %p221, %s15, 1
        %s223 = scalar_lea.vmem %s2, %s222
      $region44: #{decoder_forward.8} parent=35 // pred_fallthru
        _
    $region36: #{decoder_forward.8} parent=5 // pred_fallthru
      _
  $region6: #{decoder_forward.8} parent=0 // loop_footer
    %s13 = sadd.s32 1, %s9
  $region7: #{decoder_forward.8} parent=0 // loop_footer_branch
    %8 = sbr.rel target = $region3
  $region8: #{decoder_forward.8} parent=0 // loop_exit
    _

// kernel: decoder_forward.10
$region0: #{decoder_forward.10}
  #allocation0 [shape = 'u32[]', space=smem, size = 0x4, offset = 0x4, fixed_abs, tag = 'smem constant byte address 0x4 - core index']
  #allocation1 [shape = 'u32[144,128]{1,0:T(1,128)}', space=vmem, size = 0x12000, scoped, tag = 'internal scratch']
  %s0 = inlined_call_operand.vmem [shape: bf16[2,4,4,64], index: 0, kind: input, shape index: {}]
  %s1 = inlined_call_operand.vmem [shape: f32[2,1,64], index: 1, kind: input, shape index: {}]
  %s2 = inlined_call_operand.vmem [shape: f32[2,1,64], index: 2, kind: input, shape index: {}]
  %s3 = inlined_call_operand.vmem [shape: bf16[192,192], index: 3, kind: input, shape index: {}]
  %s4 = inlined_call_operand.vmem [shape: f32[1,64], index: 4, kind: input, shape index: {}]
  %s5 = inlined_call_operand.vmem [shape: f32[2,4,4,64], index: 5, kind: input, shape index: {}]
  %s6 = inlined_call_operand.vmem [shape: bf16[2,4,4,64], index: 6, kind: output, shape index: {}]
  %s7 = sld [smem:[#allocation0]]
  $region57: #{decoder_forward.10} parent=0
    _
  %s9 = ssub.s32 1, %s7
  %s10 = scalar_select 0, %s9, %s7
  loop: start=0, step=1, limit=4
  $region2: #{decoder_forward.10} parent=0 // loop_pre_header
    _
  $region3: #{decoder_forward.10} parent=0 // loop_header
    %s12 = sphi 0, %s16
    %p13 = scmp.ge.s32.totalorder %s12, 4
    %s22 = sphi 0, %s24
    %s25 = sphi 0, %s22
    %s26 = sphi 0, %s25
    %s42 = sphi 0, %s26
    %s48 = sphi 0, %s50
    %s51 = sphi 0, %s48
    %s52 = sphi 0, %s51
    %s68 = sphi 0, %s52
    %s74 = sphi 0, %s76
    %s77 = sphi 0, %s74
    %s78 = sphi 0, %s77
    %s94 = sphi 0, %s78
    %s98 = sphi 0, %s98
    %s100 = sphi 0, %s98
    %s101 = sphi 0, %s100
    %s115 = sphi 0, %s101
    %s119 = sphi 0, %s119
    %s121 = sphi 0, %s119
    %s122 = sphi 0, %s121
    %s136 = sphi 0, %s122
    %s142 = sphi 0, %s144
    %s145 = sphi 0, %s142
    %s146 = sphi 0, %s145
    %s162 = sphi 0, %s146
    %s168 = sphi 0, %s170
    %s171 = sphi 0, %s168
    %s172 = sphi 0, %s171
    %s188 = sphi 0, %s172
  $region4: #{decoder_forward.10} parent=0 // loop_header_branch
    %15 = sbr.rel (%p13) target = $region8
  $region5: #{decoder_forward.10} parent=0 // loop_body
    %s17 = ssub.s32 %s12, 1
    %s18 = ssub.s32 %s12, 2
    %s19 = sadd.s32 %s12, 1
    %s20 = ssub.s32 %s12, %s19
    %p21 = scmp.eq.s32.totalorder %s20, 0
    %s23 = sadd.s32 %s22, 1
    %s24 = scalar_select %p21, %s22, %s23
    %p27 = pneg %p21
    %p28 = scmp.eq.s32.totalorder %s12, 1
    %p29 = por %p27, %p28
    %p30 = scmp.ne.s32.totalorder %s22, %s25
    %p31 = scmp.eq.s32.totalorder %s12, 0
    %p32 = por %p30, %p31
    %p33 = scmp.ne.s32.totalorder %s22, %s25
    %p34 = scmp.eq.s32.totalorder %s17, 1
    %p35 = por %p33, %p34
    %p36 = scmp.ne.s32.totalorder %s25, %s26
    %p37 = scmp.eq.s32.totalorder %s17, 0
    %p38 = por %p36, %p37
    %p39 = scmp.ne.s32.totalorder %s25, %s26
    %p40 = scmp.eq.s32.totalorder %s18, 1
    %p41 = por %p39, %p40
    %p43 = scmp.ne.s32.totalorder %s26, %s42
    %p44 = scmp.eq.s32.totalorder %s18, 0
    %p45 = por %p43, %p44
    %s46 = ssub.s32 %s12, %s19
    %p47 = scmp.eq.s32.totalorder %s46, 0
    %s49 = sadd.s32 %s48, 1
    %s50 = scalar_select %p47, %s48, %s49
    %p53 = pneg %p47
    %p54 = scmp.eq.s32.totalorder %s12, 1
    %p55 = por %p53, %p54
    %p56 = scmp.ne.s32.totalorder %s48, %s51
    %p57 = scmp.eq.s32.totalorder %s12, 0
    %p58 = por %p56, %p57
    %p59 = scmp.ne.s32.totalorder %s48, %s51
    %p60 = scmp.eq.s32.totalorder %s17, 1
    %p61 = por %p59, %p60
    %p62 = scmp.ne.s32.totalorder %s51, %s52
    %p63 = scmp.eq.s32.totalorder %s17, 0
    %p64 = por %p62, %p63
    %p65 = scmp.ne.s32.totalorder %s51, %s52
    %p66 = scmp.eq.s32.totalorder %s18, 1
    %p67 = por %p65, %p66
    %p69 = scmp.ne.s32.totalorder %s52, %s68
    %p70 = scmp.eq.s32.totalorder %s18, 0
    %p71 = por %p69, %p70
    %s72 = ssub.s32 %s12, %s19
    %p73 = scmp.eq.s32.totalorder %s72, 0
    %s75 = sadd.s32 %s74, 1
    %s76 = scalar_select %p73, %s74, %s75
    %p79 = pneg %p73
    %p80 = scmp.eq.s32.totalorder %s12, 1
    %p81 = por %p79, %p80
    %p82 = scmp.ne.s32.totalorder %s74, %s77
    %p83 = scmp.eq.s32.totalorder %s12, 0
    %p84 = por %p82, %p83
    %p85 = scmp.ne.s32.totalorder %s74, %s77
    %p86 = scmp.eq.s32.totalorder %s17, 1
    %p87 = por %p85, %p86
    %p88 = scmp.ne.s32.totalorder %s77, %s78
    %p89 = scmp.eq.s32.totalorder %s17, 0
    %p90 = por %p88, %p89
    %p91 = scmp.ne.s32.totalorder %s77, %s78
    %p92 = scmp.eq.s32.totalorder %s18, 1
    %p93 = por %p91, %p92
    %p95 = scmp.ne.s32.totalorder %s78, %s94
    %p96 = scmp.eq.s32.totalorder %s18, 0
    %p97 = por %p95, %p96
    %s99 = sadd.s32 %s98, 1
    %p102 = scmp.eq.s32.totalorder %s12, 1
    %p103 = scmp.ne.s32.totalorder %s98, %s100
    %p104 = scmp.eq.s32.totalorder %s12, 0
    %p105 = por %p103, %p104
    %p106 = scmp.ne.s32.totalorder %s98, %s100
    %p107 = scmp.eq.s32.totalorder %s17, 1
    %p108 = por %p106, %p107
    %p109 = scmp.ne.s32.totalorder %s100, %s101
    %p110 = scmp.eq.s32.totalorder %s17, 0
    %p111 = por %p109, %p110
    %p112 = scmp.ne.s32.totalorder %s100, %s101
    %p113 = scmp.eq.s32.totalorder %s18, 1
    %p114 = por %p112, %p113
    %p116 = scmp.ne.s32.totalorder %s101, %s115
    %p117 = scmp.eq.s32.totalorder %s18, 0
    %p118 = por %p116, %p117
    %s120 = sadd.s32 %s119, 1
    %p123 = scmp.eq.s32.totalorder %s12, 1
    %p124 = scmp.ne.s32.totalorder %s119, %s121
    %p125 = scmp.eq.s32.totalorder %s12, 0
    %p126 = por %p124, %p125
    %p127 = scmp.ne.s32.totalorder %s119, %s121
    %p128 = scmp.eq.s32.totalorder %s17, 1
    %p129 = por %p127, %p128
    %p130 = scmp.ne.s32.totalorder %s121, %s122
    %p131 = scmp.eq.s32.totalorder %s17, 0
    %p132 = por %p130, %p131
    %p133 = scmp.ne.s32.totalorder %s121, %s122
    %p134 = scmp.eq.s32.totalorder %s18, 1
    %p135 = por %p133, %p134
    %p137 = scmp.ne.s32.totalorder %s122, %s136
    %p138 = scmp.eq.s32.totalorder %s18, 0
    %p139 = por %p137, %p138
    %s140 = ssub.s32 %s12, %s19
    %p141 = scmp.eq.s32.totalorder %s140, 0
    %s143 = sadd.s32 %s142, 1
    %s144 = scalar_select %p141, %s142, %s143
    %p147 = pneg %p141
    %p148 = scmp.eq.s32.totalorder %s12, 1
    %p149 = por %p147, %p148
    %p150 = scmp.ne.s32.totalorder %s142, %s145
    %p151 = scmp.eq.s32.totalorder %s12, 0
    %p152 = por %p150, %p151
    %p153 = scmp.ne.s32.totalorder %s142, %s145
    %p154 = scmp.eq.s32.totalorder %s17, 1
    %p155 = por %p153, %p154
    %p156 = scmp.ne.s32.totalorder %s145, %s146
    %p157 = scmp.eq.s32.totalorder %s17, 0
    %p158 = por %p156, %p157
    %p159 = scmp.ne.s32.totalorder %s145, %s146
    %p160 = scmp.eq.s32.totalorder %s18, 1
    %p161 = por %p159, %p160
    %p163 = scmp.ne.s32.totalorder %s146, %s162
    %p164 = scmp.eq.s32.totalorder %s18, 0
    %p165 = por %p163, %p164
    %s166 = ssub.s32 %s12, %s19
    %p167 = scmp.eq.s32.totalorder %s166, 0
    %s169 = sadd.s32 %s168, 1
    %s170 = scalar_select %p167, %s168, %s169
    %p173 = pneg %p167
    %p174 = scmp.eq.s32.totalorder %s12, 1
    %p175 = por %p173, %p174
    %p176 = scmp.ne.s32.totalorder %s168, %s171
    %p177 = scmp.eq.s32.totalorder %s12, 0
    %p178 = por %p176, %p177
    %p179 = scmp.ne.s32.totalorder %s168, %s171
    %p180 = scmp.eq.s32.totalorder %s17, 1
    %p181 = por %p179, %p180
    %p182 = scmp.ne.s32.totalorder %s171, %s172
    %p183 = scmp.eq.s32.totalorder %s17, 0
    %p184 = por %p182, %p183
    %p185 = scmp.ne.s32.totalorder %s171, %s172
    %p186 = scmp.eq.s32.totalorder %s18, 1
    %p187 = por %p185, %p186
    %p189 = scmp.ne.s32.totalorder %s172, %s188
    %p190 = scmp.eq.s32.totalorder %s18, 0
    %p191 = por %p189, %p190
    %p192 = scmp.le.s32.totalorder 1, %s12
    %p193 = scmp.lt.s32.totalorder %s12, 3
    %p194 = pnand %p192, %p193
    %p195 = pneg %p194
    // Predicated region
    $region9: #{decoder_forward.10} parent=5 // pred_check
      _
    $region10: #{decoder_forward.10} parent=5 // pred_check_branch
      %197 = sbr.rel (%p194) target = $region12
    $region11: #{decoder_forward.10} parent=5 // pred_region
      %s198 = ssub.s32 %s12, 1
      // Predicated region
      $region13: #{decoder_forward.10} parent=11 // pred_check
        %p199 = pneg %p111
      $region14: #{decoder_forward.10} parent=11 // pred_check_branch
        %201 = sbr.rel (%p199) target = $region16
      $region15: #{decoder_forward.10} parent=11 // pred_region
        _
      $region16: #{decoder_forward.10} parent=11 // pred_fallthru
        _
      // Predicated region
      $region17: #{decoder_forward.10} parent=11 // pred_check
        %p202 = pneg %p132
      $region18: #{decoder_forward.10} parent=11 // pred_check_branch
        %204 = sbr.rel (%p202) target = $region20
      $region19: #{decoder_forward.10} parent=11 // pred_region
        _
      $region20: #{decoder_forward.10} parent=11 // pred_fallthru
        _
    $region12: #{decoder_forward.10} parent=5 // pred_fallthru
      _
    %p205 = scmp.lt.s32.totalorder %s12, 2
    // Predicated region
    $region21: #{decoder_forward.10} parent=5 // pred_check
      %p206 = pneg %p205
    $region22: #{decoder_forward.10} parent=5 // pred_check_branch
      %208 = sbr.rel (%p206) target = $region24
    $region23: #{decoder_forward.10} parent=5 // pred_region
      // Predicated region
      $region25: #{decoder_forward.10} parent=23 // pred_check
        %p209 = pneg %p32
      $region26: #{decoder_forward.10} parent=23 // pred_check_branch
        %211 = sbr.rel (%p209) target = $region28
      $region27: #{decoder_forward.10} parent=23 // pred_region
        %p212 = scmp.lt.s32.totalorder %s12, 1
        %s213 = scalar_select %p212, %s12, 1
        %s214 = smul.addr %s213, 4
        %s215 = smul.addr %s214, 2
        %s216 = scalar_lea.vmem %s0, %s215
      $region28: #{decoder_forward.10} parent=23 // pred_fallthru
        _
      // Predicated region
      $region29: #{decoder_forward.10} parent=23 // pred_check
        %p217 = pneg %p58
      $region30: #{decoder_forward.10} parent=23 // pred_check_branch
        %219 = sbr.rel (%p217) target = $region32
      $region31: #{decoder_forward.10} parent=23 // pred_region
        %p220 = scmp.lt.s32.totalorder %s12, 1
        %s221 = scalar_select %p220, %s12, 1
        %s222 = scalar_lea.vmem %s1, %s221
      $region32: #{decoder_forward.10} parent=23 // pred_fallthru
        _
      // Predicated region
      $region33: #{decoder_forward.10} parent=23 // pred_check
        %p223 = pneg %p84
      $region34: #{decoder_forward.10} parent=23 // pred_check_branch
        %225 = sbr.rel (%p223) target = $region36
      $region35: #{decoder_forward.10} parent=23 // pred_region
        %p226 = scmp.lt.s32.totalorder %s12, 1
        %s227 = scalar_select %p226, %s12, 1
        %s228 = scalar_lea.vmem %s2, %s227
      $region36: #{decoder_forward.10} parent=23 // pred_fallthru
        _
      // Predicated region
      $region37: #{decoder_forward.10} parent=23 // pred_check
        %p229 = pneg %p152
      $region38: #{decoder_forward.10} parent=23 // pred_check_branch
        %231 = sbr.rel (%p229) target = $region40
      $region39: #{decoder_forward.10} parent=23 // pred_region
        %p232 = scmp.lt.s32.totalorder %s12, 1
        %s233 = scalar_select %p232, %s12, 1
        %s234 = smul.addr %s233, 4
        %s235 = smul.addr %s234, 4
        %s236 = scalar_lea.vmem %s5, %s235
      $region40: #{decoder_forward.10} parent=23 // pred_fallthru
        _
    $region24: #{decoder_forward.10} parent=5 // pred_fallthru
      _
    %p237 = scmp.le.s32.totalorder 1, %s12
    %p238 = scmp.lt.s32.totalorder %s12, 3
    %p239 = pnand %p237, %p238
    %p240 = pneg %p239
    // Predicated region
    $region41: #{decoder_forward.10} parent=5 // pred_check
      _
    $region42: #{decoder_forward.10} parent=5 // pred_check_branch
      %242 = sbr.rel (%p239) target = $region44
    $region43: #{decoder_forward.10} parent=5 // pred_region
      %s243 = ssub.s32 %s12, 1
      %p244 = scmp.lt.s32.totalorder %s17, 1
      %s245 = scalar_select %p244, %s17, 1
      %s246 = smul.addr %s245, 4
      %s247 = smul.addr %s246, 2
      %s248 = scalar_lea.vmem %s0, %s247
      %p249 = pneg %p38
      %p250 = pneg %p35
      %p251 = scmp.lt.s32.totalorder %s17, 1
      %s252 = scalar_select %p251, %s17, 1
      %s253 = scalar_lea.vmem %s1, %s252
      %p254 = pneg %p64
      %p255 = pneg %p61
      %p256 = scmp.lt.s32.totalorder %s17, 1
      %s257 = scalar_select %p256, %s17, 1
      %s258 = scalar_lea.vmem %s2, %s257
      %p259 = pneg %p90
      %p260 = pneg %p87
      %p261 = pneg %p111
      %p262 = pneg %p108
      %p263 = pneg %p132
      %p264 = pneg %p129
      %p265 = scmp.lt.s32.totalorder %s17, 1
      %s266 = scalar_select %p265, %s17, 1
      %s267 = smul.addr %s266, 4
      %s268 = smul.addr %s267, 4
      %s269 = scalar_lea.vmem %s5, %s268
      %p270 = pneg %p158
      %p271 = pneg %p155
      %p272 = pneg %p184
      %p273 = pneg %p181
      %p274 = scmp.lt.s32.totalorder %s17, 1
      %s275 = scalar_select %p274, %s17, 1
      %s276 = smul.addr %s275, 4
      %s277 = smul.addr %s276, 2
      %s278 = scalar_lea.vmem %s6, %s277
      %p279 = scmp.lt.s32.totalorder %s17, 1
      %s280 = scalar_select %p279, %s17, 1
      %s281 = smul.addr %s280, 4
      %s282 = smul.addr %s281, 2
      %s283 = scalar_lea.vmem %s0, %s282
      %p284 = scmp.lt.s32.totalorder %s17, 1
      %s285 = scalar_select %p284, %s17, 1
      %s286 = scalar_lea.vmem %s1, %s285
      %p287 = scmp.lt.s32.totalorder %s17, 1
      %s288 = scalar_select %p287, %s17, 1
      %s289 = scalar_lea.vmem %s2, %s288
      %p290 = scmp.lt.s32.totalorder %s17, 1
      %s291 = scalar_select %p290, %s17, 1
      %s292 = smul.addr %s291, 4
      %s293 = smul.addr %s292, 4
      %s294 = scalar_lea.vmem %s5, %s293
      %p295 = scmp.lt.s32.totalorder %s17, 1
      %s296 = scalar_select %p295, %s17, 1
      %s297 = smul.addr %s296, 4
      %s298 = smul.addr %s297, 2
      %s299 = scalar_lea.vmem %s6, %s298
      %v301 = vld [vmem:[%s283] sm:$0x3]
      %v302 = vld [vmem:[%s283 + $0x2] sm:$0x3]
      %v303 = vld [vmem:[%s283 + $0x4] sm:$0x3]
      %v304 = vld [vmem:[%s283 + $0x6] sm:$0x3]
      %v305 = vunpack.c.l.bf16 %v301
      %v306 = vunpack.c.l.bf16 %v302
      %v307 = vunpack.c.l.bf16 %v303
      %v308 = vunpack.c.l.bf16 %v304
      %v309 = vld [vmem:[%s286] sm:$0x1]
      %v311 = vlaneseq
      %v312 = vshrl.u32 %v311, 7
      %v313 = vsub.s32 0, %v312
      %v314 = vrot.slane %v309, %v313
      %v316 = vmul.f32 %v305, %v314
      %v317 = vmul.f32 %v306, %v314
      %v318 = vmul.f32 %v307, %v314
      %v319 = vmul.f32 %v308, %v314
      %v320 = vld [vmem:[%s289] sm:$0x1]
      %v322 = vlaneseq
      %v323 = vshrl.u32 %v322, 7
      %v324 = vsub.s32 0, %v323
      %v325 = vrot.slane %v320, %v324
      %v327 = vadd.f32 %v316, %v325
      %v328 = vadd.f32 %v317, %v325
      %v329 = vadd.f32 %v318, %v325
      %v330 = vadd.f32 %v319, %v325
      %v331 = vxor.u32 %v327, 2147483648
      %v332 = vxor.u32 %v328, 2147483648
      %v333 = vxor.u32 %v329, 2147483648
      %v334 = vxor.u32 %v330, 2147483648
      %v335 = vmul.f32 %v331, 1.442695
      %v336 = vpow.pop %v335
      %v337 = vmul.f32 %v332, 1.442695
      %v338 = vpow.pop %v337
      %v339 = vmul.f32 %v333, 1.442695
      %v340 = vpow.pop %v339
      %v341 = vmul.f32 %v334, 1.442695
      %v342 = vpow.pop %v341
      %v343 = vadd.f32 %v336, 1.0
      %v344 = vadd.f32 %v338, 1.0
      %v345 = vadd.f32 %v340, 1.0
      %v346 = vadd.f32 %v342, 1.0
      %v347 = vrcp.pop %v343
      %v348 = vmul.f32 1.0, %v347
      %v349 = vrcp.pop %v344
      %v350 = vmul.f32 1.0, %v349
      %v351 = vrcp.pop %v345
      %v352 = vmul.f32 1.0, %v351
      %v353 = vrcp.pop %v346
      %v354 = vmul.f32 1.0, %v353
      %v355 = vmul.f32 %v327, %v348
      %v356 = vmul.f32 %v328, %v350
      %v357 = vmul.f32 %v329, %v352
      %v358 = vmul.f32 %v330, %v354
      %v359 = vpack.c.bf16 %v355, %v355
      %v360 = vpack.c.bf16 %v356, %v356
      %v361 = vpack.c.bf16 %v357, %v357
      %v362 = vpack.c.bf16 %v358, %v358
      %367 = vrot.lane.b32.xlu0 %v359, 64
      %v368 = vpop.permute.xlu0 %367
      %369 = vrot.lane.b32.xlu0 %v360, 64
      %v370 = vpop.permute.xlu0 %369
      %371 = vrot.lane.b32.xlu0 %v361, 64
      %v372 = vpop.permute.xlu0 %371
      %373 = vrot.lane.b32.xlu0 %v362, 64
      %v374 = vpop.permute.xlu0 %373
      %vm375 = vcmask 523264
      %v378 = vsel %vm375, 0, %v368
      %v381 = vsel %vm375, %v359, %v370
      %v384 = vsel %vm375, %v360, %v372
      %v387 = vsel %vm375, %v361, %v374
      %v393 = vcombine.low %v378, %v360
      %v395 = vunpack.c.l.s4 1983009808
      %v396 = vunpack.c.0.s8 %v395
      %v397 = vlaneseq
      %v398 = vshrl.u32 %v397, 7
      %v399 = vsub.s32 %v396, %v398
      %v400 = vrot.slane %v393, %v399
      %v401 = vcombine.low %v381, %v361
      %v403 = vunpack.c.l.s4 1983009808
      %v404 = vunpack.c.0.s8 %v403
      %v405 = vlaneseq
      %v406 = vshrl.u32 %v405, 7
      %v407 = vsub.s32 %v404, %v406
      %v408 = vrot.slane %v401, %v407
      %v409 = vcombine.low %v384, %v362
      %v411 = vunpack.c.l.s4 1983009808
      %v412 = vunpack.c.0.s8 %v411
      %v413 = vlaneseq
      %v414 = vshrl.u32 %v413, 7
      %v415 = vsub.s32 %v412, %v414
      %v416 = vrot.slane %v409, %v415
      %v417 = vcombine.low %v387, 0
      %v419 = vunpack.c.l.s4 1983009808
      %v420 = vunpack.c.0.s8 %v419
      %v421 = vlaneseq
      %v422 = vshrl.u32 %v421, 7
      %v423 = vsub.s32 %v420, %v422
      %v424 = vrot.slane %v417, %v423
      %v425 = vld [vmem:[%s3] sm:$0xff]
      %v426 = vld [vmem:[%s3 + $0x8] sm:$0xff]
      %v427 = vld [vmem:[%s3 + $0x10] sm:$0xff]
      %v428 = vld [vmem:[%s3 + $0x18] sm:$0xff]
      %v429 = vld [vmem:[%s3 + $0x20] sm:$0xff]
      %v430 = vld [vmem:[%s3 + $0x28] sm:$0xff]
      %v431 = vld [vmem:[%s3 + $0x30] sm:$0xff]
      %v432 = vld [vmem:[%s3 + $0x38] sm:$0xff]
      %v433 = vld [vmem:[%s3 + $0x40] sm:$0xff]
      %v434 = vld [vmem:[%s3 + $0x48] sm:$0xff]
      %v435 = vld [vmem:[%s3 + $0x50] sm:$0xff]
      %v436 = vld [vmem:[%s3 + $0x58] sm:$0xff]
      %v437 = vld [vmem:[%s3 + $0x60] sm:$0xff]
      %v438 = vld [vmem:[%s3 + $0x68] sm:$0xff]
      %v439 = vld [vmem:[%s3 + $0x70] sm:$0xff]
      %v440 = vld [vmem:[%s3 + $0x78] sm:$0xff]
      %v441 = vld [vmem:[%s3 + $0x80] sm:$0xff]
      %v442 = vld [vmem:[%s3 + $0x88] sm:$0xff]
      %v443 = vld [vmem:[%s3 + $0x90] sm:$0xff]
      %v444 = vld [vmem:[%s3 + $0x98] sm:$0xff]
      %v445 = vld [vmem:[%s3 + $0xa0] sm:$0xff]
      %v446 = vld [vmem:[%s3 + $0xa8] sm:$0xff]
      %v447 = vld [vmem:[%s3 + $0xb0] sm:$0xff]
      %v448 = vld [vmem:[%s3 + $0xb8] sm:$0xff]
      %v449 = vcombine.low %v400, %v408
      %v450 = vcombine.low %v416, %v424
      %v452 = vunpack.c.l.s4 1983009808
      %v453 = vunpack.c.0.s8 %v452
      %v454 = vlaneseq
      %v455 = vshrl.u32 %v454, 7
      %v456 = vsub.s32 %v453, %v455
      %v457 = vrot.slane %v449, %v456
      %v459 = vunpack.c.l.s4 1983009808
      %v460 = vunpack.c.0.s8 %v459
      %v461 = vlaneseq
      %v462 = vshrl.u32 %v461, 7
      %v463 = vsub.s32 %v460, %v462
      %v464 = vrot.slane %v450, %v463
      %v465 = vcombine.low %v457, %v464
      %v466 = vcombine.high %v457, %v464
      %v492 = vunpack.c.l.b16 %v425
      %v493 = vunpack.c.h.b16 %v425
      %v494 = vunpack.c.l.b16 %v426
      %v495 = vunpack.c.h.b16 %v426
      %v496 = vunpack.c.l.b16 %v427
      %v497 = vunpack.c.h.b16 %v427
      %v498 = vunpack.c.l.b16 %v428
      %v499 = vunpack.c.h.b16 %v428
      %v500 = vunpack.c.l.b16 %v429
      %v501 = vunpack.c.h.b16 %v429
      %v502 = vunpack.c.l.b16 %v430
      %v503 = vunpack.c.h.b16 %v430
      %v504 = vunpack.c.l.b16 %v431
      %v505 = vunpack.c.h.b16 %v431
      %v506 = vunpack.c.l.b16 %v432
      %v507 = vunpack.c.h.b16 %v432
      %v508 = vunpack.c.l.b16 %v433
      %v509 = vunpack.c.h.b16 %v433
      %v510 = vunpack.c.l.b16 %v434
      %v511 = vunpack.c.h.b16 %v434
      %v512 = vunpack.c.l.b16 %v435
      %v513 = vunpack.c.h.b16 %v435
      %v514 = vunpack.c.l.b16 %v436
      %v515 = vunpack.c.h.b16 %v436
      %v516 = vunpack.c.l.b16 %v437
      %v517 = vunpack.c.h.b16 %v437
      %v518 = vunpack.c.l.b16 %v438
      %v519 = vunpack.c.h.b16 %v438
      %v520 = vunpack.c.l.b16 %v439
      %v521 = vunpack.c.h.b16 %v439
      %v522 = vunpack.c.l.b16 %v440
      %v523 = vunpack.c.h.b16 %v440
      %v524 = vunpack.c.l.b16 %v441
      %v525 = vunpack.c.h.b16 %v441
      %v526 = vunpack.c.l.b16 %v442
      %v527 = vunpack.c.h.b16 %v442
      %v528 = vunpack.c.l.b16 %v443
      %v529 = vunpack.c.h.b16 %v443
      %v530 = vunpack.c.l.b16 %v444
      %v531 = vunpack.c.h.b16 %v444
      %v532 = vunpack.c.l.b16 %v445
      %v533 = vunpack.c.h.b16 %v445
      %v534 = vunpack.c.l.b16 %v446
      %v535 = vunpack.c.h.b16 %v446
      %v536 = vunpack.c.l.b16 %v447
      %v537 = vunpack.c.h.b16 %v447
      %v538 = vunpack.c.l.b16 %v448
      %v539 = vunpack.c.h.b16 %v448
      %v540 = vpack.c.b16 %v494, %v492
      %v541 = vpack.c.b16 %v495, %v493
      %v542 = vpack.c.b16 %v498, %v496
      %v543 = vpack.c.b16 %v499, %v497
      %v544 = vpack.c.b16 %v502, %v500
      %v545 = vpack.c.b16 %v503, %v501
      %v546 = vpack.c.b16 %v506, %v504
      %v547 = vpack.c.b16 %v507, %v505
      %v548 = vpack.c.b16 %v510, %v508
      %v549 = vpack.c.b16 %v511, %v509
      %v550 = vpack.c.b16 %v514, %v512
      %v551 = vpack.c.b16 %v515, %v513
      %v552 = vpack.c.b16 %v518, %v516
      %v553 = vpack.c.b16 %v519, %v517
      %v554 = vpack.c.b16 %v522, %v520
      %v555 = vpack.c.b16 %v523, %v521
      %v556 = vpack.c.b16 %v526, %v524
      %v557 = vpack.c.b16 %v527, %v525
      %v558 = vpack.c.b16 %v530, %v528
      %v559 = vpack.c.b16 %v531, %v529
      %v560 = vpack.c.b16 %v534, %v532
      %v561 = vpack.c.b16 %v535, %v533
      %v562 = vpack.c.b16 %v538, %v536
      %v563 = vpack.c.b16 %v539, %v537
      %v589 = vsel %vm375, %v466, 0
      %591 = vmatprep.subr.bf16.mxu0 %v555
      %592 = vmatpush1.bf16.msra.mxu0 %v554
      %593 = vmatprep.subr.bf16.mxu0 %v553
      %594 = vmatpush1.bf16.msra.mxu0 %v552
      %595 = vmatprep.subr.bf16.mxu0 %v551
      %596 = vmatpush1.bf16.msra.mxu0 %v550
      %597 = vmatprep.subr.bf16.mxu0 %v549
      %598 = vmatpush1.bf16.msra.mxu0 %v548
      %599 = vmatprep.subr.bf16.mxu0 %v547
      %600 = vmatpush1.bf16.msra.mxu0 %v546
      %601 = vmatprep.subr.bf16.mxu0 %v545
      %602 = vmatpush1.bf16.msra.mxu0 %v544
      %603 = vmatprep.subr.bf16.mxu0 %v543
      %604 = vmatpush1.bf16.msra.mxu0 %v542
      %605 = vmatprep.subr.bf16.mxu0 %v541
      %606 = vmatpush1.bf16.msra.mxu0 %v540
      %607 = vmatprep.subr.bf16.mxu0 0
      %608 = vmatpush2.bf16.msra.mxu0 0
      %609 = vmatprep.subr.bf16.mxu0 0
      %610 = vmatpush2.bf16.msra.mxu0 0
      %611 = vmatprep.subr.bf16.mxu0 0
      %612 = vmatpush2.bf16.msra.mxu0 0
      %613 = vmatprep.subr.bf16.mxu0 0
      %614 = vmatpush2.bf16.msra.mxu0 0
      %615 = vmatprep.subr.bf16.mxu0 %v563
      %616 = vmatpush2.bf16.msra.mxu0 %v562
      %617 = vmatprep.subr.bf16.mxu0 %v561
      %618 = vmatpush2.bf16.msra.mxu0 %v560
      %619 = vmatprep.subr.bf16.mxu0 %v559
      %620 = vmatpush2.bf16.msra.mxu0 %v558
      %621 = vmatprep.subr.bf16.mxu0 %v557
      %622 = vmatpush2.bf16.msra.mxu0 %v556
      %623 = vmatprep.mubr.bf16.mxu0 %v589
      %624 = vmatmul.mubr.bf16.gmra.mxu0 %v465
      %v625 = vpop.f32.mrf.mxu0
      %v626 = vadd.f32 0.0, %v625
      %v627 = vpop.f32.mrf.mxu0
      %v628 = vadd.f32 0.0, %v627
      %v629 = vpop.f32.mrf.mxu0
      %v630 = vadd.f32 0.0, %v629
      %v631 = vpop.f32.mrf.mxu0
      %v632 = vadd.f32 0.0, %v631
      %633 = vdwg.mxu0
      %v638 = vcombine.low %v626, %v628
      %v639 = vcombine.high %v626, %v628
      %v640 = vcombine.low %v630, %v632
      %v641 = vcombine.high %v630, %v632
      %v646 = vrot.slane %v638, 7
      %v647 = vrot.slane %v639, 7
      %v648 = vrot.slane %v640, 7
      %v649 = vrot.slane %v641, 7
      %vm654 = vcmask 1040384
      %v655 = vsel %vm654, 0.0, %v646
      %v656 = vsel %vm654, 0.0, %v647
      %v657 = vsel %vm654, 0.0, %v648
      %v658 = vsel %vm654, 0.0, %v649
      %663 = vrot.lane.b32.xlu0 %v655, 64
      %v664 = vpop.permute.xlu0 %663
      %665 = vrot.lane.b32.xlu0 %v656, 64
      %v666 = vpop.permute.xlu0 %665
      %667 = vrot.lane.b32.xlu0 %v657, 64
      %v668 = vpop.permute.xlu0 %667
      %669 = vrot.lane.b32.xlu0 %v658, 64
      %v670 = vpop.permute.xlu0 %669
      %v675 = vadd.f32 %v638, %v664
      %v676 = vadd.f32 %v639, %v666
      %v677 = vadd.f32 %v640, %v668
      %v678 = vadd.f32 %v641, %v670
      %v679 = vcombine.high %v638, %v638
      %v680 = vcombine.high %v639, %v639
      %v681 = vcombine.high %v640, %v640
      %v682 = vcombine.high %v641, %v641
      %v683 = vrot.slane %v679, 1
      %v684 = vrot.slane %v680, 1
      %v685 = vrot.slane %v681, 1
      %v686 = vrot.slane %v682, 1
      %vm691 = vcmask 1042432
      %v692 = vsel %vm691, %v683, 0.0
      %v693 = vsel %vm691, %v684, 0.0
      %v694 = vsel %vm691, %v685, 0.0
      %v695 = vsel %vm691, %v686, 0.0
      %700 = vrot.lane.b32.xlu0 %v692, 64
      %v701 = vpop.permute.xlu0 %700
      %702 = vrot.lane.b32.xlu0 %v693, 64
      %v703 = vpop.permute.xlu0 %702
      %704 = vrot.lane.b32.xlu0 %v694, 64
      %v705 = vpop.permute.xlu0 %704
      %706 = vrot.lane.b32.xlu0 %v695, 64
      %v707 = vpop.permute.xlu0 %706
      %v712 = vadd.f32 %v675, %v701
      %v713 = vadd.f32 %v676, %v703
      %v714 = vadd.f32 %v677, %v705
      %v715 = vadd.f32 %v678, %v707
      %v716 = vld [vmem:[%s4] sm:$0x1]
      %v718 = vlaneseq
      %v719 = vshrl.u32 %v718, 7
      %v720 = vsub.s32 0, %v719
      %v721 = vrot.slane %v716, %v720
      %722 = vrot.lane.b32.xlu0 %v721, 64
      %v723 = vpop.permute.xlu0 %722
      %v725 = vadd.f32 %v712, %v723
      %v726 = vadd.f32 %v713, %v723
      %v727 = vadd.f32 %v714, %v723
      %v728 = vadd.f32 %v715, %v723
      %v729 = vld [vmem:[%s294] sm:$0xf]
      %v730 = vld [vmem:[%s294 + $0x4] sm:$0xf]
      %v731 = vld [vmem:[%s294 + $0x8] sm:$0xf]
      %v732 = vld [vmem:[%s294 + $0xc] sm:$0xf]
      %737 = vrot.lane.b32.xlu0 %v729, 64
      %v738 = vpop.permute.xlu0 %737
      %739 = vrot.lane.b32.xlu0 %v730, 64
      %v740 = vpop.permute.xlu0 %739
      %741 = vrot.lane.b32.xlu0 %v731, 64
      %v742 = vpop.permute.xlu0 %741
      %743 = vrot.lane.b32.xlu0 %v732, 64
      %v744 = vpop.permute.xlu0 %743
      %v749 = vadd.f32 %v725, %v738
      %v750 = vadd.f32 %v726, %v740
      %v751 = vadd.f32 %v727, %v742
      %v752 = vadd.f32 %v728, %v744
      %v753 = vpack.c.bf16 %v749, %v749
      %v754 = vpack.c.bf16 %v750, %v750
      %v755 = vpack.c.bf16 %v751, %v751
      %v756 = vpack.c.bf16 %v752, %v752
      %v762 = vunpack.c.l.s4 1983009808
      %v763 = vunpack.c.0.s8 %v762
      %v764 = vlaneseq
      %v765 = vshrl.u32 %v764, 7
      %v766 = vsub.s32 %v763, %v765
      %v767 = vrot.slane %v753, %v766
      %v769 = vunpack.c.l.s4 1983009808
      %v770 = vunpack.c.0.s8 %v769
      %v771 = vlaneseq
      %v772 = vshrl.u32 %v771, 7
      %v773 = vsub.s32 %v770, %v772
      %v774 = vrot.slane %v754, %v773
      %v776 = vunpack.c.l.s4 1983009808
      %v777 = vunpack.c.0.s8 %v776
      %v778 = vlaneseq
      %v779 = vshrl.u32 %v778, 7
      %v780 = vsub.s32 %v777, %v779
      %v781 = vrot.slane %v755, %v780
      %v783 = vunpack.c.l.s4 1983009808
      %v784 = vunpack.c.0.s8 %v783
      %v785 = vlaneseq
      %v786 = vshrl.u32 %v785, 7
      %v787 = vsub.s32 %v784, %v786
      %v788 = vrot.slane %v756, %v787
      %789 = vrot.lane.b32.xlu0 %v767, 64
      %v790 = vpop.permute.xlu0 %789
      %791 = vrot.lane.b32.xlu0 %v774, 64
      %v792 = vpop.permute.xlu0 %791
      %793 = vrot.lane.b32.xlu0 %v781, 64
      %v794 = vpop.permute.xlu0 %793
      %795 = vrot.lane.b32.xlu0 %v788, 64
      %v796 = vpop.permute.xlu0 %795
      %vm801 = vcmask 517120
      %802 = vst.msk [vmem:[%s299] sm:$0x3] %vm801, %v790
      %803 = vst.msk [vmem:[%s299 + $0x2] sm:$0x3] %vm801, %v792
      %804 = vst.msk [vmem:[%s299 + $0x4] sm:$0x3] %vm801, %v794
      %805 = vst.msk [vmem:[%s299 + $0x6] sm:$0x3] %vm801, %v796
      %p806 = scmp.lt.s32.totalorder %s17, 1
      %s807 = scalar_select %p806, %s17, 1
      %s808 = smul.addr %s807, 4
      %s809 = smul.addr %s808, 2
      %s810 = scalar_lea.vmem %s6, %s809
      // Predicated region
      $region45: #{decoder_forward.10} parent=43 // pred_check
        %p811 = pneg %p181
      $region46: #{decoder_forward.10} parent=43 // pred_check_branch
        %813 = sbr.rel (%p811) target = $region48
      $region47: #{decoder_forward.10} parent=43 // pred_region
        _
      $region48: #{decoder_forward.10} parent=43 // pred_fallthru
        _
    $region44: #{decoder_forward.10} parent=5 // pred_fallthru
      _
    %p814 = scmp.le.s32.totalorder 2, %s12
    // Predicated region
    $region49: #{decoder_forward.10} parent=5 // pred_check
      %p815 = pneg %p814
    $region50: #{decoder_forward.10} parent=5 // pred_check_branch
      %817 = sbr.rel (%p815) target = $region52
    $region51: #{decoder_forward.10} parent=5 // pred_region
      %s818 = ssub.s32 %s12, 2
      // Predicated region
      $region53: #{decoder_forward.10} parent=51 // pred_check
        %p819 = pneg %p187
      $region54: #{decoder_forward.10} parent=51 // pred_check_branch
        %821 = sbr.rel (%p819) target = $region56
      $region55: #{decoder_forward.10} parent=51 // pred_region
        %p822 = scmp.lt.s32.totalorder %s18, 1
        %s823 = scalar_select %p822, %s18, 1
        %s824 = smul.addr %s823, 4
        %s825 = smul.addr %s824, 2
        %s826 = scalar_lea.vmem %s6, %s825
      $region56: #{decoder_forward.10} parent=51 // pred_fallthru
        _
    $region52: #{decoder_forward.10} parent=5 // pred_fallthru
      _
  $region6: #{decoder_forward.10} parent=0 // loop_footer
    %s16 = sadd.s32 1, %s12
  $region7: #{decoder_forward.10} parent=0 // loop_footer_branch
    %11 = sbr.rel target = $region3
  $region8: #{decoder_forward.10} parent=0 // loop_exit
    _

// kernel: decoder_forward.9
$region0: #{decoder_forward.9}
  #allocation0 [shape = 'u32[]', space=smem, size = 0x4, offset = 0x4, fixed_abs, tag = 'smem constant byte address 0x4 - core index']
  #allocation1 [shape = 'u32[144,128]{1,0:T(1,128)}', space=vmem, size = 0x12000, scoped, tag = 'internal scratch']
  %s0 = inlined_call_operand.vmem [shape: f32[2,4,4,64], index: 0, kind: input, shape index: {}]
  %s1 = inlined_call_operand.vmem [shape: f32[2,1,64], index: 1, kind: input, shape index: {}]
  %s2 = inlined_call_operand.vmem [shape: f32[2,1,64], index: 2, kind: input, shape index: {}]
  %s3 = inlined_call_operand.vmem [shape: bf16[192,192], index: 3, kind: input, shape index: {}]
  %s4 = inlined_call_operand.vmem [shape: f32[1,64], index: 4, kind: input, shape index: {}]
  %s5 = inlined_call_operand.vmem [shape: bf16[2,4,4,64], index: 5, kind: output, shape index: {0}]
  %s6 = inlined_call_operand.vmem [shape: f32[2,1,64], index: 6, kind: output, shape index: {1}]
  %s7 = inlined_call_operand.vmem [shape: f32[2,1,64], index: 7, kind: output, shape index: {2}]
  %8 = xla_tuple %s5, %s6, %s7
  %s9 = sld [smem:[#allocation0]]
  $region69: #{decoder_forward.9} parent=0
    _
  %s11 = ssub.s32 1, %s9
  %s12 = scalar_select 0, %s11, %s9
  loop: start=0, step=1, limit=4
  $region2: #{decoder_forward.9} parent=0 // loop_pre_header
    _
  $region3: #{decoder_forward.9} parent=0 // loop_header
    %s14 = sphi 0, %s18
    %p15 = scmp.ge.s32.totalorder %s14, 4
    %s24 = sphi 0, %s26
    %s27 = sphi 0, %s24
    %s28 = sphi 0, %s27
    %s44 = sphi 0, %s28
    %s50 = sphi 0, %s52
    %s53 = sphi 0, %s50
    %s54 = sphi 0, %s53
    %s70 = sphi 0, %s54
    %s76 = sphi 0, %s78
    %s79 = sphi 0, %s76
    %s80 = sphi 0, %s79
    %s96 = sphi 0, %s80
    %s100 = sphi 0, %s100
    %s102 = sphi 0, %s100
    %s103 = sphi 0, %s102
    %s117 = sphi 0, %s103
    %s121 = sphi 0, %s121
    %s123 = sphi 0, %s121
    %s124 = sphi 0, %s123
    %s138 = sphi 0, %s124
    %s144 = sphi 0, %s146
    %s147 = sphi 0, %s144
    %s148 = sphi 0, %s147
    %s164 = sphi 0, %s148
    %s170 = sphi 0, %s172
    %s173 = sphi 0, %s170
    %s174 = sphi 0, %s173
    %s190 = sphi 0, %s174
    %s196 = sphi 0, %s198
    %s199 = sphi 0, %s196
    %s200 = sphi 0, %s199
    %s216 = sphi 0, %s200
  $region4: #{decoder_forward.9} parent=0 // loop_header_branch
    %17 = sbr.rel (%p15) target = $region8
  $region5: #{decoder_forward.9} parent=0 // loop_body
    %s19 = ssub.s32 %s14, 1
    %s20 = ssub.s32 %s14, 2
    %s21 = sadd.s32 %s14, 1
    %s22 = ssub.s32 %s14, %s21
    %p23 = scmp.eq.s32.totalorder %s22, 0
    %s25 = sadd.s32 %s24, 1
    %s26 = scalar_select %p23, %s24, %s25
    %p29 = pneg %p23
    %p30 = scmp.eq.s32.totalorder %s14, 1
    %p31 = por %p29, %p30
    %p32 = scmp.ne.s32.totalorder %s24, %s27
    %p33 = scmp.eq.s32.totalorder %s14, 0
    %p34 = por %p32, %p33
    %p35 = scmp.ne.s32.totalorder %s24, %s27
    %p36 = scmp.eq.s32.totalorder %s19, 1
    %p37 = por %p35, %p36
    %p38 = scmp.ne.s32.totalorder %s27, %s28
    %p39 = scmp.eq.s32.totalorder %s19, 0
    %p40 = por %p38, %p39
    %p41 = scmp.ne.s32.totalorder %s27, %s28
    %p42 = scmp.eq.s32.totalorder %s20, 1
    %p43 = por %p41, %p42
    %p45 = scmp.ne.s32.totalorder %s28, %s44
    %p46 = scmp.eq.s32.totalorder %s20, 0
    %p47 = por %p45, %p46
    %s48 = ssub.s32 %s14, %s21
    %p49 = scmp.eq.s32.totalorder %s48, 0
    %s51 = sadd.s32 %s50, 1
    %s52 = scalar_select %p49, %s50, %s51
    %p55 = pneg %p49
    %p56 = scmp.eq.s32.totalorder %s14, 1
    %p57 = por %p55, %p56
    %p58 = scmp.ne.s32.totalorder %s50, %s53
    %p59 = scmp.eq.s32.totalorder %s14, 0
    %p60 = por %p58, %p59
    %p61 = scmp.ne.s32.totalorder %s50, %s53
    %p62 = scmp.eq.s32.totalorder %s19, 1
    %p63 = por %p61, %p62
    %p64 = scmp.ne.s32.totalorder %s53, %s54
    %p65 = scmp.eq.s32.totalorder %s19, 0
    %p66 = por %p64, %p65
    %p67 = scmp.ne.s32.totalorder %s53, %s54
    %p68 = scmp.eq.s32.totalorder %s20, 1
    %p69 = por %p67, %p68
    %p71 = scmp.ne.s32.totalorder %s54, %s70
    %p72 = scmp.eq.s32.totalorder %s20, 0
    %p73 = por %p71, %p72
    %s74 = ssub.s32 %s14, %s21
    %p75 = scmp.eq.s32.totalorder %s74, 0
    %s77 = sadd.s32 %s76, 1
    %s78 = scalar_select %p75, %s76, %s77
    %p81 = pneg %p75
    %p82 = scmp.eq.s32.totalorder %s14, 1
    %p83 = por %p81, %p82
    %p84 = scmp.ne.s32.totalorder %s76, %s79
    %p85 = scmp.eq.s32.totalorder %s14, 0
    %p86 = por %p84, %p85
    %p87 = scmp.ne.s32.totalorder %s76, %s79
    %p88 = scmp.eq.s32.totalorder %s19, 1
    %p89 = por %p87, %p88
    %p90 = scmp.ne.s32.totalorder %s79, %s80
    %p91 = scmp.eq.s32.totalorder %s19, 0
    %p92 = por %p90, %p91
    %p93 = scmp.ne.s32.totalorder %s79, %s80
    %p94 = scmp.eq.s32.totalorder %s20, 1
    %p95 = por %p93, %p94
    %p97 = scmp.ne.s32.totalorder %s80, %s96
    %p98 = scmp.eq.s32.totalorder %s20, 0
    %p99 = por %p97, %p98
    %s101 = sadd.s32 %s100, 1
    %p104 = scmp.eq.s32.totalorder %s14, 1
    %p105 = scmp.ne.s32.totalorder %s100, %s102
    %p106 = scmp.eq.s32.totalorder %s14, 0
    %p107 = por %p105, %p106
    %p108 = scmp.ne.s32.totalorder %s100, %s102
    %p109 = scmp.eq.s32.totalorder %s19, 1
    %p110 = por %p108, %p109
    %p111 = scmp.ne.s32.totalorder %s102, %s103
    %p112 = scmp.eq.s32.totalorder %s19, 0
    %p113 = por %p111, %p112
    %p114 = scmp.ne.s32.totalorder %s102, %s103
    %p115 = scmp.eq.s32.totalorder %s20, 1
    %p116 = por %p114, %p115
    %p118 = scmp.ne.s32.totalorder %s103, %s117
    %p119 = scmp.eq.s32.totalorder %s20, 0
    %p120 = por %p118, %p119
    %s122 = sadd.s32 %s121, 1
    %p125 = scmp.eq.s32.totalorder %s14, 1
    %p126 = scmp.ne.s32.totalorder %s121, %s123
    %p127 = scmp.eq.s32.totalorder %s14, 0
    %p128 = por %p126, %p127
    %p129 = scmp.ne.s32.totalorder %s121, %s123
    %p130 = scmp.eq.s32.totalorder %s19, 1
    %p131 = por %p129, %p130
    %p132 = scmp.ne.s32.totalorder %s123, %s124
    %p133 = scmp.eq.s32.totalorder %s19, 0
    %p134 = por %p132, %p133
    %p135 = scmp.ne.s32.totalorder %s123, %s124
    %p136 = scmp.eq.s32.totalorder %s20, 1
    %p137 = por %p135, %p136
    %p139 = scmp.ne.s32.totalorder %s124, %s138
    %p140 = scmp.eq.s32.totalorder %s20, 0
    %p141 = por %p139, %p140
    %s142 = ssub.s32 %s14, %s21
    %p143 = scmp.eq.s32.totalorder %s142, 0
    %s145 = sadd.s32 %s144, 1
    %s146 = scalar_select %p143, %s144, %s145
    %p149 = pneg %p143
    %p150 = scmp.eq.s32.totalorder %s14, 1
    %p151 = por %p149, %p150
    %p152 = scmp.ne.s32.totalorder %s144, %s147
    %p153 = scmp.eq.s32.totalorder %s14, 0
    %p154 = por %p152, %p153
    %p155 = scmp.ne.s32.totalorder %s144, %s147
    %p156 = scmp.eq.s32.totalorder %s19, 1
    %p157 = por %p155, %p156
    %p158 = scmp.ne.s32.totalorder %s147, %s148
    %p159 = scmp.eq.s32.totalorder %s19, 0
    %p160 = por %p158, %p159
    %p161 = scmp.ne.s32.totalorder %s147, %s148
    %p162 = scmp.eq.s32.totalorder %s20, 1
    %p163 = por %p161, %p162
    %p165 = scmp.ne.s32.totalorder %s148, %s164
    %p166 = scmp.eq.s32.totalorder %s20, 0
    %p167 = por %p165, %p166
    %s168 = ssub.s32 %s14, %s21
    %p169 = scmp.eq.s32.totalorder %s168, 0
    %s171 = sadd.s32 %s170, 1
    %s172 = scalar_select %p169, %s170, %s171
    %p175 = pneg %p169
    %p176 = scmp.eq.s32.totalorder %s14, 1
    %p177 = por %p175, %p176
    %p178 = scmp.ne.s32.totalorder %s170, %s173
    %p179 = scmp.eq.s32.totalorder %s14, 0
    %p180 = por %p178, %p179
    %p181 = scmp.ne.s32.totalorder %s170, %s173
    %p182 = scmp.eq.s32.totalorder %s19, 1
    %p183 = por %p181, %p182
    %p184 = scmp.ne.s32.totalorder %s173, %s174
    %p185 = scmp.eq.s32.totalorder %s19, 0
    %p186 = por %p184, %p185
    %p187 = scmp.ne.s32.totalorder %s173, %s174
    %p188 = scmp.eq.s32.totalorder %s20, 1
    %p189 = por %p187, %p188
    %p191 = scmp.ne.s32.totalorder %s174, %s190
    %p192 = scmp.eq.s32.totalorder %s20, 0
    %p193 = por %p191, %p192
    %s194 = ssub.s32 %s14, %s21
    %p195 = scmp.eq.s32.totalorder %s194, 0
    %s197 = sadd.s32 %s196, 1
    %s198 = scalar_select %p195, %s196, %s197
    %p201 = pneg %p195
    %p202 = scmp.eq.s32.totalorder %s14, 1
    %p203 = por %p201, %p202
    %p204 = scmp.ne.s32.totalorder %s196, %s199
    %p205 = scmp.eq.s32.totalorder %s14, 0
    %p206 = por %p204, %p205
    %p207 = scmp.ne.s32.totalorder %s196, %s199
    %p208 = scmp.eq.s32.totalorder %s19, 1
    %p209 = por %p207, %p208
    %p210 = scmp.ne.s32.totalorder %s199, %s200
    %p211 = scmp.eq.s32.totalorder %s19, 0
    %p212 = por %p210, %p211
    %p213 = scmp.ne.s32.totalorder %s199, %s200
    %p214 = scmp.eq.s32.totalorder %s20, 1
    %p215 = por %p213, %p214
    %p217 = scmp.ne.s32.totalorder %s200, %s216
    %p218 = scmp.eq.s32.totalorder %s20, 0
    %p219 = por %p217, %p218
    %p220 = scmp.le.s32.totalorder 1, %s14
    %p221 = scmp.lt.s32.totalorder %s14, 3
    %p222 = pnand %p220, %p221
    %p223 = pneg %p222
    // Predicated region
    $region9: #{decoder_forward.9} parent=5 // pred_check
      _
    $region10: #{decoder_forward.9} parent=5 // pred_check_branch
      %225 = sbr.rel (%p222) target = $region12
    $region11: #{decoder_forward.9} parent=5 // pred_region
      %s226 = ssub.s32 %s14, 1
      // Predicated region
      $region13: #{decoder_forward.9} parent=11 // pred_check
        %p227 = pneg %p113
      $region14: #{decoder_forward.9} parent=11 // pred_check_branch
        %229 = sbr.rel (%p227) target = $region16
      $region15: #{decoder_forward.9} parent=11 // pred_region
        _
      $region16: #{decoder_forward.9} parent=11 // pred_fallthru
        _
      // Predicated region
      $region17: #{decoder_forward.9} parent=11 // pred_check
        %p230 = pneg %p134
      $region18: #{decoder_forward.9} parent=11 // pred_check_branch
        %232 = sbr.rel (%p230) target = $region20
      $region19: #{decoder_forward.9} parent=11 // pred_region
        _
      $region20: #{decoder_forward.9} parent=11 // pred_fallthru
        _
    $region12: #{decoder_forward.9} parent=5 // pred_fallthru
      _
    %p233 = scmp.lt.s32.totalorder %s14, 2
    // Predicated region
    $region21: #{decoder_forward.9} parent=5 // pred_check
      %p234 = pneg %p233
    $region22: #{decoder_forward.9} parent=5 // pred_check_branch
      %236 = sbr.rel (%p234) target = $region24
    $region23: #{decoder_forward.9} parent=5 // pred_region
      // Predicated region
      $region25: #{decoder_forward.9} parent=23 // pred_check
        %p237 = pneg %p34
      $region26: #{decoder_forward.9} parent=23 // pred_check_branch
        %239 = sbr.rel (%p237) target = $region28
      $region27: #{decoder_forward.9} parent=23 // pred_region
        %p240 = scmp.lt.s32.totalorder %s14, 1
        %s241 = scalar_select %p240, %s14, 1
        %s242 = smul.addr %s241, 4
        %s243 = smul.addr %s242, 4
        %s244 = scalar_lea.vmem %s0, %s243
      $region28: #{decoder_forward.9} parent=23 // pred_fallthru
        _
      // Predicated region
      $region29: #{decoder_forward.9} parent=23 // pred_check
        %p245 = pneg %p60
      $region30: #{decoder_forward.9} parent=23 // pred_check_branch
        %247 = sbr.rel (%p245) target = $region32
      $region31: #{decoder_forward.9} parent=23 // pred_region
        %p248 = scmp.lt.s32.totalorder %s14, 1
        %s249 = scalar_select %p248, %s14, 1
        %s250 = scalar_lea.vmem %s1, %s249
      $region32: #{decoder_forward.9} parent=23 // pred_fallthru
        _
      // Predicated region
      $region33: #{decoder_forward.9} parent=23 // pred_check
        %p251 = pneg %p86
      $region34: #{decoder_forward.9} parent=23 // pred_check_branch
        %253 = sbr.rel (%p251) target = $region36
      $region35: #{decoder_forward.9} parent=23 // pred_region
        %p254 = scmp.lt.s32.totalorder %s14, 1
        %s255 = scalar_select %p254, %s14, 1
        %s256 = scalar_lea.vmem %s2, %s255
      $region36: #{decoder_forward.9} parent=23 // pred_fallthru
        _
    $region24: #{decoder_forward.9} parent=5 // pred_fallthru
      _
    %p257 = scmp.le.s32.totalorder 1, %s14
    %p258 = scmp.lt.s32.totalorder %s14, 3
    %p259 = pnand %p257, %p258
    %p260 = pneg %p259
    // Predicated region
    $region37: #{decoder_forward.9} parent=5 // pred_check
      _
    $region38: #{decoder_forward.9} parent=5 // pred_check_branch
      %262 = sbr.rel (%p259) target = $region40
    $region39: #{decoder_forward.9} parent=5 // pred_region
      %s263 = ssub.s32 %s14, 1
      %p264 = scmp.lt.s32.totalorder %s19, 1
      %s265 = scalar_select %p264, %s19, 1
      %s266 = smul.addr %s265, 4
      %s267 = smul.addr %s266, 4
      %s268 = scalar_lea.vmem %s0, %s267
      %p269 = pneg %p40
      %p270 = pneg %p37
      %p271 = scmp.lt.s32.totalorder %s19, 1
      %s272 = scalar_select %p271, %s19, 1
      %s273 = scalar_lea.vmem %s1, %s272
      %p274 = pneg %p66
      %p275 = pneg %p63
      %p276 = scmp.lt.s32.totalorder %s19, 1
      %s277 = scalar_select %p276, %s19, 1
      %s278 = scalar_lea.vmem %s2, %s277
      %p279 = pneg %p92
      %p280 = pneg %p89
      %p281 = pneg %p113
      %p282 = pneg %p110
      %p283 = pneg %p134
      %p284 = pneg %p131
      %p285 = pneg %p160
      %p286 = pneg %p157
      %p287 = scmp.lt.s32.totalorder %s19, 1
      %s288 = scalar_select %p287, %s19, 1
      %s289 = smul.addr %s288, 4
      %s290 = smul.addr %s289, 2
      %s291 = scalar_lea.vmem %s5, %s290
      %p292 = pneg %p186
      %p293 = pneg %p183
      %p294 = scmp.lt.s32.totalorder %s19, 1
      %s295 = scalar_select %p294, %s19, 1
      %s296 = scalar_lea.vmem %s6, %s295
      %p297 = pneg %p212
      %p298 = pneg %p209
      %p299 = scmp.lt.s32.totalorder %s19, 1
      %s300 = scalar_select %p299, %s19, 1
      %s301 = scalar_lea.vmem %s7, %s300
      %p302 = scmp.lt.s32.totalorder %s19, 1
      %s303 = scalar_select %p302, %s19, 1
      %s304 = smul.addr %s303, 4
      %s305 = smul.addr %s304, 4
      %s306 = scalar_lea.vmem %s0, %s305
      %p307 = scmp.lt.s32.totalorder %s19, 1
      %s308 = scalar_select %p307, %s19, 1
      %s309 = scalar_lea.vmem %s1, %s308
      %p310 = scmp.lt.s32.totalorder %s19, 1
      %s311 = scalar_select %p310, %s19, 1
      %s312 = scalar_lea.vmem %s2, %s311
      %p313 = scmp.lt.s32.totalorder %s19, 1
      %s314 = scalar_select %p313, %s19, 1
      %s315 = smul.addr %s314, 4
      %s316 = smul.addr %s315, 2
      %s317 = scalar_lea.vmem %s5, %s316
      %p318 = scmp.lt.s32.totalorder %s19, 1
      %s319 = scalar_select %p318, %s19, 1
      %s320 = scalar_lea.vmem %s6, %s319
      %p321 = scmp.lt.s32.totalorder %s19, 1
      %s322 = scalar_select %p321, %s19, 1
      %s323 = scalar_lea.vmem %s7, %s322
      %v325 = vld [vmem:[%s306] sm:$0xf]
      %v326 = vld [vmem:[%s306 + $0x4] sm:$0xf]
      %v327 = vld [vmem:[%s306 + $0x8] sm:$0xf]
      %v328 = vld [vmem:[%s306 + $0xc] sm:$0xf]
      %v329 = vld [vmem:[%s309] sm:$0x1]
      %v331 = vlaneseq
      %v332 = vshrl.u32 %v331, 7
      %v333 = vsub.s32 0, %v332
      %v334 = vrot.slane %v329, %v333
      %v336 = vmul.f32 %v325, %v334
      %v337 = vmul.f32 %v326, %v334
      %v338 = vmul.f32 %v327, %v334
      %v339 = vmul.f32 %v328, %v334
      %v340 = vld [vmem:[%s312] sm:$0x1]
      %v342 = vlaneseq
      %v343 = vshrl.u32 %v342, 7
      %v344 = vsub.s32 0, %v343
      %v345 = vrot.slane %v340, %v344
      %v347 = vadd.f32 %v336, %v345
      %v348 = vadd.f32 %v337, %v345
      %v349 = vadd.f32 %v338, %v345
      %v350 = vadd.f32 %v339, %v345
      %v351 = vxor.u32 %v347, 2147483648
      %v352 = vxor.u32 %v348, 2147483648
      %v353 = vxor.u32 %v349, 2147483648
      %v354 = vxor.u32 %v350, 2147483648
      %v355 = vmul.f32 %v351, 1.442695
      %v356 = vpow.pop %v355
      %v357 = vmul.f32 %v352, 1.442695
      %v358 = vpow.pop %v357
      %v359 = vmul.f32 %v353, 1.442695
      %v360 = vpow.pop %v359
      %v361 = vmul.f32 %v354, 1.442695
      %v362 = vpow.pop %v361
      %v363 = vadd.f32 %v356, 1.0
      %v364 = vadd.f32 %v358, 1.0
      %v365 = vadd.f32 %v360, 1.0
      %v366 = vadd.f32 %v362, 1.0
      %v367 = vrcp.pop %v363
      %v368 = vmul.f32 1.0, %v367
      %v369 = vrcp.pop %v364
      %v370 = vmul.f32 1.0, %v369
      %v371 = vrcp.pop %v365
      %v372 = vmul.f32 1.0, %v371
      %v373 = vrcp.pop %v366
      %v374 = vmul.f32 1.0, %v373
      %v375 = vmul.f32 %v347, %v368
      %v376 = vmul.f32 %v348, %v370
      %v377 = vmul.f32 %v349, %v372
      %v378 = vmul.f32 %v350, %v374
      %v379 = vpack.c.bf16 %v375, %v375
      %v380 = vpack.c.bf16 %v376, %v376
      %v381 = vpack.c.bf16 %v377, %v377
      %v382 = vpack.c.bf16 %v378, %v378
      %387 = vrot.lane.b32.xlu0 %v379, 64
      %v388 = vpop.permute.xlu0 %387
      %389 = vrot.lane.b32.xlu0 %v380, 64
      %v390 = vpop.permute.xlu0 %389
      %391 = vrot.lane.b32.xlu0 %v381, 64
      %v392 = vpop.permute.xlu0 %391
      %393 = vrot.lane.b32.xlu0 %v382, 64
      %v394 = vpop.permute.xlu0 %393
      %vm395 = vcmask 523264
      %v398 = vsel %vm395, 0, %v388
      %v401 = vsel %vm395, %v379, %v390
      %v404 = vsel %vm395, %v380, %v392
      %v407 = vsel %vm395, %v381, %v394
      %v413 = vcombine.low %v398, %v380
      %v415 = vunpack.c.l.s4 1983009808
      %v416 = vunpack.c.0.s8 %v415
      %v417 = vlaneseq
      %v418 = vshrl.u32 %v417, 7
      %v419 = vsub.s32 %v416, %v418
      %v420 = vrot.slane %v413, %v419
      %v421 = vcombine.low %v401, %v381
      %v423 = vunpack.c.l.s4 1983009808
      %v424 = vunpack.c.0.s8 %v423
      %v425 = vlaneseq
      %v426 = vshrl.u32 %v425, 7
      %v427 = vsub.s32 %v424, %v426
      %v428 = vrot.slane %v421, %v427
      %v429 = vcombine.low %v404, %v382
      %v431 = vunpack.c.l.s4 1983009808
      %v432 = vunpack.c.0.s8 %v431
      %v433 = vlaneseq
      %v434 = vshrl.u32 %v433, 7
      %v435 = vsub.s32 %v432, %v434
      %v436 = vrot.slane %v429, %v435
      %v437 = vcombine.low %v407, 0
      %v439 = vunpack.c.l.s4 1983009808
      %v440 = vunpack.c.0.s8 %v439
      %v441 = vlaneseq
      %v442 = vshrl.u32 %v441, 7
      %v443 = vsub.s32 %v440, %v442
      %v444 = vrot.slane %v437, %v443
      %v445 = vld [vmem:[%s3] sm:$0xff]
      %v446 = vld [vmem:[%s3 + $0x8] sm:$0xff]
      %v447 = vld [vmem:[%s3 + $0x10] sm:$0xff]
      %v448 = vld [vmem:[%s3 + $0x18] sm:$0xff]
      %v449 = vld [vmem:[%s3 + $0x20] sm:$0xff]
      %v450 = vld [vmem:[%s3 + $0x28] sm:$0xff]
      %v451 = vld [vmem:[%s3 + $0x30] sm:$0xff]
      %v452 = vld [vmem:[%s3 + $0x38] sm:$0xff]
      %v453 = vld [vmem:[%s3 + $0x40] sm:$0xff]
      %v454 = vld [vmem:[%s3 + $0x48] sm:$0xff]
      %v455 = vld [vmem:[%s3 + $0x50] sm:$0xff]
      %v456 = vld [vmem:[%s3 + $0x58] sm:$0xff]
      %v457 = vld [vmem:[%s3 + $0x60] sm:$0xff]
      %v458 = vld [vmem:[%s3 + $0x68] sm:$0xff]
      %v459 = vld [vmem:[%s3 + $0x70] sm:$0xff]
      %v460 = vld [vmem:[%s3 + $0x78] sm:$0xff]
      %v461 = vld [vmem:[%s3 + $0x80] sm:$0xff]
      %v462 = vld [vmem:[%s3 + $0x88] sm:$0xff]
      %v463 = vld [vmem:[%s3 + $0x90] sm:$0xff]
      %v464 = vld [vmem:[%s3 + $0x98] sm:$0xff]
      %v465 = vld [vmem:[%s3 + $0xa0] sm:$0xff]
      %v466 = vld [vmem:[%s3 + $0xa8] sm:$0xff]
      %v467 = vld [vmem:[%s3 + $0xb0] sm:$0xff]
      %v468 = vld [vmem:[%s3 + $0xb8] sm:$0xff]
      %v469 = vcombine.low %v420, %v428
      %v470 = vcombine.low %v436, %v444
      %v472 = vunpack.c.l.s4 1983009808
      %v473 = vunpack.c.0.s8 %v472
      %v474 = vlaneseq
      %v475 = vshrl.u32 %v474, 7
      %v476 = vsub.s32 %v473, %v475
      %v477 = vrot.slane %v469, %v476
      %v479 = vunpack.c.l.s4 1983009808
      %v480 = vunpack.c.0.s8 %v479
      %v481 = vlaneseq
      %v482 = vshrl.u32 %v481, 7
      %v483 = vsub.s32 %v480, %v482
      %v484 = vrot.slane %v470, %v483
      %v485 = vcombine.low %v477, %v484
      %v486 = vcombine.high %v477, %v484
      %v512 = vunpack.c.l.b16 %v445
      %v513 = vunpack.c.h.b16 %v445
      %v514 = vunpack.c.l.b16 %v446
      %v515 = vunpack.c.h.b16 %v446
      %v516 = vunpack.c.l.b16 %v447
      %v517 = vunpack.c.h.b16 %v447
      %v518 = vunpack.c.l.b16 %v448
      %v519 = vunpack.c.h.b16 %v448
      %v520 = vunpack.c.l.b16 %v449
      %v521 = vunpack.c.h.b16 %v449
      %v522 = vunpack.c.l.b16 %v450
      %v523 = vunpack.c.h.b16 %v450
      %v524 = vunpack.c.l.b16 %v451
      %v525 = vunpack.c.h.b16 %v451
      %v526 = vunpack.c.l.b16 %v452
      %v527 = vunpack.c.h.b16 %v452
      %v528 = vunpack.c.l.b16 %v453
      %v529 = vunpack.c.h.b16 %v453
      %v530 = vunpack.c.l.b16 %v454
      %v531 = vunpack.c.h.b16 %v454
      %v532 = vunpack.c.l.b16 %v455
      %v533 = vunpack.c.h.b16 %v455
      %v534 = vunpack.c.l.b16 %v456
      %v535 = vunpack.c.h.b16 %v456
      %v536 = vunpack.c.l.b16 %v457
      %v537 = vunpack.c.h.b16 %v457
      %v538 = vunpack.c.l.b16 %v458
      %v539 = vunpack.c.h.b16 %v458
      %v540 = vunpack.c.l.b16 %v459
      %v541 = vunpack.c.h.b16 %v459
      %v542 = vunpack.c.l.b16 %v460
      %v543 = vunpack.c.h.b16 %v460
      %v544 = vunpack.c.l.b16 %v461
      %v545 = vunpack.c.h.b16 %v461
      %v546 = vunpack.c.l.b16 %v462
      %v547 = vunpack.c.h.b16 %v462
      %v548 = vunpack.c.l.b16 %v463
      %v549 = vunpack.c.h.b16 %v463
      %v550 = vunpack.c.l.b16 %v464
      %v551 = vunpack.c.h.b16 %v464
      %v552 = vunpack.c.l.b16 %v465
      %v553 = vunpack.c.h.b16 %v465
      %v554 = vunpack.c.l.b16 %v466
      %v555 = vunpack.c.h.b16 %v466
      %v556 = vunpack.c.l.b16 %v467
      %v557 = vunpack.c.h.b16 %v467
      %v558 = vunpack.c.l.b16 %v468
      %v559 = vunpack.c.h.b16 %v468
      %v560 = vpack.c.b16 %v514, %v512
      %v561 = vpack.c.b16 %v515, %v513
      %v562 = vpack.c.b16 %v518, %v516
      %v563 = vpack.c.b16 %v519, %v517
      %v564 = vpack.c.b16 %v522, %v520
      %v565 = vpack.c.b16 %v523, %v521
      %v566 = vpack.c.b16 %v526, %v524
      %v567 = vpack.c.b16 %v527, %v525
      %v568 = vpack.c.b16 %v530, %v528
      %v569 = vpack.c.b16 %v531, %v529
      %v570 = vpack.c.b16 %v534, %v532
      %v571 = vpack.c.b16 %v535, %v533
      %v572 = vpack.c.b16 %v538, %v536
      %v573 = vpack.c.b16 %v539, %v537
      %v574 = vpack.c.b16 %v542, %v540
      %v575 = vpack.c.b16 %v543, %v541
      %v576 = vpack.c.b16 %v546, %v544
      %v577 = vpack.c.b16 %v547, %v545
      %v578 = vpack.c.b16 %v550, %v548
      %v579 = vpack.c.b16 %v551, %v549
      %v580 = vpack.c.b16 %v554, %v552
      %v581 = vpack.c.b16 %v555, %v553
      %v582 = vpack.c.b16 %v558, %v556
      %v583 = vpack.c.b16 %v559, %v557
      %v609 = vsel %vm395, %v486, 0
      %611 = vmatprep.subr.bf16.mxu0 %v575
      %612 = vmatpush1.bf16.msra.mxu0 %v574
      %613 = vmatprep.subr.bf16.mxu0 %v573
      %614 = vmatpush1.bf16.msra.mxu0 %v572
      %615 = vmatprep.subr.bf16.mxu0 %v571
      %616 = vmatpush1.bf16.msra.mxu0 %v570
      %617 = vmatprep.subr.bf16.mxu0 %v569
      %618 = vmatpush1.bf16.msra.mxu0 %v568
      %619 = vmatprep.subr.bf16.mxu0 %v567
      %620 = vmatpush1.bf16.msra.mxu0 %v566
      %621 = vmatprep.subr.bf16.mxu0 %v565
      %622 = vmatpush1.bf16.msra.mxu0 %v564
      %623 = vmatprep.subr.bf16.mxu0 %v563
      %624 = vmatpush1.bf16.msra.mxu0 %v562
      %625 = vmatprep.subr.bf16.mxu0 %v561
      %626 = vmatpush1.bf16.msra.mxu0 %v560
      %627 = vmatprep.subr.bf16.mxu0 0
      %628 = vmatpush2.bf16.msra.mxu0 0
      %629 = vmatprep.subr.bf16.mxu0 0
      %630 = vmatpush2.bf16.msra.mxu0 0
      %631 = vmatprep.subr.bf16.mxu0 0
      %632 = vmatpush2.bf16.msra.mxu0 0
      %633 = vmatprep.subr.bf16.mxu0 0
      %634 = vmatpush2.bf16.msra.mxu0 0
      %635 = vmatprep.subr.bf16.mxu0 %v583
      %636 = vmatpush2.bf16.msra.mxu0 %v582
      %637 = vmatprep.subr.bf16.mxu0 %v581
      %638 = vmatpush2.bf16.msra.mxu0 %v580
      %639 = vmatprep.subr.bf16.mxu0 %v579
      %640 = vmatpush2.bf16.msra.mxu0 %v578
      %641 = vmatprep.subr.bf16.mxu0 %v577
      %642 = vmatpush2.bf16.msra.mxu0 %v576
      %643 = vmatprep.mubr.bf16.mxu0 %v609
      %644 = vmatmul.mubr.bf16.gmra.mxu0 %v485
      %v645 = vpop.f32.mrf.mxu0
      %v646 = vadd.f32 0.0, %v645
      %v647 = vpop.f32.mrf.mxu0
      %v648 = vadd.f32 0.0, %v647
      %v649 = vpop.f32.mrf.mxu0
      %v650 = vadd.f32 0.0, %v649
      %v651 = vpop.f32.mrf.mxu0
      %v652 = vadd.f32 0.0, %v651
      %653 = vdwg.mxu0
      %v658 = vcombine.low %v646, %v648
      %v659 = vcombine.high %v646, %v648
      %v660 = vcombine.low %v650, %v652
      %v661 = vcombine.high %v650, %v652
      %v666 = vrot.slane %v658, 7
      %v667 = vrot.slane %v659, 7
      %v668 = vrot.slane %v660, 7
      %v669 = vrot.slane %v661, 7
      %vm674 = vcmask 1040384
      %v675 = vsel %vm674, 0.0, %v666
      %v676 = vsel %vm674, 0.0, %v667
      %v677 = vsel %vm674, 0.0, %v668
      %v678 = vsel %vm674, 0.0, %v669
      %683 = vrot.lane.b32.xlu0 %v675, 64
      %v684 = vpop.permute.xlu0 %683
      %685 = vrot.lane.b32.xlu0 %v676, 64
      %v686 = vpop.permute.xlu0 %685
      %687 = vrot.lane.b32.xlu0 %v677, 64
      %v688 = vpop.permute.xlu0 %687
      %689 = vrot.lane.b32.xlu0 %v678, 64
      %v690 = vpop.permute.xlu0 %689
      %v695 = vadd.f32 %v658, %v684
      %v696 = vadd.f32 %v659, %v686
      %v697 = vadd.f32 %v660, %v688
      %v698 = vadd.f32 %v661, %v690
      %v699 = vcombine.high %v658, %v658
      %v700 = vcombine.high %v659, %v659
      %v701 = vcombine.high %v660, %v660
      %v702 = vcombine.high %v661, %v661
      %v703 = vrot.slane %v699, 1
      %v704 = vrot.slane %v700, 1
      %v705 = vrot.slane %v701, 1
      %v706 = vrot.slane %v702, 1
      %vm711 = vcmask 1042432
      %v712 = vsel %vm711, %v703, 0.0
      %v713 = vsel %vm711, %v704, 0.0
      %v714 = vsel %vm711, %v705, 0.0
      %v715 = vsel %vm711, %v706, 0.0
      %720 = vrot.lane.b32.xlu0 %v712, 64
      %v721 = vpop.permute.xlu0 %720
      %722 = vrot.lane.b32.xlu0 %v713, 64
      %v723 = vpop.permute.xlu0 %722
      %724 = vrot.lane.b32.xlu0 %v714, 64
      %v725 = vpop.permute.xlu0 %724
      %726 = vrot.lane.b32.xlu0 %v715, 64
      %v727 = vpop.permute.xlu0 %726
      %v732 = vadd.f32 %v695, %v721
      %v733 = vadd.f32 %v696, %v723
      %v734 = vadd.f32 %v697, %v725
      %v735 = vadd.f32 %v698, %v727
      %v736 = vld [vmem:[%s4] sm:$0x1]
      %v738 = vlaneseq
      %v739 = vshrl.u32 %v738, 7
      %v740 = vsub.s32 0, %v739
      %v741 = vrot.slane %v736, %v740
      %742 = vrot.lane.b32.xlu0 %v741, 64
      %v743 = vpop.permute.xlu0 %742
      %v745 = vadd.f32 %v732, %v743
      %v746 = vadd.f32 %v733, %v743
      %v747 = vadd.f32 %v734, %v743
      %v748 = vadd.f32 %v735, %v743
      %v749 = vpack.c.bf16 %v745, %v745
      %v750 = vpack.c.bf16 %v746, %v746
      %v751 = vpack.c.bf16 %v747, %v747
      %v752 = vpack.c.bf16 %v748, %v748
      %v758 = vunpack.c.l.s4 1983009808
      %v759 = vunpack.c.0.s8 %v758
      %v760 = vlaneseq
      %v761 = vshrl.u32 %v760, 7
      %v762 = vsub.s32 %v759, %v761
      %v763 = vrot.slane %v749, %v762
      %v765 = vunpack.c.l.s4 1983009808
      %v766 = vunpack.c.0.s8 %v765
      %v767 = vlaneseq
      %v768 = vshrl.u32 %v767, 7
      %v769 = vsub.s32 %v766, %v768
      %v770 = vrot.slane %v750, %v769
      %v772 = vunpack.c.l.s4 1983009808
      %v773 = vunpack.c.0.s8 %v772
      %v774 = vlaneseq
      %v775 = vshrl.u32 %v774, 7
      %v776 = vsub.s32 %v773, %v775
      %v777 = vrot.slane %v751, %v776
      %v779 = vunpack.c.l.s4 1983009808
      %v780 = vunpack.c.0.s8 %v779
      %v781 = vlaneseq
      %v782 = vshrl.u32 %v781, 7
      %v783 = vsub.s32 %v780, %v782
      %v784 = vrot.slane %v752, %v783
      %785 = vrot.lane.b32.xlu0 %v763, 64
      %v786 = vpop.permute.xlu0 %785
      %787 = vrot.lane.b32.xlu0 %v770, 64
      %v788 = vpop.permute.xlu0 %787
      %789 = vrot.lane.b32.xlu0 %v777, 64
      %v790 = vpop.permute.xlu0 %789
      %791 = vrot.lane.b32.xlu0 %v784, 64
      %v792 = vpop.permute.xlu0 %791
      %vm797 = vcmask 517120
      %798 = vst.msk [vmem:[%s317] sm:$0x3] %vm797, %v786
      %799 = vst.msk [vmem:[%s317 + $0x2] sm:$0x3] %vm797, %v788
      %800 = vst.msk [vmem:[%s317 + $0x4] sm:$0x3] %vm797, %v790
      %801 = vst.msk [vmem:[%s317 + $0x6] sm:$0x3] %vm797, %v792
      %v806 = vcombine.low %v745, %v746
      %v807 = vcombine.low %v747, %v748
      %vm810 = vcmask 1048064
      %v811 = vsel %vm810, %v806, 0.0
      %v812 = vsel %vm810, %v807, 0.0
      %v813 = vadd.f32 %v811, %v812
      %v814 = vrot.slane %v813, 4
      %v815 = vadd.f32 %v813, %v814
      %v816 = vrot.slane %v815, 2
      %v817 = vadd.f32 %v815, %v816
      %v818 = vrot.slane %v817, 1
      %v819 = vadd.f32 %v817, %v818
      %821 = vrot.lane.b32.xlu0 %v819, 64
      %v822 = vpop.permute.xlu0 %821
      %vm824 = vcmask 516096
      %825 = vst.msk [vmem:[%s320] sm:$0x1] %vm824, %v822
      %v826 = vmul.f32 %v745, %v745
      %v827 = vmul.f32 %v746, %v746
      %v828 = vmul.f32 %v747, %v747
      %v829 = vmul.f32 %v748, %v748
      %v834 = vcombine.low %v826, %v827
      %v835 = vcombine.low %v828, %v829
      %v838 = vsel %vm810, %v834, 0.0
      %v839 = vsel %vm810, %v835, 0.0
      %v840 = vadd.f32 %v838, %v839
      %v841 = vrot.slane %v840, 4
      %v842 = vadd.f32 %v840, %v841
      %v843 = vrot.slane %v842, 2
      %v844 = vadd.f32 %v842, %v843
      %v845 = vrot.slane %v844, 1
      %v846 = vadd.f32 %v844, %v845
      %848 = vrot.lane.b32.xlu0 %v846, 64
      %v849 = vpop.permute.xlu0 %848
      %851 = vst.msk [vmem:[%s323] sm:$0x1] %vm824, %v849
      %p852 = scmp.lt.s32.totalorder %s19, 1
      %s853 = scalar_select %p852, %s19, 1
      %s854 = smul.addr %s853, 4
      %s855 = smul.addr %s854, 2
      %s856 = scalar_lea.vmem %s5, %s855
      %p857 = scmp.lt.s32.totalorder %s19, 1
      %s858 = scalar_select %p857, %s19, 1
      %s859 = scalar_lea.vmem %s6, %s858
      %p860 = scmp.lt.s32.totalorder %s19, 1
      %s861 = scalar_select %p860, %s19, 1
      %s862 = scalar_lea.vmem %s7, %s861
      // Predicated region
      $region41: #{decoder_forward.9} parent=39 // pred_check
        %p863 = pneg %p157
      $region42: #{decoder_forward.9} parent=39 // pred_check_branch
        %865 = sbr.rel (%p863) target = $region44
      $region43: #{decoder_forward.9} parent=39 // pred_region
        _
      $region44: #{decoder_forward.9} parent=39 // pred_fallthru
        _
      // Predicated region
      $region45: #{decoder_forward.9} parent=39 // pred_check
        %p866 = pneg %p183
      $region46: #{decoder_forward.9} parent=39 // pred_check_branch
        %868 = sbr.rel (%p866) target = $region48
      $region47: #{decoder_forward.9} parent=39 // pred_region
        _
      $region48: #{decoder_forward.9} parent=39 // pred_fallthru
        _
      // Predicated region
      $region49: #{decoder_forward.9} parent=39 // pred_check
        %p869 = pneg %p209
      $region50: #{decoder_forward.9} parent=39 // pred_check_branch
        %871 = sbr.rel (%p869) target = $region52
      $region51: #{decoder_forward.9} parent=39 // pred_region
        _
      $region52: #{decoder_forward.9} parent=39 // pred_fallthru
        _
    $region40: #{decoder_forward.9} parent=5 // pred_fallthru
      _
    %p872 = scmp.le.s32.totalorder 2, %s14
    // Predicated region
    $region53: #{decoder_forward.9} parent=5 // pred_check
      %p873 = pneg %p872
    $region54: #{decoder_forward.9} parent=5 // pred_check_branch
      %875 = sbr.rel (%p873) target = $region56
    $region55: #{decoder_forward.9} parent=5 // pred_region
      %s876 = ssub.s32 %s14, 2
      // Predicated region
      $region57: #{decoder_forward.9} parent=55 // pred_check
        %p877 = pneg %p163
      $region58: #{decoder_forward.9} parent=55 // pred_check_branch
        %879 = sbr.rel (%p877) target = $region60
      $region59: #{decoder_forward.9} parent=55 // pred_region
        %p880 = scmp.lt.s32.totalorder %s20, 1
        %s881 = scalar_select %p880, %s20, 1
        %s882 = smul.addr %s881, 4
        %s883 = smul.addr %s882, 2
        %s884 = scalar_lea.vmem %s5, %s883
      $region60: #{decoder_forward.9} parent=55 // pred_fallthru
        _
      // Predicated region
      $region61: #{decoder_forward.9} parent=55 // pred_check
        %p885 = pneg %p189
      $region62: #{decoder_forward.9} parent=55 // pred_check_branch
        %887 = sbr.rel (%p885) target = $region64
      $region63: #{decoder_forward.9} parent=55 // pred_region
        %p888 = scmp.lt.s32.totalorder %s20, 1
        %s889 = scalar_select %p888, %s20, 1
        %s890 = scalar_lea.vmem %s6, %s889
      $region64: #{decoder_forward.9} parent=55 // pred_fallthru
        _
      // Predicated region
      $region65: #{decoder_forward.9} parent=55 // pred_check
        %p891 = pneg %p215
      $region66: #{decoder_forward.9} parent=55 // pred_check_branch
        %893 = sbr.rel (%p891) target = $region68
      $region67: #{decoder_forward.9} parent=55 // pred_region
        %p894 = scmp.lt.s32.totalorder %s20, 1
        %s895 = scalar_select %p894, %s20, 1
        %s896 = scalar_lea.vmem %s7, %s895
      $region68: #{decoder_forward.9} parent=55 // pred_fallthru
        _
    $region56: #{decoder_forward.9} parent=5 // pred_fallthru
      _
  $region6: #{decoder_forward.9} parent=0 // loop_footer
    %s18 = sadd.s32 1, %s14
  $region7: #{decoder_forward.9} parent=0 // loop_footer_branch
    %13 = sbr.rel target = $region3
  $region8: #{decoder_forward.9} parent=0 // loop_exit
    _

// kernel: decoder_forward.11
$region0: #{decoder_forward.11}
  #allocation0 [shape = 'u32[]', space=smem, size = 0x4, offset = 0x4, fixed_abs, tag = 'smem constant byte address 0x4 - core index']
  #allocation1 [shape = 'u32[144,128]{1,0:T(1,128)}', space=vmem, size = 0x12000, scoped, tag = 'internal scratch']
  %s0 = inlined_call_operand.vmem [shape: bf16[2,4,4,64], index: 0, kind: input, shape index: {}]
  %s1 = inlined_call_operand.vmem [shape: bf16[192,192], index: 1, kind: input, shape index: {}]
  %s2 = inlined_call_operand.vmem [shape: f32[1,64], index: 2, kind: input, shape index: {}]
  %s3 = inlined_call_operand.vmem [shape: bf16[2,8,8,64], index: 3, kind: output, shape index: {0}]
  %s4 = inlined_call_operand.vmem [shape: f32[2,1,64], index: 4, kind: output, shape index: {1}]
  %s5 = inlined_call_operand.vmem [shape: f32[2,1,64], index: 5, kind: output, shape index: {2}]
  %6 = xla_tuple %s3, %s4, %s5
  %s7 = sld [smem:[#allocation0]]
  $region61: #{decoder_forward.11} parent=0
    _
  %s9 = ssub.s32 1, %s7
  %s10 = scalar_select 0, %s9, %s7
  loop: start=0, step=1, limit=4
  $region2: #{decoder_forward.11} parent=0 // loop_pre_header
    _
  $region3: #{decoder_forward.11} parent=0 // loop_header
    %s12 = sphi 0, %s16
    %p13 = scmp.ge.s32.totalorder %s12, 4
    %s22 = sphi 0, %s24
    %s25 = sphi 0, %s22
    %s26 = sphi 0, %s25
    %s42 = sphi 0, %s26
    %s46 = sphi 0, %s46
    %s48 = sphi 0, %s46
    %s49 = sphi 0, %s48
    %s63 = sphi 0, %s49
    %s67 = sphi 0, %s67
    %s69 = sphi 0, %s67
    %s70 = sphi 0, %s69
    %s84 = sphi 0, %s70
    %s90 = sphi 0, %s92
    %s93 = sphi 0, %s90
    %s94 = sphi 0, %s93
    %s110 = sphi 0, %s94
    %s116 = sphi 0, %s118
    %s119 = sphi 0, %s116
    %s120 = sphi 0, %s119
    %s136 = sphi 0, %s120
    %s142 = sphi 0, %s144
    %s145 = sphi 0, %s142
    %s146 = sphi 0, %s145
    %s162 = sphi 0, %s146
  $region4: #{decoder_forward.11} parent=0 // loop_header_branch
    %15 = sbr.rel (%p13) target = $region8
  $region5: #{decoder_forward.11} parent=0 // loop_body
    %s17 = ssub.s32 %s12, 1
    %s18 = ssub.s32 %s12, 2
    %s19 = sadd.s32 %s12, 1
    %s20 = ssub.s32 %s12, %s19
    %p21 = scmp.eq.s32.totalorder %s20, 0
    %s23 = sadd.s32 %s22, 1
    %s24 = scalar_select %p21, %s22, %s23
    %p27 = pneg %p21
    %p28 = scmp.eq.s32.totalorder %s12, 1
    %p29 = por %p27, %p28
    %p30 = scmp.ne.s32.totalorder %s22, %s25
    %p31 = scmp.eq.s32.totalorder %s12, 0
    %p32 = por %p30, %p31
    %p33 = scmp.ne.s32.totalorder %s22, %s25
    %p34 = scmp.eq.s32.totalorder %s17, 1
    %p35 = por %p33, %p34
    %p36 = scmp.ne.s32.totalorder %s25, %s26
    %p37 = scmp.eq.s32.totalorder %s17, 0
    %p38 = por %p36, %p37
    %p39 = scmp.ne.s32.totalorder %s25, %s26
    %p40 = scmp.eq.s32.totalorder %s18, 1
    %p41 = por %p39, %p40
    %p43 = scmp.ne.s32.totalorder %s26, %s42
    %p44 = scmp.eq.s32.totalorder %s18, 0
    %p45 = por %p43, %p44
    %s47 = sadd.s32 %s46, 1
    %p50 = scmp.eq.s32.totalorder %s12, 1
    %p51 = scmp.ne.s32.totalorder %s46, %s48
    %p52 = scmp.eq.s32.totalorder %s12, 0
    %p53 = por %p51, %p52
    %p54 = scmp.ne.s32.totalorder %s46, %s48
    %p55 = scmp.eq.s32.totalorder %s17, 1
    %p56 = por %p54, %p55
    %p57 = scmp.ne.s32.totalorder %s48, %s49
    %p58 = scmp.eq.s32.totalorder %s17, 0
    %p59 = por %p57, %p58
    %p60 = scmp.ne.s32.totalorder %s48, %s49
    %p61 = scmp.eq.s32.totalorder %s18, 1
    %p62 = por %p60, %p61
    %p64 = scmp.ne.s32.totalorder %s49, %s63
    %p65 = scmp.eq.s32.totalorder %s18, 0
    %p66 = por %p64, %p65
    %s68 = sadd.s32 %s67, 1
    %p71 = scmp.eq.s32.totalorder %s12, 1
    %p72 = scmp.ne.s32.totalorder %s67, %s69
    %p73 = scmp.eq.s32.totalorder %s12, 0
    %p74 = por %p72, %p73
    %p75 = scmp.ne.s32.totalorder %s67, %s69
    %p76 = scmp.eq.s32.totalorder %s17, 1
    %p77 = por %p75, %p76
    %p78 = scmp.ne.s32.totalorder %s69, %s70
    %p79 = scmp.eq.s32.totalorder %s17, 0
    %p80 = por %p78, %p79
    %p81 = scmp.ne.s32.totalorder %s69, %s70
    %p82 = scmp.eq.s32.totalorder %s18, 1
    %p83 = por %p81, %p82
    %p85 = scmp.ne.s32.totalorder %s70, %s84
    %p86 = scmp.eq.s32.totalorder %s18, 0
    %p87 = por %p85, %p86
    %s88 = ssub.s32 %s12, %s19
    %p89 = scmp.eq.s32.totalorder %s88, 0
    %s91 = sadd.s32 %s90, 1
    %s92 = scalar_select %p89, %s90, %s91
    %p95 = pneg %p89
    %p96 = scmp.eq.s32.totalorder %s12, 1
    %p97 = por %p95, %p96
    %p98 = scmp.ne.s32.totalorder %s90, %s93
    %p99 = scmp.eq.s32.totalorder %s12, 0
    %p100 = por %p98, %p99
    %p101 = scmp.ne.s32.totalorder %s90, %s93
    %p102 = scmp.eq.s32.totalorder %s17, 1
    %p103 = por %p101, %p102
    %p104 = scmp.ne.s32.totalorder %s93, %s94
    %p105 = scmp.eq.s32.totalorder %s17, 0
    %p106 = por %p104, %p105
    %p107 = scmp.ne.s32.totalorder %s93, %s94
    %p108 = scmp.eq.s32.totalorder %s18, 1
    %p109 = por %p107, %p108
    %p111 = scmp.ne.s32.totalorder %s94, %s110
    %p112 = scmp.eq.s32.totalorder %s18, 0
    %p113 = por %p111, %p112
    %s114 = ssub.s32 %s12, %s19
    %p115 = scmp.eq.s32.totalorder %s114, 0
    %s117 = sadd.s32 %s116, 1
    %s118 = scalar_select %p115, %s116, %s117
    %p121 = pneg %p115
    %p122 = scmp.eq.s32.totalorder %s12, 1
    %p123 = por %p121, %p122
    %p124 = scmp.ne.s32.totalorder %s116, %s119
    %p125 = scmp.eq.s32.totalorder %s12, 0
    %p126 = por %p124, %p125
    %p127 = scmp.ne.s32.totalorder %s116, %s119
    %p128 = scmp.eq.s32.totalorder %s17, 1
    %p129 = por %p127, %p128
    %p130 = scmp.ne.s32.totalorder %s119, %s120
    %p131 = scmp.eq.s32.totalorder %s17, 0
    %p132 = por %p130, %p131
    %p133 = scmp.ne.s32.totalorder %s119, %s120
    %p134 = scmp.eq.s32.totalorder %s18, 1
    %p135 = por %p133, %p134
    %p137 = scmp.ne.s32.totalorder %s120, %s136
    %p138 = scmp.eq.s32.totalorder %s18, 0
    %p139 = por %p137, %p138
    %s140 = ssub.s32 %s12, %s19
    %p141 = scmp.eq.s32.totalorder %s140, 0
    %s143 = sadd.s32 %s142, 1
    %s144 = scalar_select %p141, %s142, %s143
    %p147 = pneg %p141
    %p148 = scmp.eq.s32.totalorder %s12, 1
    %p149 = por %p147, %p148
    %p150 = scmp.ne.s32.totalorder %s142, %s145
    %p151 = scmp.eq.s32.totalorder %s12, 0
    %p152 = por %p150, %p151
    %p153 = scmp.ne.s32.totalorder %s142, %s145
    %p154 = scmp.eq.s32.totalorder %s17, 1
    %p155 = por %p153, %p154
    %p156 = scmp.ne.s32.totalorder %s145, %s146
    %p157 = scmp.eq.s32.totalorder %s17, 0
    %p158 = por %p156, %p157
    %p159 = scmp.ne.s32.totalorder %s145, %s146
    %p160 = scmp.eq.s32.totalorder %s18, 1
    %p161 = por %p159, %p160
    %p163 = scmp.ne.s32.totalorder %s146, %s162
    %p164 = scmp.eq.s32.totalorder %s18, 0
    %p165 = por %p163, %p164
    %p166 = scmp.le.s32.totalorder 1, %s12
    %p167 = scmp.lt.s32.totalorder %s12, 3
    %p168 = pnand %p166, %p167
    %p169 = pneg %p168
    // Predicated region
    $region9: #{decoder_forward.11} parent=5 // pred_check
      _
    $region10: #{decoder_forward.11} parent=5 // pred_check_branch
      %171 = sbr.rel (%p168) target = $region12
    $region11: #{decoder_forward.11} parent=5 // pred_region
      %s172 = ssub.s32 %s12, 1
      // Predicated region
      $region13: #{decoder_forward.11} parent=11 // pred_check
        %p173 = pneg %p59
      $region14: #{decoder_forward.11} parent=11 // pred_check_branch
        %175 = sbr.rel (%p173) target = $region16
      $region15: #{decoder_forward.11} parent=11 // pred_region
        _
      $region16: #{decoder_forward.11} parent=11 // pred_fallthru
        _
      // Predicated region
      $region17: #{decoder_forward.11} parent=11 // pred_check
        %p176 = pneg %p80
      $region18: #{decoder_forward.11} parent=11 // pred_check_branch
        %178 = sbr.rel (%p176) target = $region20
      $region19: #{decoder_forward.11} parent=11 // pred_region
        _
      $region20: #{decoder_forward.11} parent=11 // pred_fallthru
        _
    $region12: #{decoder_forward.11} parent=5 // pred_fallthru
      _
    %p179 = scmp.lt.s32.totalorder %s12, 2
    // Predicated region
    $region21: #{decoder_forward.11} parent=5 // pred_check
      %p180 = pneg %p179
    $region22: #{decoder_forward.11} parent=5 // pred_check_branch
      %182 = sbr.rel (%p180) target = $region24
    $region23: #{decoder_forward.11} parent=5 // pred_region
      // Predicated region
      $region25: #{decoder_forward.11} parent=23 // pred_check
        %p183 = pneg %p32
      $region26: #{decoder_forward.11} parent=23 // pred_check_branch
        %185 = sbr.rel (%p183) target = $region28
      $region27: #{decoder_forward.11} parent=23 // pred_region
        %p186 = scmp.lt.s32.totalorder %s12, 1
        %s187 = scalar_select %p186, %s12, 1
        %s188 = smul.addr %s187, 4
        %s189 = smul.addr %s188, 2
        %s190 = scalar_lea.vmem %s0, %s189
      $region28: #{decoder_forward.11} parent=23 // pred_fallthru
        _
    $region24: #{decoder_forward.11} parent=5 // pred_fallthru
      _
    %p191 = scmp.le.s32.totalorder 1, %s12
    %p192 = scmp.lt.s32.totalorder %s12, 3
    %p193 = pnand %p191, %p192
    %p194 = pneg %p193
    // Predicated region
    $region29: #{decoder_forward.11} parent=5 // pred_check
      _
    $region30: #{decoder_forward.11} parent=5 // pred_check_branch
      %196 = sbr.rel (%p193) target = $region32
    $region31: #{decoder_forward.11} parent=5 // pred_region
      %s197 = ssub.s32 %s12, 1
      %p198 = scmp.lt.s32.totalorder %s17, 1
      %s199 = scalar_select %p198, %s17, 1
      %s200 = smul.addr %s199, 4
      %s201 = smul.addr %s200, 2
      %s202 = scalar_lea.vmem %s0, %s201
      %p203 = pneg %p38
      %p204 = pneg %p35
      %p205 = pneg %p59
      %p206 = pneg %p56
      %p207 = pneg %p80
      %p208 = pneg %p77
      %p209 = pneg %p106
      %p210 = pneg %p103
      %p211 = scmp.lt.s32.totalorder %s17, 1
      %s212 = scalar_select %p211, %s17, 1
      %s213 = smul.addr %s212, 8
      %s214 = smul.addr %s213, 4
      %s215 = scalar_lea.vmem %s3, %s214
      %p216 = pneg %p132
      %p217 = pneg %p129
      %p218 = scmp.lt.s32.totalorder %s17, 1
      %s219 = scalar_select %p218, %s17, 1
      %s220 = scalar_lea.vmem %s4, %s219
      %p221 = pneg %p158
      %p222 = pneg %p155
      %p223 = scmp.lt.s32.totalorder %s17, 1
      %s224 = scalar_select %p223, %s17, 1
      %s225 = scalar_lea.vmem %s5, %s224
      %p226 = scmp.lt.s32.totalorder %s17, 1
      %s227 = scalar_select %p226, %s17, 1
      %s228 = smul.addr %s227, 4
      %s229 = smul.addr %s228, 2
      %s230 = scalar_lea.vmem %s0, %s229
      %p231 = scmp.lt.s32.totalorder %s17, 1
      %s232 = scalar_select %p231, %s17, 1
      %s233 = smul.addr %s232, 8
      %s234 = smul.addr %s233, 4
      %s235 = scalar_lea.vmem %s3, %s234
      %p236 = scmp.lt.s32.totalorder %s17, 1
      %s237 = scalar_select %p236, %s17, 1
      %s238 = scalar_lea.vmem %s4, %s237
      %p239 = scmp.lt.s32.totalorder %s17, 1
      %s240 = scalar_select %p239, %s17, 1
      %s241 = scalar_lea.vmem %s5, %s240
      %v243 = vld [vmem:[%s230] sm:$0x3]
      %v244 = vld [vmem:[%s230 + $0x2] sm:$0x3]
      %v245 = vld [vmem:[%s230 + $0x4] sm:$0x3]
      %v246 = vld [vmem:[%s230 + $0x6] sm:$0x3]
      %v252 = vunpack.c.l.s4 1966171168
      %v253 = vunpack.c.0.s8 %v252
      %v254 = vlaneseq
      %v255 = vshrl.u32 %v254, 7
      %v256 = vsub.s32 %v253, %v255
      %v257 = vrot.slane %v243, %v256
      %v258 = vcombine.high %v257, %v257
      %v260 = vunpack.c.l.s4 1966171168
      %v261 = vunpack.c.0.s8 %v260
      %v262 = vlaneseq
      %v263 = vshrl.u32 %v262, 7
      %v264 = vsub.s32 %v261, %v263
      %v265 = vrot.slane %v244, %v264
      %v266 = vcombine.high %v265, %v265
      %v268 = vunpack.c.l.s4 1966171168
      %v269 = vunpack.c.0.s8 %v268
      %v270 = vlaneseq
      %v271 = vshrl.u32 %v270, 7
      %v272 = vsub.s32 %v269, %v271
      %v273 = vrot.slane %v245, %v272
      %v274 = vcombine.high %v273, %v273
      %v276 = vunpack.c.l.s4 1966171168
      %v277 = vunpack.c.0.s8 %v276
      %v278 = vlaneseq
      %v279 = vshrl.u32 %v278, 7
      %v280 = vsub.s32 %v277, %v279
      %v281 = vrot.slane %v246, %v280
      %v282 = vcombine.high %v281, %v281
      %v283 = vunpack.i.l.s16 %v257
      %v284 = vunpack.i.h.s16 %v257
      %v285 = vunpack.i.l.s16 %v258
      %v286 = vunpack.i.h.s16 %v258
      %v287 = vunpack.i.l.s16 %v265
      %v288 = vunpack.i.h.s16 %v265
      %v289 = vunpack.i.l.s16 %v266
      %v290 = vunpack.i.h.s16 %v266
      %v291 = vunpack.i.l.s16 %v273
      %v292 = vunpack.i.h.s16 %v273
      %v293 = vunpack.i.l.s16 %v274
      %v294 = vunpack.i.h.s16 %v274
      %v295 = vunpack.i.l.s16 %v281
      %v296 = vunpack.i.h.s16 %v281
      %v297 = vunpack.i.l.s16 %v282
      %v298 = vunpack.i.h.s16 %v282
      %v299 = vpack.i.b16 %v283, %v283
      %v300 = vpack.i.b16 %v284, %v284
      %v301 = vpack.i.b16 %v285, %v285
      %v302 = vpack.i.b16 %v286, %v286
      %v303 = vpack.i.b16 %v287, %v287
      %v304 = vpack.i.b16 %v288, %v288
      %v305 = vpack.i.b16 %v289, %v289
      %v306 = vpack.i.b16 %v290, %v290
      %v307 = vpack.i.b16 %v291, %v291
      %v308 = vpack.i.b16 %v292, %v292
      %v309 = vpack.i.b16 %v293, %v293
      %v310 = vpack.i.b16 %v294, %v294
      %v311 = vpack.i.b16 %v295, %v295
      %v312 = vpack.i.b16 %v296, %v296
      %v313 = vpack.i.b16 %v297, %v297
      %v314 = vpack.i.b16 %v298, %v298
      %v315 = vlaneseq
      %v316 = vshrl.u32 %v315, 7
      %v317 = vsub.s32 0, %v316
      %v318 = vrot.slane %v299, %v317
      %v319 = vlaneseq
      %v320 = vshrl.u32 %v319, 7
      %v321 = vsub.s32 0, %v320
      %v322 = vrot.slane %v300, %v321
      %v323 = vlaneseq
      %v324 = vshrl.u32 %v323, 7
      %v325 = vsub.s32 0, %v324
      %v326 = vrot.slane %v301, %v325
      %v327 = vlaneseq
      %v328 = vshrl.u32 %v327, 7
      %v329 = vsub.s32 0, %v328
      %v330 = vrot.slane %v302, %v329
      %v331 = vlaneseq
      %v332 = vshrl.u32 %v331, 7
      %v333 = vsub.s32 0, %v332
      %v334 = vrot.slane %v303, %v333
      %v335 = vlaneseq
      %v336 = vshrl.u32 %v335, 7
      %v337 = vsub.s32 0, %v336
      %v338 = vrot.slane %v304, %v337
      %v339 = vlaneseq
      %v340 = vshrl.u32 %v339, 7
      %v341 = vsub.s32 0, %v340
      %v342 = vrot.slane %v305, %v341
      %v343 = vlaneseq
      %v344 = vshrl.u32 %v343, 7
      %v345 = vsub.s32 0, %v344
      %v346 = vrot.slane %v306, %v345
      %v347 = vlaneseq
      %v348 = vshrl.u32 %v347, 7
      %v349 = vsub.s32 0, %v348
      %v350 = vrot.slane %v307, %v349
      %v351 = vlaneseq
      %v352 = vshrl.u32 %v351, 7
      %v353 = vsub.s32 0, %v352
      %v354 = vrot.slane %v308, %v353
      %v355 = vlaneseq
      %v356 = vshrl.u32 %v355, 7
      %v357 = vsub.s32 0, %v356
      %v358 = vrot.slane %v309, %v357
      %v359 = vlaneseq
      %v360 = vshrl.u32 %v359, 7
      %v361 = vsub.s32 0, %v360
      %v362 = vrot.slane %v310, %v361
      %v363 = vlaneseq
      %v364 = vshrl.u32 %v363, 7
      %v365 = vsub.s32 0, %v364
      %v366 = vrot.slane %v311, %v365
      %v367 = vlaneseq
      %v368 = vshrl.u32 %v367, 7
      %v369 = vsub.s32 0, %v368
      %v370 = vrot.slane %v312, %v369
      %v371 = vlaneseq
      %v372 = vshrl.u32 %v371, 7
      %v373 = vsub.s32 0, %v372
      %v374 = vrot.slane %v313, %v373
      %v375 = vlaneseq
      %v376 = vshrl.u32 %v375, 7
      %v377 = vsub.s32 0, %v376
      %v378 = vrot.slane %v314, %v377
      %v380 = vpack.i.b16 %v318, %v318
      %v382 = vlaneseq
      %v383 = vshrl.u32 %v382, 7
      %v384 = vsub.s32 0, %v383
      %v385 = vrot.slane %v380, %v384
      %v387 = vpack.i.b16 %v322, %v322
      %v389 = vlaneseq
      %v390 = vshrl.u32 %v389, 7
      %v391 = vsub.s32 0, %v390
      %v392 = vrot.slane %v387, %v391
      %v394 = vpack.i.b16 %v326, %v326
      %v396 = vlaneseq
      %v397 = vshrl.u32 %v396, 7
      %v398 = vsub.s32 0, %v397
      %v399 = vrot.slane %v394, %v398
      %v401 = vpack.i.b16 %v330, %v330
      %v403 = vlaneseq
      %v404 = vshrl.u32 %v403, 7
      %v405 = vsub.s32 0, %v404
      %v406 = vrot.slane %v401, %v405
      %v408 = vpack.i.b16 %v334, %v334
      %v410 = vlaneseq
      %v411 = vshrl.u32 %v410, 7
      %v412 = vsub.s32 0, %v411
      %v413 = vrot.slane %v408, %v412
      %v415 = vpack.i.b16 %v338, %v338
      %v417 = vlaneseq
      %v418 = vshrl.u32 %v417, 7
      %v419 = vsub.s32 0, %v418
      %v420 = vrot.slane %v415, %v419
      %v422 = vpack.i.b16 %v342, %v342
      %v424 = vlaneseq
      %v425 = vshrl.u32 %v424, 7
      %v426 = vsub.s32 0, %v425
      %v427 = vrot.slane %v422, %v426
      %v429 = vpack.i.b16 %v346, %v346
      %v431 = vlaneseq
      %v432 = vshrl.u32 %v431, 7
      %v433 = vsub.s32 0, %v432
      %v434 = vrot.slane %v429, %v433
      %v436 = vpack.i.b16 %v350, %v350
      %v438 = vlaneseq
      %v439 = vshrl.u32 %v438, 7
      %v440 = vsub.s32 0, %v439
      %v441 = vrot.slane %v436, %v440
      %v443 = vpack.i.b16 %v354, %v354
      %v445 = vlaneseq
      %v446 = vshrl.u32 %v445, 7
      %v447 = vsub.s32 0, %v446
      %v448 = vrot.slane %v443, %v447
      %v450 = vpack.i.b16 %v358, %v358
      %v452 = vlaneseq
      %v453 = vshrl.u32 %v452, 7
      %v454 = vsub.s32 0, %v453
      %v455 = vrot.slane %v450, %v454
      %v457 = vpack.i.b16 %v362, %v362
      %v459 = vlaneseq
      %v460 = vshrl.u32 %v459, 7
      %v461 = vsub.s32 0, %v460
      %v462 = vrot.slane %v457, %v461
      %v464 = vpack.i.b16 %v366, %v366
      %v466 = vlaneseq
      %v467 = vshrl.u32 %v466, 7
      %v468 = vsub.s32 0, %v467
      %v469 = vrot.slane %v464, %v468
      %v471 = vpack.i.b16 %v370, %v370
      %v473 = vlaneseq
      %v474 = vshrl.u32 %v473, 7
      %v475 = vsub.s32 0, %v474
      %v476 = vrot.slane %v471, %v475
      %v478 = vpack.i.b16 %v374, %v374
      %v480 = vlaneseq
      %v481 = vshrl.u32 %v480, 7
      %v482 = vsub.s32 0, %v481
      %v483 = vrot.slane %v478, %v482
      %v485 = vpack.i.b16 %v378, %v378
      %v487 = vlaneseq
      %v488 = vshrl.u32 %v487, 7
      %v489 = vsub.s32 0, %v488
      %v490 = vrot.slane %v485, %v489
      %v507 = vcombine.low %v385, %v392
      %v508 = vcombine.low %v399, %v406
      %v510 = vunpack.c.l.s4 1966171168
      %v511 = vunpack.c.0.s8 %v510
      %v512 = vlaneseq
      %v513 = vshrl.u32 %v512, 7
      %v514 = vsub.s32 %v511, %v513
      %v515 = vrot.slane %v507, %v514
      %v517 = vunpack.c.l.s4 1966171168
      %v518 = vunpack.c.0.s8 %v517
      %v519 = vlaneseq
      %v520 = vshrl.u32 %v519, 7
      %v521 = vsub.s32 %v518, %v520
      %v522 = vrot.slane %v508, %v521
      %v523 = vcombine.low %v515, %v522
      %v525 = vunpack.c.l.s4 1966171168
      %v526 = vunpack.c.0.s8 %v525
      %v527 = vlaneseq
      %v528 = vshrl.u32 %v527, 7
      %v529 = vsub.s32 %v526, %v528
      %v530 = vrot.slane %v523, %v529
      %v531 = vcombine.low %v413, %v420
      %v532 = vcombine.low %v427, %v434
      %v534 = vunpack.c.l.s4 1966171168
      %v535 = vunpack.c.0.s8 %v534
      %v536 = vlaneseq
      %v537 = vshrl.u32 %v536, 7
      %v538 = vsub.s32 %v535, %v537
      %v539 = vrot.slane %v531, %v538
      %v541 = vunpack.c.l.s4 1966171168
      %v542 = vunpack.c.0.s8 %v541
      %v543 = vlaneseq
      %v544 = vshrl.u32 %v543, 7
      %v545 = vsub.s32 %v542, %v544
      %v546 = vrot.slane %v532, %v545
      %v547 = vcombine.low %v539, %v546
      %v549 = vunpack.c.l.s4 1966171168
      %v550 = vunpack.c.0.s8 %v549
      %v551 = vlaneseq
      %v552 = vshrl.u32 %v551, 7
      %v553 = vsub.s32 %v550, %v552
      %v554 = vrot.slane %v547, %v553
      %v555 = vcombine.low %v441, %v448
      %v556 = vcombine.low %v455, %v462
      %v558 = vunpack.c.l.s4 1966171168
      %v559 = vunpack.c.0.s8 %v558
      %v560 = vlaneseq
      %v561 = vshrl.u32 %v560, 7
      %v562 = vsub.s32 %v559, %v561
      %v563 = vrot.slane %v555, %v562
      %v565 = vunpack.c.l.s4 1966171168
      %v566 = vunpack.c.0.s8 %v565
      %v567 = vlaneseq
      %v568 = vshrl.u32 %v567, 7
      %v569 = vsub.s32 %v566, %v568
      %v570 = vrot.slane %v556, %v569
      %v571 = vcombine.low %v563, %v570
      %v573 = vunpack.c.l.s4 1966171168
      %v574 = vunpack.c.0.s8 %v573
      %v575 = vlaneseq
      %v576 = vshrl.u32 %v575, 7
      %v577 = vsub.s32 %v574, %v576
      %v578 = vrot.slane %v571, %v577
      %v579 = vcombine.low %v469, %v476
      %v580 = vcombine.low %v483, %v490
      %v582 = vunpack.c.l.s4 1966171168
      %v583 = vunpack.c.0.s8 %v582
      %v584 = vlaneseq
      %v585 = vshrl.u32 %v584, 7
      %v586 = vsub.s32 %v583, %v585
      %v587 = vrot.slane %v579, %v586
      %v589 = vunpack.c.l.s4 1966171168
      %v590 = vunpack.c.0.s8 %v589
      %v591 = vlaneseq
      %v592 = vshrl.u32 %v591, 7
      %v593 = vsub.s32 %v590, %v592
      %v594 = vrot.slane %v580, %v593
      %v595 = vcombine.low %v587, %v594
      %v597 = vunpack.c.l.s4 1966171168
      %v598 = vunpack.c.0.s8 %v597
      %v599 = vlaneseq
      %v600 = vshrl.u32 %v599, 7
      %v601 = vsub.s32 %v598, %v600
      %v602 = vrot.slane %v595, %v601
      %603 = vrot.lane.b32.xlu0 %v530, 64
      %v604 = vpop.permute.xlu0 %603
      %605 = vrot.lane.b32.xlu0 %v554, 64
      %v606 = vpop.permute.xlu0 %605
      %607 = vrot.lane.b32.xlu0 %v578, 64
      %v608 = vpop.permute.xlu0 %607
      %609 = vrot.lane.b32.xlu0 %v602, 64
      %v610 = vpop.permute.xlu0 %609
      %v612 = vcombine.low 0, 0
      %v614 = vunpack.c.l.s4 1966171168
      %v615 = vunpack.c.0.s8 %v614
      %v616 = vlaneseq
      %v617 = vshrl.u32 %v616, 7
      %v618 = vsub.s32 %v615, %v617
      %v619 = vrot.slane %v612, %v618
      %v620 = vcombine.low %v619, %v619
      %v622 = vunpack.c.l.s4 1966171168
      %v623 = vunpack.c.0.s8 %v622
      %v624 = vlaneseq
      %v625 = vshrl.u32 %v624, 7
      %v626 = vsub.s32 %v623, %v625
      %v627 = vrot.slane %v620, %v626
      %vm628 = vcmask 523264
      %v631 = vsel %vm628, 0, %v604
      %v633 = vsel %vm628, %v530, %v604
      %v635 = vsel %vm628, %v530, %v606
      %v637 = vsel %vm628, %v554, %v606
      %v639 = vsel %vm628, %v554, %v608
      %v641 = vsel %vm628, %v578, %v608
      %v643 = vsel %vm628, %v578, %v610
      %v645 = vsel %vm628, %v602, %v610
      %v654 = vunpack.c.l.b16 %v631
      %v655 = vunpack.c.l.b16 %v530
      %v656 = vunpack.c.l.b16 %v633
      %v657 = vunpack.c.l.b16 %v554
      %v658 = vunpack.c.l.b16 %v635
      %v659 = vunpack.c.l.b16 %v637
      %v660 = vunpack.c.l.b16 %v578
      %v661 = vunpack.c.l.b16 %v639
      %v662 = vunpack.c.l.b16 %v641
      %v663 = vunpack.c.l.b16 %v602
      %v664 = vunpack.c.l.b16 %v643
      %v665 = vunpack.c.l.b16 %v645
      %v666 = vunpack.c.l.b16 %v627
      %v667 = vld [vmem:[%s1] sm:$0xff]
      %v668 = vld [vmem:[%s1 + $0x8] sm:$0xff]
      %v669 = vld [vmem:[%s1 + $0x10] sm:$0xff]
      %v670 = vld [vmem:[%s1 + $0x18] sm:$0xff]
      %v671 = vld [vmem:[%s1 + $0x20] sm:$0xff]
      %v672 = vld [vmem:[%s1 + $0x28] sm:$0xff]
      %v673 = vld [vmem:[%s1 + $0x30] sm:$0xff]
      %v674 = vld [vmem:[%s1 + $0x38] sm:$0xff]
      %v675 = vld [vmem:[%s1 + $0x40] sm:$0xff]
      %v676 = vld [vmem:[%s1 + $0x48] sm:$0xff]
      %v677 = vld [vmem:[%s1 + $0x50] sm:$0xff]
      %v678 = vld [vmem:[%s1 + $0x58] sm:$0xff]
      %v679 = vld [vmem:[%s1 + $0x60] sm:$0xff]
      %v680 = vld [vmem:[%s1 + $0x68] sm:$0xff]
      %v681 = vld [vmem:[%s1 + $0x70] sm:$0xff]
      %v682 = vld [vmem:[%s1 + $0x78] sm:$0xff]
      %v683 = vld [vmem:[%s1 + $0x80] sm:$0xff]
      %v684 = vld [vmem:[%s1 + $0x88] sm:$0xff]
      %v685 = vld [vmem:[%s1 + $0x90] sm:$0xff]
      %v686 = vld [vmem:[%s1 + $0x98] sm:$0xff]
      %v687 = vld [vmem:[%s1 + $0xa0] sm:$0xff]
      %v688 = vld [vmem:[%s1 + $0xa8] sm:$0xff]
      %v689 = vld [vmem:[%s1 + $0xb0] sm:$0xff]
      %v690 = vld [vmem:[%s1 + $0xb8] sm:$0xff]
      %v691 = vpack.c.b16 %v656, %v654
      %v692 = vpack.c.b16 %v657, %v655
      %v693 = vpack.c.b16 %v659, %v658
      %v694 = vpack.c.b16 %v660, %v657
      %v695 = vpack.c.b16 %v662, %v661
      %v696 = vpack.c.b16 %v663, %v660
      %v697 = vpack.c.b16 %v665, %v664
      %v698 = vpack.c.b16 %v666, %v663
      %v727 = vunpack.c.l.b16 %v667
      %v728 = vunpack.c.h.b16 %v667
      %v729 = vunpack.c.l.b16 %v668
      %v730 = vunpack.c.h.b16 %v668
      %v731 = vunpack.c.l.b16 %v669
      %v732 = vunpack.c.h.b16 %v669
      %v733 = vunpack.c.l.b16 %v670
      %v734 = vunpack.c.h.b16 %v670
      %v735 = vunpack.c.l.b16 %v671
      %v736 = vunpack.c.h.b16 %v671
      %v737 = vunpack.c.l.b16 %v672
      %v738 = vunpack.c.h.b16 %v672
      %v739 = vunpack.c.l.b16 %v673
      %v740 = vunpack.c.h.b16 %v673
      %v741 = vunpack.c.l.b16 %v674
      %v742 = vunpack.c.h.b16 %v674
      %v743 = vunpack.c.l.b16 %v675
      %v744 = vunpack.c.h.b16 %v675
      %v745 = vunpack.c.l.b16 %v676
      %v746 = vunpack.c.h.b16 %v676
      %v747 = vunpack.c.l.b16 %v677
      %v748 = vunpack.c.h.b16 %v677
      %v749 = vunpack.c.l.b16 %v678
      %v750 = vunpack.c.h.b16 %v678
      %v751 = vunpack.c.l.b16 %v679
      %v752 = vunpack.c.h.b16 %v679
      %v753 = vunpack.c.l.b16 %v680
      %v754 = vunpack.c.h.b16 %v680
      %v755 = vunpack.c.l.b16 %v681
      %v756 = vunpack.c.h.b16 %v681
      %v757 = vunpack.c.l.b16 %v682
      %v758 = vunpack.c.h.b16 %v682
      %v759 = vunpack.c.l.b16 %v683
      %v760 = vunpack.c.h.b16 %v683
      %v761 = vunpack.c.l.b16 %v684
      %v762 = vunpack.c.h.b16 %v684
      %v763 = vunpack.c.l.b16 %v685
      %v764 = vunpack.c.h.b16 %v685
      %v765 = vunpack.c.l.b16 %v686
      %v766 = vunpack.c.h.b16 %v686
      %v767 = vunpack.c.l.b16 %v687
      %v768 = vunpack.c.h.b16 %v687
      %v769 = vunpack.c.l.b16 %v688
      %v770 = vunpack.c.h.b16 %v688
      %v771 = vunpack.c.l.b16 %v689
      %v772 = vunpack.c.h.b16 %v689
      %v773 = vunpack.c.l.b16 %v690
      %v774 = vunpack.c.h.b16 %v690
      %v775 = vpack.c.b16 %v729, %v727
      %v776 = vpack.c.b16 %v730, %v728
      %v777 = vpack.c.b16 %v733, %v731
      %v778 = vpack.c.b16 %v734, %v732
      %v779 = vpack.c.b16 %v737, %v735
      %v780 = vpack.c.b16 %v738, %v736
      %v781 = vpack.c.b16 %v741, %v739
      %v782 = vpack.c.b16 %v742, %v740
      %v783 = vpack.c.b16 %v745, %v743
      %v784 = vpack.c.b16 %v746, %v744
      %v785 = vpack.c.b16 %v749, %v747
      %v786 = vpack.c.b16 %v750, %v748
      %v787 = vpack.c.b16 %v753, %v751
      %v788 = vpack.c.b16 %v754, %v752
      %v789 = vpack.c.b16 %v757, %v755
      %v790 = vpack.c.b16 %v758, %v756
      %v791 = vpack.c.b16 %v761, %v759
      %v792 = vpack.c.b16 %v762, %v760
      %v793 = vpack.c.b16 %v765, %v763
      %v794 = vpack.c.b16 %v766, %v764
      %v795 = vpack.c.b16 %v769, %v767
      %v796 = vpack.c.b16 %v770, %v768
      %v797 = vpack.c.b16 %v773, %v771
      %v798 = vpack.c.b16 %v774, %v772
      %v824 = vsel %vm628, %v692, 0
      %v827 = vsel %vm628, %v694, 0
      %v830 = vsel %vm628, %v696, 0
      %v833 = vsel %vm628, %v698, 0
      %835 = vmatprep.subr.bf16.mxu0 %v790
      %836 = vmatpush1.bf16.msra.mxu0 %v789
      %837 = vmatprep.subr.bf16.mxu0 %v788
      %838 = vmatpush1.bf16.msra.mxu0 %v787
      %839 = vmatprep.subr.bf16.mxu0 %v786
      %840 = vmatpush1.bf16.msra.mxu0 %v785
      %841 = vmatprep.subr.bf16.mxu0 %v784
      %842 = vmatpush1.bf16.msra.mxu0 %v783
      %843 = vmatprep.subr.bf16.mxu0 %v782
      %844 = vmatpush1.bf16.msra.mxu0 %v781
      %845 = vmatprep.subr.bf16.mxu0 %v780
      %846 = vmatpush1.bf16.msra.mxu0 %v779
      %847 = vmatprep.subr.bf16.mxu0 %v778
      %848 = vmatpush1.bf16.msra.mxu0 %v777
      %849 = vmatprep.subr.bf16.mxu0 %v776
      %850 = vmatpush1.bf16.msra.mxu0 %v775
      %851 = vmatprep.subr.bf16.mxu0 0
      %852 = vmatpush2.bf16.msra.mxu0 0
      %853 = vmatprep.subr.bf16.mxu0 0
      %854 = vmatpush2.bf16.msra.mxu0 0
      %855 = vmatprep.subr.bf16.mxu0 0
      %856 = vmatpush2.bf16.msra.mxu0 0
      %857 = vmatprep.subr.bf16.mxu0 0
      %858 = vmatpush2.bf16.msra.mxu0 0
      %859 = vmatprep.subr.bf16.mxu0 %v798
      %860 = vmatpush2.bf16.msra.mxu0 %v797
      %861 = vmatprep.subr.bf16.mxu0 %v796
      %862 = vmatpush2.bf16.msra.mxu0 %v795
      %863 = vmatprep.subr.bf16.mxu0 %v794
      %864 = vmatpush2.bf16.msra.mxu0 %v793
      %865 = vmatprep.subr.bf16.mxu0 %v792
      %866 = vmatpush2.bf16.msra.mxu0 %v791
      %867 = vmatprep.mubr.bf16.mxu0 %v824
      %868 = vmatmul.mubr.bf16.gmra.mxu0 %v691
      %v869 = vpop.f32.mrf.mxu0
      %v870 = vadd.f32 0.0, %v869
      %v871 = vpop.f32.mrf.mxu0
      %v872 = vadd.f32 0.0, %v871
      %v873 = vpop.f32.mrf.mxu0
      %v874 = vadd.f32 0.0, %v873
      %v875 = vpop.f32.mrf.mxu0
      %v876 = vadd.f32 0.0, %v875
      %877 = vmatprep.mubr.bf16.mxu0 %v827
      %878 = vmatmul.mubr.bf16.gmra.mxu0 %v693
      %v879 = vpop.f32.mrf.mxu0
      %v880 = vadd.f32 0.0, %v879
      %v881 = vpop.f32.mrf.mxu0
      %v882 = vadd.f32 0.0, %v881
      %v883 = vpop.f32.mrf.mxu0
      %v884 = vadd.f32 0.0, %v883
      %v885 = vpop.f32.mrf.mxu0
      %v886 = vadd.f32 0.0, %v885
      %887 = vmatprep.mubr.bf16.mxu0 %v830
      %888 = vmatmul.mubr.bf16.gmra.mxu0 %v695
      %v889 = vpop.f32.mrf.mxu0
      %v890 = vadd.f32 0.0, %v889
      %v891 = vpop.f32.mrf.mxu0
      %v892 = vadd.f32 0.0, %v891
      %v893 = vpop.f32.mrf.mxu0
      %v894 = vadd.f32 0.0, %v893
      %v895 = vpop.f32.mrf.mxu0
      %v896 = vadd.f32 0.0, %v895
      %897 = vmatprep.mubr.bf16.mxu0 %v833
      %898 = vmatmul.mubr.bf16.gmra.mxu0 %v697
      %v899 = vpop.f32.mrf.mxu0
      %v900 = vadd.f32 0.0, %v899
      %v901 = vpop.f32.mrf.mxu0
      %v902 = vadd.f32 0.0, %v901
      %v903 = vpop.f32.mrf.mxu0
      %v904 = vadd.f32 0.0, %v903
      %v905 = vpop.f32.mrf.mxu0
      %v906 = vadd.f32 0.0, %v905
      %907 = vdwg.mxu0
      %v916 = vrot.slane %v870, 7
      %v917 = vrot.slane %v874, 7
      %v918 = vrot.slane %v880, 7
      %v919 = vrot.slane %v884, 7
      %v920 = vrot.slane %v890, 7
      %v921 = vrot.slane %v894, 7
      %v922 = vrot.slane %v900, 7
      %v923 = vrot.slane %v904, 7
      %vm932 = vcmask 1040384
      %v933 = vsel %vm932, 0.0, %v916
      %v934 = vsel %vm932, 0.0, %v917
      %v935 = vsel %vm932, 0.0, %v918
      %v936 = vsel %vm932, 0.0, %v919
      %v937 = vsel %vm932, 0.0, %v920
      %v938 = vsel %vm932, 0.0, %v921
      %v939 = vsel %vm932, 0.0, %v922
      %v940 = vsel %vm932, 0.0, %v923
      %949 = vrot.lane.b32.xlu0 %v933, 64
      %v950 = vpop.permute.xlu0 %949
      %951 = vrot.lane.b32.xlu0 %v934, 64
      %v952 = vpop.permute.xlu0 %951
      %953 = vrot.lane.b32.xlu0 %v935, 64
      %v954 = vpop.permute.xlu0 %953
      %955 = vrot.lane.b32.xlu0 %v936, 64
      %v956 = vpop.permute.xlu0 %955
      %957 = vrot.lane.b32.xlu0 %v937, 64
      %v958 = vpop.permute.xlu0 %957
      %959 = vrot.lane.b32.xlu0 %v938, 64
      %v960 = vpop.permute.xlu0 %959
      %961 = vrot.lane.b32.xlu0 %v939, 64
      %v962 = vpop.permute.xlu0 %961
      %963 = vrot.lane.b32.xlu0 %v940, 64
      %v964 = vpop.permute.xlu0 %963
      %v973 = vadd.f32 %v870, %v950
      %v974 = vadd.f32 %v874, %v952
      %v975 = vadd.f32 %v880, %v954
      %v976 = vadd.f32 %v884, %v956
      %v977 = vadd.f32 %v890, %v958
      %v978 = vadd.f32 %v894, %v960
      %v979 = vadd.f32 %v900, %v962
      %v980 = vadd.f32 %v904, %v964
      %v989 = vrot.slane %v872, 1
      %v990 = vrot.slane %v876, 1
      %v991 = vrot.slane %v882, 1
      %v992 = vrot.slane %v886, 1
      %v993 = vrot.slane %v892, 1
      %v994 = vrot.slane %v896, 1
      %v995 = vrot.slane %v902, 1
      %v996 = vrot.slane %v906, 1
      %vm1005 = vcmask 1046528
      %v1006 = vsel %vm1005, %v989, 0.0
      %v1007 = vsel %vm1005, %v990, 0.0
      %v1008 = vsel %vm1005, %v991, 0.0
      %v1009 = vsel %vm1005, %v992, 0.0
      %v1010 = vsel %vm1005, %v993, 0.0
      %v1011 = vsel %vm1005, %v994, 0.0
      %v1012 = vsel %vm1005, %v995, 0.0
      %v1013 = vsel %vm1005, %v996, 0.0
      %1022 = vrot.lane.b32.xlu0 %v1006, 64
      %v1023 = vpop.permute.xlu0 %1022
      %1024 = vrot.lane.b32.xlu0 %v1007, 64
      %v1025 = vpop.permute.xlu0 %1024
      %1026 = vrot.lane.b32.xlu0 %v1008, 64
      %v1027 = vpop.permute.xlu0 %1026
      %1028 = vrot.lane.b32.xlu0 %v1009, 64
      %v1029 = vpop.permute.xlu0 %1028
      %1030 = vrot.lane.b32.xlu0 %v1010, 64
      %v1031 = vpop.permute.xlu0 %1030
      %1032 = vrot.lane.b32.xlu0 %v1011, 64
      %v1033 = vpop.permute.xlu0 %1032
      %1034 = vrot.lane.b32.xlu0 %v1012, 64
      %v1035 = vpop.permute.xlu0 %1034
      %1036 = vrot.lane.b32.xlu0 %v1013, 64
      %v1037 = vpop.permute.xlu0 %1036
      %v1046 = vadd.f32 %v973, %v1023
      %v1047 = vadd.f32 %v974, %v1025
      %v1048 = vadd.f32 %v975, %v1027
      %v1049 = vadd.f32 %v976, %v1029
      %v1050 = vadd.f32 %v977, %v1031
      %v1051 = vadd.f32 %v978, %v1033
      %v1052 = vadd.f32 %v979, %v1035
      %v1053 = vadd.f32 %v980, %v1037
      %v1054 = vld [vmem:[%s2] sm:$0x1]
      %v1056 = vlaneseq
      %v1057 = vshrl.u32 %v1056, 7
      %v1058 = vsub.s32 0, %v1057
      %v1059 = vrot.slane %v1054, %v1058
      %1060 = vrot.lane.b32.xlu0 %v1059, 64
      %v1061 = vpop.permute.xlu0 %1060
      %v1063 = vadd.f32 %v1046, %v1061
      %v1064 = vadd.f32 %v1047, %v1061
      %v1065 = vadd.f32 %v1048, %v1061
      %v1066 = vadd.f32 %v1049, %v1061
      %v1067 = vadd.f32 %v1050, %v1061
      %v1068 = vadd.f32 %v1051, %v1061
      %v1069 = vadd.f32 %v1052, %v1061
      %v1070 = vadd.f32 %v1053, %v1061
      %v1071 = vpack.c.bf16 %v1063, %v1063
      %v1072 = vpack.c.bf16 %v1064, %v1064
      %v1073 = vpack.c.bf16 %v1065, %v1065
      %v1074 = vpack.c.bf16 %v1066, %v1066
      %v1075 = vpack.c.bf16 %v1067, %v1067
      %v1076 = vpack.c.bf16 %v1068, %v1068
      %v1077 = vpack.c.bf16 %v1069, %v1069
      %v1078 = vpack.c.bf16 %v1070, %v1070
      %v1087 = vunpack.c.l.b16 %v1071
      %v1088 = vunpack.c.l.b16 %v1072
      %v1089 = vunpack.c.l.b16 %v1073
      %v1090 = vunpack.c.l.b16 %v1074
      %v1091 = vunpack.c.l.b16 %v1075
      %v1092 = vunpack.c.l.b16 %v1076
      %v1093 = vunpack.c.l.b16 %v1077
      %v1094 = vunpack.c.l.b16 %v1078
      %v1095 = vpack.c.b16 %v1087, %v1087
      %v1096 = vpack.c.b16 %v1088, %v1088
      %v1097 = vpack.c.b16 %v1089, %v1089
      %v1098 = vpack.c.b16 %v1090, %v1090
      %v1099 = vpack.c.b16 %v1091, %v1091
      %v1100 = vpack.c.b16 %v1092, %v1092
      %v1101 = vpack.c.b16 %v1093, %v1093
      %v1102 = vpack.c.b16 %v1094, %v1094
      %1103 = vrot.lane.b32.xlu0 %v1095, 64
      %v1104 = vpop.permute.xlu0 %1103
      %1105 = vrot.lane.b32.xlu0 %v1096, 64
      %v1106 = vpop.permute.xlu0 %1105
      %1107 = vrot.lane.b32.xlu0 %v1097, 64
      %v1108 = vpop.permute.xlu0 %1107
      %1109 = vrot.lane.b32.xlu0 %v1098, 64
      %v1110 = vpop.permute.xlu0 %1109
      %1111 = vrot.lane.b32.xlu0 %v1099, 64
      %v1112 = vpop.permute.xlu0 %1111
      %1113 = vrot.lane.b32.xlu0 %v1100, 64
      %v1114 = vpop.permute.xlu0 %1113
      %1115 = vrot.lane.b32.xlu0 %v1101, 64
      %v1116 = vpop.permute.xlu0 %1115
      %1117 = vrot.lane.b32.xlu0 %v1102, 64
      %v1118 = vpop.permute.xlu0 %1117
      %vm1127 = vcmask 519168
      %1128 = vst.msk [vmem:[%s235] sm:$0xf] %vm1127, %v1104
      %1129 = vst.msk [vmem:[%s235 + $0x4] sm:$0xf] %vm1127, %v1106
      %1130 = vst.msk [vmem:[%s235 + $0x8] sm:$0xf] %vm1127, %v1108
      %1131 = vst.msk [vmem:[%s235 + $0xc] sm:$0xf] %vm1127, %v1110
      %1132 = vst.msk [vmem:[%s235 + $0x10] sm:$0xf] %vm1127, %v1112
      %1133 = vst.msk [vmem:[%s235 + $0x14] sm:$0xf] %vm1127, %v1114
      %1134 = vst.msk [vmem:[%s235 + $0x18] sm:$0xf] %vm1127, %v1116
      %1135 = vst.msk [vmem:[%s235 + $0x1c] sm:$0xf] %vm1127, %v1118
      %vm1136 = vcmask 1048064
      %v1137 = vsel %vm1136, %v1063, 0.0
      %v1138 = vsel %vm1136, %v1064, 0.0
      %v1139 = vadd.f32 %v1137, %v1138
      %v1140 = vsel %vm1136, %v1065, 0.0
      %v1141 = vadd.f32 %v1139, %v1140
      %v1142 = vsel %vm1136, %v1066, 0.0
      %v1143 = vadd.f32 %v1141, %v1142
      %v1144 = vsel %vm1136, %v1067, 0.0
      %v1145 = vadd.f32 %v1143, %v1144
      %v1146 = vsel %vm1136, %v1068, 0.0
      %v1147 = vadd.f32 %v1145, %v1146
      %v1148 = vsel %vm1136, %v1069, 0.0
      %v1149 = vadd.f32 %v1147, %v1148
      %v1150 = vsel %vm1136, %v1070, 0.0
      %v1151 = vadd.f32 %v1149, %v1150
      %v1152 = vrot.slane %v1151, 4
      %v1153 = vadd.f32 %v1151, %v1152
      %v1154 = vrot.slane %v1153, 2
      %v1155 = vadd.f32 %v1153, %v1154
      %v1156 = vrot.slane %v1155, 1
      %v1157 = vadd.f32 %v1155, %v1156
      %1159 = vrot.lane.b32.xlu0 %v1157, 64
      %v1160 = vpop.permute.xlu0 %1159
      %vm1162 = vcmask 516096
      %1163 = vst.msk [vmem:[%s238] sm:$0x1] %vm1162, %v1160
      %v1164 = vmul.f32 %v1063, %v1063
      %v1165 = vmul.f32 %v1064, %v1064
      %v1166 = vmul.f32 %v1065, %v1065
      %v1167 = vmul.f32 %v1066, %v1066
      %v1168 = vmul.f32 %v1067, %v1067
      %v1169 = vmul.f32 %v1068, %v1068
      %v1170 = vmul.f32 %v1069, %v1069
      %v1171 = vmul.f32 %v1070, %v1070
      %v1172 = vsel %vm1136, %v1164, 0.0
      %v1173 = vsel %vm1136, %v1165, 0.0
      %v1174 = vadd.f32 %v1172, %v1173
      %v1175 = vsel %vm1136, %v1166, 0.0
      %v1176 = vadd.f32 %v1174, %v1175
      %v1177 = vsel %vm1136, %v1167, 0.0
      %v1178 = vadd.f32 %v1176, %v1177
      %v1179 = vsel %vm1136, %v1168, 0.0
      %v1180 = vadd.f32 %v1178, %v1179
      %v1181 = vsel %vm1136, %v1169, 0.0
      %v1182 = vadd.f32 %v1180, %v1181
      %v1183 = vsel %vm1136, %v1170, 0.0
      %v1184 = vadd.f32 %v1182, %v1183
      %v1185 = vsel %vm1136, %v1171, 0.0
      %v1186 = vadd.f32 %v1184, %v1185
      %v1187 = vrot.slane %v1186, 4
      %v1188 = vadd.f32 %v1186, %v1187
      %v1189 = vrot.slane %v1188, 2
      %v1190 = vadd.f32 %v1188, %v1189
      %v1191 = vrot.slane %v1190, 1
      %v1192 = vadd.f32 %v1190, %v1191
      %1194 = vrot.lane.b32.xlu0 %v1192, 64
      %v1195 = vpop.permute.xlu0 %1194
      %1197 = vst.msk [vmem:[%s241] sm:$0x1] %vm1162, %v1195
      %p1198 = scmp.lt.s32.totalorder %s17, 1
      %s1199 = scalar_select %p1198, %s17, 1
      %s1200 = smul.addr %s1199, 8
      %s1201 = smul.addr %s1200, 4
      %s1202 = scalar_lea.vmem %s3, %s1201
      %p1203 = scmp.lt.s32.totalorder %s17, 1
      %s1204 = scalar_select %p1203, %s17, 1
      %s1205 = scalar_lea.vmem %s4, %s1204
      %p1206 = scmp.lt.s32.totalorder %s17, 1
      %s1207 = scalar_select %p1206, %s17, 1
      %s1208 = scalar_lea.vmem %s5, %s1207
      // Predicated region
      $region33: #{decoder_forward.11} parent=31 // pred_check
        %p1209 = pneg %p103
      $region34: #{decoder_forward.11} parent=31 // pred_check_branch
        %1211 = sbr.rel (%p1209) target = $region36
      $region35: #{decoder_forward.11} parent=31 // pred_region
        _
      $region36: #{decoder_forward.11} parent=31 // pred_fallthru
        _
      // Predicated region
      $region37: #{decoder_forward.11} parent=31 // pred_check
        %p1212 = pneg %p129
      $region38: #{decoder_forward.11} parent=31 // pred_check_branch
        %1214 = sbr.rel (%p1212) target = $region40
      $region39: #{decoder_forward.11} parent=31 // pred_region
        _
      $region40: #{decoder_forward.11} parent=31 // pred_fallthru
        _
      // Predicated region
      $region41: #{decoder_forward.11} parent=31 // pred_check
        %p1215 = pneg %p155
      $region42: #{decoder_forward.11} parent=31 // pred_check_branch
        %1217 = sbr.rel (%p1215) target = $region44
      $region43: #{decoder_forward.11} parent=31 // pred_region
        _
      $region44: #{decoder_forward.11} parent=31 // pred_fallthru
        _
    $region32: #{decoder_forward.11} parent=5 // pred_fallthru
      _
    %p1218 = scmp.le.s32.totalorder 2, %s12
    // Predicated region
    $region45: #{decoder_forward.11} parent=5 // pred_check
      %p1219 = pneg %p1218
    $region46: #{decoder_forward.11} parent=5 // pred_check_branch
      %1221 = sbr.rel (%p1219) target = $region48
    $region47: #{decoder_forward.11} parent=5 // pred_region
      %s1222 = ssub.s32 %s12, 2
      // Predicated region
      $region49: #{decoder_forward.11} parent=47 // pred_check
        %p1223 = pneg %p109
      $region50: #{decoder_forward.11} parent=47 // pred_check_branch
        %1225 = sbr.rel (%p1223) target = $region52
      $region51: #{decoder_forward.11} parent=47 // pred_region
        %p1226 = scmp.lt.s32.totalorder %s18, 1
        %s1227 = scalar_select %p1226, %s18, 1
        %s1228 = smul.addr %s1227, 8
        %s1229 = smul.addr %s1228, 4
        %s1230 = scalar_lea.vmem %s3, %s1229
      $region52: #{decoder_forward.11} parent=47 // pred_fallthru
        _
      // Predicated region
      $region53: #{decoder_forward.11} parent=47 // pred_check
        %p1231 = pneg %p135
      $region54: #{decoder_forward.11} parent=47 // pred_check_branch
        %1233 = sbr.rel (%p1231) target = $region56
      $region55: #{decoder_forward.11} parent=47 // pred_region
        %p1234 = scmp.lt.s32.totalorder %s18, 1
        %s1235 = scalar_select %p1234, %s18, 1
        %s1236 = scalar_lea.vmem %s4, %s1235
      $region56: #{decoder_forward.11} parent=47 // pred_fallthru
        _
      // Predicated region
      $region57: #{decoder_forward.11} parent=47 // pred_check
        %p1237 = pneg %p161
      $region58: #{decoder_forward.11} parent=47 // pred_check_branch
        %1239 = sbr.rel (%p1237) target = $region60
      $region59: #{decoder_forward.11} parent=47 // pred_region
        %p1240 = scmp.lt.s32.totalorder %s18, 1
        %s1241 = scalar_select %p1240, %s18, 1
        %s1242 = scalar_lea.vmem %s5, %s1241
      $region60: #{decoder_forward.11} parent=47 // pred_fallthru
        _
    $region48: #{decoder_forward.11} parent=5 // pred_fallthru
      _
  $region6: #{decoder_forward.11} parent=0 // loop_footer
    %s16 = sadd.s32 1, %s12
  $region7: #{decoder_forward.11} parent=0 // loop_footer_branch
    %11 = sbr.rel target = $region3
  $region8: #{decoder_forward.11} parent=0 // loop_exit
    _

// kernel: decoder_forward.13
$region0: #{decoder_forward.13}
  #allocation0 [shape = 'u32[]', space=smem, size = 0x4, offset = 0x4, fixed_abs, tag = 'smem constant byte address 0x4 - core index']
  #allocation1 [shape = 'u32[144,128]{1,0:T(1,128)}', space=vmem, size = 0x12000, scoped, tag = 'internal scratch']
  %s0 = inlined_call_operand.vmem [shape: bf16[2,8,8,32], index: 0, kind: input, shape index: {}]
  %s1 = inlined_call_operand.vmem [shape: f32[2,1,32], index: 1, kind: input, shape index: {}]
  %s2 = inlined_call_operand.vmem [shape: f32[2,1,32], index: 2, kind: input, shape index: {}]
  %s3 = inlined_call_operand.vmem [shape: bf16[96,96], index: 3, kind: input, shape index: {}]
  %s4 = inlined_call_operand.vmem [shape: f32[1,32], index: 4, kind: input, shape index: {}]
  %s5 = inlined_call_operand.vmem [shape: bf16[2,8,8,64], index: 5, kind: input, shape index: {}]
  %s6 = inlined_call_operand.vmem [shape: bf16[64,32], index: 6, kind: input, shape index: {}]
  %s7 = inlined_call_operand.vmem [shape: f32[1,32], index: 7, kind: input, shape index: {}]
  %s8 = inlined_call_operand.vmem [shape: bf16[2,8,8,32], index: 8, kind: output, shape index: {}]
  %s9 = sld [smem:[#allocation0]]
  $region65: #{decoder_forward.13} parent=0
    _
  %s11 = ssub.s32 1, %s9
  %s12 = scalar_select 0, %s11, %s9
  loop: start=0, step=1, limit=4
  $region2: #{decoder_forward.13} parent=0 // loop_pre_header
    _
  $region3: #{decoder_forward.13} parent=0 // loop_header
    %s14 = sphi 0, %s18
    %p15 = scmp.ge.s32.totalorder %s14, 4
    %s24 = sphi 0, %s26
    %s27 = sphi 0, %s24
    %s28 = sphi 0, %s27
    %s44 = sphi 0, %s28
    %s50 = sphi 0, %s52
    %s53 = sphi 0, %s50
    %s54 = sphi 0, %s53
    %s70 = sphi 0, %s54
    %s76 = sphi 0, %s78
    %s79 = sphi 0, %s76
    %s80 = sphi 0, %s79
    %s96 = sphi 0, %s80
    %s100 = sphi 0, %s100
    %s102 = sphi 0, %s100
    %s103 = sphi 0, %s102
    %s117 = sphi 0, %s103
    %s121 = sphi 0, %s121
    %s123 = sphi 0, %s121
    %s124 = sphi 0, %s123
    %s138 = sphi 0, %s124
    %s144 = sphi 0, %s146
    %s147 = sphi 0, %s144
    %s148 = sphi 0, %s147
    %s164 = sphi 0, %s148
    %s168 = sphi 0, %s168
    %s170 = sphi 0, %s168
    %s171 = sphi 0, %s170
    %s185 = sphi 0, %s171
    %s189 = sphi 0, %s189
    %s191 = sphi 0, %s189
    %s192 = sphi 0, %s191
    %s206 = sphi 0, %s192
    %s212 = sphi 0, %s214
    %s215 = sphi 0, %s212
    %s216 = sphi 0, %s215
    %s232 = sphi 0, %s216
  $region4: #{decoder_forward.13} parent=0 // loop_header_branch
    %17 = sbr.rel (%p15) target = $region8
  $region5: #{decoder_forward.13} parent=0 // loop_body
    %s19 = ssub.s32 %s14, 1
    %s20 = ssub.s32 %s14, 2
    %s21 = sadd.s32 %s14, 1
    %s22 = ssub.s32 %s14, %s21
    %p23 = scmp.eq.s32.totalorder %s22, 0
    %s25 = sadd.s32 %s24, 1
    %s26 = scalar_select %p23, %s24, %s25
    %p29 = pneg %p23
    %p30 = scmp.eq.s32.totalorder %s14, 1
    %p31 = por %p29, %p30
    %p32 = scmp.ne.s32.totalorder %s24, %s27
    %p33 = scmp.eq.s32.totalorder %s14, 0
    %p34 = por %p32, %p33
    %p35 = scmp.ne.s32.totalorder %s24, %s27
    %p36 = scmp.eq.s32.totalorder %s19, 1
    %p37 = por %p35, %p36
    %p38 = scmp.ne.s32.totalorder %s27, %s28
    %p39 = scmp.eq.s32.totalorder %s19, 0
    %p40 = por %p38, %p39
    %p41 = scmp.ne.s32.totalorder %s27, %s28
    %p42 = scmp.eq.s32.totalorder %s20, 1
    %p43 = por %p41, %p42
    %p45 = scmp.ne.s32.totalorder %s28, %s44
    %p46 = scmp.eq.s32.totalorder %s20, 0
    %p47 = por %p45, %p46
    %s48 = ssub.s32 %s14, %s21
    %p49 = scmp.eq.s32.totalorder %s48, 0
    %s51 = sadd.s32 %s50, 1
    %s52 = scalar_select %p49, %s50, %s51
    %p55 = pneg %p49
    %p56 = scmp.eq.s32.totalorder %s14, 1
    %p57 = por %p55, %p56
    %p58 = scmp.ne.s32.totalorder %s50, %s53
    %p59 = scmp.eq.s32.totalorder %s14, 0
    %p60 = por %p58, %p59
    %p61 = scmp.ne.s32.totalorder %s50, %s53
    %p62 = scmp.eq.s32.totalorder %s19, 1
    %p63 = por %p61, %p62
    %p64 = scmp.ne.s32.totalorder %s53, %s54
    %p65 = scmp.eq.s32.totalorder %s19, 0
    %p66 = por %p64, %p65
    %p67 = scmp.ne.s32.totalorder %s53, %s54
    %p68 = scmp.eq.s32.totalorder %s20, 1
    %p69 = por %p67, %p68
    %p71 = scmp.ne.s32.totalorder %s54, %s70
    %p72 = scmp.eq.s32.totalorder %s20, 0
    %p73 = por %p71, %p72
    %s74 = ssub.s32 %s14, %s21
    %p75 = scmp.eq.s32.totalorder %s74, 0
    %s77 = sadd.s32 %s76, 1
    %s78 = scalar_select %p75, %s76, %s77
    %p81 = pneg %p75
    %p82 = scmp.eq.s32.totalorder %s14, 1
    %p83 = por %p81, %p82
    %p84 = scmp.ne.s32.totalorder %s76, %s79
    %p85 = scmp.eq.s32.totalorder %s14, 0
    %p86 = por %p84, %p85
    %p87 = scmp.ne.s32.totalorder %s76, %s79
    %p88 = scmp.eq.s32.totalorder %s19, 1
    %p89 = por %p87, %p88
    %p90 = scmp.ne.s32.totalorder %s79, %s80
    %p91 = scmp.eq.s32.totalorder %s19, 0
    %p92 = por %p90, %p91
    %p93 = scmp.ne.s32.totalorder %s79, %s80
    %p94 = scmp.eq.s32.totalorder %s20, 1
    %p95 = por %p93, %p94
    %p97 = scmp.ne.s32.totalorder %s80, %s96
    %p98 = scmp.eq.s32.totalorder %s20, 0
    %p99 = por %p97, %p98
    %s101 = sadd.s32 %s100, 1
    %p104 = scmp.eq.s32.totalorder %s14, 1
    %p105 = scmp.ne.s32.totalorder %s100, %s102
    %p106 = scmp.eq.s32.totalorder %s14, 0
    %p107 = por %p105, %p106
    %p108 = scmp.ne.s32.totalorder %s100, %s102
    %p109 = scmp.eq.s32.totalorder %s19, 1
    %p110 = por %p108, %p109
    %p111 = scmp.ne.s32.totalorder %s102, %s103
    %p112 = scmp.eq.s32.totalorder %s19, 0
    %p113 = por %p111, %p112
    %p114 = scmp.ne.s32.totalorder %s102, %s103
    %p115 = scmp.eq.s32.totalorder %s20, 1
    %p116 = por %p114, %p115
    %p118 = scmp.ne.s32.totalorder %s103, %s117
    %p119 = scmp.eq.s32.totalorder %s20, 0
    %p120 = por %p118, %p119
    %s122 = sadd.s32 %s121, 1
    %p125 = scmp.eq.s32.totalorder %s14, 1
    %p126 = scmp.ne.s32.totalorder %s121, %s123
    %p127 = scmp.eq.s32.totalorder %s14, 0
    %p128 = por %p126, %p127
    %p129 = scmp.ne.s32.totalorder %s121, %s123
    %p130 = scmp.eq.s32.totalorder %s19, 1
    %p131 = por %p129, %p130
    %p132 = scmp.ne.s32.totalorder %s123, %s124
    %p133 = scmp.eq.s32.totalorder %s19, 0
    %p134 = por %p132, %p133
    %p135 = scmp.ne.s32.totalorder %s123, %s124
    %p136 = scmp.eq.s32.totalorder %s20, 1
    %p137 = por %p135, %p136
    %p139 = scmp.ne.s32.totalorder %s124, %s138
    %p140 = scmp.eq.s32.totalorder %s20, 0
    %p141 = por %p139, %p140
    %s142 = ssub.s32 %s14, %s21
    %p143 = scmp.eq.s32.totalorder %s142, 0
    %s145 = sadd.s32 %s144, 1
    %s146 = scalar_select %p143, %s144, %s145
    %p149 = pneg %p143
    %p150 = scmp.eq.s32.totalorder %s14, 1
    %p151 = por %p149, %p150
    %p152 = scmp.ne.s32.totalorder %s144, %s147
    %p153 = scmp.eq.s32.totalorder %s14, 0
    %p154 = por %p152, %p153
    %p155 = scmp.ne.s32.totalorder %s144, %s147
    %p156 = scmp.eq.s32.totalorder %s19, 1
    %p157 = por %p155, %p156
    %p158 = scmp.ne.s32.totalorder %s147, %s148
    %p159 = scmp.eq.s32.totalorder %s19, 0
    %p160 = por %p158, %p159
    %p161 = scmp.ne.s32.totalorder %s147, %s148
    %p162 = scmp.eq.s32.totalorder %s20, 1
    %p163 = por %p161, %p162
    %p165 = scmp.ne.s32.totalorder %s148, %s164
    %p166 = scmp.eq.s32.totalorder %s20, 0
    %p167 = por %p165, %p166
    %s169 = sadd.s32 %s168, 1
    %p172 = scmp.eq.s32.totalorder %s14, 1
    %p173 = scmp.ne.s32.totalorder %s168, %s170
    %p174 = scmp.eq.s32.totalorder %s14, 0
    %p175 = por %p173, %p174
    %p176 = scmp.ne.s32.totalorder %s168, %s170
    %p177 = scmp.eq.s32.totalorder %s19, 1
    %p178 = por %p176, %p177
    %p179 = scmp.ne.s32.totalorder %s170, %s171
    %p180 = scmp.eq.s32.totalorder %s19, 0
    %p181 = por %p179, %p180
    %p182 = scmp.ne.s32.totalorder %s170, %s171
    %p183 = scmp.eq.s32.totalorder %s20, 1
    %p184 = por %p182, %p183
    %p186 = scmp.ne.s32.totalorder %s171, %s185
    %p187 = scmp.eq.s32.totalorder %s20, 0
    %p188 = por %p186, %p187
    %s190 = sadd.s32 %s189, 1
    %p193 = scmp.eq.s32.totalorder %s14, 1
    %p194 = scmp.ne.s32.totalorder %s189, %s191
    %p195 = scmp.eq.s32.totalorder %s14, 0
    %p196 = por %p194, %p195
    %p197 = scmp.ne.s32.totalorder %s189, %s191
    %p198 = scmp.eq.s32.totalorder %s19, 1
    %p199 = por %p197, %p198
    %p200 = scmp.ne.s32.totalorder %s191, %s192
    %p201 = scmp.eq.s32.totalorder %s19, 0
    %p202 = por %p200, %p201
    %p203 = scmp.ne.s32.totalorder %s191, %s192
    %p204 = scmp.eq.s32.totalorder %s20, 1
    %p205 = por %p203, %p204
    %p207 = scmp.ne.s32.totalorder %s192, %s206
    %p208 = scmp.eq.s32.totalorder %s20, 0
    %p209 = por %p207, %p208
    %s210 = ssub.s32 %s14, %s21
    %p211 = scmp.eq.s32.totalorder %s210, 0
    %s213 = sadd.s32 %s212, 1
    %s214 = scalar_select %p211, %s212, %s213
    %p217 = pneg %p211
    %p218 = scmp.eq.s32.totalorder %s14, 1
    %p219 = por %p217, %p218
    %p220 = scmp.ne.s32.totalorder %s212, %s215
    %p221 = scmp.eq.s32.totalorder %s14, 0
    %p222 = por %p220, %p221
    %p223 = scmp.ne.s32.totalorder %s212, %s215
    %p224 = scmp.eq.s32.totalorder %s19, 1
    %p225 = por %p223, %p224
    %p226 = scmp.ne.s32.totalorder %s215, %s216
    %p227 = scmp.eq.s32.totalorder %s19, 0
    %p228 = por %p226, %p227
    %p229 = scmp.ne.s32.totalorder %s215, %s216
    %p230 = scmp.eq.s32.totalorder %s20, 1
    %p231 = por %p229, %p230
    %p233 = scmp.ne.s32.totalorder %s216, %s232
    %p234 = scmp.eq.s32.totalorder %s20, 0
    %p235 = por %p233, %p234
    %p236 = scmp.le.s32.totalorder 1, %s14
    %p237 = scmp.lt.s32.totalorder %s14, 3
    %p238 = pnand %p236, %p237
    %p239 = pneg %p238
    // Predicated region
    $region9: #{decoder_forward.13} parent=5 // pred_check
      _
    $region10: #{decoder_forward.13} parent=5 // pred_check_branch
      %241 = sbr.rel (%p238) target = $region12
    $region11: #{decoder_forward.13} parent=5 // pred_region
      %s242 = ssub.s32 %s14, 1
      // Predicated region
      $region13: #{decoder_forward.13} parent=11 // pred_check
        %p243 = pneg %p113
      $region14: #{decoder_forward.13} parent=11 // pred_check_branch
        %245 = sbr.rel (%p243) target = $region16
      $region15: #{decoder_forward.13} parent=11 // pred_region
        _
      $region16: #{decoder_forward.13} parent=11 // pred_fallthru
        _
      // Predicated region
      $region17: #{decoder_forward.13} parent=11 // pred_check
        %p246 = pneg %p134
      $region18: #{decoder_forward.13} parent=11 // pred_check_branch
        %248 = sbr.rel (%p246) target = $region20
      $region19: #{decoder_forward.13} parent=11 // pred_region
        _
      $region20: #{decoder_forward.13} parent=11 // pred_fallthru
        _
      // Predicated region
      $region21: #{decoder_forward.13} parent=11 // pred_check
        %p249 = pneg %p181
      $region22: #{decoder_forward.13} parent=11 // pred_check_branch
        %251 = sbr.rel (%p249) target = $region24
      $region23: #{decoder_forward.13} parent=11 // pred_region
        _
      $region24: #{decoder_forward.13} parent=11 // pred_fallthru
        _
      // Predicated region
      $region25: #{decoder_forward.13} parent=11 // pred_check
        %p252 = pneg %p202
      $region26: #{decoder_forward.13} parent=11 // pred_check_branch
        %254 = sbr.rel (%p252) target = $region28
      $region27: #{decoder_forward.13} parent=11 // pred_region
        _
      $region28: #{decoder_forward.13} parent=11 // pred_fallthru
        _
    $region12: #{decoder_forward.13} parent=5 // pred_fallthru
      _
    %p255 = scmp.lt.s32.totalorder %s14, 2
    // Predicated region
    $region29: #{decoder_forward.13} parent=5 // pred_check
      %p256 = pneg %p255
    $region30: #{decoder_forward.13} parent=5 // pred_check_branch
      %258 = sbr.rel (%p256) target = $region32
    $region31: #{decoder_forward.13} parent=5 // pred_region
      // Predicated region
      $region33: #{decoder_forward.13} parent=31 // pred_check
        %p259 = pneg %p34
      $region34: #{decoder_forward.13} parent=31 // pred_check_branch
        %261 = sbr.rel (%p259) target = $region36
      $region35: #{decoder_forward.13} parent=31 // pred_region
        %p262 = scmp.lt.s32.totalorder %s14, 1
        %s263 = scalar_select %p262, %s14, 1
        %s264 = smul.addr %s263, 8
        %s265 = smul.addr %s264, 4
        %s266 = scalar_lea.vmem %s0, %s265
      $region36: #{decoder_forward.13} parent=31 // pred_fallthru
        _
      // Predicated region
      $region37: #{decoder_forward.13} parent=31 // pred_check
        %p267 = pneg %p60
      $region38: #{decoder_forward.13} parent=31 // pred_check_branch
        %269 = sbr.rel (%p267) target = $region40
      $region39: #{decoder_forward.13} parent=31 // pred_region
        %p270 = scmp.lt.s32.totalorder %s14, 1
        %s271 = scalar_select %p270, %s14, 1
        %s272 = scalar_lea.vmem %s1, %s271
      $region40: #{decoder_forward.13} parent=31 // pred_fallthru
        _
      // Predicated region
      $region41: #{decoder_forward.13} parent=31 // pred_check
        %p273 = pneg %p86
      $region42: #{decoder_forward.13} parent=31 // pred_check_branch
        %275 = sbr.rel (%p273) target = $region44
      $region43: #{decoder_forward.13} parent=31 // pred_region
        %p276 = scmp.lt.s32.totalorder %s14, 1
        %s277 = scalar_select %p276, %s14, 1
        %s278 = scalar_lea.vmem %s2, %s277
      $region44: #{decoder_forward.13} parent=31 // pred_fallthru
        _
      // Predicated region
      $region45: #{decoder_forward.13} parent=31 // pred_check
        %p279 = pneg %p154
      $region46: #{decoder_forward.13} parent=31 // pred_check_branch
        %281 = sbr.rel (%p279) target = $region48
      $region47: #{decoder_forward.13} parent=31 // pred_region
        %p282 = scmp.lt.s32.totalorder %s14, 1
        %s283 = scalar_select %p282, %s14, 1
        %s284 = smul.addr %s283, 8
        %s285 = smul.addr %s284, 4
        %s286 = scalar_lea.vmem %s5, %s285
      $region48: #{decoder_forward.13} parent=31 // pred_fallthru
        _
    $region32: #{decoder_forward.13} parent=5 // pred_fallthru
      _
    %p287 = scmp.le.s32.totalorder 1, %s14
    %p288 = scmp.lt.s32.totalorder %s14, 3
    %p289 = pnand %p287, %p288
    %p290 = pneg %p289
    // Predicated region
    $region49: #{decoder_forward.13} parent=5 // pred_check
      _
    $region50: #{decoder_forward.13} parent=5 // pred_check_branch
      %292 = sbr.rel (%p289) target = $region52
    $region51: #{decoder_forward.13} parent=5 // pred_region
      %s293 = ssub.s32 %s14, 1
      %p294 = scmp.lt.s32.totalorder %s19, 1
      %s295 = scalar_select %p294, %s19, 1
      %s296 = smul.addr %s295, 8
      %s297 = smul.addr %s296, 4
      %s298 = scalar_lea.vmem %s0, %s297
      %p299 = pneg %p40
      %p300 = pneg %p37
      %p301 = scmp.lt.s32.totalorder %s19, 1
      %s302 = scalar_select %p301, %s19, 1
      %s303 = scalar_lea.vmem %s1, %s302
      %p304 = pneg %p66
      %p305 = pneg %p63
      %p306 = scmp.lt.s32.totalorder %s19, 1
      %s307 = scalar_select %p306, %s19, 1
      %s308 = scalar_lea.vmem %s2, %s307
      %p309 = pneg %p92
      %p310 = pneg %p89
      %p311 = pneg %p113
      %p312 = pneg %p110
      %p313 = pneg %p134
      %p314 = pneg %p131
      %p315 = scmp.lt.s32.totalorder %s19, 1
      %s316 = scalar_select %p315, %s19, 1
      %s317 = smul.addr %s316, 8
      %s318 = smul.addr %s317, 4
      %s319 = scalar_lea.vmem %s5, %s318
      %p320 = pneg %p160
      %p321 = pneg %p157
      %p322 = pneg %p181
      %p323 = pneg %p178
      %p324 = pneg %p202
      %p325 = pneg %p199
      %p326 = pneg %p228
      %p327 = pneg %p225
      %p328 = scmp.lt.s32.totalorder %s19, 1
      %s329 = scalar_select %p328, %s19, 1
      %s330 = smul.addr %s329, 8
      %s331 = smul.addr %s330, 4
      %s332 = scalar_lea.vmem %s8, %s331
      %p333 = scmp.lt.s32.totalorder %s19, 1
      %s334 = scalar_select %p333, %s19, 1
      %s335 = smul.addr %s334, 8
      %s336 = smul.addr %s335, 4
      %s337 = scalar_lea.vmem %s0, %s336
      %p338 = scmp.lt.s32.totalorder %s19, 1
      %s339 = scalar_select %p338, %s19, 1
      %s340 = scalar_lea.vmem %s1, %s339
      %p341 = scmp.lt.s32.totalorder %s19, 1
      %s342 = scalar_select %p341, %s19, 1
      %s343 = scalar_lea.vmem %s2, %s342
      %p344 = scmp.lt.s32.totalorder %s19, 1
      %s345 = scalar_select %p344, %s19, 1
      %s346 = smul.addr %s345, 8
      %s347 = smul.addr %s346, 4
      %s348 = scalar_lea.vmem %s5, %s347
      %p349 = scmp.lt.s32.totalorder %s19, 1
      %s350 = scalar_select %p349, %s19, 1
      %s351 = smul.addr %s350, 8
      %s352 = smul.addr %s351, 4
      %s353 = scalar_lea.vmem %s8, %s352
      %v355 = vld [vmem:[%s337] sm:$0xf]
      %v356 = vld [vmem:[%s337 + $0x4] sm:$0xf]
      %v357 = vld [vmem:[%s337 + $0x8] sm:$0xf]
      %v358 = vld [vmem:[%s337 + $0xc] sm:$0xf]
      %v359 = vld [vmem:[%s337 + $0x10] sm:$0xf]
      %v360 = vld [vmem:[%s337 + $0x14] sm:$0xf]
      %v361 = vld [vmem:[%s337 + $0x18] sm:$0xf]
      %v362 = vld [vmem:[%s337 + $0x1c] sm:$0xf]
      %v363 = vunpack.c.l.bf16 %v355
      %v364 = vunpack.c.l.bf16 %v356
      %v365 = vunpack.c.l.bf16 %v357
      %v366 = vunpack.c.l.bf16 %v358
      %v367 = vunpack.c.l.bf16 %v359
      %v368 = vunpack.c.l.bf16 %v360
      %v369 = vunpack.c.l.bf16 %v361
      %v370 = vunpack.c.l.bf16 %v362
      %v371 = vld [vmem:[%s340] sm:$0x1]
      %v373 = vlaneseq
      %v374 = vshrl.u32 %v373, 7
      %v375 = vsub.s32 0, %v374
      %v376 = vrot.slane %v371, %v375
      %v378 = vmul.f32 %v363, %v376
      %v379 = vmul.f32 %v364, %v376
      %v380 = vmul.f32 %v365, %v376
      %v381 = vmul.f32 %v366, %v376
      %v382 = vmul.f32 %v367, %v376
      %v383 = vmul.f32 %v368, %v376
      %v384 = vmul.f32 %v369, %v376
      %v385 = vmul.f32 %v370, %v376
      %v386 = vld [vmem:[%s343] sm:$0x1]
      %v388 = vlaneseq
      %v389 = vshrl.u32 %v388, 7
      %v390 = vsub.s32 0, %v389
      %v391 = vrot.slane %v386, %v390
      %v393 = vadd.f32 %v378, %v391
      %v394 = vadd.f32 %v379, %v391
      %v395 = vadd.f32 %v380, %v391
      %v396 = vadd.f32 %v381, %v391
      %v397 = vadd.f32 %v382, %v391
      %v398 = vadd.f32 %v383, %v391
      %v399 = vadd.f32 %v384, %v391
      %v400 = vadd.f32 %v385, %v391
      %v401 = vxor.u32 %v393, 2147483648
      %v402 = vxor.u32 %v394, 2147483648
      %v403 = vxor.u32 %v395, 2147483648
      %v404 = vxor.u32 %v396, 2147483648
      %v405 = vxor.u32 %v397, 2147483648
      %v406 = vxor.u32 %v398, 2147483648
      %v407 = vxor.u32 %v399, 2147483648
      %v408 = vxor.u32 %v400, 2147483648
      %v409 = vmul.f32 %v401, 1.442695
      %v410 = vpow.pop %v409
      %v411 = vmul.f32 %v402, 1.442695
      %v412 = vpow.pop %v411
      %v413 = vmul.f32 %v403, 1.442695
      %v414 = vpow.pop %v413
      %v415 = vmul.f32 %v404, 1.442695
      %v416 = vpow.pop %v415
      %v417 = vmul.f32 %v405, 1.442695
      %v418 = vpow.pop %v417
      %v419 = vmul.f32 %v406, 1.442695
      %v420 = vpow.pop %v419
      %v421 = vmul.f32 %v407, 1.442695
      %v422 = vpow.pop %v421
      %v423 = vmul.f32 %v408, 1.442695
      %v424 = vpow.pop %v423
      %v425 = vadd.f32 %v410, 1.0
      %v426 = vadd.f32 %v412, 1.0
      %v427 = vadd.f32 %v414, 1.0
      %v428 = vadd.f32 %v416, 1.0
      %v429 = vadd.f32 %v418, 1.0
      %v430 = vadd.f32 %v420, 1.0
      %v431 = vadd.f32 %v422, 1.0
      %v432 = vadd.f32 %v424, 1.0
      %v433 = vrcp.pop %v425
      %v434 = vmul.f32 1.0, %v433
      %v435 = vrcp.pop %v426
      %v436 = vmul.f32 1.0, %v435
      %v437 = vrcp.pop %v427
      %v438 = vmul.f32 1.0, %v437
      %v439 = vrcp.pop %v428
      %v440 = vmul.f32 1.0, %v439
      %v441 = vrcp.pop %v429
      %v442 = vmul.f32 1.0, %v441
      %v443 = vrcp.pop %v430
      %v444 = vmul.f32 1.0, %v443
      %v445 = vrcp.pop %v431
      %v446 = vmul.f32 1.0, %v445
      %v447 = vrcp.pop %v432
      %v448 = vmul.f32 1.0, %v447
      %v449 = vmul.f32 %v393, %v434
      %v450 = vmul.f32 %v394, %v436
      %v451 = vmul.f32 %v395, %v438
      %v452 = vmul.f32 %v396, %v440
      %v453 = vmul.f32 %v397, %v442
      %v454 = vmul.f32 %v398, %v444
      %v455 = vmul.f32 %v399, %v446
      %v456 = vmul.f32 %v400, %v448
      %v457 = vpack.c.bf16 %v449, %v449
      %v458 = vpack.c.bf16 %v450, %v450
      %v459 = vpack.c.bf16 %v451, %v451
      %v460 = vpack.c.bf16 %v452, %v452
      %v461 = vpack.c.bf16 %v453, %v453
      %v462 = vpack.c.bf16 %v454, %v454
      %v463 = vpack.c.bf16 %v455, %v455
      %v464 = vpack.c.bf16 %v456, %v456
      %473 = vrot.lane.b32.xlu0 %v457, 32
      %v474 = vpop.permute.xlu0 %473
      %475 = vrot.lane.b32.xlu0 %v458, 32
      %v476 = vpop.permute.xlu0 %475
      %477 = vrot.lane.b32.xlu0 %v459, 32
      %v478 = vpop.permute.xlu0 %477
      %479 = vrot.lane.b32.xlu0 %v460, 32
      %v480 = vpop.permute.xlu0 %479
      %481 = vrot.lane.b32.xlu0 %v461, 32
      %v482 = vpop.permute.xlu0 %481
      %483 = vrot.lane.b32.xlu0 %v462, 32
      %v484 = vpop.permute.xlu0 %483
      %485 = vrot.lane.b32.xlu0 %v463, 32
      %v486 = vpop.permute.xlu0 %485
      %487 = vrot.lane.b32.xlu0 %v464, 32
      %v488 = vpop.permute.xlu0 %487
      %490 = vrot.lane.b32.xlu0 %v458, 64
      %v491 = vpop.permute.xlu0 %490
      %492 = vrot.lane.b32.xlu0 %v459, 64
      %v493 = vpop.permute.xlu0 %492
      %494 = vrot.lane.b32.xlu0 %v460, 64
      %v495 = vpop.permute.xlu0 %494
      %496 = vrot.lane.b32.xlu0 %v461, 64
      %v497 = vpop.permute.xlu0 %496
      %498 = vrot.lane.b32.xlu0 %v462, 64
      %v499 = vpop.permute.xlu0 %498
      %500 = vrot.lane.b32.xlu0 %v463, 64
      %v501 = vpop.permute.xlu0 %500
      %502 = vrot.lane.b32.xlu0 %v464, 64
      %v503 = vpop.permute.xlu0 %502
      %504 = vrot.lane.b32.xlu0 0, 64
      %v505 = vpop.permute.xlu0 %504
      %vm506 = vcmask 261120
      %v509 = vsel %vm506, 0, %v474
      %v512 = vsel %vm506, %v457, %v476
      %v515 = vsel %vm506, %v458, %v478
      %v518 = vsel %vm506, %v459, %v480
      %v521 = vsel %vm506, %v460, %v482
      %v524 = vsel %vm506, %v461, %v484
      %v527 = vsel %vm506, %v462, %v486
      %v530 = vsel %vm506, %v463, %v488
      %vm531 = vcmask 523264
      %v533 = vsel %vm531, %v509, %v491
      %v535 = vsel %vm531, %v512, %v493
      %v537 = vsel %vm531, %v515, %v495
      %v539 = vsel %vm531, %v518, %v497
      %v541 = vsel %vm531, %v521, %v499
      %v543 = vsel %vm531, %v524, %v501
      %v545 = vsel %vm531, %v527, %v503
      %v547 = vsel %vm531, %v530, %v505
      %v548 = vld [vmem:[%s3] sm:$0xf]
      %v549 = vld [vmem:[%s3 + $0x4] sm:$0xf]
      %v550 = vld [vmem:[%s3 + $0x8] sm:$0xf]
      %v551 = vld [vmem:[%s3 + $0xc] sm:$0xf]
      %v552 = vld [vmem:[%s3 + $0x10] sm:$0xf]
      %v553 = vld [vmem:[%s3 + $0x14] sm:$0xf]
      %v554 = vld [vmem:[%s3 + $0x18] sm:$0xf]
      %v555 = vld [vmem:[%s3 + $0x1c] sm:$0xf]
      %v556 = vld [vmem:[%s3 + $0x20] sm:$0xf]
      %v557 = vld [vmem:[%s3 + $0x24] sm:$0xf]
      %v558 = vld [vmem:[%s3 + $0x28] sm:$0xf]
      %v559 = vld [vmem:[%s3 + $0x2c] sm:$0xf]
      %v568 = vunpack.c.l.b16 %v533
      %v569 = vunpack.c.l.b16 %v535
      %v570 = vunpack.c.l.b16 %v537
      %v571 = vunpack.c.l.b16 %v539
      %v572 = vunpack.c.l.b16 %v541
      %v573 = vunpack.c.l.b16 %v543
      %v574 = vunpack.c.l.b16 %v545
      %v575 = vunpack.c.l.b16 %v547
      %v576 = vpack.c.b16 %v569, %v568
      %v577 = vpack.c.b16 %v571, %v570
      %v578 = vpack.c.b16 %v573, %v572
      %v579 = vpack.c.b16 %v575, %v574
      %v592 = vunpack.c.l.b16 %v548
      %v593 = vunpack.c.l.b16 %v549
      %v594 = vunpack.c.l.b16 %v550
      %v595 = vunpack.c.l.b16 %v551
      %v596 = vunpack.c.l.b16 %v552
      %v597 = vunpack.c.l.b16 %v553
      %v598 = vunpack.c.l.b16 %v554
      %v599 = vunpack.c.l.b16 %v555
      %v600 = vunpack.c.l.b16 %v556
      %v601 = vunpack.c.l.b16 %v557
      %v602 = vunpack.c.l.b16 %v558
      %v603 = vunpack.c.l.b16 %v559
      %v604 = vpack.c.b16 %v593, %v592
      %v605 = vpack.c.b16 %v595, %v594
      %v606 = vpack.c.b16 %v597, %v596
      %v607 = vpack.c.b16 %v599, %v598
      %v608 = vpack.c.b16 %v601, %v600
      %v609 = vpack.c.b16 %v603, %v602
      %vm616 = vcmask 785408
      %v618 = vsel %vm616, %v576, 0
      %v621 = vsel %vm616, %v577, 0
      %v624 = vsel %vm616, %v578, 0
      %v627 = vsel %vm616, %v579, 0
      %629 = vmatprep.subr.bf16.mxu0 0
      %630 = vmatpush1.bf16.msra.mxu0 0
      %631 = vmatprep.subr.bf16.mxu0 0
      %632 = vmatpush1.bf16.msra.mxu0 0
      %633 = vmatprep.subr.bf16.mxu0 0
      %634 = vmatpush1.bf16.msra.mxu0 %v609
      %635 = vmatprep.subr.bf16.mxu0 0
      %636 = vmatpush1.bf16.msra.mxu0 %v608
      %637 = vmatprep.subr.bf16.mxu0 0
      %638 = vmatpush1.bf16.msra.mxu0 %v607
      %639 = vmatprep.subr.bf16.mxu0 0
      %640 = vmatpush1.bf16.msra.mxu0 %v606
      %641 = vmatprep.subr.bf16.mxu0 0
      %642 = vmatpush1.bf16.msra.mxu0 %v605
      %643 = vmatprep.subr.bf16.mxu0 0
      %644 = vmatpush1.bf16.msra.mxu0 %v604
      %645 = vmatprep.subr.bf16.mxu0 0
      %646 = vmatpush2.bf16.msra.mxu0 0
      %647 = vmatprep.subr.bf16.mxu0 0
      %648 = vmatpush2.bf16.msra.mxu0 0
      %649 = vmatprep.subr.bf16.mxu0 0
      %650 = vmatpush2.bf16.msra.mxu0 0
      %651 = vmatprep.subr.bf16.mxu0 0
      %652 = vmatpush2.bf16.msra.mxu0 0
      %653 = vmatprep.subr.bf16.mxu0 0
      %654 = vmatpush2.bf16.msra.mxu0 0
      %655 = vmatprep.subr.bf16.mxu0 0
      %656 = vmatpush2.bf16.msra.mxu0 0
      %657 = vmatprep.subr.bf16.mxu0 0
      %658 = vmatpush2.bf16.msra.mxu0 0
      %659 = vmatprep.subr.bf16.mxu0 0
      %660 = vmatpush2.bf16.msra.mxu0 0
      %661 = vmatprep.mubr.bf16.mxu0 0
      %662 = vmatmul.mubr.bf16.gmra.mxu0 %v618
      %v663 = vpop.f32.mrf.mxu0
      %v664 = vadd.f32 0.0, %v663
      %v665 = vpop.f32.mrf.mxu0
      %v666 = vpop.f32.mrf.mxu0
      %v667 = vadd.f32 0.0, %v666
      %v668 = vpop.f32.mrf.mxu0
      %669 = vmatprep.mubr.bf16.mxu0 0
      %670 = vmatmul.mubr.bf16.gmra.mxu0 %v621
      %v671 = vpop.f32.mrf.mxu0
      %v672 = vadd.f32 0.0, %v671
      %v673 = vpop.f32.mrf.mxu0
      %v674 = vpop.f32.mrf.mxu0
      %v675 = vadd.f32 0.0, %v674
      %v676 = vpop.f32.mrf.mxu0
      %677 = vmatprep.mubr.bf16.mxu0 0
      %678 = vmatmul.mubr.bf16.gmra.mxu0 %v624
      %v679 = vpop.f32.mrf.mxu0
      %v680 = vadd.f32 0.0, %v679
      %v681 = vpop.f32.mrf.mxu0
      %v682 = vpop.f32.mrf.mxu0
      %v683 = vadd.f32 0.0, %v682
      %v684 = vpop.f32.mrf.mxu0
      %685 = vmatprep.mubr.bf16.mxu0 0
      %686 = vmatmul.mubr.bf16.gmra.mxu0 %v627
      %v687 = vpop.f32.mrf.mxu0
      %v688 = vadd.f32 0.0, %v687
      %v689 = vpop.f32.mrf.mxu0
      %v690 = vpop.f32.mrf.mxu0
      %v691 = vadd.f32 0.0, %v690
      %v692 = vpop.f32.mrf.mxu0
      %693 = vdwg.mxu0
      %v702 = vrot.slane %v664, 7
      %v703 = vrot.slane %v667, 7
      %v704 = vrot.slane %v672, 7
      %v705 = vrot.slane %v675, 7
      %v706 = vrot.slane %v680, 7
      %v707 = vrot.slane %v683, 7
      %v708 = vrot.slane %v688, 7
      %v709 = vrot.slane %v691, 7
      %vm718 = vcmask 1040384
      %v719 = vsel %vm718, 0.0, %v702
      %v720 = vsel %vm718, 0.0, %v703
      %v721 = vsel %vm718, 0.0, %v704
      %v722 = vsel %vm718, 0.0, %v705
      %v723 = vsel %vm718, 0.0, %v706
      %v724 = vsel %vm718, 0.0, %v707
      %v725 = vsel %vm718, 0.0, %v708
      %v726 = vsel %vm718, 0.0, %v709
      %735 = vrot.lane.b32.xlu0 %v719, 32
      %v736 = vpop.permute.xlu0 %735
      %737 = vrot.lane.b32.xlu0 %v720, 32
      %v738 = vpop.permute.xlu0 %737
      %739 = vrot.lane.b32.xlu0 %v721, 32
      %v740 = vpop.permute.xlu0 %739
      %741 = vrot.lane.b32.xlu0 %v722, 32
      %v742 = vpop.permute.xlu0 %741
      %743 = vrot.lane.b32.xlu0 %v723, 32
      %v744 = vpop.permute.xlu0 %743
      %745 = vrot.lane.b32.xlu0 %v724, 32
      %v746 = vpop.permute.xlu0 %745
      %747 = vrot.lane.b32.xlu0 %v725, 32
      %v748 = vpop.permute.xlu0 %747
      %749 = vrot.lane.b32.xlu0 %v726, 32
      %v750 = vpop.permute.xlu0 %749
      %v759 = vadd.f32 %v664, %v736
      %v760 = vadd.f32 %v667, %v738
      %v761 = vadd.f32 %v672, %v740
      %v762 = vadd.f32 %v675, %v742
      %v763 = vadd.f32 %v680, %v744
      %v764 = vadd.f32 %v683, %v746
      %v765 = vadd.f32 %v688, %v748
      %v766 = vadd.f32 %v691, %v750
      %v767 = vrot.slane %v664, 1
      %v768 = vrot.slane %v667, 1
      %v769 = vrot.slane %v672, 1
      %v770 = vrot.slane %v675, 1
      %v771 = vrot.slane %v680, 1
      %v772 = vrot.slane %v683, 1
      %v773 = vrot.slane %v688, 1
      %v774 = vrot.slane %v691, 1
      %vm783 = vcmask 1046528
      %v784 = vsel %vm783, %v767, 0.0
      %v785 = vsel %vm783, %v768, 0.0
      %v786 = vsel %vm783, %v769, 0.0
      %v787 = vsel %vm783, %v770, 0.0
      %v788 = vsel %vm783, %v771, 0.0
      %v789 = vsel %vm783, %v772, 0.0
      %v790 = vsel %vm783, %v773, 0.0
      %v791 = vsel %vm783, %v774, 0.0
      %800 = vrot.lane.b32.xlu0 %v784, 96
      %v801 = vpop.permute.xlu0 %800
      %802 = vrot.lane.b32.xlu0 %v785, 96
      %v803 = vpop.permute.xlu0 %802
      %804 = vrot.lane.b32.xlu0 %v786, 96
      %v805 = vpop.permute.xlu0 %804
      %806 = vrot.lane.b32.xlu0 %v787, 96
      %v807 = vpop.permute.xlu0 %806
      %808 = vrot.lane.b32.xlu0 %v788, 96
      %v809 = vpop.permute.xlu0 %808
      %810 = vrot.lane.b32.xlu0 %v789, 96
      %v811 = vpop.permute.xlu0 %810
      %812 = vrot.lane.b32.xlu0 %v790, 96
      %v813 = vpop.permute.xlu0 %812
      %814 = vrot.lane.b32.xlu0 %v791, 96
      %v815 = vpop.permute.xlu0 %814
      %v824 = vadd.f32 %v759, %v801
      %v825 = vadd.f32 %v760, %v803
      %v826 = vadd.f32 %v761, %v805
      %v827 = vadd.f32 %v762, %v807
      %v828 = vadd.f32 %v763, %v809
      %v829 = vadd.f32 %v764, %v811
      %v830 = vadd.f32 %v765, %v813
      %v831 = vadd.f32 %v766, %v815
      %v832 = vld [vmem:[%s4] sm:$0x1]
      %v834 = vlaneseq
      %v835 = vshrl.u32 %v834, 7
      %v836 = vsub.s32 0, %v835
      %v837 = vrot.slane %v832, %v836
      %838 = vrot.lane.b32.xlu0 %v837, 32
      %v839 = vpop.permute.xlu0 %838
      %v841 = vadd.f32 %v824, %v839
      %v842 = vadd.f32 %v825, %v839
      %v843 = vadd.f32 %v826, %v839
      %v844 = vadd.f32 %v827, %v839
      %v845 = vadd.f32 %v828, %v839
      %v846 = vadd.f32 %v829, %v839
      %v847 = vadd.f32 %v830, %v839
      %v848 = vadd.f32 %v831, %v839
      %v849 = vld [vmem:[%s348] sm:$0xf]
      %v850 = vld [vmem:[%s348 + $0x4] sm:$0xf]
      %v851 = vld [vmem:[%s348 + $0x8] sm:$0xf]
      %v852 = vld [vmem:[%s348 + $0xc] sm:$0xf]
      %v853 = vld [vmem:[%s348 + $0x10] sm:$0xf]
      %v854 = vld [vmem:[%s348 + $0x14] sm:$0xf]
      %v855 = vld [vmem:[%s348 + $0x18] sm:$0xf]
      %v856 = vld [vmem:[%s348 + $0x1c] sm:$0xf]
      %v857 = vld [vmem:[%s6] sm:$0xf]
      %v858 = vld [vmem:[%s6 + $0x4] sm:$0xf]
      %v859 = vld [vmem:[%s6 + $0x8] sm:$0xf]
      %v860 = vld [vmem:[%s6 + $0xc] sm:$0xf]
      %v861 = vld [vmem:[%s6 + $0x10] sm:$0xf]
      %v862 = vld [vmem:[%s6 + $0x14] sm:$0xf]
      %v863 = vld [vmem:[%s6 + $0x18] sm:$0xf]
      %v864 = vld [vmem:[%s6 + $0x1c] sm:$0xf]
      %v865 = vld [vmem:[%s7] sm:$0x1]
      %v867 = vlaneseq
      %v868 = vshrl.u32 %v867, 7
      %v869 = vsub.s32 0, %v868
      %v870 = vrot.slane %v865, %v869
      %v880 = vunpack.c.l.b16 %v849
      %v881 = vunpack.c.l.b16 %v850
      %v882 = vunpack.c.l.b16 %v851
      %v883 = vunpack.c.l.b16 %v852
      %v884 = vunpack.c.l.b16 %v853
      %v885 = vunpack.c.l.b16 %v854
      %v886 = vunpack.c.l.b16 %v855
      %v887 = vunpack.c.l.b16 %v856
      %v888 = vpack.c.b16 %v881, %v880
      %v889 = vpack.c.b16 %v883, %v882
      %v890 = vpack.c.b16 %v885, %v884
      %v891 = vpack.c.b16 %v887, %v886
      %v900 = vunpack.c.l.b16 %v857
      %v901 = vunpack.c.l.b16 %v858
      %v902 = vunpack.c.l.b16 %v859
      %v903 = vunpack.c.l.b16 %v860
      %v904 = vunpack.c.l.b16 %v861
      %v905 = vunpack.c.l.b16 %v862
      %v906 = vunpack.c.l.b16 %v863
      %v907 = vunpack.c.l.b16 %v864
      %v908 = vpack.c.b16 %v901, %v900
      %v909 = vpack.c.b16 %v903, %v902
      %v910 = vpack.c.b16 %v905, %v904
      %v911 = vpack.c.b16 %v907, %v906
      %v917 = vsel %vm531, %v888, 0
      %v920 = vsel %vm531, %v889, 0
      %v923 = vsel %vm531, %v890, 0
      %v926 = vsel %vm531, %v891, 0
      %928 = vmatprep.subr.bf16.mxu0 0
      %929 = vmatpush1.bf16.msra.mxu0 0
      %930 = vmatprep.subr.bf16.mxu0 0
      %931 = vmatpush1.bf16.msra.mxu0 0
      %932 = vmatprep.subr.bf16.mxu0 0
      %933 = vmatpush1.bf16.msra.mxu0 0
      %934 = vmatprep.subr.bf16.mxu0 0
      %935 = vmatpush1.bf16.msra.mxu0 0
      %936 = vmatprep.subr.bf16.mxu0 0
      %937 = vmatpush1.bf16.msra.mxu0 %v911
      %938 = vmatprep.subr.bf16.mxu0 0
      %939 = vmatpush1.bf16.msra.mxu0 %v910
      %940 = vmatprep.subr.bf16.mxu0 0
      %941 = vmatpush1.bf16.msra.mxu0 %v909
      %942 = vmatprep.subr.bf16.mxu0 0
      %943 = vmatpush1.bf16.msra.mxu0 %v908
      %944 = vmatprep.subr.bf16.mxu0 0
      %945 = vmatpush2.bf16.msra.mxu0 0
      %946 = vmatprep.subr.bf16.mxu0 0
      %947 = vmatpush2.bf16.msra.mxu0 0
      %948 = vmatprep.subr.bf16.mxu0 0
      %949 = vmatpush2.bf16.msra.mxu0 0
      %950 = vmatprep.subr.bf16.mxu0 0
      %951 = vmatpush2.bf16.msra.mxu0 0
      %952 = vmatprep.subr.bf16.mxu0 0
      %953 = vmatpush2.bf16.msra.mxu0 0
      %954 = vmatprep.subr.bf16.mxu0 0
      %955 = vmatpush2.bf16.msra.mxu0 0
      %956 = vmatprep.subr.bf16.mxu0 0
      %957 = vmatpush2.bf16.msra.mxu0 0
      %958 = vmatprep.subr.bf16.mxu0 0
      %959 = vmatpush2.bf16.msra.mxu0 0
      %960 = vmatprep.mubr.bf16.mxu0 0
      %961 = vmatmul.mubr.bf16.gmra.mxu0 %v917
      %v962 = vpop.f32.mrf.mxu0
      %v963 = vadd.f32 %v870, %v962
      %v964 = vpop.f32.mrf.mxu0
      %v965 = vpop.f32.mrf.mxu0
      %v966 = vadd.f32 %v870, %v965
      %v967 = vpop.f32.mrf.mxu0
      %968 = vmatprep.mubr.bf16.mxu0 0
      %969 = vmatmul.mubr.bf16.gmra.mxu0 %v920
      %v970 = vpop.f32.mrf.mxu0
      %v971 = vadd.f32 %v870, %v970
      %v972 = vpop.f32.mrf.mxu0
      %v973 = vpop.f32.mrf.mxu0
      %v974 = vadd.f32 %v870, %v973
      %v975 = vpop.f32.mrf.mxu0
      %976 = vmatprep.mubr.bf16.mxu0 0
      %977 = vmatmul.mubr.bf16.gmra.mxu0 %v923
      %v978 = vpop.f32.mrf.mxu0
      %v979 = vadd.f32 %v870, %v978
      %v980 = vpop.f32.mrf.mxu0
      %v981 = vpop.f32.mrf.mxu0
      %v982 = vadd.f32 %v870, %v981
      %v983 = vpop.f32.mrf.mxu0
      %984 = vmatprep.mubr.bf16.mxu0 0
      %985 = vmatmul.mubr.bf16.gmra.mxu0 %v926
      %v986 = vpop.f32.mrf.mxu0
      %v987 = vadd.f32 %v870, %v986
      %v988 = vpop.f32.mrf.mxu0
      %v989 = vpop.f32.mrf.mxu0
      %v990 = vadd.f32 %v870, %v989
      %v991 = vpop.f32.mrf.mxu0
      %992 = vdwg.mxu0
      %1001 = vrot.lane.b32.xlu0 %v963, 32
      %v1002 = vpop.permute.xlu0 %1001
      %1003 = vrot.lane.b32.xlu0 %v966, 32
      %v1004 = vpop.permute.xlu0 %1003
      %1005 = vrot.lane.b32.xlu0 %v971, 32
      %v1006 = vpop.permute.xlu0 %1005
      %1007 = vrot.lane.b32.xlu0 %v974, 32
      %v1008 = vpop.permute.xlu0 %1007
      %1009 = vrot.lane.b32.xlu0 %v979, 32
      %v1010 = vpop.permute.xlu0 %1009
      %1011 = vrot.lane.b32.xlu0 %v982, 32
      %v1012 = vpop.permute.xlu0 %1011
      %1013 = vrot.lane.b32.xlu0 %v987, 32
      %v1014 = vpop.permute.xlu0 %1013
      %1015 = vrot.lane.b32.xlu0 %v990, 32
      %v1016 = vpop.permute.xlu0 %1015
      %v1025 = vadd.f32 %v841, %v1002
      %v1026 = vadd.f32 %v842, %v1004
      %v1027 = vadd.f32 %v843, %v1006
      %v1028 = vadd.f32 %v844, %v1008
      %v1029 = vadd.f32 %v845, %v1010
      %v1030 = vadd.f32 %v846, %v1012
      %v1031 = vadd.f32 %v847, %v1014
      %v1032 = vadd.f32 %v848, %v1016
      %v1033 = vpack.c.bf16 %v1025, %v1025
      %v1034 = vpack.c.bf16 %v1026, %v1026
      %v1035 = vpack.c.bf16 %v1027, %v1027
      %v1036 = vpack.c.bf16 %v1028, %v1028
      %v1037 = vpack.c.bf16 %v1029, %v1029
      %v1038 = vpack.c.bf16 %v1030, %v1030
      %v1039 = vpack.c.bf16 %v1031, %v1031
      %v1040 = vpack.c.bf16 %v1032, %v1032
      %v1049 = vunpack.c.l.b16 %v1033
      %v1050 = vunpack.c.l.b16 %v1034
      %v1051 = vunpack.c.l.b16 %v1035
      %v1052 = vunpack.c.l.b16 %v1036
      %v1053 = vunpack.c.l.b16 %v1037
      %v1054 = vunpack.c.l.b16 %v1038
      %v1055 = vunpack.c.l.b16 %v1039
      %v1056 = vunpack.c.l.b16 %v1040
      %v1057 = vpack.c.b16 %v1049, %v1049
      %v1058 = vpack.c.b16 %v1050, %v1050
      %v1059 = vpack.c.b16 %v1051, %v1051
      %v1060 = vpack.c.b16 %v1052, %v1052
      %v1061 = vpack.c.b16 %v1053, %v1053
      %v1062 = vpack.c.b16 %v1054, %v1054
      %v1063 = vpack.c.b16 %v1055, %v1055
      %v1064 = vpack.c.b16 %v1056, %v1056
      %1065 = vrot.lane.b32.xlu0 %v1057, 96
      %v1066 = vpop.permute.xlu0 %1065
      %1067 = vrot.lane.b32.xlu0 %v1058, 96
      %v1068 = vpop.permute.xlu0 %1067
      %1069 = vrot.lane.b32.xlu0 %v1059, 96
      %v1070 = vpop.permute.xlu0 %1069
      %1071 = vrot.lane.b32.xlu0 %v1060, 96
      %v1072 = vpop.permute.xlu0 %1071
      %1073 = vrot.lane.b32.xlu0 %v1061, 96
      %v1074 = vpop.permute.xlu0 %1073
      %1075 = vrot.lane.b32.xlu0 %v1062, 96
      %v1076 = vpop.permute.xlu0 %1075
      %1077 = vrot.lane.b32.xlu0 %v1063, 96
      %v1078 = vpop.permute.xlu0 %1077
      %1079 = vrot.lane.b32.xlu0 %v1064, 96
      %v1080 = vpop.permute.xlu0 %1079
      %vm1089 = vcmask 257024
      %1090 = vst.msk [vmem:[%s353] sm:$0xf] %vm1089, %v1066
      %1091 = vst.msk [vmem:[%s353 + $0x4] sm:$0xf] %vm1089, %v1068
      %1092 = vst.msk [vmem:[%s353 + $0x8] sm:$0xf] %vm1089, %v1070
      %1093 = vst.msk [vmem:[%s353 + $0xc] sm:$0xf] %vm1089, %v1072
      %1094 = vst.msk [vmem:[%s353 + $0x10] sm:$0xf] %vm1089, %v1074
      %1095 = vst.msk [vmem:[%s353 + $0x14] sm:$0xf] %vm1089, %v1076
      %1096 = vst.msk [vmem:[%s353 + $0x18] sm:$0xf] %vm1089, %v1078
      %1097 = vst.msk [vmem:[%s353 + $0x1c] sm:$0xf] %vm1089, %v1080
      %p1098 = scmp.lt.s32.totalorder %s19, 1
      %s1099 = scalar_select %p1098, %s19, 1
      %s1100 = smul.addr %s1099, 8
      %s1101 = smul.addr %s1100, 4
      %s1102 = scalar_lea.vmem %s8, %s1101
      // Predicated region
      $region53: #{decoder_forward.13} parent=51 // pred_check
        %p1103 = pneg %p225
      $region54: #{decoder_forward.13} parent=51 // pred_check_branch
        %1105 = sbr.rel (%p1103) target = $region56
      $region55: #{decoder_forward.13} parent=51 // pred_region
        _
      $region56: #{decoder_forward.13} parent=51 // pred_fallthru
        _
    $region52: #{decoder_forward.13} parent=5 // pred_fallthru
      _
    %p1106 = scmp.le.s32.totalorder 2, %s14
    // Predicated region
    $region57: #{decoder_forward.13} parent=5 // pred_check
      %p1107 = pneg %p1106
    $region58: #{decoder_forward.13} parent=5 // pred_check_branch
      %1109 = sbr.rel (%p1107) target = $region60
    $region59: #{decoder_forward.13} parent=5 // pred_region
      %s1110 = ssub.s32 %s14, 2
      // Predicated region
      $region61: #{decoder_forward.13} parent=59 // pred_check
        %p1111 = pneg %p231
      $region62: #{decoder_forward.13} parent=59 // pred_check_branch
        %1113 = sbr.rel (%p1111) target = $region64
      $region63: #{decoder_forward.13} parent=59 // pred_region
        %p1114 = scmp.lt.s32.totalorder %s20, 1
        %s1115 = scalar_select %p1114, %s20, 1
        %s1116 = smul.addr %s1115, 8
        %s1117 = smul.addr %s1116, 4
        %s1118 = scalar_lea.vmem %s8, %s1117
      $region64: #{decoder_forward.13} parent=59 // pred_fallthru
        _
    $region60: #{decoder_forward.13} parent=5 // pred_fallthru
      _
  $region6: #{decoder_forward.13} parent=0 // loop_footer
    %s18 = sadd.s32 1, %s14
  $region7: #{decoder_forward.13} parent=0 // loop_footer_branch
    %13 = sbr.rel target = $region3
  $region8: #{decoder_forward.13} parent=0 // loop_exit
    _

// kernel: decoder_forward.12
$region0: #{decoder_forward.12}
  #allocation0 [shape = 'u32[]', space=smem, size = 0x4, offset = 0x4, fixed_abs, tag = 'smem constant byte address 0x4 - core index']
  #allocation1 [shape = 'u32[144,128]{1,0:T(1,128)}', space=vmem, size = 0x12000, scoped, tag = 'internal scratch']
  %s0 = inlined_call_operand.vmem [shape: bf16[2,8,8,64], index: 0, kind: input, shape index: {}]
  %s1 = inlined_call_operand.vmem [shape: f32[2,1,64], index: 1, kind: input, shape index: {}]
  %s2 = inlined_call_operand.vmem [shape: f32[2,1,64], index: 2, kind: input, shape index: {}]
  %s3 = inlined_call_operand.vmem [shape: bf16[192,96], index: 3, kind: input, shape index: {}]
  %s4 = inlined_call_operand.vmem [shape: f32[1,32], index: 4, kind: input, shape index: {}]
  %s5 = inlined_call_operand.vmem [shape: bf16[2,8,8,32], index: 5, kind: output, shape index: {0}]
  %s6 = inlined_call_operand.vmem [shape: f32[2,1,32], index: 6, kind: output, shape index: {1}]
  %s7 = inlined_call_operand.vmem [shape: f32[2,1,32], index: 7, kind: output, shape index: {2}]
  %8 = xla_tuple %s5, %s6, %s7
  %s9 = sld [smem:[#allocation0]]
  $region69: #{decoder_forward.12} parent=0
    _
  %s11 = ssub.s32 1, %s9
  %s12 = scalar_select 0, %s11, %s9
  loop: start=0, step=1, limit=4
  $region2: #{decoder_forward.12} parent=0 // loop_pre_header
    _
  $region3: #{decoder_forward.12} parent=0 // loop_header
    %s14 = sphi 0, %s18
    %p15 = scmp.ge.s32.totalorder %s14, 4
    %s24 = sphi 0, %s26
    %s27 = sphi 0, %s24
    %s28 = sphi 0, %s27
    %s44 = sphi 0, %s28
    %s50 = sphi 0, %s52
    %s53 = sphi 0, %s50
    %s54 = sphi 0, %s53
    %s70 = sphi 0, %s54
    %s76 = sphi 0, %s78
    %s79 = sphi 0, %s76
    %s80 = sphi 0, %s79
    %s96 = sphi 0, %s80
    %s100 = sphi 0, %s100
    %s102 = sphi 0, %s100
    %s103 = sphi 0, %s102
    %s117 = sphi 0, %s103
    %s121 = sphi 0, %s121
    %s123 = sphi 0, %s121
    %s124 = sphi 0, %s123
    %s138 = sphi 0, %s124
    %s144 = sphi 0, %s146
    %s147 = sphi 0, %s144
    %s148 = sphi 0, %s147
    %s164 = sphi 0, %s148
    %s170 = sphi 0, %s172
    %s173 = sphi 0, %s170
    %s174 = sphi 0, %s173
    %s190 = sphi 0, %s174
    %s196 = sphi 0, %s198
    %s199 = sphi 0, %s196
    %s200 = sphi 0, %s199
    %s216 = sphi 0, %s200
  $region4: #{decoder_forward.12} parent=0 // loop_header_branch
    %17 = sbr.rel (%p15) target = $region8
  $region5: #{decoder_forward.12} parent=0 // loop_body
    %s19 = ssub.s32 %s14, 1
    %s20 = ssub.s32 %s14, 2
    %s21 = sadd.s32 %s14, 1
    %s22 = ssub.s32 %s14, %s21
    %p23 = scmp.eq.s32.totalorder %s22, 0
    %s25 = sadd.s32 %s24, 1
    %s26 = scalar_select %p23, %s24, %s25
    %p29 = pneg %p23
    %p30 = scmp.eq.s32.totalorder %s14, 1
    %p31 = por %p29, %p30
    %p32 = scmp.ne.s32.totalorder %s24, %s27
    %p33 = scmp.eq.s32.totalorder %s14, 0
    %p34 = por %p32, %p33
    %p35 = scmp.ne.s32.totalorder %s24, %s27
    %p36 = scmp.eq.s32.totalorder %s19, 1
    %p37 = por %p35, %p36
    %p38 = scmp.ne.s32.totalorder %s27, %s28
    %p39 = scmp.eq.s32.totalorder %s19, 0
    %p40 = por %p38, %p39
    %p41 = scmp.ne.s32.totalorder %s27, %s28
    %p42 = scmp.eq.s32.totalorder %s20, 1
    %p43 = por %p41, %p42
    %p45 = scmp.ne.s32.totalorder %s28, %s44
    %p46 = scmp.eq.s32.totalorder %s20, 0
    %p47 = por %p45, %p46
    %s48 = ssub.s32 %s14, %s21
    %p49 = scmp.eq.s32.totalorder %s48, 0
    %s51 = sadd.s32 %s50, 1
    %s52 = scalar_select %p49, %s50, %s51
    %p55 = pneg %p49
    %p56 = scmp.eq.s32.totalorder %s14, 1
    %p57 = por %p55, %p56
    %p58 = scmp.ne.s32.totalorder %s50, %s53
    %p59 = scmp.eq.s32.totalorder %s14, 0
    %p60 = por %p58, %p59
    %p61 = scmp.ne.s32.totalorder %s50, %s53
    %p62 = scmp.eq.s32.totalorder %s19, 1
    %p63 = por %p61, %p62
    %p64 = scmp.ne.s32.totalorder %s53, %s54
    %p65 = scmp.eq.s32.totalorder %s19, 0
    %p66 = por %p64, %p65
    %p67 = scmp.ne.s32.totalorder %s53, %s54
    %p68 = scmp.eq.s32.totalorder %s20, 1
    %p69 = por %p67, %p68
    %p71 = scmp.ne.s32.totalorder %s54, %s70
    %p72 = scmp.eq.s32.totalorder %s20, 0
    %p73 = por %p71, %p72
    %s74 = ssub.s32 %s14, %s21
    %p75 = scmp.eq.s32.totalorder %s74, 0
    %s77 = sadd.s32 %s76, 1
    %s78 = scalar_select %p75, %s76, %s77
    %p81 = pneg %p75
    %p82 = scmp.eq.s32.totalorder %s14, 1
    %p83 = por %p81, %p82
    %p84 = scmp.ne.s32.totalorder %s76, %s79
    %p85 = scmp.eq.s32.totalorder %s14, 0
    %p86 = por %p84, %p85
    %p87 = scmp.ne.s32.totalorder %s76, %s79
    %p88 = scmp.eq.s32.totalorder %s19, 1
    %p89 = por %p87, %p88
    %p90 = scmp.ne.s32.totalorder %s79, %s80
    %p91 = scmp.eq.s32.totalorder %s19, 0
    %p92 = por %p90, %p91
    %p93 = scmp.ne.s32.totalorder %s79, %s80
    %p94 = scmp.eq.s32.totalorder %s20, 1
    %p95 = por %p93, %p94
    %p97 = scmp.ne.s32.totalorder %s80, %s96
    %p98 = scmp.eq.s32.totalorder %s20, 0
    %p99 = por %p97, %p98
    %s101 = sadd.s32 %s100, 1
    %p104 = scmp.eq.s32.totalorder %s14, 1
    %p105 = scmp.ne.s32.totalorder %s100, %s102
    %p106 = scmp.eq.s32.totalorder %s14, 0
    %p107 = por %p105, %p106
    %p108 = scmp.ne.s32.totalorder %s100, %s102
    %p109 = scmp.eq.s32.totalorder %s19, 1
    %p110 = por %p108, %p109
    %p111 = scmp.ne.s32.totalorder %s102, %s103
    %p112 = scmp.eq.s32.totalorder %s19, 0
    %p113 = por %p111, %p112
    %p114 = scmp.ne.s32.totalorder %s102, %s103
    %p115 = scmp.eq.s32.totalorder %s20, 1
    %p116 = por %p114, %p115
    %p118 = scmp.ne.s32.totalorder %s103, %s117
    %p119 = scmp.eq.s32.totalorder %s20, 0
    %p120 = por %p118, %p119
    %s122 = sadd.s32 %s121, 1
    %p125 = scmp.eq.s32.totalorder %s14, 1
    %p126 = scmp.ne.s32.totalorder %s121, %s123
    %p127 = scmp.eq.s32.totalorder %s14, 0
    %p128 = por %p126, %p127
    %p129 = scmp.ne.s32.totalorder %s121, %s123
    %p130 = scmp.eq.s32.totalorder %s19, 1
    %p131 = por %p129, %p130
    %p132 = scmp.ne.s32.totalorder %s123, %s124
    %p133 = scmp.eq.s32.totalorder %s19, 0
    %p134 = por %p132, %p133
    %p135 = scmp.ne.s32.totalorder %s123, %s124
    %p136 = scmp.eq.s32.totalorder %s20, 1
    %p137 = por %p135, %p136
    %p139 = scmp.ne.s32.totalorder %s124, %s138
    %p140 = scmp.eq.s32.totalorder %s20, 0
    %p141 = por %p139, %p140
    %s142 = ssub.s32 %s14, %s21
    %p143 = scmp.eq.s32.totalorder %s142, 0
    %s145 = sadd.s32 %s144, 1
    %s146 = scalar_select %p143, %s144, %s145
    %p149 = pneg %p143
    %p150 = scmp.eq.s32.totalorder %s14, 1
    %p151 = por %p149, %p150
    %p152 = scmp.ne.s32.totalorder %s144, %s147
    %p153 = scmp.eq.s32.totalorder %s14, 0
    %p154 = por %p152, %p153
    %p155 = scmp.ne.s32.totalorder %s144, %s147
    %p156 = scmp.eq.s32.totalorder %s19, 1
    %p157 = por %p155, %p156
    %p158 = scmp.ne.s32.totalorder %s147, %s148
    %p159 = scmp.eq.s32.totalorder %s19, 0
    %p160 = por %p158, %p159
    %p161 = scmp.ne.s32.totalorder %s147, %s148
    %p162 = scmp.eq.s32.totalorder %s20, 1
    %p163 = por %p161, %p162
    %p165 = scmp.ne.s32.totalorder %s148, %s164
    %p166 = scmp.eq.s32.totalorder %s20, 0
    %p167 = por %p165, %p166
    %s168 = ssub.s32 %s14, %s21
    %p169 = scmp.eq.s32.totalorder %s168, 0
    %s171 = sadd.s32 %s170, 1
    %s172 = scalar_select %p169, %s170, %s171
    %p175 = pneg %p169
    %p176 = scmp.eq.s32.totalorder %s14, 1
    %p177 = por %p175, %p176
    %p178 = scmp.ne.s32.totalorder %s170, %s173
    %p179 = scmp.eq.s32.totalorder %s14, 0
    %p180 = por %p178, %p179
    %p181 = scmp.ne.s32.totalorder %s170, %s173
    %p182 = scmp.eq.s32.totalorder %s19, 1
    %p183 = por %p181, %p182
    %p184 = scmp.ne.s32.totalorder %s173, %s174
    %p185 = scmp.eq.s32.totalorder %s19, 0
    %p186 = por %p184, %p185
    %p187 = scmp.ne.s32.totalorder %s173, %s174
    %p188 = scmp.eq.s32.totalorder %s20, 1
    %p189 = por %p187, %p188
    %p191 = scmp.ne.s32.totalorder %s174, %s190
    %p192 = scmp.eq.s32.totalorder %s20, 0
    %p193 = por %p191, %p192
    %s194 = ssub.s32 %s14, %s21
    %p195 = scmp.eq.s32.totalorder %s194, 0
    %s197 = sadd.s32 %s196, 1
    %s198 = scalar_select %p195, %s196, %s197
    %p201 = pneg %p195
    %p202 = scmp.eq.s32.totalorder %s14, 1
    %p203 = por %p201, %p202
    %p204 = scmp.ne.s32.totalorder %s196, %s199
    %p205 = scmp.eq.s32.totalorder %s14, 0
    %p206 = por %p204, %p205
    %p207 = scmp.ne.s32.totalorder %s196, %s199
    %p208 = scmp.eq.s32.totalorder %s19, 1
    %p209 = por %p207, %p208
    %p210 = scmp.ne.s32.totalorder %s199, %s200
    %p211 = scmp.eq.s32.totalorder %s19, 0
    %p212 = por %p210, %p211
    %p213 = scmp.ne.s32.totalorder %s199, %s200
    %p214 = scmp.eq.s32.totalorder %s20, 1
    %p215 = por %p213, %p214
    %p217 = scmp.ne.s32.totalorder %s200, %s216
    %p218 = scmp.eq.s32.totalorder %s20, 0
    %p219 = por %p217, %p218
    %p220 = scmp.le.s32.totalorder 1, %s14
    %p221 = scmp.lt.s32.totalorder %s14, 3
    %p222 = pnand %p220, %p221
    %p223 = pneg %p222
    // Predicated region
    $region9: #{decoder_forward.12} parent=5 // pred_check
      _
    $region10: #{decoder_forward.12} parent=5 // pred_check_branch
      %225 = sbr.rel (%p222) target = $region12
    $region11: #{decoder_forward.12} parent=5 // pred_region
      %s226 = ssub.s32 %s14, 1
      // Predicated region
      $region13: #{decoder_forward.12} parent=11 // pred_check
        %p227 = pneg %p113
      $region14: #{decoder_forward.12} parent=11 // pred_check_branch
        %229 = sbr.rel (%p227) target = $region16
      $region15: #{decoder_forward.12} parent=11 // pred_region
        _
      $region16: #{decoder_forward.12} parent=11 // pred_fallthru
        _
      // Predicated region
      $region17: #{decoder_forward.12} parent=11 // pred_check
        %p230 = pneg %p134
      $region18: #{decoder_forward.12} parent=11 // pred_check_branch
        %232 = sbr.rel (%p230) target = $region20
      $region19: #{decoder_forward.12} parent=11 // pred_region
        _
      $region20: #{decoder_forward.12} parent=11 // pred_fallthru
        _
    $region12: #{decoder_forward.12} parent=5 // pred_fallthru
      _
    %p233 = scmp.lt.s32.totalorder %s14, 2
    // Predicated region
    $region21: #{decoder_forward.12} parent=5 // pred_check
      %p234 = pneg %p233
    $region22: #{decoder_forward.12} parent=5 // pred_check_branch
      %236 = sbr.rel (%p234) target = $region24
    $region23: #{decoder_forward.12} parent=5 // pred_region
      // Predicated region
      $region25: #{decoder_forward.12} parent=23 // pred_check
        %p237 = pneg %p34
      $region26: #{decoder_forward.12} parent=23 // pred_check_branch
        %239 = sbr.rel (%p237) target = $region28
      $region27: #{decoder_forward.12} parent=23 // pred_region
        %p240 = scmp.lt.s32.totalorder %s14, 1
        %s241 = scalar_select %p240, %s14, 1
        %s242 = smul.addr %s241, 8
        %s243 = smul.addr %s242, 4
        %s244 = scalar_lea.vmem %s0, %s243
      $region28: #{decoder_forward.12} parent=23 // pred_fallthru
        _
      // Predicated region
      $region29: #{decoder_forward.12} parent=23 // pred_check
        %p245 = pneg %p60
      $region30: #{decoder_forward.12} parent=23 // pred_check_branch
        %247 = sbr.rel (%p245) target = $region32
      $region31: #{decoder_forward.12} parent=23 // pred_region
        %p248 = scmp.lt.s32.totalorder %s14, 1
        %s249 = scalar_select %p248, %s14, 1
        %s250 = scalar_lea.vmem %s1, %s249
      $region32: #{decoder_forward.12} parent=23 // pred_fallthru
        _
      // Predicated region
      $region33: #{decoder_forward.12} parent=23 // pred_check
        %p251 = pneg %p86
      $region34: #{decoder_forward.12} parent=23 // pred_check_branch
        %253 = sbr.rel (%p251) target = $region36
      $region35: #{decoder_forward.12} parent=23 // pred_region
        %p254 = scmp.lt.s32.totalorder %s14, 1
        %s255 = scalar_select %p254, %s14, 1
        %s256 = scalar_lea.vmem %s2, %s255
      $region36: #{decoder_forward.12} parent=23 // pred_fallthru
        _
    $region24: #{decoder_forward.12} parent=5 // pred_fallthru
      _
    %p257 = scmp.le.s32.totalorder 1, %s14
    %p258 = scmp.lt.s32.totalorder %s14, 3
    %p259 = pnand %p257, %p258
    %p260 = pneg %p259
    // Predicated region
    $region37: #{decoder_forward.12} parent=5 // pred_check
      _
    $region38: #{decoder_forward.12} parent=5 // pred_check_branch
      %262 = sbr.rel (%p259) target = $region40
    $region39: #{decoder_forward.12} parent=5 // pred_region
      %s263 = ssub.s32 %s14, 1
      %p264 = scmp.lt.s32.totalorder %s19, 1
      %s265 = scalar_select %p264, %s19, 1
      %s266 = smul.addr %s265, 8
      %s267 = smul.addr %s266, 4
      %s268 = scalar_lea.vmem %s0, %s267
      %p269 = pneg %p40
      %p270 = pneg %p37
      %p271 = scmp.lt.s32.totalorder %s19, 1
      %s272 = scalar_select %p271, %s19, 1
      %s273 = scalar_lea.vmem %s1, %s272
      %p274 = pneg %p66
      %p275 = pneg %p63
      %p276 = scmp.lt.s32.totalorder %s19, 1
      %s277 = scalar_select %p276, %s19, 1
      %s278 = scalar_lea.vmem %s2, %s277
      %p279 = pneg %p92
      %p280 = pneg %p89
      %p281 = pneg %p113
      %p282 = pneg %p110
      %p283 = pneg %p134
      %p284 = pneg %p131
      %p285 = pneg %p160
      %p286 = pneg %p157
      %p287 = scmp.lt.s32.totalorder %s19, 1
      %s288 = scalar_select %p287, %s19, 1
      %s289 = smul.addr %s288, 8
      %s290 = smul.addr %s289, 4
      %s291 = scalar_lea.vmem %s5, %s290
      %p292 = pneg %p186
      %p293 = pneg %p183
      %p294 = scmp.lt.s32.totalorder %s19, 1
      %s295 = scalar_select %p294, %s19, 1
      %s296 = scalar_lea.vmem %s6, %s295
      %p297 = pneg %p212
      %p298 = pneg %p209
      %p299 = scmp.lt.s32.totalorder %s19, 1
      %s300 = scalar_select %p299, %s19, 1
      %s301 = scalar_lea.vmem %s7, %s300
      %p302 = scmp.lt.s32.totalorder %s19, 1
      %s303 = scalar_select %p302, %s19, 1
      %s304 = smul.addr %s303, 8
      %s305 = smul.addr %s304, 4
      %s306 = scalar_lea.vmem %s0, %s305
      %p307 = scmp.lt.s32.totalorder %s19, 1
      %s308 = scalar_select %p307, %s19, 1
      %s309 = scalar_lea.vmem %s1, %s308
      %p310 = scmp.lt.s32.totalorder %s19, 1
      %s311 = scalar_select %p310, %s19, 1
      %s312 = scalar_lea.vmem %s2, %s311
      %p313 = scmp.lt.s32.totalorder %s19, 1
      %s314 = scalar_select %p313, %s19, 1
      %s315 = smul.addr %s314, 8
      %s316 = smul.addr %s315, 4
      %s317 = scalar_lea.vmem %s5, %s316
      %p318 = scmp.lt.s32.totalorder %s19, 1
      %s319 = scalar_select %p318, %s19, 1
      %s320 = scalar_lea.vmem %s6, %s319
      %p321 = scmp.lt.s32.totalorder %s19, 1
      %s322 = scalar_select %p321, %s19, 1
      %s323 = scalar_lea.vmem %s7, %s322
      %v325 = vld [vmem:[%s306] sm:$0xf]
      %v326 = vld [vmem:[%s306 + $0x4] sm:$0xf]
      %v327 = vld [vmem:[%s306 + $0x8] sm:$0xf]
      %v328 = vld [vmem:[%s306 + $0xc] sm:$0xf]
      %v329 = vld [vmem:[%s306 + $0x10] sm:$0xf]
      %v330 = vld [vmem:[%s306 + $0x14] sm:$0xf]
      %v331 = vld [vmem:[%s306 + $0x18] sm:$0xf]
      %v332 = vld [vmem:[%s306 + $0x1c] sm:$0xf]
      %v333 = vunpack.c.l.bf16 %v325
      %v334 = vunpack.c.l.bf16 %v326
      %v335 = vunpack.c.l.bf16 %v327
      %v336 = vunpack.c.l.bf16 %v328
      %v337 = vunpack.c.l.bf16 %v329
      %v338 = vunpack.c.l.bf16 %v330
      %v339 = vunpack.c.l.bf16 %v331
      %v340 = vunpack.c.l.bf16 %v332
      %v341 = vld [vmem:[%s309] sm:$0x1]
      %v343 = vlaneseq
      %v344 = vshrl.u32 %v343, 7
      %v345 = vsub.s32 0, %v344
      %v346 = vrot.slane %v341, %v345
      %v348 = vmul.f32 %v333, %v346
      %v349 = vmul.f32 %v334, %v346
      %v350 = vmul.f32 %v335, %v346
      %v351 = vmul.f32 %v336, %v346
      %v352 = vmul.f32 %v337, %v346
      %v353 = vmul.f32 %v338, %v346
      %v354 = vmul.f32 %v339, %v346
      %v355 = vmul.f32 %v340, %v346
      %v356 = vld [vmem:[%s312] sm:$0x1]
      %v358 = vlaneseq
      %v359 = vshrl.u32 %v358, 7
      %v360 = vsub.s32 0, %v359
      %v361 = vrot.slane %v356, %v360
      %v363 = vadd.f32 %v348, %v361
      %v364 = vadd.f32 %v349, %v361
      %v365 = vadd.f32 %v350, %v361
      %v366 = vadd.f32 %v351, %v361
      %v367 = vadd.f32 %v352, %v361
      %v368 = vadd.f32 %v353, %v361
      %v369 = vadd.f32 %v354, %v361
      %v370 = vadd.f32 %v355, %v361
      %v371 = vxor.u32 %v363, 2147483648
      %v372 = vxor.u32 %v364, 2147483648
      %v373 = vxor.u32 %v365, 2147483648
      %v374 = vxor.u32 %v366, 2147483648
      %v375 = vxor.u32 %v367, 2147483648
      %v376 = vxor.u32 %v368, 2147483648
      %v377 = vxor.u32 %v369, 2147483648
      %v378 = vxor.u32 %v370, 2147483648
      %v379 = vmul.f32 %v371, 1.442695
      %v380 = vpow.pop %v379
      %v381 = vmul.f32 %v372, 1.442695
      %v382 = vpow.pop %v381
      %v383 = vmul.f32 %v373, 1.442695
      %v384 = vpow.pop %v383
      %v385 = vmul.f32 %v374, 1.442695
      %v386 = vpow.pop %v385
      %v387 = vmul.f32 %v375, 1.442695
      %v388 = vpow.pop %v387
      %v389 = vmul.f32 %v376, 1.442695
      %v390 = vpow.pop %v389
      %v391 = vmul.f32 %v377, 1.442695
      %v392 = vpow.pop %v391
      %v393 = vmul.f32 %v378, 1.442695
      %v394 = vpow.pop %v393
      %v395 = vadd.f32 %v380, 1.0
      %v396 = vadd.f32 %v382, 1.0
      %v397 = vadd.f32 %v384, 1.0
      %v398 = vadd.f32 %v386, 1.0
      %v399 = vadd.f32 %v388, 1.0
      %v400 = vadd.f32 %v390, 1.0
      %v401 = vadd.f32 %v392, 1.0
      %v402 = vadd.f32 %v394, 1.0
      %v403 = vrcp.pop %v395
      %v404 = vmul.f32 1.0, %v403
      %v405 = vrcp.pop %v396
      %v406 = vmul.f32 1.0, %v405
      %v407 = vrcp.pop %v397
      %v408 = vmul.f32 1.0, %v407
      %v409 = vrcp.pop %v398
      %v410 = vmul.f32 1.0, %v409
      %v411 = vrcp.pop %v399
      %v412 = vmul.f32 1.0, %v411
      %v413 = vrcp.pop %v400
      %v414 = vmul.f32 1.0, %v413
      %v415 = vrcp.pop %v401
      %v416 = vmul.f32 1.0, %v415
      %v417 = vrcp.pop %v402
      %v418 = vmul.f32 1.0, %v417
      %v419 = vmul.f32 %v363, %v404
      %v420 = vmul.f32 %v364, %v406
      %v421 = vmul.f32 %v365, %v408
      %v422 = vmul.f32 %v366, %v410
      %v423 = vmul.f32 %v367, %v412
      %v424 = vmul.f32 %v368, %v414
      %v425 = vmul.f32 %v369, %v416
      %v426 = vmul.f32 %v370, %v418
      %v427 = vpack.c.bf16 %v419, %v419
      %v428 = vpack.c.bf16 %v420, %v420
      %v429 = vpack.c.bf16 %v421, %v421
      %v430 = vpack.c.bf16 %v422, %v422
      %v431 = vpack.c.bf16 %v423, %v423
      %v432 = vpack.c.bf16 %v424, %v424
      %v433 = vpack.c.bf16 %v425, %v425
      %v434 = vpack.c.bf16 %v426, %v426
      %443 = vrot.lane.b32.xlu0 %v427, 64
      %v444 = vpop.permute.xlu0 %443
      %445 = vrot.lane.b32.xlu0 %v428, 64
      %v446 = vpop.permute.xlu0 %445
      %447 = vrot.lane.b32.xlu0 %v429, 64
      %v448 = vpop.permute.xlu0 %447
      %449 = vrot.lane.b32.xlu0 %v430, 64
      %v450 = vpop.permute.xlu0 %449
      %451 = vrot.lane.b32.xlu0 %v431, 64
      %v452 = vpop.permute.xlu0 %451
      %453 = vrot.lane.b32.xlu0 %v432, 64
      %v454 = vpop.permute.xlu0 %453
      %455 = vrot.lane.b32.xlu0 %v433, 64
      %v456 = vpop.permute.xlu0 %455
      %457 = vrot.lane.b32.xlu0 %v434, 64
      %v458 = vpop.permute.xlu0 %457
      %vm459 = vcmask 523264
      %v462 = vsel %vm459, 0, %v444
      %v465 = vsel %vm459, %v427, %v446
      %v468 = vsel %vm459, %v428, %v448
      %v471 = vsel %vm459, %v429, %v450
      %v474 = vsel %vm459, %v430, %v452
      %v477 = vsel %vm459, %v431, %v454
      %v480 = vsel %vm459, %v432, %v456
      %v483 = vsel %vm459, %v433, %v458
      %v493 = vunpack.c.l.b16 %v462
      %v494 = vunpack.c.l.b16 %v428
      %v495 = vunpack.c.l.b16 %v465
      %v496 = vunpack.c.l.b16 %v429
      %v497 = vunpack.c.l.b16 %v468
      %v498 = vunpack.c.l.b16 %v430
      %v499 = vunpack.c.l.b16 %v471
      %v500 = vunpack.c.l.b16 %v431
      %v501 = vunpack.c.l.b16 %v474
      %v502 = vunpack.c.l.b16 %v432
      %v503 = vunpack.c.l.b16 %v477
      %v504 = vunpack.c.l.b16 %v433
      %v505 = vunpack.c.l.b16 %v480
      %v506 = vunpack.c.l.b16 %v434
      %v507 = vunpack.c.l.b16 %v483
      %v508 = vunpack.c.l.b16 0
      %v509 = vld [vmem:[%s3] sm:$0xf]
      %v510 = vld [vmem:[%s3 + $0x4] sm:$0xf]
      %v511 = vld [vmem:[%s3 + $0x8] sm:$0xf]
      %v512 = vld [vmem:[%s3 + $0xc] sm:$0xf]
      %v513 = vld [vmem:[%s3 + $0x10] sm:$0xf]
      %v514 = vld [vmem:[%s3 + $0x14] sm:$0xf]
      %v515 = vld [vmem:[%s3 + $0x18] sm:$0xf]
      %v516 = vld [vmem:[%s3 + $0x1c] sm:$0xf]
      %v517 = vld [vmem:[%s3 + $0x20] sm:$0xf]
      %v518 = vld [vmem:[%s3 + $0x24] sm:$0xf]
      %v519 = vld [vmem:[%s3 + $0x28] sm:$0xf]
      %v520 = vld [vmem:[%s3 + $0x2c] sm:$0xf]
      %v521 = vld [vmem:[%s3 + $0x30] sm:$0xf]
      %v522 = vld [vmem:[%s3 + $0x34] sm:$0xf]
      %v523 = vld [vmem:[%s3 + $0x38] sm:$0xf]
      %v524 = vld [vmem:[%s3 + $0x3c] sm:$0xf]
      %v525 = vld [vmem:[%s3 + $0x40] sm:$0xf]
      %v526 = vld [vmem:[%s3 + $0x44] sm:$0xf]
      %v527 = vld [vmem:[%s3 + $0x48] sm:$0xf]
      %v528 = vld [vmem:[%s3 + $0x4c] sm:$0xf]
      %v529 = vld [vmem:[%s3 + $0x50] sm:$0xf]
      %v530 = vld [vmem:[%s3 + $0x54] sm:$0xf]
      %v531 = vld [vmem:[%s3 + $0x58] sm:$0xf]
      %v532 = vld [vmem:[%s3 + $0x5c] sm:$0xf]
      %v533 = vpack.c.b16 %v495, %v493
      %v534 = vpack.c.b16 %v496, %v494
      %v535 = vpack.c.b16 %v499, %v497
      %v536 = vpack.c.b16 %v500, %v498
      %v537 = vpack.c.b16 %v503, %v501
      %v538 = vpack.c.b16 %v504, %v502
      %v539 = vpack.c.b16 %v507, %v505
      %v540 = vpack.c.b16 %v508, %v506
      %v569 = vunpack.c.l.b16 %v509
      %v570 = vunpack.c.l.b16 %v510
      %v571 = vunpack.c.l.b16 %v511
      %v572 = vunpack.c.l.b16 %v512
      %v573 = vunpack.c.l.b16 %v513
      %v574 = vunpack.c.l.b16 %v514
      %v575 = vunpack.c.l.b16 %v515
      %v576 = vunpack.c.l.b16 %v516
      %v577 = vunpack.c.l.b16 %v517
      %v578 = vunpack.c.l.b16 %v518
      %v579 = vunpack.c.l.b16 %v519
      %v580 = vunpack.c.l.b16 %v520
      %v581 = vunpack.c.l.b16 %v521
      %v582 = vunpack.c.l.b16 %v522
      %v583 = vunpack.c.l.b16 %v523
      %v584 = vunpack.c.l.b16 %v524
      %v585 = vunpack.c.l.b16 %v525
      %v586 = vunpack.c.l.b16 %v526
      %v587 = vunpack.c.l.b16 %v527
      %v588 = vunpack.c.l.b16 %v528
      %v589 = vunpack.c.l.b16 %v529
      %v590 = vunpack.c.l.b16 %v530
      %v591 = vunpack.c.l.b16 %v531
      %v592 = vunpack.c.l.b16 %v532
      %v593 = vpack.c.b16 %v570, %v569
      %v594 = vpack.c.b16 %v572, %v571
      %v595 = vpack.c.b16 %v574, %v573
      %v596 = vpack.c.b16 %v576, %v575
      %v597 = vpack.c.b16 %v578, %v577
      %v598 = vpack.c.b16 %v580, %v579
      %v599 = vpack.c.b16 %v582, %v581
      %v600 = vpack.c.b16 %v584, %v583
      %v601 = vpack.c.b16 %v586, %v585
      %v602 = vpack.c.b16 %v588, %v587
      %v603 = vpack.c.b16 %v590, %v589
      %v604 = vpack.c.b16 %v592, %v591
      %v618 = vsel %vm459, %v534, 0
      %v621 = vsel %vm459, %v536, 0
      %v624 = vsel %vm459, %v538, 0
      %v627 = vsel %vm459, %v540, 0
      %629 = vmatprep.subr.bf16.mxu0 0
      %630 = vmatpush1.bf16.msra.mxu0 %v600
      %631 = vmatprep.subr.bf16.mxu0 0
      %632 = vmatpush1.bf16.msra.mxu0 %v599
      %633 = vmatprep.subr.bf16.mxu0 0
      %634 = vmatpush1.bf16.msra.mxu0 %v598
      %635 = vmatprep.subr.bf16.mxu0 0
      %636 = vmatpush1.bf16.msra.mxu0 %v597
      %637 = vmatprep.subr.bf16.mxu0 0
      %638 = vmatpush1.bf16.msra.mxu0 %v596
      %639 = vmatprep.subr.bf16.mxu0 0
      %640 = vmatpush1.bf16.msra.mxu0 %v595
      %641 = vmatprep.subr.bf16.mxu0 0
      %642 = vmatpush1.bf16.msra.mxu0 %v594
      %643 = vmatprep.subr.bf16.mxu0 0
      %644 = vmatpush1.bf16.msra.mxu0 %v593
      %645 = vmatprep.subr.bf16.mxu0 0
      %646 = vmatpush2.bf16.msra.mxu0 0
      %647 = vmatprep.subr.bf16.mxu0 0
      %648 = vmatpush2.bf16.msra.mxu0 0
      %649 = vmatprep.subr.bf16.mxu0 0
      %650 = vmatpush2.bf16.msra.mxu0 0
      %651 = vmatprep.subr.bf16.mxu0 0
      %652 = vmatpush2.bf16.msra.mxu0 0
      %653 = vmatprep.subr.bf16.mxu0 0
      %654 = vmatpush2.bf16.msra.mxu0 %v604
      %655 = vmatprep.subr.bf16.mxu0 0
      %656 = vmatpush2.bf16.msra.mxu0 %v603
      %657 = vmatprep.subr.bf16.mxu0 0
      %658 = vmatpush2.bf16.msra.mxu0 %v602
      %659 = vmatprep.subr.bf16.mxu0 0
      %660 = vmatpush2.bf16.msra.mxu0 %v601
      %661 = vmatprep.mubr.bf16.mxu0 %v618
      %662 = vmatmul.mubr.bf16.gmra.mxu0 %v533
      %v663 = vpop.f32.mrf.mxu0
      %v664 = vadd.f32 0.0, %v663
      %v665 = vpop.f32.mrf.mxu0
      %v666 = vpop.f32.mrf.mxu0
      %v667 = vadd.f32 0.0, %v666
      %v668 = vpop.f32.mrf.mxu0
      %669 = vmatprep.mubr.bf16.mxu0 %v621
      %670 = vmatmul.mubr.bf16.gmra.mxu0 %v535
      %v671 = vpop.f32.mrf.mxu0
      %v672 = vadd.f32 0.0, %v671
      %v673 = vpop.f32.mrf.mxu0
      %v674 = vpop.f32.mrf.mxu0
      %v675 = vadd.f32 0.0, %v674
      %v676 = vpop.f32.mrf.mxu0
      %677 = vmatprep.mubr.bf16.mxu0 %v624
      %678 = vmatmul.mubr.bf16.gmra.mxu0 %v537
      %v679 = vpop.f32.mrf.mxu0
      %v680 = vadd.f32 0.0, %v679
      %v681 = vpop.f32.mrf.mxu0
      %v682 = vpop.f32.mrf.mxu0
      %v683 = vadd.f32 0.0, %v682
      %v684 = vpop.f32.mrf.mxu0
      %685 = vmatprep.mubr.bf16.mxu0 %v627
      %686 = vmatmul.mubr.bf16.gmra.mxu0 %v539
      %v687 = vpop.f32.mrf.mxu0
      %v688 = vadd.f32 0.0, %v687
      %v689 = vpop.f32.mrf.mxu0
      %v690 = vpop.f32.mrf.mxu0
      %v691 = vadd.f32 0.0, %v690
      %v692 = vpop.f32.mrf.mxu0
      %693 = vdwg.mxu0
      %v702 = vrot.slane %v664, 7
      %v703 = vrot.slane %v667, 7
      %v704 = vrot.slane %v672, 7
      %v705 = vrot.slane %v675, 7
      %v706 = vrot.slane %v680, 7
      %v707 = vrot.slane %v683, 7
      %v708 = vrot.slane %v688, 7
      %v709 = vrot.slane %v691, 7
      %vm718 = vcmask 1040384
      %v719 = vsel %vm718, 0.0, %v702
      %v720 = vsel %vm718, 0.0, %v703
      %v721 = vsel %vm718, 0.0, %v704
      %v722 = vsel %vm718, 0.0, %v705
      %v723 = vsel %vm718, 0.0, %v706
      %v724 = vsel %vm718, 0.0, %v707
      %v725 = vsel %vm718, 0.0, %v708
      %v726 = vsel %vm718, 0.0, %v709
      %735 = vrot.lane.b32.xlu0 %v719, 32
      %v736 = vpop.permute.xlu0 %735
      %737 = vrot.lane.b32.xlu0 %v720, 32
      %v738 = vpop.permute.xlu0 %737
      %739 = vrot.lane.b32.xlu0 %v721, 32
      %v740 = vpop.permute.xlu0 %739
      %741 = vrot.lane.b32.xlu0 %v722, 32
      %v742 = vpop.permute.xlu0 %741
      %743 = vrot.lane.b32.xlu0 %v723, 32
      %v744 = vpop.permute.xlu0 %743
      %745 = vrot.lane.b32.xlu0 %v724, 32
      %v746 = vpop.permute.xlu0 %745
      %747 = vrot.lane.b32.xlu0 %v725, 32
      %v748 = vpop.permute.xlu0 %747
      %749 = vrot.lane.b32.xlu0 %v726, 32
      %v750 = vpop.permute.xlu0 %749
      %v759 = vadd.f32 %v664, %v736
      %v760 = vadd.f32 %v667, %v738
      %v761 = vadd.f32 %v672, %v740
      %v762 = vadd.f32 %v675, %v742
      %v763 = vadd.f32 %v680, %v744
      %v764 = vadd.f32 %v683, %v746
      %v765 = vadd.f32 %v688, %v748
      %v766 = vadd.f32 %v691, %v750
      %v767 = vrot.slane %v664, 1
      %v768 = vrot.slane %v667, 1
      %v769 = vrot.slane %v672, 1
      %v770 = vrot.slane %v675, 1
      %v771 = vrot.slane %v680, 1
      %v772 = vrot.slane %v683, 1
      %v773 = vrot.slane %v688, 1
      %v774 = vrot.slane %v691, 1
      %vm783 = vcmask 1046528
      %v784 = vsel %vm783, %v767, 0.0
      %v785 = vsel %vm783, %v768, 0.0
      %v786 = vsel %vm783, %v769, 0.0
      %v787 = vsel %vm783, %v770, 0.0
      %v788 = vsel %vm783, %v771, 0.0
      %v789 = vsel %vm783, %v772, 0.0
      %v790 = vsel %vm783, %v773, 0.0
      %v791 = vsel %vm783, %v774, 0.0
      %800 = vrot.lane.b32.xlu0 %v784, 96
      %v801 = vpop.permute.xlu0 %800
      %802 = vrot.lane.b32.xlu0 %v785, 96
      %v803 = vpop.permute.xlu0 %802
      %804 = vrot.lane.b32.xlu0 %v786, 96
      %v805 = vpop.permute.xlu0 %804
      %806 = vrot.lane.b32.xlu0 %v787, 96
      %v807 = vpop.permute.xlu0 %806
      %808 = vrot.lane.b32.xlu0 %v788, 96
      %v809 = vpop.permute.xlu0 %808
      %810 = vrot.lane.b32.xlu0 %v789, 96
      %v811 = vpop.permute.xlu0 %810
      %812 = vrot.lane.b32.xlu0 %v790, 96
      %v813 = vpop.permute.xlu0 %812
      %814 = vrot.lane.b32.xlu0 %v791, 96
      %v815 = vpop.permute.xlu0 %814
      %v824 = vadd.f32 %v759, %v801
      %v825 = vadd.f32 %v760, %v803
      %v826 = vadd.f32 %v761, %v805
      %v827 = vadd.f32 %v762, %v807
      %v828 = vadd.f32 %v763, %v809
      %v829 = vadd.f32 %v764, %v811
      %v830 = vadd.f32 %v765, %v813
      %v831 = vadd.f32 %v766, %v815
      %v832 = vld [vmem:[%s4] sm:$0x1]
      %v834 = vlaneseq
      %v835 = vshrl.u32 %v834, 7
      %v836 = vsub.s32 0, %v835
      %v837 = vrot.slane %v832, %v836
      %838 = vrot.lane.b32.xlu0 %v837, 32
      %v839 = vpop.permute.xlu0 %838
      %v841 = vadd.f32 %v824, %v839
      %v842 = vadd.f32 %v825, %v839
      %v843 = vadd.f32 %v826, %v839
      %v844 = vadd.f32 %v827, %v839
      %v845 = vadd.f32 %v828, %v839
      %v846 = vadd.f32 %v829, %v839
      %v847 = vadd.f32 %v830, %v839
      %v848 = vadd.f32 %v831, %v839
      %v849 = vpack.c.bf16 %v841, %v841
      %v850 = vpack.c.bf16 %v842, %v842
      %v851 = vpack.c.bf16 %v843, %v843
      %v852 = vpack.c.bf16 %v844, %v844
      %v853 = vpack.c.bf16 %v845, %v845
      %v854 = vpack.c.bf16 %v846, %v846
      %v855 = vpack.c.bf16 %v847, %v847
      %v856 = vpack.c.bf16 %v848, %v848
      %v865 = vunpack.c.l.b16 %v849
      %v866 = vunpack.c.l.b16 %v850
      %v867 = vunpack.c.l.b16 %v851
      %v868 = vunpack.c.l.b16 %v852
      %v869 = vunpack.c.l.b16 %v853
      %v870 = vunpack.c.l.b16 %v854
      %v871 = vunpack.c.l.b16 %v855
      %v872 = vunpack.c.l.b16 %v856
      %v873 = vpack.c.b16 %v865, %v865
      %v874 = vpack.c.b16 %v866, %v866
      %v875 = vpack.c.b16 %v867, %v867
      %v876 = vpack.c.b16 %v868, %v868
      %v877 = vpack.c.b16 %v869, %v869
      %v878 = vpack.c.b16 %v870, %v870
      %v879 = vpack.c.b16 %v871, %v871
      %v880 = vpack.c.b16 %v872, %v872
      %881 = vrot.lane.b32.xlu0 %v873, 96
      %v882 = vpop.permute.xlu0 %881
      %883 = vrot.lane.b32.xlu0 %v874, 96
      %v884 = vpop.permute.xlu0 %883
      %885 = vrot.lane.b32.xlu0 %v875, 96
      %v886 = vpop.permute.xlu0 %885
      %887 = vrot.lane.b32.xlu0 %v876, 96
      %v888 = vpop.permute.xlu0 %887
      %889 = vrot.lane.b32.xlu0 %v877, 96
      %v890 = vpop.permute.xlu0 %889
      %891 = vrot.lane.b32.xlu0 %v878, 96
      %v892 = vpop.permute.xlu0 %891
      %893 = vrot.lane.b32.xlu0 %v879, 96
      %v894 = vpop.permute.xlu0 %893
      %895 = vrot.lane.b32.xlu0 %v880, 96
      %v896 = vpop.permute.xlu0 %895
      %vm905 = vcmask 257024
      %906 = vst.msk [vmem:[%s317] sm:$0xf] %vm905, %v882
      %907 = vst.msk [vmem:[%s317 + $0x4] sm:$0xf] %vm905, %v884
      %908 = vst.msk [vmem:[%s317 + $0x8] sm:$0xf] %vm905, %v886
      %909 = vst.msk [vmem:[%s317 + $0xc] sm:$0xf] %vm905, %v888
      %910 = vst.msk [vmem:[%s317 + $0x10] sm:$0xf] %vm905, %v890
      %911 = vst.msk [vmem:[%s317 + $0x14] sm:$0xf] %vm905, %v892
      %912 = vst.msk [vmem:[%s317 + $0x18] sm:$0xf] %vm905, %v894
      %913 = vst.msk [vmem:[%s317 + $0x1c] sm:$0xf] %vm905, %v896
      %vm914 = vcmask 523520
      %v915 = vsel %vm914, %v841, 0.0
      %v916 = vsel %vm914, %v842, 0.0
      %v917 = vadd.f32 %v915, %v916
      %v918 = vsel %vm914, %v843, 0.0
      %v919 = vadd.f32 %v917, %v918
      %v920 = vsel %vm914, %v844, 0.0
      %v921 = vadd.f32 %v919, %v920
      %v922 = vsel %vm914, %v845, 0.0
      %v923 = vadd.f32 %v921, %v922
      %v924 = vsel %vm914, %v846, 0.0
      %v925 = vadd.f32 %v923, %v924
      %v926 = vsel %vm914, %v847, 0.0
      %v927 = vadd.f32 %v925, %v926
      %v928 = vsel %vm914, %v848, 0.0
      %v929 = vadd.f32 %v927, %v928
      %v930 = vrot.slane %v929, 4
      %v931 = vadd.f32 %v929, %v930
      %v932 = vrot.slane %v931, 2
      %v933 = vadd.f32 %v931, %v932
      %v934 = vrot.slane %v933, 1
      %v935 = vadd.f32 %v933, %v934
      %937 = vrot.lane.b32.xlu0 %v935, 96
      %v938 = vpop.permute.xlu0 %937
      %vm940 = vcmask 253952
      %941 = vst.msk [vmem:[%s320] sm:$0x1] %vm940, %v938
      %v942 = vmul.f32 %v841, %v841
      %v943 = vmul.f32 %v842, %v842
      %v944 = vmul.f32 %v843, %v843
      %v945 = vmul.f32 %v844, %v844
      %v946 = vmul.f32 %v845, %v845
      %v947 = vmul.f32 %v846, %v846
      %v948 = vmul.f32 %v847, %v847
      %v949 = vmul.f32 %v848, %v848
      %v950 = vsel %vm914, %v942, 0.0
      %v951 = vsel %vm914, %v943, 0.0
      %v952 = vadd.f32 %v950, %v951
      %v953 = vsel %vm914, %v944, 0.0
      %v954 = vadd.f32 %v952, %v953
      %v955 = vsel %vm914, %v945, 0.0
      %v956 = vadd.f32 %v954, %v955
      %v957 = vsel %vm914, %v946, 0.0
      %v958 = vadd.f32 %v956, %v957
      %v959 = vsel %vm914, %v947, 0.0
      %v960 = vadd.f32 %v958, %v959
      %v961 = vsel %vm914, %v948, 0.0
      %v962 = vadd.f32 %v960, %v961
      %v963 = vsel %vm914, %v949, 0.0
      %v964 = vadd.f32 %v962, %v963
      %v965 = vrot.slane %v964, 4
      %v966 = vadd.f32 %v964, %v965
      %v967 = vrot.slane %v966, 2
      %v968 = vadd.f32 %v966, %v967
      %v969 = vrot.slane %v968, 1
      %v970 = vadd.f32 %v968, %v969
      %972 = vrot.lane.b32.xlu0 %v970, 96
      %v973 = vpop.permute.xlu0 %972
      %975 = vst.msk [vmem:[%s323] sm:$0x1] %vm940, %v973
      %p976 = scmp.lt.s32.totalorder %s19, 1
      %s977 = scalar_select %p976, %s19, 1
      %s978 = smul.addr %s977, 8
      %s979 = smul.addr %s978, 4
      %s980 = scalar_lea.vmem %s5, %s979
      %p981 = scmp.lt.s32.totalorder %s19, 1
      %s982 = scalar_select %p981, %s19, 1
      %s983 = scalar_lea.vmem %s6, %s982
      %p984 = scmp.lt.s32.totalorder %s19, 1
      %s985 = scalar_select %p984, %s19, 1
      %s986 = scalar_lea.vmem %s7, %s985
      // Predicated region
      $region41: #{decoder_forward.12} parent=39 // pred_check
        %p987 = pneg %p157
      $region42: #{decoder_forward.12} parent=39 // pred_check_branch
        %989 = sbr.rel (%p987) target = $region44
      $region43: #{decoder_forward.12} parent=39 // pred_region
        _
      $region44: #{decoder_forward.12} parent=39 // pred_fallthru
        _
      // Predicated region
      $region45: #{decoder_forward.12} parent=39 // pred_check
        %p990 = pneg %p183
      $region46: #{decoder_forward.12} parent=39 // pred_check_branch
        %992 = sbr.rel (%p990) target = $region48
      $region47: #{decoder_forward.12} parent=39 // pred_region
        _
      $region48: #{decoder_forward.12} parent=39 // pred_fallthru
        _
      // Predicated region
      $region49: #{decoder_forward.12} parent=39 // pred_check
        %p993 = pneg %p209
      $region50: #{decoder_forward.12} parent=39 // pred_check_branch
        %995 = sbr.rel (%p993) target = $region52
      $region51: #{decoder_forward.12} parent=39 // pred_region
        _
      $region52: #{decoder_forward.12} parent=39 // pred_fallthru
        _
    $region40: #{decoder_forward.12} parent=5 // pred_fallthru
      _
    %p996 = scmp.le.s32.totalorder 2, %s14
    // Predicated region
    $region53: #{decoder_forward.12} parent=5 // pred_check
      %p997 = pneg %p996
    $region54: #{decoder_forward.12} parent=5 // pred_check_branch
      %999 = sbr.rel (%p997) target = $region56
    $region55: #{decoder_forward.12} parent=5 // pred_region
      %s1000 = ssub.s32 %s14, 2
      // Predicated region
      $region57: #{decoder_forward.12} parent=55 // pred_check
        %p1001 = pneg %p163
      $region58: #{decoder_forward.12} parent=55 // pred_check_branch
        %1003 = sbr.rel (%p1001) target = $region60
      $region59: #{decoder_forward.12} parent=55 // pred_region
        %p1004 = scmp.lt.s32.totalorder %s20, 1
        %s1005 = scalar_select %p1004, %s20, 1
        %s1006 = smul.addr %s1005, 8
        %s1007 = smul.addr %s1006, 4
        %s1008 = scalar_lea.vmem %s5, %s1007
      $region60: #{decoder_forward.12} parent=55 // pred_fallthru
        _
      // Predicated region
      $region61: #{decoder_forward.12} parent=55 // pred_check
        %p1009 = pneg %p189
      $region62: #{decoder_forward.12} parent=55 // pred_check_branch
        %1011 = sbr.rel (%p1009) target = $region64
      $region63: #{decoder_forward.12} parent=55 // pred_region
        %p1012 = scmp.lt.s32.totalorder %s20, 1
        %s1013 = scalar_select %p1012, %s20, 1
        %s1014 = scalar_lea.vmem %s6, %s1013
      $region64: #{decoder_forward.12} parent=55 // pred_fallthru
        _
      // Predicated region
      $region65: #{decoder_forward.12} parent=55 // pred_check
        %p1015 = pneg %p215
      $region66: #{decoder_forward.12} parent=55 // pred_check_branch
        %1017 = sbr.rel (%p1015) target = $region68
      $region67: #{decoder_forward.12} parent=55 // pred_region
        %p1018 = scmp.lt.s32.totalorder %s20, 1
        %s1019 = scalar_select %p1018, %s20, 1
        %s1020 = scalar_lea.vmem %s7, %s1019
      $region68: #{decoder_forward.12} parent=55 // pred_fallthru
        _
    $region56: #{decoder_forward.12} parent=5 // pred_fallthru
      _
  $region6: #{decoder_forward.12} parent=0 // loop_footer
    %s18 = sadd.s32 1, %s14
  $region7: #{decoder_forward.12} parent=0 // loop_footer_branch
    %13 = sbr.rel target = $region3
  $region8: #{decoder_forward.12} parent=0 // loop_exit
    _

// kernel: decoder_forward.15
$region0: #{decoder_forward.15}
  #allocation0 [shape = 'u32[]', space=smem, size = 0x4, offset = 0x4, fixed_abs, tag = 'smem constant byte address 0x4 - core index']
  #allocation1 [shape = 'u32[144,128]{1,0:T(1,128)}', space=vmem, size = 0x12000, scoped, tag = 'internal scratch']
  %s0 = inlined_call_operand.vmem [shape: bf16[2,16,16,32], index: 0, kind: input, shape index: {}]
  %s1 = inlined_call_operand.vmem [shape: bf16[96,9], index: 1, kind: input, shape index: {}]
  %s2 = inlined_call_operand.vmem [shape: f32[1,3], index: 2, kind: input, shape index: {}]
  %s3 = inlined_call_operand.vmem [shape: f32[2,16,16,3], index: 3, kind: output, shape index: {}]
  %s4 = sld [smem:[#allocation0]]
  $region45: #{decoder_forward.15} parent=0
    _
  %s6 = ssub.s32 1, %s4
  %s7 = scalar_select 0, %s6, %s4
  loop: start=0, step=1, limit=4
  $region2: #{decoder_forward.15} parent=0 // loop_pre_header
    _
  $region3: #{decoder_forward.15} parent=0 // loop_header
    %s9 = sphi 0, %s13
    %p10 = scmp.ge.s32.totalorder %s9, 4
    %s19 = sphi 0, %s21
    %s22 = sphi 0, %s19
    %s23 = sphi 0, %s22
    %s39 = sphi 0, %s23
    %s43 = sphi 0, %s43
    %s45 = sphi 0, %s43
    %s46 = sphi 0, %s45
    %s60 = sphi 0, %s46
    %s64 = sphi 0, %s64
    %s66 = sphi 0, %s64
    %s67 = sphi 0, %s66
    %s81 = sphi 0, %s67
    %s87 = sphi 0, %s89
    %s90 = sphi 0, %s87
    %s91 = sphi 0, %s90
    %s107 = sphi 0, %s91
  $region4: #{decoder_forward.15} parent=0 // loop_header_branch
    %12 = sbr.rel (%p10) target = $region8
  $region5: #{decoder_forward.15} parent=0 // loop_body
    %s14 = ssub.s32 %s9, 1
    %s15 = ssub.s32 %s9, 2
    %s16 = sadd.s32 %s9, 1
    %s17 = ssub.s32 %s9, %s16
    %p18 = scmp.eq.s32.totalorder %s17, 0
    %s20 = sadd.s32 %s19, 1
    %s21 = scalar_select %p18, %s19, %s20
    %p24 = pneg %p18
    %p25 = scmp.eq.s32.totalorder %s9, 1
    %p26 = por %p24, %p25
    %p27 = scmp.ne.s32.totalorder %s19, %s22
    %p28 = scmp.eq.s32.totalorder %s9, 0
    %p29 = por %p27, %p28
    %p30 = scmp.ne.s32.totalorder %s19, %s22
    %p31 = scmp.eq.s32.totalorder %s14, 1
    %p32 = por %p30, %p31
    %p33 = scmp.ne.s32.totalorder %s22, %s23
    %p34 = scmp.eq.s32.totalorder %s14, 0
    %p35 = por %p33, %p34
    %p36 = scmp.ne.s32.totalorder %s22, %s23
    %p37 = scmp.eq.s32.totalorder %s15, 1
    %p38 = por %p36, %p37
    %p40 = scmp.ne.s32.totalorder %s23, %s39
    %p41 = scmp.eq.s32.totalorder %s15, 0
    %p42 = por %p40, %p41
    %s44 = sadd.s32 %s43, 1
    %p47 = scmp.eq.s32.totalorder %s9, 1
    %p48 = scmp.ne.s32.totalorder %s43, %s45
    %p49 = scmp.eq.s32.totalorder %s9, 0
    %p50 = por %p48, %p49
    %p51 = scmp.ne.s32.totalorder %s43, %s45
    %p52 = scmp.eq.s32.totalorder %s14, 1
    %p53 = por %p51, %p52
    %p54 = scmp.ne.s32.totalorder %s45, %s46
    %p55 = scmp.eq.s32.totalorder %s14, 0
    %p56 = por %p54, %p55
    %p57 = scmp.ne.s32.totalorder %s45, %s46
    %p58 = scmp.eq.s32.totalorder %s15, 1
    %p59 = por %p57, %p58
    %p61 = scmp.ne.s32.totalorder %s46, %s60
    %p62 = scmp.eq.s32.totalorder %s15, 0
    %p63 = por %p61, %p62
    %s65 = sadd.s32 %s64, 1
    %p68 = scmp.eq.s32.totalorder %s9, 1
    %p69 = scmp.ne.s32.totalorder %s64, %s66
    %p70 = scmp.eq.s32.totalorder %s9, 0
    %p71 = por %p69, %p70
    %p72 = scmp.ne.s32.totalorder %s64, %s66
    %p73 = scmp.eq.s32.totalorder %s14, 1
    %p74 = por %p72, %p73
    %p75 = scmp.ne.s32.totalorder %s66, %s67
    %p76 = scmp.eq.s32.totalorder %s14, 0
    %p77 = por %p75, %p76
    %p78 = scmp.ne.s32.totalorder %s66, %s67
    %p79 = scmp.eq.s32.totalorder %s15, 1
    %p80 = por %p78, %p79
    %p82 = scmp.ne.s32.totalorder %s67, %s81
    %p83 = scmp.eq.s32.totalorder %s15, 0
    %p84 = por %p82, %p83
    %s85 = ssub.s32 %s9, %s16
    %p86 = scmp.eq.s32.totalorder %s85, 0
    %s88 = sadd.s32 %s87, 1
    %s89 = scalar_select %p86, %s87, %s88
    %p92 = pneg %p86
    %p93 = scmp.eq.s32.totalorder %s9, 1
    %p94 = por %p92, %p93
    %p95 = scmp.ne.s32.totalorder %s87, %s90
    %p96 = scmp.eq.s32.totalorder %s9, 0
    %p97 = por %p95, %p96
    %p98 = scmp.ne.s32.totalorder %s87, %s90
    %p99 = scmp.eq.s32.totalorder %s14, 1
    %p100 = por %p98, %p99
    %p101 = scmp.ne.s32.totalorder %s90, %s91
    %p102 = scmp.eq.s32.totalorder %s14, 0
    %p103 = por %p101, %p102
    %p104 = scmp.ne.s32.totalorder %s90, %s91
    %p105 = scmp.eq.s32.totalorder %s15, 1
    %p106 = por %p104, %p105
    %p108 = scmp.ne.s32.totalorder %s91, %s107
    %p109 = scmp.eq.s32.totalorder %s15, 0
    %p110 = por %p108, %p109
    %p111 = scmp.le.s32.totalorder 1, %s9
    %p112 = scmp.lt.s32.totalorder %s9, 3
    %p113 = pnand %p111, %p112
    %p114 = pneg %p113
    // Predicated region
    $region9: #{decoder_forward.15} parent=5 // pred_check
      _
    $region10: #{decoder_forward.15} parent=5 // pred_check_branch
      %116 = sbr.rel (%p113) target = $region12
    $region11: #{decoder_forward.15} parent=5 // pred_region
      %s117 = ssub.s32 %s9, 1
      // Predicated region
      $region13: #{decoder_forward.15} parent=11 // pred_check
        %p118 = pneg %p56
      $region14: #{decoder_forward.15} parent=11 // pred_check_branch
        %120 = sbr.rel (%p118) target = $region16
      $region15: #{decoder_forward.15} parent=11 // pred_region
        _
      $region16: #{decoder_forward.15} parent=11 // pred_fallthru
        _
      // Predicated region
      $region17: #{decoder_forward.15} parent=11 // pred_check
        %p121 = pneg %p77
      $region18: #{decoder_forward.15} parent=11 // pred_check_branch
        %123 = sbr.rel (%p121) target = $region20
      $region19: #{decoder_forward.15} parent=11 // pred_region
        _
      $region20: #{decoder_forward.15} parent=11 // pred_fallthru
        _
    $region12: #{decoder_forward.15} parent=5 // pred_fallthru
      _
    %p124 = scmp.lt.s32.totalorder %s9, 2
    // Predicated region
    $region21: #{decoder_forward.15} parent=5 // pred_check
      %p125 = pneg %p124
    $region22: #{decoder_forward.15} parent=5 // pred_check_branch
      %127 = sbr.rel (%p125) target = $region24
    $region23: #{decoder_forward.15} parent=5 // pred_region
      // Predicated region
      $region25: #{decoder_forward.15} parent=23 // pred_check
        %p128 = pneg %p29
      $region26: #{decoder_forward.15} parent=23 // pred_check_branch
        %130 = sbr.rel (%p128) target = $region28
      $region27: #{decoder_forward.15} parent=23 // pred_region
        %p131 = scmp.lt.s32.totalorder %s9, 1
        %s132 = scalar_select %p131, %s9, 1
        %s133 = smul.addr %s132, 32
        %s134 = smul.addr %s133, 4
        %s135 = scalar_lea.vmem %s0, %s134
      $region28: #{decoder_forward.15} parent=23 // pred_fallthru
        _
    $region24: #{decoder_forward.15} parent=5 // pred_fallthru
      _
    %p136 = scmp.le.s32.totalorder 1, %s9
    %p137 = scmp.lt.s32.totalorder %s9, 3
    %p138 = pnand %p136, %p137
    %p139 = pneg %p138
    // Predicated region
    $region29: #{decoder_forward.15} parent=5 // pred_check
      _
    $region30: #{decoder_forward.15} parent=5 // pred_check_branch
      %141 = sbr.rel (%p138) target = $region32
    $region31: #{decoder_forward.15} parent=5 // pred_region
      %s142 = ssub.s32 %s9, 1
      %p143 = scmp.lt.s32.totalorder %s14, 1
      %s144 = scalar_select %p143, %s14, 1
      %s145 = smul.addr %s144, 32
      %s146 = smul.addr %s145, 4
      %s147 = scalar_lea.vmem %s0, %s146
      %p148 = pneg %p35
      %p149 = pneg %p32
      %p150 = pneg %p56
      %p151 = pneg %p53
      %p152 = pneg %p77
      %p153 = pneg %p74
      %p154 = pneg %p103
      %p155 = pneg %p100
      %p156 = scmp.lt.s32.totalorder %s14, 1
      %s157 = scalar_select %p156, %s14, 1
      %s158 = smul.addr %s157, 32
      %s159 = smul.addr %s158, 8
      %s160 = scalar_lea.vmem %s3, %s159
      %p161 = scmp.lt.s32.totalorder %s14, 1
      %s162 = scalar_select %p161, %s14, 1
      %s163 = smul.addr %s162, 32
      %s164 = smul.addr %s163, 4
      %s165 = scalar_lea.vmem %s0, %s164
      %p166 = scmp.lt.s32.totalorder %s14, 1
      %s167 = scalar_select %p166, %s14, 1
      %s168 = smul.addr %s167, 32
      %s169 = smul.addr %s168, 8
      %s170 = scalar_lea.vmem %s3, %s169
      %v172 = vld [vmem:[%s165] sm:$0xf]
      %v173 = vld [vmem:[%s165 + $0x4] sm:$0xf]
      %v174 = vld [vmem:[%s165 + $0x8] sm:$0xf]
      %v175 = vld [vmem:[%s165 + $0xc] sm:$0xf]
      %v176 = vld [vmem:[%s165 + $0x10] sm:$0xf]
      %v177 = vld [vmem:[%s165 + $0x14] sm:$0xf]
      %v178 = vld [vmem:[%s165 + $0x18] sm:$0xf]
      %v179 = vld [vmem:[%s165 + $0x1c] sm:$0xf]
      %v180 = vld [vmem:[%s165 + $0x20] sm:$0xf]
      %v181 = vld [vmem:[%s165 + $0x24] sm:$0xf]
      %v182 = vld [vmem:[%s165 + $0x28] sm:$0xf]
      %v183 = vld [vmem:[%s165 + $0x2c] sm:$0xf]
      %v184 = vld [vmem:[%s165 + $0x30] sm:$0xf]
      %v185 = vld [vmem:[%s165 + $0x34] sm:$0xf]
      %v186 = vld [vmem:[%s165 + $0x38] sm:$0xf]
      %v187 = vld [vmem:[%s165 + $0x3c] sm:$0xf]
      %v188 = vld [vmem:[%s165 + $0x40] sm:$0xf]
      %v189 = vld [vmem:[%s165 + $0x44] sm:$0xf]
      %v190 = vld [vmem:[%s165 + $0x48] sm:$0xf]
      %v191 = vld [vmem:[%s165 + $0x4c] sm:$0xf]
      %v192 = vld [vmem:[%s165 + $0x50] sm:$0xf]
      %v193 = vld [vmem:[%s165 + $0x54] sm:$0xf]
      %v194 = vld [vmem:[%s165 + $0x58] sm:$0xf]
      %v195 = vld [vmem:[%s165 + $0x5c] sm:$0xf]
      %v196 = vld [vmem:[%s165 + $0x60] sm:$0xf]
      %v197 = vld [vmem:[%s165 + $0x64] sm:$0xf]
      %v198 = vld [vmem:[%s165 + $0x68] sm:$0xf]
      %v199 = vld [vmem:[%s165 + $0x6c] sm:$0xf]
      %v200 = vld [vmem:[%s165 + $0x70] sm:$0xf]
      %v201 = vld [vmem:[%s165 + $0x74] sm:$0xf]
      %v202 = vld [vmem:[%s165 + $0x78] sm:$0xf]
      %v203 = vld [vmem:[%s165 + $0x7c] sm:$0xf]
      %v234 = vunpack.c.l.b16 %v172
      %v235 = vunpack.c.l.b16 %v173
      %v236 = vunpack.c.l.b16 %v174
      %v237 = vunpack.c.l.b16 %v175
      %v238 = vunpack.c.l.b16 %v176
      %v239 = vunpack.c.l.b16 %v177
      %v240 = vunpack.c.l.b16 %v178
      %v241 = vunpack.c.l.b16 %v179
      %v242 = vunpack.c.l.b16 %v180
      %v243 = vunpack.c.l.b16 %v181
      %v244 = vunpack.c.l.b16 %v182
      %v245 = vunpack.c.l.b16 %v183
      %v246 = vunpack.c.l.b16 %v184
      %v247 = vunpack.c.l.b16 %v185
      %v248 = vunpack.c.l.b16 %v186
      %v249 = vunpack.c.l.b16 %v187
      %v250 = vunpack.c.l.b16 %v188
      %v251 = vunpack.c.l.b16 %v189
      %v252 = vunpack.c.l.b16 %v190
      %v253 = vunpack.c.l.b16 %v191
      %v254 = vunpack.c.l.b16 %v192
      %v255 = vunpack.c.l.b16 %v193
      %v256 = vunpack.c.l.b16 %v194
      %v257 = vunpack.c.l.b16 %v195
      %v258 = vunpack.c.l.b16 %v196
      %v259 = vunpack.c.l.b16 %v197
      %v260 = vunpack.c.l.b16 %v198
      %v261 = vunpack.c.l.b16 %v199
      %v262 = vunpack.c.l.b16 %v200
      %v263 = vunpack.c.l.b16 %v201
      %v264 = vpack.c.b16 %v235, %v234
      %v265 = vpack.c.b16 %v237, %v236
      %v266 = vpack.c.b16 %v239, %v238
      %v267 = vpack.c.b16 %v241, %v240
      %v268 = vpack.c.b16 %v243, %v242
      %v269 = vpack.c.b16 %v245, %v244
      %v270 = vpack.c.b16 %v247, %v246
      %v271 = vpack.c.b16 %v249, %v248
      %v272 = vpack.c.b16 %v251, %v250
      %v273 = vpack.c.b16 %v253, %v252
      %v274 = vpack.c.b16 %v255, %v254
      %v275 = vpack.c.b16 %v257, %v256
      %v276 = vpack.c.b16 %v259, %v258
      %v277 = vpack.c.b16 %v261, %v260
      %v278 = vpack.c.b16 %v263, %v262
      %v281 = vunpack.c.l.b16 %v202
      %v282 = vunpack.c.l.b16 %v203
      %v283 = vpack.c.b16 %v282, %v281
      %284 = vrot.lane.b32.xlu0 %v264, 32
      %v285 = vpop.permute.xlu0 %284
      %286 = vrot.lane.b32.xlu0 %v265, 32
      %v287 = vpop.permute.xlu0 %286
      %288 = vrot.lane.b32.xlu0 %v266, 32
      %v289 = vpop.permute.xlu0 %288
      %290 = vrot.lane.b32.xlu0 %v267, 32
      %v291 = vpop.permute.xlu0 %290
      %292 = vrot.lane.b32.xlu0 %v268, 32
      %v293 = vpop.permute.xlu0 %292
      %294 = vrot.lane.b32.xlu0 %v269, 32
      %v295 = vpop.permute.xlu0 %294
      %296 = vrot.lane.b32.xlu0 %v270, 32
      %v297 = vpop.permute.xlu0 %296
      %298 = vrot.lane.b32.xlu0 %v271, 32
      %v299 = vpop.permute.xlu0 %298
      %300 = vrot.lane.b32.xlu0 %v272, 32
      %v301 = vpop.permute.xlu0 %300
      %302 = vrot.lane.b32.xlu0 %v273, 32
      %v303 = vpop.permute.xlu0 %302
      %304 = vrot.lane.b32.xlu0 %v274, 32
      %v305 = vpop.permute.xlu0 %304
      %306 = vrot.lane.b32.xlu0 %v275, 32
      %v307 = vpop.permute.xlu0 %306
      %308 = vrot.lane.b32.xlu0 %v276, 32
      %v309 = vpop.permute.xlu0 %308
      %310 = vrot.lane.b32.xlu0 %v277, 32
      %v311 = vpop.permute.xlu0 %310
      %312 = vrot.lane.b32.xlu0 %v278, 32
      %v313 = vpop.permute.xlu0 %312
      %314 = vrot.lane.b32.xlu0 %v283, 32
      %v315 = vpop.permute.xlu0 %314
      %v317 = vunpack.c.l.b16 0
      %v318 = vpack.c.b16 %v317, %v317
      %319 = vrot.lane.b32.xlu0 %v265, 64
      %v320 = vpop.permute.xlu0 %319
      %321 = vrot.lane.b32.xlu0 %v266, 64
      %v322 = vpop.permute.xlu0 %321
      %323 = vrot.lane.b32.xlu0 %v267, 64
      %v324 = vpop.permute.xlu0 %323
      %325 = vrot.lane.b32.xlu0 %v268, 64
      %v326 = vpop.permute.xlu0 %325
      %327 = vrot.lane.b32.xlu0 %v269, 64
      %v328 = vpop.permute.xlu0 %327
      %329 = vrot.lane.b32.xlu0 %v270, 64
      %v330 = vpop.permute.xlu0 %329
      %331 = vrot.lane.b32.xlu0 %v271, 64
      %v332 = vpop.permute.xlu0 %331
      %333 = vrot.lane.b32.xlu0 %v272, 64
      %v334 = vpop.permute.xlu0 %333
      %335 = vrot.lane.b32.xlu0 %v273, 64
      %v336 = vpop.permute.xlu0 %335
      %337 = vrot.lane.b32.xlu0 %v274, 64
      %v338 = vpop.permute.xlu0 %337
      %339 = vrot.lane.b32.xlu0 %v275, 64
      %v340 = vpop.permute.xlu0 %339
      %341 = vrot.lane.b32.xlu0 %v276, 64
      %v342 = vpop.permute.xlu0 %341
      %343 = vrot.lane.b32.xlu0 %v277, 64
      %v344 = vpop.permute.xlu0 %343
      %345 = vrot.lane.b32.xlu0 %v278, 64
      %v346 = vpop.permute.xlu0 %345
      %347 = vrot.lane.b32.xlu0 %v283, 64
      %v348 = vpop.permute.xlu0 %347
      %349 = vrot.lane.b32.xlu0 %v318, 64
      %v350 = vpop.permute.xlu0 %349
      %vm351 = vcmask 261120
      %v354 = vsel %vm351, 0, %v285
      %v357 = vsel %vm351, %v264, %v287
      %v360 = vsel %vm351, %v265, %v289
      %v363 = vsel %vm351, %v266, %v291
      %v366 = vsel %vm351, %v267, %v293
      %v369 = vsel %vm351, %v268, %v295
      %v372 = vsel %vm351, %v269, %v297
      %v375 = vsel %vm351, %v270, %v299
      %v378 = vsel %vm351, %v271, %v301
      %v381 = vsel %vm351, %v272, %v303
      %v384 = vsel %vm351, %v273, %v305
      %v387 = vsel %vm351, %v274, %v307
      %v390 = vsel %vm351, %v275, %v309
      %v393 = vsel %vm351, %v276, %v311
      %v396 = vsel %vm351, %v277, %v313
      %v399 = vsel %vm351, %v278, %v315
      %vm400 = vcmask 523264
      %v402 = vsel %vm400, %v354, %v320
      %v404 = vsel %vm400, %v357, %v322
      %v406 = vsel %vm400, %v360, %v324
      %v408 = vsel %vm400, %v363, %v326
      %v410 = vsel %vm400, %v366, %v328
      %v412 = vsel %vm400, %v369, %v330
      %v414 = vsel %vm400, %v372, %v332
      %v416 = vsel %vm400, %v375, %v334
      %v418 = vsel %vm400, %v378, %v336
      %v420 = vsel %vm400, %v381, %v338
      %v422 = vsel %vm400, %v384, %v340
      %v424 = vsel %vm400, %v387, %v342
      %v426 = vsel %vm400, %v390, %v344
      %v428 = vsel %vm400, %v393, %v346
      %v430 = vsel %vm400, %v396, %v348
      %v432 = vsel %vm400, %v399, %v350
      %v433 = vld [vmem:[%s1] sm:$0xf]
      %v434 = vld [vmem:[%s1 + $0x4] sm:$0xf]
      %v435 = vld [vmem:[%s1 + $0x8] sm:$0xf]
      %v436 = vld [vmem:[%s1 + $0xc] sm:$0xf]
      %v437 = vld [vmem:[%s1 + $0x10] sm:$0xf]
      %v438 = vld [vmem:[%s1 + $0x14] sm:$0xf]
      %v439 = vld [vmem:[%s1 + $0x18] sm:$0xf]
      %v440 = vld [vmem:[%s1 + $0x1c] sm:$0xf]
      %v441 = vld [vmem:[%s1 + $0x20] sm:$0xf]
      %v442 = vld [vmem:[%s1 + $0x24] sm:$0xf]
      %v443 = vld [vmem:[%s1 + $0x28] sm:$0xf]
      %v444 = vld [vmem:[%s1 + $0x2c] sm:$0xf]
      %v457 = vunpack.c.l.b16 %v433
      %v458 = vunpack.c.l.b16 %v434
      %v459 = vunpack.c.l.b16 %v435
      %v460 = vunpack.c.l.b16 %v436
      %v461 = vunpack.c.l.b16 %v437
      %v462 = vunpack.c.l.b16 %v438
      %v463 = vunpack.c.l.b16 %v439
      %v464 = vunpack.c.l.b16 %v440
      %v465 = vunpack.c.l.b16 %v441
      %v466 = vunpack.c.l.b16 %v442
      %v467 = vunpack.c.l.b16 %v443
      %v468 = vunpack.c.l.b16 %v444
      %v469 = vpack.c.b16 %v458, %v457
      %v470 = vpack.c.b16 %v460, %v459
      %v471 = vpack.c.b16 %v462, %v461
      %v472 = vpack.c.b16 %v464, %v463
      %v473 = vpack.c.b16 %v466, %v465
      %v474 = vpack.c.b16 %v468, %v467
      %vm481 = vcmask 785408
      %v482 = vsel %vm481, %v402, 0
      %v484 = vsel %vm481, %v404, 0
      %v486 = vsel %vm481, %v406, 0
      %v488 = vsel %vm481, %v408, 0
      %v490 = vsel %vm481, %v410, 0
      %v492 = vsel %vm481, %v412, 0
      %v494 = vsel %vm481, %v414, 0
      %v496 = vsel %vm481, %v416, 0
      %v498 = vsel %vm481, %v418, 0
      %v500 = vsel %vm481, %v420, 0
      %v502 = vsel %vm481, %v422, 0
      %v504 = vsel %vm481, %v424, 0
      %v506 = vsel %vm481, %v426, 0
      %v508 = vsel %vm481, %v428, 0
      %v510 = vsel %vm481, %v430, 0
      %v512 = vsel %vm481, %v432, 0
      %514 = vmatprep.subr.bf16.mxu0 0
      %515 = vmatpush1.bf16.msra.mxu0 0
      %516 = vmatprep.subr.bf16.mxu0 0
      %517 = vmatpush1.bf16.msra.mxu0 0
      %518 = vmatprep.subr.bf16.mxu0 0
      %519 = vmatpush1.bf16.msra.mxu0 %v474
      %520 = vmatprep.subr.bf16.mxu0 0
      %521 = vmatpush1.bf16.msra.mxu0 %v473
      %522 = vmatprep.subr.bf16.mxu0 0
      %523 = vmatpush1.bf16.msra.mxu0 %v472
      %524 = vmatprep.subr.bf16.mxu0 0
      %525 = vmatpush1.bf16.msra.mxu0 %v471
      %526 = vmatprep.subr.bf16.mxu0 0
      %527 = vmatpush1.bf16.msra.mxu0 %v470
      %528 = vmatprep.subr.bf16.mxu0 0
      %529 = vmatpush1.bf16.msra.mxu0 %v469
      %530 = vmatprep.subr.bf16.mxu0 0
      %531 = vmatpush2.bf16.msra.mxu0 0
      %532 = vmatprep.subr.bf16.mxu0 0
      %533 = vmatpush2.bf16.msra.mxu0 0
      %534 = vmatprep.subr.bf16.mxu0 0
      %535 = vmatpush2.bf16.msra.mxu0 0
      %536 = vmatprep.subr.bf16.mxu0 0
      %537 = vmatpush2.bf16.msra.mxu0 0
      %538 = vmatprep.subr.bf16.mxu0 0
      %539 = vmatpush2.bf16.msra.mxu0 0
      %540 = vmatprep.subr.bf16.mxu0 0
      %541 = vmatpush2.bf16.msra.mxu0 0
      %542 = vmatprep.subr.bf16.mxu0 0
      %543 = vmatpush2.bf16.msra.mxu0 0
      %544 = vmatprep.subr.bf16.mxu0 0
      %545 = vmatpush2.bf16.msra.mxu0 0
      %546 = vmatprep.mubr.bf16.mxu0 0
      %547 = vmatmul.mubr.bf16.gmra.mxu0 %v482
      %v548 = vpop.f32.mrf.mxu0
      %v549 = vadd.f32 0.0, %v548
      %v550 = vpop.f32.mrf.mxu0
      %v551 = vpop.f32.mrf.mxu0
      %v552 = vadd.f32 0.0, %v551
      %v553 = vpop.f32.mrf.mxu0
      %554 = vmatprep.mubr.bf16.mxu0 0
      %555 = vmatmul.mubr.bf16.gmra.mxu0 %v484
      %v556 = vpop.f32.mrf.mxu0
      %v557 = vadd.f32 0.0, %v556
      %v558 = vpop.f32.mrf.mxu0
      %v559 = vpop.f32.mrf.mxu0
      %v560 = vadd.f32 0.0, %v559
      %v561 = vpop.f32.mrf.mxu0
      %562 = vmatprep.mubr.bf16.mxu0 0
      %563 = vmatmul.mubr.bf16.gmra.mxu0 %v486
      %v564 = vpop.f32.mrf.mxu0
      %v565 = vadd.f32 0.0, %v564
      %v566 = vpop.f32.mrf.mxu0
      %v567 = vpop.f32.mrf.mxu0
      %v568 = vadd.f32 0.0, %v567
      %v569 = vpop.f32.mrf.mxu0
      %570 = vmatprep.mubr.bf16.mxu0 0
      %571 = vmatmul.mubr.bf16.gmra.mxu0 %v488
      %v572 = vpop.f32.mrf.mxu0
      %v573 = vadd.f32 0.0, %v572
      %v574 = vpop.f32.mrf.mxu0
      %v575 = vpop.f32.mrf.mxu0
      %v576 = vadd.f32 0.0, %v575
      %v577 = vpop.f32.mrf.mxu0
      %578 = vmatprep.mubr.bf16.mxu0 0
      %579 = vmatmul.mubr.bf16.gmra.mxu0 %v490
      %v580 = vpop.f32.mrf.mxu0
      %v581 = vadd.f32 0.0, %v580
      %v582 = vpop.f32.mrf.mxu0
      %v583 = vpop.f32.mrf.mxu0
      %v584 = vadd.f32 0.0, %v583
      %v585 = vpop.f32.mrf.mxu0
      %586 = vmatprep.mubr.bf16.mxu0 0
      %587 = vmatmul.mubr.bf16.gmra.mxu0 %v492
      %v588 = vpop.f32.mrf.mxu0
      %v589 = vadd.f32 0.0, %v588
      %v590 = vpop.f32.mrf.mxu0
      %v591 = vpop.f32.mrf.mxu0
      %v592 = vadd.f32 0.0, %v591
      %v593 = vpop.f32.mrf.mxu0
      %594 = vmatprep.mubr.bf16.mxu0 0
      %595 = vmatmul.mubr.bf16.gmra.mxu0 %v494
      %v596 = vpop.f32.mrf.mxu0
      %v597 = vadd.f32 0.0, %v596
      %v598 = vpop.f32.mrf.mxu0
      %v599 = vpop.f32.mrf.mxu0
      %v600 = vadd.f32 0.0, %v599
      %v601 = vpop.f32.mrf.mxu0
      %602 = vmatprep.mubr.bf16.mxu0 0
      %603 = vmatmul.mubr.bf16.gmra.mxu0 %v496
      %v604 = vpop.f32.mrf.mxu0
      %v605 = vadd.f32 0.0, %v604
      %v606 = vpop.f32.mrf.mxu0
      %v607 = vpop.f32.mrf.mxu0
      %v608 = vadd.f32 0.0, %v607
      %v609 = vpop.f32.mrf.mxu0
      %610 = vmatprep.mubr.bf16.mxu0 0
      %611 = vmatmul.mubr.bf16.gmra.mxu0 %v498
      %v612 = vpop.f32.mrf.mxu0
      %v613 = vadd.f32 0.0, %v612
      %v614 = vpop.f32.mrf.mxu0
      %v615 = vpop.f32.mrf.mxu0
      %v616 = vadd.f32 0.0, %v615
      %v617 = vpop.f32.mrf.mxu0
      %618 = vmatprep.mubr.bf16.mxu0 0
      %619 = vmatmul.mubr.bf16.gmra.mxu0 %v500
      %v620 = vpop.f32.mrf.mxu0
      %v621 = vadd.f32 0.0, %v620
      %v622 = vpop.f32.mrf.mxu0
      %v623 = vpop.f32.mrf.mxu0
      %v624 = vadd.f32 0.0, %v623
      %v625 = vpop.f32.mrf.mxu0
      %626 = vmatprep.mubr.bf16.mxu0 0
      %627 = vmatmul.mubr.bf16.gmra.mxu0 %v502
      %v628 = vpop.f32.mrf.mxu0
      %v629 = vadd.f32 0.0, %v628
      %v630 = vpop.f32.mrf.mxu0
      %v631 = vpop.f32.mrf.mxu0
      %v632 = vadd.f32 0.0, %v631
      %v633 = vpop.f32.mrf.mxu0
      %634 = vmatprep.mubr.bf16.mxu0 0
      %635 = vmatmul.mubr.bf16.gmra.mxu0 %v504
      %v636 = vpop.f32.mrf.mxu0
      %v637 = vadd.f32 0.0, %v636
      %v638 = vpop.f32.mrf.mxu0
      %v639 = vpop.f32.mrf.mxu0
      %v640 = vadd.f32 0.0, %v639
      %v641 = vpop.f32.mrf.mxu0
      %642 = vmatprep.mubr.bf16.mxu0 0
      %643 = vmatmul.mubr.bf16.gmra.mxu0 %v506
      %v644 = vpop.f32.mrf.mxu0
      %v645 = vadd.f32 0.0, %v644
      %v646 = vpop.f32.mrf.mxu0
      %v647 = vpop.f32.mrf.mxu0
      %v648 = vadd.f32 0.0, %v647
      %v649 = vpop.f32.mrf.mxu0
      %650 = vmatprep.mubr.bf16.mxu0 0
      %651 = vmatmul.mubr.bf16.gmra.mxu0 %v508
      %v652 = vpop.f32.mrf.mxu0
      %v653 = vadd.f32 0.0, %v652
      %v654 = vpop.f32.mrf.mxu0
      %v655 = vpop.f32.mrf.mxu0
      %v656 = vadd.f32 0.0, %v655
      %v657 = vpop.f32.mrf.mxu0
      %658 = vmatprep.mubr.bf16.mxu0 0
      %659 = vmatmul.mubr.bf16.gmra.mxu0 %v510
      %v660 = vpop.f32.mrf.mxu0
      %v661 = vadd.f32 0.0, %v660
      %v662 = vpop.f32.mrf.mxu0
      %v663 = vpop.f32.mrf.mxu0
      %v664 = vadd.f32 0.0, %v663
      %v665 = vpop.f32.mrf.mxu0
      %666 = vmatprep.mubr.bf16.mxu0 0
      %667 = vmatmul.mubr.bf16.gmra.mxu0 %v512
      %v668 = vpop.f32.mrf.mxu0
      %v669 = vadd.f32 0.0, %v668
      %v670 = vpop.f32.mrf.mxu0
      %v671 = vpop.f32.mrf.mxu0
      %v672 = vadd.f32 0.0, %v671
      %v673 = vpop.f32.mrf.mxu0
      %674 = vdwg.mxu0
      %vm707 = vcmask 1040384
      %v708 = vrot.slane %v549, 7
      %v709 = vrot.slane %v552, 7
      %v710 = vsel %vm707, %v708, %v709
      %v711 = vrot.slane %v557, 7
      %v712 = vrot.slane %v560, 7
      %v713 = vsel %vm707, %v711, %v712
      %v714 = vrot.slane %v565, 7
      %v715 = vrot.slane %v568, 7
      %v716 = vsel %vm707, %v714, %v715
      %v717 = vrot.slane %v573, 7
      %v718 = vrot.slane %v576, 7
      %v719 = vsel %vm707, %v717, %v718
      %v720 = vrot.slane %v581, 7
      %v721 = vrot.slane %v584, 7
      %v722 = vsel %vm707, %v720, %v721
      %v723 = vrot.slane %v589, 7
      %v724 = vrot.slane %v592, 7
      %v725 = vsel %vm707, %v723, %v724
      %v726 = vrot.slane %v597, 7
      %v727 = vrot.slane %v600, 7
      %v728 = vsel %vm707, %v726, %v727
      %v729 = vrot.slane %v605, 7
      %v730 = vrot.slane %v608, 7
      %v731 = vsel %vm707, %v729, %v730
      %v732 = vrot.slane %v613, 7
      %v733 = vrot.slane %v616, 7
      %v734 = vsel %vm707, %v732, %v733
      %v735 = vrot.slane %v621, 7
      %v736 = vrot.slane %v624, 7
      %v737 = vsel %vm707, %v735, %v736
      %v738 = vrot.slane %v629, 7
      %v739 = vrot.slane %v632, 7
      %v740 = vsel %vm707, %v738, %v739
      %v741 = vrot.slane %v637, 7
      %v742 = vrot.slane %v640, 7
      %v743 = vsel %vm707, %v741, %v742
      %v744 = vrot.slane %v645, 7
      %v745 = vrot.slane %v648, 7
      %v746 = vsel %vm707, %v744, %v745
      %v747 = vrot.slane %v653, 7
      %v748 = vrot.slane %v656, 7
      %v749 = vsel %vm707, %v747, %v748
      %v750 = vrot.slane %v661, 7
      %v751 = vrot.slane %v664, 7
      %v752 = vsel %vm707, %v750, %v751
      %v753 = vrot.slane %v669, 7
      %v754 = vrot.slane %v672, 7
      %v755 = vsel %vm707, %v753, %v754
      %v772 = vsel %vm707, 0.0, %v708
      %v773 = vsel %vm707, 0.0, %v711
      %v774 = vsel %vm707, 0.0, %v714
      %v775 = vsel %vm707, 0.0, %v717
      %v776 = vsel %vm707, 0.0, %v720
      %v777 = vsel %vm707, 0.0, %v723
      %v778 = vsel %vm707, 0.0, %v726
      %v779 = vsel %vm707, 0.0, %v729
      %v780 = vsel %vm707, 0.0, %v732
      %v781 = vsel %vm707, 0.0, %v735
      %v782 = vsel %vm707, 0.0, %v738
      %v783 = vsel %vm707, 0.0, %v741
      %v784 = vsel %vm707, 0.0, %v744
      %v785 = vsel %vm707, 0.0, %v747
      %v786 = vsel %vm707, 0.0, %v750
      %v787 = vsel %vm707, 0.0, %v753
      %804 = vrot.lane.b32.xlu0 %v772, 3
      %v805 = vpop.permute.xlu0 %804
      %806 = vrot.lane.b32.xlu0 %v710, 3
      %v807 = vpop.permute.xlu0 %806
      %808 = vrot.lane.b32.xlu0 %v773, 3
      %v809 = vpop.permute.xlu0 %808
      %810 = vrot.lane.b32.xlu0 %v713, 3
      %v811 = vpop.permute.xlu0 %810
      %812 = vrot.lane.b32.xlu0 %v774, 3
      %v813 = vpop.permute.xlu0 %812
      %814 = vrot.lane.b32.xlu0 %v716, 3
      %v815 = vpop.permute.xlu0 %814
      %816 = vrot.lane.b32.xlu0 %v775, 3
      %v817 = vpop.permute.xlu0 %816
      %818 = vrot.lane.b32.xlu0 %v719, 3
      %v819 = vpop.permute.xlu0 %818
      %820 = vrot.lane.b32.xlu0 %v776, 3
      %v821 = vpop.permute.xlu0 %820
      %822 = vrot.lane.b32.xlu0 %v722, 3
      %v823 = vpop.permute.xlu0 %822
      %824 = vrot.lane.b32.xlu0 %v777, 3
      %v825 = vpop.permute.xlu0 %824
      %826 = vrot.lane.b32.xlu0 %v725, 3
      %v827 = vpop.permute.xlu0 %826
      %828 = vrot.lane.b32.xlu0 %v778, 3
      %v829 = vpop.permute.xlu0 %828
      %830 = vrot.lane.b32.xlu0 %v728, 3
      %v831 = vpop.permute.xlu0 %830
      %832 = vrot.lane.b32.xlu0 %v779, 3
      %v833 = vpop.permute.xlu0 %832
      %834 = vrot.lane.b32.xlu0 %v731, 3
      %v835 = vpop.permute.xlu0 %834
      %836 = vrot.lane.b32.xlu0 %v780, 3
      %v837 = vpop.permute.xlu0 %836
      %838 = vrot.lane.b32.xlu0 %v734, 3
      %v839 = vpop.permute.xlu0 %838
      %840 = vrot.lane.b32.xlu0 %v781, 3
      %v841 = vpop.permute.xlu0 %840
      %842 = vrot.lane.b32.xlu0 %v737, 3
      %v843 = vpop.permute.xlu0 %842
      %844 = vrot.lane.b32.xlu0 %v782, 3
      %v845 = vpop.permute.xlu0 %844
      %846 = vrot.lane.b32.xlu0 %v740, 3
      %v847 = vpop.permute.xlu0 %846
      %848 = vrot.lane.b32.xlu0 %v783, 3
      %v849 = vpop.permute.xlu0 %848
      %850 = vrot.lane.b32.xlu0 %v743, 3
      %v851 = vpop.permute.xlu0 %850
      %852 = vrot.lane.b32.xlu0 %v784, 3
      %v853 = vpop.permute.xlu0 %852
      %854 = vrot.lane.b32.xlu0 %v746, 3
      %v855 = vpop.permute.xlu0 %854
      %856 = vrot.lane.b32.xlu0 %v785, 3
      %v857 = vpop.permute.xlu0 %856
      %858 = vrot.lane.b32.xlu0 %v749, 3
      %v859 = vpop.permute.xlu0 %858
      %860 = vrot.lane.b32.xlu0 %v786, 3
      %v861 = vpop.permute.xlu0 %860
      %862 = vrot.lane.b32.xlu0 %v752, 3
      %v863 = vpop.permute.xlu0 %862
      %864 = vrot.lane.b32.xlu0 %v787, 3
      %v865 = vpop.permute.xlu0 %864
      %866 = vrot.lane.b32.xlu0 %v755, 3
      %v867 = vpop.permute.xlu0 %866
      %v900 = vadd.f32 %v549, %v805
      %v901 = vadd.f32 %v552, %v807
      %v902 = vadd.f32 %v557, %v809
      %v903 = vadd.f32 %v560, %v811
      %v904 = vadd.f32 %v565, %v813
      %v905 = vadd.f32 %v568, %v815
      %v906 = vadd.f32 %v573, %v817
      %v907 = vadd.f32 %v576, %v819
      %v908 = vadd.f32 %v581, %v821
      %v909 = vadd.f32 %v584, %v823
      %v910 = vadd.f32 %v589, %v825
      %v911 = vadd.f32 %v592, %v827
      %v912 = vadd.f32 %v597, %v829
      %v913 = vadd.f32 %v600, %v831
      %v914 = vadd.f32 %v605, %v833
      %v915 = vadd.f32 %v608, %v835
      %v916 = vadd.f32 %v613, %v837
      %v917 = vadd.f32 %v616, %v839
      %v918 = vadd.f32 %v621, %v841
      %v919 = vadd.f32 %v624, %v843
      %v920 = vadd.f32 %v629, %v845
      %v921 = vadd.f32 %v632, %v847
      %v922 = vadd.f32 %v637, %v849
      %v923 = vadd.f32 %v640, %v851
      %v924 = vadd.f32 %v645, %v853
      %v925 = vadd.f32 %v648, %v855
      %v926 = vadd.f32 %v653, %v857
      %v927 = vadd.f32 %v656, %v859
      %v928 = vadd.f32 %v661, %v861
      %v929 = vadd.f32 %v664, %v863
      %v930 = vadd.f32 %v669, %v865
      %v931 = vadd.f32 %v672, %v867
      %vm932 = vcmask 1046528
      %v933 = vrot.slane %v549, 1
      %v934 = vrot.slane %v552, 1
      %v935 = vsel %vm932, %v933, %v934
      %v936 = vrot.slane %v557, 1
      %v937 = vrot.slane %v560, 1
      %v938 = vsel %vm932, %v936, %v937
      %v939 = vrot.slane %v565, 1
      %v940 = vrot.slane %v568, 1
      %v941 = vsel %vm932, %v939, %v940
      %v942 = vrot.slane %v573, 1
      %v943 = vrot.slane %v576, 1
      %v944 = vsel %vm932, %v942, %v943
      %v945 = vrot.slane %v581, 1
      %v946 = vrot.slane %v584, 1
      %v947 = vsel %vm932, %v945, %v946
      %v948 = vrot.slane %v589, 1
      %v949 = vrot.slane %v592, 1
      %v950 = vsel %vm932, %v948, %v949
      %v951 = vrot.slane %v597, 1
      %v952 = vrot.slane %v600, 1
      %v953 = vsel %vm932, %v951, %v952
      %v954 = vrot.slane %v605, 1
      %v955 = vrot.slane %v608, 1
      %v956 = vsel %vm932, %v954, %v955
      %v957 = vrot.slane %v613, 1
      %v958 = vrot.slane %v616, 1
      %v959 = vsel %vm932, %v957, %v958
      %v960 = vrot.slane %v621, 1
      %v961 = vrot.slane %v624, 1
      %v962 = vsel %vm932, %v960, %v961
      %v963 = vrot.slane %v629, 1
      %v964 = vrot.slane %v632, 1
      %v965 = vsel %vm932, %v963, %v964
      %v966 = vrot.slane %v637, 1
      %v967 = vrot.slane %v640, 1
      %v968 = vsel %vm932, %v966, %v967
      %v969 = vrot.slane %v645, 1
      %v970 = vrot.slane %v648, 1
      %v971 = vsel %vm932, %v969, %v970
      %v972 = vrot.slane %v653, 1
      %v973 = vrot.slane %v656, 1
      %v974 = vsel %vm932, %v972, %v973
      %v975 = vrot.slane %v661, 1
      %v976 = vrot.slane %v664, 1
      %v977 = vsel %vm932, %v975, %v976
      %v978 = vrot.slane %v669, 1
      %v979 = vrot.slane %v672, 1
      %v980 = vsel %vm932, %v978, %v979
      %v997 = vsel %vm932, %v934, 0.0
      %v998 = vsel %vm932, %v937, 0.0
      %v999 = vsel %vm932, %v940, 0.0
      %v1000 = vsel %vm932, %v943, 0.0
      %v1001 = vsel %vm932, %v946, 0.0
      %v1002 = vsel %vm932, %v949, 0.0
      %v1003 = vsel %vm932, %v952, 0.0
      %v1004 = vsel %vm932, %v955, 0.0
      %v1005 = vsel %vm932, %v958, 0.0
      %v1006 = vsel %vm932, %v961, 0.0
      %v1007 = vsel %vm932, %v964, 0.0
      %v1008 = vsel %vm932, %v967, 0.0
      %v1009 = vsel %vm932, %v970, 0.0
      %v1010 = vsel %vm932, %v973, 0.0
      %v1011 = vsel %vm932, %v976, 0.0
      %v1012 = vsel %vm932, %v979, 0.0
      %1029 = vrot.lane.b32.xlu0 %v935, 125
      %v1030 = vpop.permute.xlu0 %1029
      %1031 = vrot.lane.b32.xlu0 %v997, 125
      %v1032 = vpop.permute.xlu0 %1031
      %1033 = vrot.lane.b32.xlu0 %v938, 125
      %v1034 = vpop.permute.xlu0 %1033
      %1035 = vrot.lane.b32.xlu0 %v998, 125
      %v1036 = vpop.permute.xlu0 %1035
      %1037 = vrot.lane.b32.xlu0 %v941, 125
      %v1038 = vpop.permute.xlu0 %1037
      %1039 = vrot.lane.b32.xlu0 %v999, 125
      %v1040 = vpop.permute.xlu0 %1039
      %1041 = vrot.lane.b32.xlu0 %v944, 125
      %v1042 = vpop.permute.xlu0 %1041
      %1043 = vrot.lane.b32.xlu0 %v1000, 125
      %v1044 = vpop.permute.xlu0 %1043
      %1045 = vrot.lane.b32.xlu0 %v947, 125
      %v1046 = vpop.permute.xlu0 %1045
      %1047 = vrot.lane.b32.xlu0 %v1001, 125
      %v1048 = vpop.permute.xlu0 %1047
      %1049 = vrot.lane.b32.xlu0 %v950, 125
      %v1050 = vpop.permute.xlu0 %1049
      %1051 = vrot.lane.b32.xlu0 %v1002, 125
      %v1052 = vpop.permute.xlu0 %1051
      %1053 = vrot.lane.b32.xlu0 %v953, 125
      %v1054 = vpop.permute.xlu0 %1053
      %1055 = vrot.lane.b32.xlu0 %v1003, 125
      %v1056 = vpop.permute.xlu0 %1055
      %1057 = vrot.lane.b32.xlu0 %v956, 125
      %v1058 = vpop.permute.xlu0 %1057
      %1059 = vrot.lane.b32.xlu0 %v1004, 125
      %v1060 = vpop.permute.xlu0 %1059
      %1061 = vrot.lane.b32.xlu0 %v959, 125
      %v1062 = vpop.permute.xlu0 %1061
      %1063 = vrot.lane.b32.xlu0 %v1005, 125
      %v1064 = vpop.permute.xlu0 %1063
      %1065 = vrot.lane.b32.xlu0 %v962, 125
      %v1066 = vpop.permute.xlu0 %1065
      %1067 = vrot.lane.b32.xlu0 %v1006, 125
      %v1068 = vpop.permute.xlu0 %1067
      %1069 = vrot.lane.b32.xlu0 %v965, 125
      %v1070 = vpop.permute.xlu0 %1069
      %1071 = vrot.lane.b32.xlu0 %v1007, 125
      %v1072 = vpop.permute.xlu0 %1071
      %1073 = vrot.lane.b32.xlu0 %v968, 125
      %v1074 = vpop.permute.xlu0 %1073
      %1075 = vrot.lane.b32.xlu0 %v1008, 125
      %v1076 = vpop.permute.xlu0 %1075
      %1077 = vrot.lane.b32.xlu0 %v971, 125
      %v1078 = vpop.permute.xlu0 %1077
      %1079 = vrot.lane.b32.xlu0 %v1009, 125
      %v1080 = vpop.permute.xlu0 %1079
      %1081 = vrot.lane.b32.xlu0 %v974, 125
      %v1082 = vpop.permute.xlu0 %1081
      %1083 = vrot.lane.b32.xlu0 %v1010, 125
      %v1084 = vpop.permute.xlu0 %1083
      %1085 = vrot.lane.b32.xlu0 %v977, 125
      %v1086 = vpop.permute.xlu0 %1085
      %1087 = vrot.lane.b32.xlu0 %v1011, 125
      %v1088 = vpop.permute.xlu0 %1087
      %1089 = vrot.lane.b32.xlu0 %v980, 125
      %v1090 = vpop.permute.xlu0 %1089
      %1091 = vrot.lane.b32.xlu0 %v1012, 125
      %v1092 = vpop.permute.xlu0 %1091
      %v1125 = vadd.f32 %v900, %v1030
      %v1126 = vadd.f32 %v901, %v1032
      %v1127 = vadd.f32 %v902, %v1034
      %v1128 = vadd.f32 %v903, %v1036
      %v1129 = vadd.f32 %v904, %v1038
      %v1130 = vadd.f32 %v905, %v1040
      %v1131 = vadd.f32 %v906, %v1042
      %v1132 = vadd.f32 %v907, %v1044
      %v1133 = vadd.f32 %v908, %v1046
      %v1134 = vadd.f32 %v909, %v1048
      %v1135 = vadd.f32 %v910, %v1050
      %v1136 = vadd.f32 %v911, %v1052
      %v1137 = vadd.f32 %v912, %v1054
      %v1138 = vadd.f32 %v913, %v1056
      %v1139 = vadd.f32 %v914, %v1058
      %v1140 = vadd.f32 %v915, %v1060
      %v1141 = vadd.f32 %v916, %v1062
      %v1142 = vadd.f32 %v917, %v1064
      %v1143 = vadd.f32 %v918, %v1066
      %v1144 = vadd.f32 %v919, %v1068
      %v1145 = vadd.f32 %v920, %v1070
      %v1146 = vadd.f32 %v921, %v1072
      %v1147 = vadd.f32 %v922, %v1074
      %v1148 = vadd.f32 %v923, %v1076
      %v1149 = vadd.f32 %v924, %v1078
      %v1150 = vadd.f32 %v925, %v1080
      %v1151 = vadd.f32 %v926, %v1082
      %v1152 = vadd.f32 %v927, %v1084
      %v1153 = vadd.f32 %v928, %v1086
      %v1154 = vadd.f32 %v929, %v1088
      %v1155 = vadd.f32 %v930, %v1090
      %v1156 = vadd.f32 %v931, %v1092
      %v1157 = vld [vmem:[%s2] sm:$0x1]
      %v1159 = vlaneseq
      %v1160 = vshrl.u32 %v1159, 7
      %v1161 = vsub.s32 0, %v1160
      %v1162 = vrot.slane %v1157, %v1161
      %1163 = vrot.lane.b32.xlu0 %v1162, 3
      %v1164 = vpop.permute.xlu0 %1163
      %v1166 = vadd.f32 %v1125, %v1164
      %v1167 = vadd.f32 %v1126, %v1164
      %v1168 = vadd.f32 %v1127, %v1164
      %v1169 = vadd.f32 %v1128, %v1164
      %v1170 = vadd.f32 %v1129, %v1164
      %v1171 = vadd.f32 %v1130, %v1164
      %v1172 = vadd.f32 %v1131, %v1164
      %v1173 = vadd.f32 %v1132, %v1164
      %v1174 = vadd.f32 %v1133, %v1164
      %v1175 = vadd.f32 %v1134, %v1164
      %v1176 = vadd.f32 %v1135, %v1164
      %v1177 = vadd.f32 %v1136, %v1164
      %v1178 = vadd.f32 %v1137, %v1164
      %v1179 = vadd.f32 %v1138, %v1164
      %v1180 = vadd.f32 %v1139, %v1164
      %v1181 = vadd.f32 %v1140, %v1164
      %v1182 = vadd.f32 %v1141, %v1164
      %v1183 = vadd.f32 %v1142, %v1164
      %v1184 = vadd.f32 %v1143, %v1164
      %v1185 = vadd.f32 %v1144, %v1164
      %v1186 = vadd.f32 %v1145, %v1164
      %v1187 = vadd.f32 %v1146, %v1164
      %v1188 = vadd.f32 %v1147, %v1164
      %v1189 = vadd.f32 %v1148, %v1164
      %v1190 = vadd.f32 %v1149, %v1164
      %v1191 = vadd.f32 %v1150, %v1164
      %v1192 = vadd.f32 %v1151, %v1164
      %v1193 = vadd.f32 %v1152, %v1164
      %v1194 = vadd.f32 %v1153, %v1164
      %v1195 = vadd.f32 %v1154, %v1164
      %v1196 = vadd.f32 %v1155, %v1164
      %v1197 = vadd.f32 %v1156, %v1164
      %1230 = vrot.lane.b32.xlu0 %v1166, 125
      %v1231 = vpop.permute.xlu0 %1230
      %1232 = vrot.lane.b32.xlu0 %v1167, 125
      %v1233 = vpop.permute.xlu0 %1232
      %1234 = vrot.lane.b32.xlu0 %v1168, 125
      %v1235 = vpop.permute.xlu0 %1234
      %1236 = vrot.lane.b32.xlu0 %v1169, 125
      %v1237 = vpop.permute.xlu0 %1236
      %1238 = vrot.lane.b32.xlu0 %v1170, 125
      %v1239 = vpop.permute.xlu0 %1238
      %1240 = vrot.lane.b32.xlu0 %v1171, 125
      %v1241 = vpop.permute.xlu0 %1240
      %1242 = vrot.lane.b32.xlu0 %v1172, 125
      %v1243 = vpop.permute.xlu0 %1242
      %1244 = vrot.lane.b32.xlu0 %v1173, 125
      %v1245 = vpop.permute.xlu0 %1244
      %1246 = vrot.lane.b32.xlu0 %v1174, 125
      %v1247 = vpop.permute.xlu0 %1246
      %1248 = vrot.lane.b32.xlu0 %v1175, 125
      %v1249 = vpop.permute.xlu0 %1248
      %1250 = vrot.lane.b32.xlu0 %v1176, 125
      %v1251 = vpop.permute.xlu0 %1250
      %1252 = vrot.lane.b32.xlu0 %v1177, 125
      %v1253 = vpop.permute.xlu0 %1252
      %1254 = vrot.lane.b32.xlu0 %v1178, 125
      %v1255 = vpop.permute.xlu0 %1254
      %1256 = vrot.lane.b32.xlu0 %v1179, 125
      %v1257 = vpop.permute.xlu0 %1256
      %1258 = vrot.lane.b32.xlu0 %v1180, 125
      %v1259 = vpop.permute.xlu0 %1258
      %1260 = vrot.lane.b32.xlu0 %v1181, 125
      %v1261 = vpop.permute.xlu0 %1260
      %1262 = vrot.lane.b32.xlu0 %v1182, 125
      %v1263 = vpop.permute.xlu0 %1262
      %1264 = vrot.lane.b32.xlu0 %v1183, 125
      %v1265 = vpop.permute.xlu0 %1264
      %1266 = vrot.lane.b32.xlu0 %v1184, 125
      %v1267 = vpop.permute.xlu0 %1266
      %1268 = vrot.lane.b32.xlu0 %v1185, 125
      %v1269 = vpop.permute.xlu0 %1268
      %1270 = vrot.lane.b32.xlu0 %v1186, 125
      %v1271 = vpop.permute.xlu0 %1270
      %1272 = vrot.lane.b32.xlu0 %v1187, 125
      %v1273 = vpop.permute.xlu0 %1272
      %1274 = vrot.lane.b32.xlu0 %v1188, 125
      %v1275 = vpop.permute.xlu0 %1274
      %1276 = vrot.lane.b32.xlu0 %v1189, 125
      %v1277 = vpop.permute.xlu0 %1276
      %1278 = vrot.lane.b32.xlu0 %v1190, 125
      %v1279 = vpop.permute.xlu0 %1278
      %1280 = vrot.lane.b32.xlu0 %v1191, 125
      %v1281 = vpop.permute.xlu0 %1280
      %1282 = vrot.lane.b32.xlu0 %v1192, 125
      %v1283 = vpop.permute.xlu0 %1282
      %1284 = vrot.lane.b32.xlu0 %v1193, 125
      %v1285 = vpop.permute.xlu0 %1284
      %1286 = vrot.lane.b32.xlu0 %v1194, 125
      %v1287 = vpop.permute.xlu0 %1286
      %1288 = vrot.lane.b32.xlu0 %v1195, 125
      %v1289 = vpop.permute.xlu0 %1288
      %1290 = vrot.lane.b32.xlu0 %v1196, 125
      %v1291 = vpop.permute.xlu0 %1290
      %1292 = vrot.lane.b32.xlu0 %v1197, 125
      %v1293 = vpop.permute.xlu0 %1292
      %vm1326 = vcmask 23552
      %1327 = vst.msk [vmem:[%s170] sm:$0xff] %vm1326, %v1231
      %1328 = vst.msk [vmem:[%s170 + $0x8] sm:$0xff] %vm1326, %v1233
      %1329 = vst.msk [vmem:[%s170 + $0x10] sm:$0xff] %vm1326, %v1235
      %1330 = vst.msk [vmem:[%s170 + $0x18] sm:$0xff] %vm1326, %v1237
      %1331 = vst.msk [vmem:[%s170 + $0x20] sm:$0xff] %vm1326, %v1239
      %1332 = vst.msk [vmem:[%s170 + $0x28] sm:$0xff] %vm1326, %v1241
      %1333 = vst.msk [vmem:[%s170 + $0x30] sm:$0xff] %vm1326, %v1243
      %1334 = vst.msk [vmem:[%s170 + $0x38] sm:$0xff] %vm1326, %v1245
      %1335 = vst.msk [vmem:[%s170 + $0x40] sm:$0xff] %vm1326, %v1247
      %1336 = vst.msk [vmem:[%s170 + $0x48] sm:$0xff] %vm1326, %v1249
      %1337 = vst.msk [vmem:[%s170 + $0x50] sm:$0xff] %vm1326, %v1251
      %1338 = vst.msk [vmem:[%s170 + $0x58] sm:$0xff] %vm1326, %v1253
      %1339 = vst.msk [vmem:[%s170 + $0x60] sm:$0xff] %vm1326, %v1255
      %1340 = vst.msk [vmem:[%s170 + $0x68] sm:$0xff] %vm1326, %v1257
      %1341 = vst.msk [vmem:[%s170 + $0x70] sm:$0xff] %vm1326, %v1259
      %1342 = vst.msk [vmem:[%s170 + $0x78] sm:$0xff] %vm1326, %v1261
      %1343 = vst.msk [vmem:[%s170 + $0x80] sm:$0xff] %vm1326, %v1263
      %1344 = vst.msk [vmem:[%s170 + $0x88] sm:$0xff] %vm1326, %v1265
      %1345 = vst.msk [vmem:[%s170 + $0x90] sm:$0xff] %vm1326, %v1267
      %1346 = vst.msk [vmem:[%s170 + $0x98] sm:$0xff] %vm1326, %v1269
      %1347 = vst.msk [vmem:[%s170 + $0xa0] sm:$0xff] %vm1326, %v1271
      %1348 = vst.msk [vmem:[%s170 + $0xa8] sm:$0xff] %vm1326, %v1273
      %1349 = vst.msk [vmem:[%s170 + $0xb0] sm:$0xff] %vm1326, %v1275
      %1350 = vst.msk [vmem:[%s170 + $0xb8] sm:$0xff] %vm1326, %v1277
      %1351 = vst.msk [vmem:[%s170 + $0xc0] sm:$0xff] %vm1326, %v1279
      %1352 = vst.msk [vmem:[%s170 + $0xc8] sm:$0xff] %vm1326, %v1281
      %1353 = vst.msk [vmem:[%s170 + $0xd0] sm:$0xff] %vm1326, %v1283
      %1354 = vst.msk [vmem:[%s170 + $0xd8] sm:$0xff] %vm1326, %v1285
      %1355 = vst.msk [vmem:[%s170 + $0xe0] sm:$0xff] %vm1326, %v1287
      %1356 = vst.msk [vmem:[%s170 + $0xe8] sm:$0xff] %vm1326, %v1289
      %1357 = vst.msk [vmem:[%s170 + $0xf0] sm:$0xff] %vm1326, %v1291
      %1358 = vst.msk [vmem:[%s170 + $0xf8] sm:$0xff] %vm1326, %v1293
      %p1359 = scmp.lt.s32.totalorder %s14, 1
      %s1360 = scalar_select %p1359, %s14, 1
      %s1361 = smul.addr %s1360, 32
      %s1362 = smul.addr %s1361, 8
      %s1363 = scalar_lea.vmem %s3, %s1362
      // Predicated region
      $region33: #{decoder_forward.15} parent=31 // pred_check
        %p1364 = pneg %p100
      $region34: #{decoder_forward.15} parent=31 // pred_check_branch
        %1366 = sbr.rel (%p1364) target = $region36
      $region35: #{decoder_forward.15} parent=31 // pred_region
        _
      $region36: #{decoder_forward.15} parent=31 // pred_fallthru
        _
    $region32: #{decoder_forward.15} parent=5 // pred_fallthru
      _
    %p1367 = scmp.le.s32.totalorder 2, %s9
    // Predicated region
    $region37: #{decoder_forward.15} parent=5 // pred_check
      %p1368 = pneg %p1367
    $region38: #{decoder_forward.15} parent=5 // pred_check_branch
      %1370 = sbr.rel (%p1368) target = $region40
    $region39: #{decoder_forward.15} parent=5 // pred_region
      %s1371 = ssub.s32 %s9, 2
      // Predicated region
      $region41: #{decoder_forward.15} parent=39 // pred_check
        %p1372 = pneg %p106
      $region42: #{decoder_forward.15} parent=39 // pred_check_branch
        %1374 = sbr.rel (%p1372) target = $region44
      $region43: #{decoder_forward.15} parent=39 // pred_region
        %p1375 = scmp.lt.s32.totalorder %s15, 1
        %s1376 = scalar_select %p1375, %s15, 1
        %s1377 = smul.addr %s1376, 32
        %s1378 = smul.addr %s1377, 8
        %s1379 = scalar_lea.vmem %s3, %s1378
      $region44: #{decoder_forward.15} parent=39 // pred_fallthru
        _
    $region40: #{decoder_forward.15} parent=5 // pred_fallthru
      _
  $region6: #{decoder_forward.15} parent=0 // loop_footer
    %s13 = sadd.s32 1, %s9
  $region7: #{decoder_forward.15} parent=0 // loop_footer_branch
    %8 = sbr.rel target = $region3
  $region8: #{decoder_forward.15} parent=0 // loop_exit
    _

// kernel: decoder_forward.14
$region0: #{decoder_forward.14}
  #allocation0 [shape = 'u32[]', space=smem, size = 0x4, offset = 0x4, fixed_abs, tag = 'smem constant byte address 0x4 - core index']
  #allocation1 [shape = 'u32[144,128]{1,0:T(1,128)}', space=vmem, size = 0x12000, scoped, tag = 'internal scratch']
  %s0 = inlined_call_operand.vmem [shape: bf16[2,8,8,32], index: 0, kind: input, shape index: {}]
  %s1 = inlined_call_operand.vmem [shape: bf16[96,96], index: 1, kind: input, shape index: {}]
  %s2 = inlined_call_operand.vmem [shape: f32[1,32], index: 2, kind: input, shape index: {}]
  %s3 = inlined_call_operand.vmem [shape: bf16[2,16,16,32], index: 3, kind: output, shape index: {}]
  %s4 = sld [smem:[#allocation0]]
  $region45: #{decoder_forward.14} parent=0
    _
  %s6 = ssub.s32 1, %s4
  %s7 = scalar_select 0, %s6, %s4
  loop: start=0, step=1, limit=4
  $region2: #{decoder_forward.14} parent=0 // loop_pre_header
    _
  $region3: #{decoder_forward.14} parent=0 // loop_header
    %s9 = sphi 0, %s13
    %p10 = scmp.ge.s32.totalorder %s9, 4
    %s19 = sphi 0, %s21
    %s22 = sphi 0, %s19
    %s23 = sphi 0, %s22
    %s39 = sphi 0, %s23
    %s43 = sphi 0, %s43
    %s45 = sphi 0, %s43
    %s46 = sphi 0, %s45
    %s60 = sphi 0, %s46
    %s64 = sphi 0, %s64
    %s66 = sphi 0, %s64
    %s67 = sphi 0, %s66
    %s81 = sphi 0, %s67
    %s87 = sphi 0, %s89
    %s90 = sphi 0, %s87
    %s91 = sphi 0, %s90
    %s107 = sphi 0, %s91
  $region4: #{decoder_forward.14} parent=0 // loop_header_branch
    %12 = sbr.rel (%p10) target = $region8
  $region5: #{decoder_forward.14} parent=0 // loop_body
    %s14 = ssub.s32 %s9, 1
    %s15 = ssub.s32 %s9, 2
    %s16 = sadd.s32 %s9, 1
    %s17 = ssub.s32 %s9, %s16
    %p18 = scmp.eq.s32.totalorder %s17, 0
    %s20 = sadd.s32 %s19, 1
    %s21 = scalar_select %p18, %s19, %s20
    %p24 = pneg %p18
    %p25 = scmp.eq.s32.totalorder %s9, 1
    %p26 = por %p24, %p25
    %p27 = scmp.ne.s32.totalorder %s19, %s22
    %p28 = scmp.eq.s32.totalorder %s9, 0
    %p29 = por %p27, %p28
    %p30 = scmp.ne.s32.totalorder %s19, %s22
    %p31 = scmp.eq.s32.totalorder %s14, 1
    %p32 = por %p30, %p31
    %p33 = scmp.ne.s32.totalorder %s22, %s23
    %p34 = scmp.eq.s32.totalorder %s14, 0
    %p35 = por %p33, %p34
    %p36 = scmp.ne.s32.totalorder %s22, %s23
    %p37 = scmp.eq.s32.totalorder %s15, 1
    %p38 = por %p36, %p37
    %p40 = scmp.ne.s32.totalorder %s23, %s39
    %p41 = scmp.eq.s32.totalorder %s15, 0
    %p42 = por %p40, %p41
    %s44 = sadd.s32 %s43, 1
    %p47 = scmp.eq.s32.totalorder %s9, 1
    %p48 = scmp.ne.s32.totalorder %s43, %s45
    %p49 = scmp.eq.s32.totalorder %s9, 0
    %p50 = por %p48, %p49
    %p51 = scmp.ne.s32.totalorder %s43, %s45
    %p52 = scmp.eq.s32.totalorder %s14, 1
    %p53 = por %p51, %p52
    %p54 = scmp.ne.s32.totalorder %s45, %s46
    %p55 = scmp.eq.s32.totalorder %s14, 0
    %p56 = por %p54, %p55
    %p57 = scmp.ne.s32.totalorder %s45, %s46
    %p58 = scmp.eq.s32.totalorder %s15, 1
    %p59 = por %p57, %p58
    %p61 = scmp.ne.s32.totalorder %s46, %s60
    %p62 = scmp.eq.s32.totalorder %s15, 0
    %p63 = por %p61, %p62
    %s65 = sadd.s32 %s64, 1
    %p68 = scmp.eq.s32.totalorder %s9, 1
    %p69 = scmp.ne.s32.totalorder %s64, %s66
    %p70 = scmp.eq.s32.totalorder %s9, 0
    %p71 = por %p69, %p70
    %p72 = scmp.ne.s32.totalorder %s64, %s66
    %p73 = scmp.eq.s32.totalorder %s14, 1
    %p74 = por %p72, %p73
    %p75 = scmp.ne.s32.totalorder %s66, %s67
    %p76 = scmp.eq.s32.totalorder %s14, 0
    %p77 = por %p75, %p76
    %p78 = scmp.ne.s32.totalorder %s66, %s67
    %p79 = scmp.eq.s32.totalorder %s15, 1
    %p80 = por %p78, %p79
    %p82 = scmp.ne.s32.totalorder %s67, %s81
    %p83 = scmp.eq.s32.totalorder %s15, 0
    %p84 = por %p82, %p83
    %s85 = ssub.s32 %s9, %s16
    %p86 = scmp.eq.s32.totalorder %s85, 0
    %s88 = sadd.s32 %s87, 1
    %s89 = scalar_select %p86, %s87, %s88
    %p92 = pneg %p86
    %p93 = scmp.eq.s32.totalorder %s9, 1
    %p94 = por %p92, %p93
    %p95 = scmp.ne.s32.totalorder %s87, %s90
    %p96 = scmp.eq.s32.totalorder %s9, 0
    %p97 = por %p95, %p96
    %p98 = scmp.ne.s32.totalorder %s87, %s90
    %p99 = scmp.eq.s32.totalorder %s14, 1
    %p100 = por %p98, %p99
    %p101 = scmp.ne.s32.totalorder %s90, %s91
    %p102 = scmp.eq.s32.totalorder %s14, 0
    %p103 = por %p101, %p102
    %p104 = scmp.ne.s32.totalorder %s90, %s91
    %p105 = scmp.eq.s32.totalorder %s15, 1
    %p106 = por %p104, %p105
    %p108 = scmp.ne.s32.totalorder %s91, %s107
    %p109 = scmp.eq.s32.totalorder %s15, 0
    %p110 = por %p108, %p109
    %p111 = scmp.le.s32.totalorder 1, %s9
    %p112 = scmp.lt.s32.totalorder %s9, 3
    %p113 = pnand %p111, %p112
    %p114 = pneg %p113
    // Predicated region
    $region9: #{decoder_forward.14} parent=5 // pred_check
      _
    $region10: #{decoder_forward.14} parent=5 // pred_check_branch
      %116 = sbr.rel (%p113) target = $region12
    $region11: #{decoder_forward.14} parent=5 // pred_region
      %s117 = ssub.s32 %s9, 1
      // Predicated region
      $region13: #{decoder_forward.14} parent=11 // pred_check
        %p118 = pneg %p56
      $region14: #{decoder_forward.14} parent=11 // pred_check_branch
        %120 = sbr.rel (%p118) target = $region16
      $region15: #{decoder_forward.14} parent=11 // pred_region
        _
      $region16: #{decoder_forward.14} parent=11 // pred_fallthru
        _
      // Predicated region
      $region17: #{decoder_forward.14} parent=11 // pred_check
        %p121 = pneg %p77
      $region18: #{decoder_forward.14} parent=11 // pred_check_branch
        %123 = sbr.rel (%p121) target = $region20
      $region19: #{decoder_forward.14} parent=11 // pred_region
        _
      $region20: #{decoder_forward.14} parent=11 // pred_fallthru
        _
    $region12: #{decoder_forward.14} parent=5 // pred_fallthru
      _
    %p124 = scmp.lt.s32.totalorder %s9, 2
    // Predicated region
    $region21: #{decoder_forward.14} parent=5 // pred_check
      %p125 = pneg %p124
    $region22: #{decoder_forward.14} parent=5 // pred_check_branch
      %127 = sbr.rel (%p125) target = $region24
    $region23: #{decoder_forward.14} parent=5 // pred_region
      // Predicated region
      $region25: #{decoder_forward.14} parent=23 // pred_check
        %p128 = pneg %p29
      $region26: #{decoder_forward.14} parent=23 // pred_check_branch
        %130 = sbr.rel (%p128) target = $region28
      $region27: #{decoder_forward.14} parent=23 // pred_region
        %p131 = scmp.lt.s32.totalorder %s9, 1
        %s132 = scalar_select %p131, %s9, 1
        %s133 = smul.addr %s132, 8
        %s134 = smul.addr %s133, 4
        %s135 = scalar_lea.vmem %s0, %s134
      $region28: #{decoder_forward.14} parent=23 // pred_fallthru
        _
    $region24: #{decoder_forward.14} parent=5 // pred_fallthru
      _
    %p136 = scmp.le.s32.totalorder 1, %s9
    %p137 = scmp.lt.s32.totalorder %s9, 3
    %p138 = pnand %p136, %p137
    %p139 = pneg %p138
    // Predicated region
    $region29: #{decoder_forward.14} parent=5 // pred_check
      _
    $region30: #{decoder_forward.14} parent=5 // pred_check_branch
      %141 = sbr.rel (%p138) target = $region32
    $region31: #{decoder_forward.14} parent=5 // pred_region
      %s142 = ssub.s32 %s9, 1
      %p143 = scmp.lt.s32.totalorder %s14, 1
      %s144 = scalar_select %p143, %s14, 1
      %s145 = smul.addr %s144, 8
      %s146 = smul.addr %s145, 4
      %s147 = scalar_lea.vmem %s0, %s146
      %p148 = pneg %p35
      %p149 = pneg %p32
      %p150 = pneg %p56
      %p151 = pneg %p53
      %p152 = pneg %p77
      %p153 = pneg %p74
      %p154 = pneg %p103
      %p155 = pneg %p100
      %p156 = scmp.lt.s32.totalorder %s14, 1
      %s157 = scalar_select %p156, %s14, 1
      %s158 = smul.addr %s157, 32
      %s159 = smul.addr %s158, 4
      %s160 = scalar_lea.vmem %s3, %s159
      %p161 = scmp.lt.s32.totalorder %s14, 1
      %s162 = scalar_select %p161, %s14, 1
      %s163 = smul.addr %s162, 8
      %s164 = smul.addr %s163, 4
      %s165 = scalar_lea.vmem %s0, %s164
      %p166 = scmp.lt.s32.totalorder %s14, 1
      %s167 = scalar_select %p166, %s14, 1
      %s168 = smul.addr %s167, 32
      %s169 = smul.addr %s168, 4
      %s170 = scalar_lea.vmem %s3, %s169
      %v172 = vld [vmem:[%s165] sm:$0xf]
      %v173 = vld [vmem:[%s165 + $0x4] sm:$0xf]
      %v174 = vld [vmem:[%s165 + $0x8] sm:$0xf]
      %v175 = vld [vmem:[%s165 + $0xc] sm:$0xf]
      %v176 = vld [vmem:[%s165 + $0x10] sm:$0xf]
      %v177 = vld [vmem:[%s165 + $0x14] sm:$0xf]
      %v178 = vld [vmem:[%s165 + $0x18] sm:$0xf]
      %v179 = vld [vmem:[%s165 + $0x1c] sm:$0xf]
      %v189 = vunpack.c.l.s4 1966171168
      %v190 = vunpack.c.0.s8 %v189
      %v191 = vlaneseq
      %v192 = vshrl.u32 %v191, 7
      %v193 = vsub.s32 %v190, %v192
      %v194 = vrot.slane %v172, %v193
      %v195 = vcombine.high %v194, %v194
      %v197 = vunpack.c.l.s4 1966171168
      %v198 = vunpack.c.0.s8 %v197
      %v199 = vlaneseq
      %v200 = vshrl.u32 %v199, 7
      %v201 = vsub.s32 %v198, %v200
      %v202 = vrot.slane %v194, %v201
      %v204 = vunpack.c.l.s4 1966171168
      %v205 = vunpack.c.0.s8 %v204
      %v206 = vlaneseq
      %v207 = vshrl.u32 %v206, 7
      %v208 = vsub.s32 %v205, %v207
      %v209 = vrot.slane %v195, %v208
      %v210 = vcombine.high %v202, %v202
      %v211 = vcombine.high %v209, %v209
      %v213 = vunpack.c.l.s4 1966171168
      %v214 = vunpack.c.0.s8 %v213
      %v215 = vlaneseq
      %v216 = vshrl.u32 %v215, 7
      %v217 = vsub.s32 %v214, %v216
      %v218 = vrot.slane %v173, %v217
      %v219 = vcombine.high %v218, %v218
      %v221 = vunpack.c.l.s4 1966171168
      %v222 = vunpack.c.0.s8 %v221
      %v223 = vlaneseq
      %v224 = vshrl.u32 %v223, 7
      %v225 = vsub.s32 %v222, %v224
      %v226 = vrot.slane %v218, %v225
      %v228 = vunpack.c.l.s4 1966171168
      %v229 = vunpack.c.0.s8 %v228
      %v230 = vlaneseq
      %v231 = vshrl.u32 %v230, 7
      %v232 = vsub.s32 %v229, %v231
      %v233 = vrot.slane %v219, %v232
      %v234 = vcombine.high %v226, %v226
      %v235 = vcombine.high %v233, %v233
      %v237 = vunpack.c.l.s4 1966171168
      %v238 = vunpack.c.0.s8 %v237
      %v239 = vlaneseq
      %v240 = vshrl.u32 %v239, 7
      %v241 = vsub.s32 %v238, %v240
      %v242 = vrot.slane %v174, %v241
      %v243 = vcombine.high %v242, %v242
      %v245 = vunpack.c.l.s4 1966171168
      %v246 = vunpack.c.0.s8 %v245
      %v247 = vlaneseq
      %v248 = vshrl.u32 %v247, 7
      %v249 = vsub.s32 %v246, %v248
      %v250 = vrot.slane %v242, %v249
      %v252 = vunpack.c.l.s4 1966171168
      %v253 = vunpack.c.0.s8 %v252
      %v254 = vlaneseq
      %v255 = vshrl.u32 %v254, 7
      %v256 = vsub.s32 %v253, %v255
      %v257 = vrot.slane %v243, %v256
      %v258 = vcombine.high %v250, %v250
      %v259 = vcombine.high %v257, %v257
      %v261 = vunpack.c.l.s4 1966171168
      %v262 = vunpack.c.0.s8 %v261
      %v263 = vlaneseq
      %v264 = vshrl.u32 %v263, 7
      %v265 = vsub.s32 %v262, %v264
      %v266 = vrot.slane %v175, %v265
      %v267 = vcombine.high %v266, %v266
      %v269 = vunpack.c.l.s4 1966171168
      %v270 = vunpack.c.0.s8 %v269
      %v271 = vlaneseq
      %v272 = vshrl.u32 %v271, 7
      %v273 = vsub.s32 %v270, %v272
      %v274 = vrot.slane %v266, %v273
      %v276 = vunpack.c.l.s4 1966171168
      %v277 = vunpack.c.0.s8 %v276
      %v278 = vlaneseq
      %v279 = vshrl.u32 %v278, 7
      %v280 = vsub.s32 %v277, %v279
      %v281 = vrot.slane %v267, %v280
      %v282 = vcombine.high %v274, %v274
      %v283 = vcombine.high %v281, %v281
      %v285 = vunpack.c.l.s4 1966171168
      %v286 = vunpack.c.0.s8 %v285
      %v287 = vlaneseq
      %v288 = vshrl.u32 %v287, 7
      %v289 = vsub.s32 %v286, %v288
      %v290 = vrot.slane %v176, %v289
      %v291 = vcombine.high %v290, %v290
      %v293 = vunpack.c.l.s4 1966171168
      %v294 = vunpack.c.0.s8 %v293
      %v295 = vlaneseq
      %v296 = vshrl.u32 %v295, 7
      %v297 = vsub.s32 %v294, %v296
      %v298 = vrot.slane %v290, %v297
      %v300 = vunpack.c.l.s4 1966171168
      %v301 = vunpack.c.0.s8 %v300
      %v302 = vlaneseq
      %v303 = vshrl.u32 %v302, 7
      %v304 = vsub.s32 %v301, %v303
      %v305 = vrot.slane %v291, %v304
      %v306 = vcombine.high %v298, %v298
      %v307 = vcombine.high %v305, %v305
      %v309 = vunpack.c.l.s4 1966171168
      %v310 = vunpack.c.0.s8 %v309
      %v311 = vlaneseq
      %v312 = vshrl.u32 %v311, 7
      %v313 = vsub.s32 %v310, %v312
      %v314 = vrot.slane %v177, %v313
      %v315 = vcombine.high %v314, %v314
      %v317 = vunpack.c.l.s4 1966171168
      %v318 = vunpack.c.0.s8 %v317
      %v319 = vlaneseq
      %v320 = vshrl.u32 %v319, 7
      %v321 = vsub.s32 %v318, %v320
      %v322 = vrot.slane %v314, %v321
      %v324 = vunpack.c.l.s4 1966171168
      %v325 = vunpack.c.0.s8 %v324
      %v326 = vlaneseq
      %v327 = vshrl.u32 %v326, 7
      %v328 = vsub.s32 %v325, %v327
      %v329 = vrot.slane %v315, %v328
      %v330 = vcombine.high %v322, %v322
      %v331 = vcombine.high %v329, %v329
      %v333 = vunpack.c.l.s4 1966171168
      %v334 = vunpack.c.0.s8 %v333
      %v335 = vlaneseq
      %v336 = vshrl.u32 %v335, 7
      %v337 = vsub.s32 %v334, %v336
      %v338 = vrot.slane %v178, %v337
      %v339 = vcombine.high %v338, %v338
      %v341 = vunpack.c.l.s4 1966171168
      %v342 = vunpack.c.0.s8 %v341
      %v343 = vlaneseq
      %v344 = vshrl.u32 %v343, 7
      %v345 = vsub.s32 %v342, %v344
      %v346 = vrot.slane %v338, %v345
      %v348 = vunpack.c.l.s4 1966171168
      %v349 = vunpack.c.0.s8 %v348
      %v350 = vlaneseq
      %v351 = vshrl.u32 %v350, 7
      %v352 = vsub.s32 %v349, %v351
      %v353 = vrot.slane %v339, %v352
      %v354 = vcombine.high %v346, %v346
      %v355 = vcombine.high %v353, %v353
      %v357 = vunpack.c.l.s4 1966171168
      %v358 = vunpack.c.0.s8 %v357
      %v359 = vlaneseq
      %v360 = vshrl.u32 %v359, 7
      %v361 = vsub.s32 %v358, %v360
      %v362 = vrot.slane %v179, %v361
      %v363 = vcombine.high %v362, %v362
      %v365 = vunpack.c.l.s4 1966171168
      %v366 = vunpack.c.0.s8 %v365
      %v367 = vlaneseq
      %v368 = vshrl.u32 %v367, 7
      %v369 = vsub.s32 %v366, %v368
      %v370 = vrot.slane %v362, %v369
      %v372 = vunpack.c.l.s4 1966171168
      %v373 = vunpack.c.0.s8 %v372
      %v374 = vlaneseq
      %v375 = vshrl.u32 %v374, 7
      %v376 = vsub.s32 %v373, %v375
      %v377 = vrot.slane %v363, %v376
      %v378 = vcombine.high %v370, %v370
      %v379 = vcombine.high %v377, %v377
      %v380 = vunpack.i.l.s16 %v202
      %v381 = vunpack.i.h.s16 %v202
      %v382 = vunpack.i.l.s16 %v209
      %v383 = vunpack.i.h.s16 %v209
      %v384 = vunpack.i.l.s16 %v210
      %v385 = vunpack.i.h.s16 %v210
      %v386 = vunpack.i.l.s16 %v211
      %v387 = vunpack.i.h.s16 %v211
      %v388 = vunpack.i.l.s16 %v226
      %v389 = vunpack.i.h.s16 %v226
      %v390 = vunpack.i.l.s16 %v233
      %v391 = vunpack.i.h.s16 %v233
      %v392 = vunpack.i.l.s16 %v234
      %v393 = vunpack.i.h.s16 %v234
      %v394 = vunpack.i.l.s16 %v235
      %v395 = vunpack.i.h.s16 %v235
      %v396 = vunpack.i.l.s16 %v250
      %v397 = vunpack.i.h.s16 %v250
      %v398 = vunpack.i.l.s16 %v257
      %v399 = vunpack.i.h.s16 %v257
      %v400 = vunpack.i.l.s16 %v258
      %v401 = vunpack.i.h.s16 %v258
      %v402 = vunpack.i.l.s16 %v259
      %v403 = vunpack.i.h.s16 %v259
      %v404 = vunpack.i.l.s16 %v274
      %v405 = vunpack.i.h.s16 %v274
      %v406 = vunpack.i.l.s16 %v281
      %v407 = vunpack.i.h.s16 %v281
      %v408 = vunpack.i.l.s16 %v282
      %v409 = vunpack.i.h.s16 %v282
      %v410 = vunpack.i.l.s16 %v283
      %v411 = vunpack.i.h.s16 %v283
      %v412 = vunpack.i.l.s16 %v298
      %v413 = vunpack.i.h.s16 %v298
      %v414 = vunpack.i.l.s16 %v305
      %v415 = vunpack.i.h.s16 %v305
      %v416 = vunpack.i.l.s16 %v306
      %v417 = vunpack.i.h.s16 %v306
      %v418 = vunpack.i.l.s16 %v307
      %v419 = vunpack.i.h.s16 %v307
      %v420 = vunpack.i.l.s16 %v322
      %v421 = vunpack.i.h.s16 %v322
      %v422 = vunpack.i.l.s16 %v329
      %v423 = vunpack.i.h.s16 %v329
      %v424 = vunpack.i.l.s16 %v330
      %v425 = vunpack.i.h.s16 %v330
      %v426 = vunpack.i.l.s16 %v331
      %v427 = vunpack.i.h.s16 %v331
      %v428 = vunpack.i.l.s16 %v346
      %v429 = vunpack.i.h.s16 %v346
      %v430 = vunpack.i.l.s16 %v353
      %v431 = vunpack.i.h.s16 %v353
      %v432 = vunpack.i.l.s16 %v354
      %v433 = vunpack.i.h.s16 %v354
      %v434 = vunpack.i.l.s16 %v355
      %v435 = vunpack.i.h.s16 %v355
      %v436 = vunpack.i.l.s16 %v370
      %v437 = vunpack.i.h.s16 %v370
      %v438 = vunpack.i.l.s16 %v377
      %v439 = vunpack.i.h.s16 %v377
      %v440 = vunpack.i.l.s16 %v378
      %v441 = vunpack.i.h.s16 %v378
      %v442 = vunpack.i.l.s16 %v379
      %v443 = vunpack.i.h.s16 %v379
      %v444 = vpack.i.b16 %v380, %v380
      %v445 = vpack.i.b16 %v381, %v381
      %v446 = vpack.i.b16 %v382, %v382
      %v447 = vpack.i.b16 %v383, %v383
      %v448 = vpack.i.b16 %v384, %v384
      %v449 = vpack.i.b16 %v385, %v385
      %v450 = vpack.i.b16 %v386, %v386
      %v451 = vpack.i.b16 %v387, %v387
      %v452 = vpack.i.b16 %v388, %v388
      %v453 = vpack.i.b16 %v389, %v389
      %v454 = vpack.i.b16 %v390, %v390
      %v455 = vpack.i.b16 %v391, %v391
      %v456 = vpack.i.b16 %v392, %v392
      %v457 = vpack.i.b16 %v393, %v393
      %v458 = vpack.i.b16 %v394, %v394
      %v459 = vpack.i.b16 %v395, %v395
      %v460 = vpack.i.b16 %v396, %v396
      %v461 = vpack.i.b16 %v397, %v397
      %v462 = vpack.i.b16 %v398, %v398
      %v463 = vpack.i.b16 %v399, %v399
      %v464 = vpack.i.b16 %v400, %v400
      %v465 = vpack.i.b16 %v401, %v401
      %v466 = vpack.i.b16 %v402, %v402
      %v467 = vpack.i.b16 %v403, %v403
      %v468 = vpack.i.b16 %v404, %v404
      %v469 = vpack.i.b16 %v405, %v405
      %v470 = vpack.i.b16 %v406, %v406
      %v471 = vpack.i.b16 %v407, %v407
      %v472 = vpack.i.b16 %v408, %v408
      %v473 = vpack.i.b16 %v409, %v409
      %v474 = vpack.i.b16 %v410, %v410
      %v475 = vpack.i.b16 %v411, %v411
      %v476 = vpack.i.b16 %v412, %v412
      %v477 = vpack.i.b16 %v413, %v413
      %v478 = vpack.i.b16 %v414, %v414
      %v479 = vpack.i.b16 %v415, %v415
      %v480 = vpack.i.b16 %v416, %v416
      %v481 = vpack.i.b16 %v417, %v417
      %v482 = vpack.i.b16 %v418, %v418
      %v483 = vpack.i.b16 %v419, %v419
      %v484 = vpack.i.b16 %v420, %v420
      %v485 = vpack.i.b16 %v421, %v421
      %v486 = vpack.i.b16 %v422, %v422
      %v487 = vpack.i.b16 %v423, %v423
      %v488 = vpack.i.b16 %v424, %v424
      %v489 = vpack.i.b16 %v425, %v425
      %v490 = vpack.i.b16 %v426, %v426
      %v491 = vpack.i.b16 %v427, %v427
      %v492 = vpack.i.b16 %v428, %v428
      %v493 = vpack.i.b16 %v429, %v429
      %v494 = vpack.i.b16 %v430, %v430
      %v495 = vpack.i.b16 %v431, %v431
      %v496 = vpack.i.b16 %v432, %v432
      %v497 = vpack.i.b16 %v433, %v433
      %v498 = vpack.i.b16 %v434, %v434
      %v499 = vpack.i.b16 %v435, %v435
      %v500 = vpack.i.b16 %v436, %v436
      %v501 = vpack.i.b16 %v437, %v437
      %v502 = vpack.i.b16 %v438, %v438
      %v503 = vpack.i.b16 %v439, %v439
      %v504 = vpack.i.b16 %v440, %v440
      %v505 = vpack.i.b16 %v441, %v441
      %v506 = vpack.i.b16 %v442, %v442
      %v507 = vpack.i.b16 %v443, %v443
      %v508 = vlaneseq
      %v509 = vshrl.u32 %v508, 7
      %v510 = vsub.s32 0, %v509
      %v511 = vrot.slane %v444, %v510
      %v512 = vlaneseq
      %v513 = vshrl.u32 %v512, 7
      %v514 = vsub.s32 0, %v513
      %v515 = vrot.slane %v445, %v514
      %v516 = vlaneseq
      %v517 = vshrl.u32 %v516, 7
      %v518 = vsub.s32 0, %v517
      %v519 = vrot.slane %v446, %v518
      %v520 = vlaneseq
      %v521 = vshrl.u32 %v520, 7
      %v522 = vsub.s32 0, %v521
      %v523 = vrot.slane %v447, %v522
      %v524 = vlaneseq
      %v525 = vshrl.u32 %v524, 7
      %v526 = vsub.s32 0, %v525
      %v527 = vrot.slane %v448, %v526
      %v528 = vlaneseq
      %v529 = vshrl.u32 %v528, 7
      %v530 = vsub.s32 0, %v529
      %v531 = vrot.slane %v449, %v530
      %v532 = vlaneseq
      %v533 = vshrl.u32 %v532, 7
      %v534 = vsub.s32 0, %v533
      %v535 = vrot.slane %v450, %v534
      %v536 = vlaneseq
      %v537 = vshrl.u32 %v536, 7
      %v538 = vsub.s32 0, %v537
      %v539 = vrot.slane %v451, %v538
      %v540 = vlaneseq
      %v541 = vshrl.u32 %v540, 7
      %v542 = vsub.s32 0, %v541
      %v543 = vrot.slane %v452, %v542
      %v544 = vlaneseq
      %v545 = vshrl.u32 %v544, 7
      %v546 = vsub.s32 0, %v545
      %v547 = vrot.slane %v453, %v546
      %v548 = vlaneseq
      %v549 = vshrl.u32 %v548, 7
      %v550 = vsub.s32 0, %v549
      %v551 = vrot.slane %v454, %v550
      %v552 = vlaneseq
      %v553 = vshrl.u32 %v552, 7
      %v554 = vsub.s32 0, %v553
      %v555 = vrot.slane %v455, %v554
      %v556 = vlaneseq
      %v557 = vshrl.u32 %v556, 7
      %v558 = vsub.s32 0, %v557
      %v559 = vrot.slane %v456, %v558
      %v560 = vlaneseq
      %v561 = vshrl.u32 %v560, 7
      %v562 = vsub.s32 0, %v561
      %v563 = vrot.slane %v457, %v562
      %v564 = vlaneseq
      %v565 = vshrl.u32 %v564, 7
      %v566 = vsub.s32 0, %v565
      %v567 = vrot.slane %v458, %v566
      %v568 = vlaneseq
      %v569 = vshrl.u32 %v568, 7
      %v570 = vsub.s32 0, %v569
      %v571 = vrot.slane %v459, %v570
      %v572 = vlaneseq
      %v573 = vshrl.u32 %v572, 7
      %v574 = vsub.s32 0, %v573
      %v575 = vrot.slane %v460, %v574
      %v576 = vlaneseq
      %v577 = vshrl.u32 %v576, 7
      %v578 = vsub.s32 0, %v577
      %v579 = vrot.slane %v461, %v578
      %v580 = vlaneseq
      %v581 = vshrl.u32 %v580, 7
      %v582 = vsub.s32 0, %v581
      %v583 = vrot.slane %v462, %v582
      %v584 = vlaneseq
      %v585 = vshrl.u32 %v584, 7
      %v586 = vsub.s32 0, %v585
      %v587 = vrot.slane %v463, %v586
      %v588 = vlaneseq
      %v589 = vshrl.u32 %v588, 7
      %v590 = vsub.s32 0, %v589
      %v591 = vrot.slane %v464, %v590
      %v592 = vlaneseq
      %v593 = vshrl.u32 %v592, 7
      %v594 = vsub.s32 0, %v593
      %v595 = vrot.slane %v465, %v594
      %v596 = vlaneseq
      %v597 = vshrl.u32 %v596, 7
      %v598 = vsub.s32 0, %v597
      %v599 = vrot.slane %v466, %v598
      %v600 = vlaneseq
      %v601 = vshrl.u32 %v600, 7
      %v602 = vsub.s32 0, %v601
      %v603 = vrot.slane %v467, %v602
      %v604 = vlaneseq
      %v605 = vshrl.u32 %v604, 7
      %v606 = vsub.s32 0, %v605
      %v607 = vrot.slane %v468, %v606
      %v608 = vlaneseq
      %v609 = vshrl.u32 %v608, 7
      %v610 = vsub.s32 0, %v609
      %v611 = vrot.slane %v469, %v610
      %v612 = vlaneseq
      %v613 = vshrl.u32 %v612, 7
      %v614 = vsub.s32 0, %v613
      %v615 = vrot.slane %v470, %v614
      %v616 = vlaneseq
      %v617 = vshrl.u32 %v616, 7
      %v618 = vsub.s32 0, %v617
      %v619 = vrot.slane %v471, %v618
      %v620 = vlaneseq
      %v621 = vshrl.u32 %v620, 7
      %v622 = vsub.s32 0, %v621
      %v623 = vrot.slane %v472, %v622
      %v624 = vlaneseq
      %v625 = vshrl.u32 %v624, 7
      %v626 = vsub.s32 0, %v625
      %v627 = vrot.slane %v473, %v626
      %v628 = vlaneseq
      %v629 = vshrl.u32 %v628, 7
      %v630 = vsub.s32 0, %v629
      %v631 = vrot.slane %v474, %v630
      %v632 = vlaneseq
      %v633 = vshrl.u32 %v632, 7
      %v634 = vsub.s32 0, %v633
      %v635 = vrot.slane %v475, %v634
      %v636 = vlaneseq
      %v637 = vshrl.u32 %v636, 7
      %v638 = vsub.s32 0, %v637
      %v639 = vrot.slane %v476, %v638
      %v640 = vlaneseq
      %v641 = vshrl.u32 %v640, 7
      %v642 = vsub.s32 0, %v641
      %v643 = vrot.slane %v477, %v642
      %v644 = vlaneseq
      %v645 = vshrl.u32 %v644, 7
      %v646 = vsub.s32 0, %v645
      %v647 = vrot.slane %v478, %v646
      %v648 = vlaneseq
      %v649 = vshrl.u32 %v648, 7
      %v650 = vsub.s32 0, %v649
      %v651 = vrot.slane %v479, %v650
      %v652 = vlaneseq
      %v653 = vshrl.u32 %v652, 7
      %v654 = vsub.s32 0, %v653
      %v655 = vrot.slane %v480, %v654
      %v656 = vlaneseq
      %v657 = vshrl.u32 %v656, 7
      %v658 = vsub.s32 0, %v657
      %v659 = vrot.slane %v481, %v658
      %v660 = vlaneseq
      %v661 = vshrl.u32 %v660, 7
      %v662 = vsub.s32 0, %v661
      %v663 = vrot.slane %v482, %v662
      %v664 = vlaneseq
      %v665 = vshrl.u32 %v664, 7
      %v666 = vsub.s32 0, %v665
      %v667 = vrot.slane %v483, %v666
      %v668 = vlaneseq
      %v669 = vshrl.u32 %v668, 7
      %v670 = vsub.s32 0, %v669
      %v671 = vrot.slane %v484, %v670
      %v672 = vlaneseq
      %v673 = vshrl.u32 %v672, 7
      %v674 = vsub.s32 0, %v673
      %v675 = vrot.slane %v485, %v674
      %v676 = vlaneseq
      %v677 = vshrl.u32 %v676, 7
      %v678 = vsub.s32 0, %v677
      %v679 = vrot.slane %v486, %v678
      %v680 = vlaneseq
      %v681 = vshrl.u32 %v680, 7
      %v682 = vsub.s32 0, %v681
      %v683 = vrot.slane %v487, %v682
      %v684 = vlaneseq
      %v685 = vshrl.u32 %v684, 7
      %v686 = vsub.s32 0, %v685
      %v687 = vrot.slane %v488, %v686
      %v688 = vlaneseq
      %v689 = vshrl.u32 %v688, 7
      %v690 = vsub.s32 0, %v689
      %v691 = vrot.slane %v489, %v690
      %v692 = vlaneseq
      %v693 = vshrl.u32 %v692, 7
      %v694 = vsub.s32 0, %v693
      %v695 = vrot.slane %v490, %v694
      %v696 = vlaneseq
      %v697 = vshrl.u32 %v696, 7
      %v698 = vsub.s32 0, %v697
      %v699 = vrot.slane %v491, %v698
      %v700 = vlaneseq
      %v701 = vshrl.u32 %v700, 7
      %v702 = vsub.s32 0, %v701
      %v703 = vrot.slane %v492, %v702
      %v704 = vlaneseq
      %v705 = vshrl.u32 %v704, 7
      %v706 = vsub.s32 0, %v705
      %v707 = vrot.slane %v493, %v706
      %v708 = vlaneseq
      %v709 = vshrl.u32 %v708, 7
      %v710 = vsub.s32 0, %v709
      %v711 = vrot.slane %v494, %v710
      %v712 = vlaneseq
      %v713 = vshrl.u32 %v712, 7
      %v714 = vsub.s32 0, %v713
      %v715 = vrot.slane %v495, %v714
      %v716 = vlaneseq
      %v717 = vshrl.u32 %v716, 7
      %v718 = vsub.s32 0, %v717
      %v719 = vrot.slane %v496, %v718
      %v720 = vlaneseq
      %v721 = vshrl.u32 %v720, 7
      %v722 = vsub.s32 0, %v721
      %v723 = vrot.slane %v497, %v722
      %v724 = vlaneseq
      %v725 = vshrl.u32 %v724, 7
      %v726 = vsub.s32 0, %v725
      %v727 = vrot.slane %v498, %v726
      %v728 = vlaneseq
      %v729 = vshrl.u32 %v728, 7
      %v730 = vsub.s32 0, %v729
      %v731 = vrot.slane %v499, %v730
      %v732 = vlaneseq
      %v733 = vshrl.u32 %v732, 7
      %v734 = vsub.s32 0, %v733
      %v735 = vrot.slane %v500, %v734
      %v736 = vlaneseq
      %v737 = vshrl.u32 %v736, 7
      %v738 = vsub.s32 0, %v737
      %v739 = vrot.slane %v501, %v738
      %v740 = vlaneseq
      %v741 = vshrl.u32 %v740, 7
      %v742 = vsub.s32 0, %v741
      %v743 = vrot.slane %v502, %v742
      %v744 = vlaneseq
      %v745 = vshrl.u32 %v744, 7
      %v746 = vsub.s32 0, %v745
      %v747 = vrot.slane %v503, %v746
      %v748 = vlaneseq
      %v749 = vshrl.u32 %v748, 7
      %v750 = vsub.s32 0, %v749
      %v751 = vrot.slane %v504, %v750
      %v752 = vlaneseq
      %v753 = vshrl.u32 %v752, 7
      %v754 = vsub.s32 0, %v753
      %v755 = vrot.slane %v505, %v754
      %v756 = vlaneseq
      %v757 = vshrl.u32 %v756, 7
      %v758 = vsub.s32 0, %v757
      %v759 = vrot.slane %v506, %v758
      %v760 = vlaneseq
      %v761 = vshrl.u32 %v760, 7
      %v762 = vsub.s32 0, %v761
      %v763 = vrot.slane %v507, %v762
      %v765 = vpack.i.b16 %v511, %v511
      %v767 = vlaneseq
      %v768 = vshrl.u32 %v767, 7
      %v769 = vsub.s32 0, %v768
      %v770 = vrot.slane %v765, %v769
      %v772 = vpack.i.b16 %v515, %v515
      %v774 = vlaneseq
      %v775 = vshrl.u32 %v774, 7
      %v776 = vsub.s32 0, %v775
      %v777 = vrot.slane %v772, %v776
      %v779 = vpack.i.b16 %v519, %v519
      %v781 = vlaneseq
      %v782 = vshrl.u32 %v781, 7
      %v783 = vsub.s32 0, %v782
      %v784 = vrot.slane %v779, %v783
      %v786 = vpack.i.b16 %v523, %v523
      %v788 = vlaneseq
      %v789 = vshrl.u32 %v788, 7
      %v790 = vsub.s32 0, %v789
      %v791 = vrot.slane %v786, %v790
      %v793 = vpack.i.b16 %v527, %v527
      %v795 = vlaneseq
      %v796 = vshrl.u32 %v795, 7
      %v797 = vsub.s32 0, %v796
      %v798 = vrot.slane %v793, %v797
      %v800 = vpack.i.b16 %v531, %v531
      %v802 = vlaneseq
      %v803 = vshrl.u32 %v802, 7
      %v804 = vsub.s32 0, %v803
      %v805 = vrot.slane %v800, %v804
      %v807 = vpack.i.b16 %v535, %v535
      %v809 = vlaneseq
      %v810 = vshrl.u32 %v809, 7
      %v811 = vsub.s32 0, %v810
      %v812 = vrot.slane %v807, %v811
      %v814 = vpack.i.b16 %v539, %v539
      %v816 = vlaneseq
      %v817 = vshrl.u32 %v816, 7
      %v818 = vsub.s32 0, %v817
      %v819 = vrot.slane %v814, %v818
      %v821 = vpack.i.b16 %v543, %v543
      %v823 = vlaneseq
      %v824 = vshrl.u32 %v823, 7
      %v825 = vsub.s32 0, %v824
      %v826 = vrot.slane %v821, %v825
      %v828 = vpack.i.b16 %v547, %v547
      %v830 = vlaneseq
      %v831 = vshrl.u32 %v830, 7
      %v832 = vsub.s32 0, %v831
      %v833 = vrot.slane %v828, %v832
      %v835 = vpack.i.b16 %v551, %v551
      %v837 = vlaneseq
      %v838 = vshrl.u32 %v837, 7
      %v839 = vsub.s32 0, %v838
      %v840 = vrot.slane %v835, %v839
      %v842 = vpack.i.b16 %v555, %v555
      %v844 = vlaneseq
      %v845 = vshrl.u32 %v844, 7
      %v846 = vsub.s32 0, %v845
      %v847 = vrot.slane %v842, %v846
      %v849 = vpack.i.b16 %v559, %v559
      %v851 = vlaneseq
      %v852 = vshrl.u32 %v851, 7
      %v853 = vsub.s32 0, %v852
      %v854 = vrot.slane %v849, %v853
      %v856 = vpack.i.b16 %v563, %v563
      %v858 = vlaneseq
      %v859 = vshrl.u32 %v858, 7
      %v860 = vsub.s32 0, %v859
      %v861 = vrot.slane %v856, %v860
      %v863 = vpack.i.b16 %v567, %v567
      %v865 = vlaneseq
      %v866 = vshrl.u32 %v865, 7
      %v867 = vsub.s32 0, %v866
      %v868 = vrot.slane %v863, %v867
      %v870 = vpack.i.b16 %v571, %v571
      %v872 = vlaneseq
      %v873 = vshrl.u32 %v872, 7
      %v874 = vsub.s32 0, %v873
      %v875 = vrot.slane %v870, %v874
      %v877 = vpack.i.b16 %v575, %v575
      %v879 = vlaneseq
      %v880 = vshrl.u32 %v879, 7
      %v881 = vsub.s32 0, %v880
      %v882 = vrot.slane %v877, %v881
      %v884 = vpack.i.b16 %v579, %v579
      %v886 = vlaneseq
      %v887 = vshrl.u32 %v886, 7
      %v888 = vsub.s32 0, %v887
      %v889 = vrot.slane %v884, %v888
      %v891 = vpack.i.b16 %v583, %v583
      %v893 = vlaneseq
      %v894 = vshrl.u32 %v893, 7
      %v895 = vsub.s32 0, %v894
      %v896 = vrot.slane %v891, %v895
      %v898 = vpack.i.b16 %v587, %v587
      %v900 = vlaneseq
      %v901 = vshrl.u32 %v900, 7
      %v902 = vsub.s32 0, %v901
      %v903 = vrot.slane %v898, %v902
      %v905 = vpack.i.b16 %v591, %v591
      %v907 = vlaneseq
      %v908 = vshrl.u32 %v907, 7
      %v909 = vsub.s32 0, %v908
      %v910 = vrot.slane %v905, %v909
      %v912 = vpack.i.b16 %v595, %v595
      %v914 = vlaneseq
      %v915 = vshrl.u32 %v914, 7
      %v916 = vsub.s32 0, %v915
      %v917 = vrot.slane %v912, %v916
      %v919 = vpack.i.b16 %v599, %v599
      %v921 = vlaneseq
      %v922 = vshrl.u32 %v921, 7
      %v923 = vsub.s32 0, %v922
      %v924 = vrot.slane %v919, %v923
      %v926 = vpack.i.b16 %v603, %v603
      %v928 = vlaneseq
      %v929 = vshrl.u32 %v928, 7
      %v930 = vsub.s32 0, %v929
      %v931 = vrot.slane %v926, %v930
      %v933 = vpack.i.b16 %v607, %v607
      %v935 = vlaneseq
      %v936 = vshrl.u32 %v935, 7
      %v937 = vsub.s32 0, %v936
      %v938 = vrot.slane %v933, %v937
      %v940 = vpack.i.b16 %v611, %v611
      %v942 = vlaneseq
      %v943 = vshrl.u32 %v942, 7
      %v944 = vsub.s32 0, %v943
      %v945 = vrot.slane %v940, %v944
      %v947 = vpack.i.b16 %v615, %v615
      %v949 = vlaneseq
      %v950 = vshrl.u32 %v949, 7
      %v951 = vsub.s32 0, %v950
      %v952 = vrot.slane %v947, %v951
      %v954 = vpack.i.b16 %v619, %v619
      %v956 = vlaneseq
      %v957 = vshrl.u32 %v956, 7
      %v958 = vsub.s32 0, %v957
      %v959 = vrot.slane %v954, %v958
      %v961 = vpack.i.b16 %v623, %v623
      %v963 = vlaneseq
      %v964 = vshrl.u32 %v963, 7
      %v965 = vsub.s32 0, %v964
      %v966 = vrot.slane %v961, %v965
      %v968 = vpack.i.b16 %v627, %v627
      %v970 = vlaneseq
      %v971 = vshrl.u32 %v970, 7
      %v972 = vsub.s32 0, %v971
      %v973 = vrot.slane %v968, %v972
      %v975 = vpack.i.b16 %v631, %v631
      %v977 = vlaneseq
      %v978 = vshrl.u32 %v977, 7
      %v979 = vsub.s32 0, %v978
      %v980 = vrot.slane %v975, %v979
      %v982 = vpack.i.b16 %v635, %v635
      %v984 = vlaneseq
      %v985 = vshrl.u32 %v984, 7
      %v986 = vsub.s32 0, %v985
      %v987 = vrot.slane %v982, %v986
      %v989 = vpack.i.b16 %v639, %v639
      %v991 = vlaneseq
      %v992 = vshrl.u32 %v991, 7
      %v993 = vsub.s32 0, %v992
      %v994 = vrot.slane %v989, %v993
      %v996 = vpack.i.b16 %v643, %v643
      %v998 = vlaneseq
      %v999 = vshrl.u32 %v998, 7
      %v1000 = vsub.s32 0, %v999
      %v1001 = vrot.slane %v996, %v1000
      %v1003 = vpack.i.b16 %v647, %v647
      %v1005 = vlaneseq
      %v1006 = vshrl.u32 %v1005, 7
      %v1007 = vsub.s32 0, %v1006
      %v1008 = vrot.slane %v1003, %v1007
      %v1010 = vpack.i.b16 %v651, %v651
      %v1012 = vlaneseq
      %v1013 = vshrl.u32 %v1012, 7
      %v1014 = vsub.s32 0, %v1013
      %v1015 = vrot.slane %v1010, %v1014
      %v1017 = vpack.i.b16 %v655, %v655
      %v1019 = vlaneseq
      %v1020 = vshrl.u32 %v1019, 7
      %v1021 = vsub.s32 0, %v1020
      %v1022 = vrot.slane %v1017, %v1021
      %v1024 = vpack.i.b16 %v659, %v659
      %v1026 = vlaneseq
      %v1027 = vshrl.u32 %v1026, 7
      %v1028 = vsub.s32 0, %v1027
      %v1029 = vrot.slane %v1024, %v1028
      %v1031 = vpack.i.b16 %v663, %v663
      %v1033 = vlaneseq
      %v1034 = vshrl.u32 %v1033, 7
      %v1035 = vsub.s32 0, %v1034
      %v1036 = vrot.slane %v1031, %v1035
      %v1038 = vpack.i.b16 %v667, %v667
      %v1040 = vlaneseq
      %v1041 = vshrl.u32 %v1040, 7
      %v1042 = vsub.s32 0, %v1041
      %v1043 = vrot.slane %v1038, %v1042
      %v1045 = vpack.i.b16 %v671, %v671
      %v1047 = vlaneseq
      %v1048 = vshrl.u32 %v1047, 7
      %v1049 = vsub.s32 0, %v1048
      %v1050 = vrot.slane %v1045, %v1049
      %v1052 = vpack.i.b16 %v675, %v675
      %v1054 = vlaneseq
      %v1055 = vshrl.u32 %v1054, 7
      %v1056 = vsub.s32 0, %v1055
      %v1057 = vrot.slane %v1052, %v1056
      %v1059 = vpack.i.b16 %v679, %v679
      %v1061 = vlaneseq
      %v1062 = vshrl.u32 %v1061, 7
      %v1063 = vsub.s32 0, %v1062
      %v1064 = vrot.slane %v1059, %v1063
      %v1066 = vpack.i.b16 %v683, %v683
      %v1068 = vlaneseq
      %v1069 = vshrl.u32 %v1068, 7
      %v1070 = vsub.s32 0, %v1069
      %v1071 = vrot.slane %v1066, %v1070
      %v1073 = vpack.i.b16 %v687, %v687
      %v1075 = vlaneseq
      %v1076 = vshrl.u32 %v1075, 7
      %v1077 = vsub.s32 0, %v1076
      %v1078 = vrot.slane %v1073, %v1077
      %v1080 = vpack.i.b16 %v691, %v691
      %v1082 = vlaneseq
      %v1083 = vshrl.u32 %v1082, 7
      %v1084 = vsub.s32 0, %v1083
      %v1085 = vrot.slane %v1080, %v1084
      %v1087 = vpack.i.b16 %v695, %v695
      %v1089 = vlaneseq
      %v1090 = vshrl.u32 %v1089, 7
      %v1091 = vsub.s32 0, %v1090
      %v1092 = vrot.slane %v1087, %v1091
      %v1094 = vpack.i.b16 %v699, %v699
      %v1096 = vlaneseq
      %v1097 = vshrl.u32 %v1096, 7
      %v1098 = vsub.s32 0, %v1097
      %v1099 = vrot.slane %v1094, %v1098
      %v1101 = vpack.i.b16 %v703, %v703
      %v1103 = vlaneseq
      %v1104 = vshrl.u32 %v1103, 7
      %v1105 = vsub.s32 0, %v1104
      %v1106 = vrot.slane %v1101, %v1105
      %v1108 = vpack.i.b16 %v707, %v707
      %v1110 = vlaneseq
      %v1111 = vshrl.u32 %v1110, 7
      %v1112 = vsub.s32 0, %v1111
      %v1113 = vrot.slane %v1108, %v1112
      %v1115 = vpack.i.b16 %v711, %v711
      %v1117 = vlaneseq
      %v1118 = vshrl.u32 %v1117, 7
      %v1119 = vsub.s32 0, %v1118
      %v1120 = vrot.slane %v1115, %v1119
      %v1122 = vpack.i.b16 %v715, %v715
      %v1124 = vlaneseq
      %v1125 = vshrl.u32 %v1124, 7
      %v1126 = vsub.s32 0, %v1125
      %v1127 = vrot.slane %v1122, %v1126
      %v1129 = vpack.i.b16 %v719, %v719
      %v1131 = vlaneseq
      %v1132 = vshrl.u32 %v1131, 7
      %v1133 = vsub.s32 0, %v1132
      %v1134 = vrot.slane %v1129, %v1133
      %v1136 = vpack.i.b16 %v723, %v723
      %v1138 = vlaneseq
      %v1139 = vshrl.u32 %v1138, 7
      %v1140 = vsub.s32 0, %v1139
      %v1141 = vrot.slane %v1136, %v1140
      %v1143 = vpack.i.b16 %v727, %v727
      %v1145 = vlaneseq
      %v1146 = vshrl.u32 %v1145, 7
      %v1147 = vsub.s32 0, %v1146
      %v1148 = vrot.slane %v1143, %v1147
      %v1150 = vpack.i.b16 %v731, %v731
      %v1152 = vlaneseq
      %v1153 = vshrl.u32 %v1152, 7
      %v1154 = vsub.s32 0, %v1153
      %v1155 = vrot.slane %v1150, %v1154
      %v1157 = vpack.i.b16 %v735, %v735
      %v1159 = vlaneseq
      %v1160 = vshrl.u32 %v1159, 7
      %v1161 = vsub.s32 0, %v1160
      %v1162 = vrot.slane %v1157, %v1161
      %v1164 = vpack.i.b16 %v739, %v739
      %v1166 = vlaneseq
      %v1167 = vshrl.u32 %v1166, 7
      %v1168 = vsub.s32 0, %v1167
      %v1169 = vrot.slane %v1164, %v1168
      %v1171 = vpack.i.b16 %v743, %v743
      %v1173 = vlaneseq
      %v1174 = vshrl.u32 %v1173, 7
      %v1175 = vsub.s32 0, %v1174
      %v1176 = vrot.slane %v1171, %v1175
      %v1178 = vpack.i.b16 %v747, %v747
      %v1180 = vlaneseq
      %v1181 = vshrl.u32 %v1180, 7
      %v1182 = vsub.s32 0, %v1181
      %v1183 = vrot.slane %v1178, %v1182
      %v1185 = vpack.i.b16 %v751, %v751
      %v1187 = vlaneseq
      %v1188 = vshrl.u32 %v1187, 7
      %v1189 = vsub.s32 0, %v1188
      %v1190 = vrot.slane %v1185, %v1189
      %v1192 = vpack.i.b16 %v755, %v755
      %v1194 = vlaneseq
      %v1195 = vshrl.u32 %v1194, 7
      %v1196 = vsub.s32 0, %v1195
      %v1197 = vrot.slane %v1192, %v1196
      %v1199 = vpack.i.b16 %v759, %v759
      %v1201 = vlaneseq
      %v1202 = vshrl.u32 %v1201, 7
      %v1203 = vsub.s32 0, %v1202
      %v1204 = vrot.slane %v1199, %v1203
      %v1206 = vpack.i.b16 %v763, %v763
      %v1208 = vlaneseq
      %v1209 = vshrl.u32 %v1208, 7
      %v1210 = vsub.s32 0, %v1209
      %v1211 = vrot.slane %v1206, %v1210
      %v1276 = vcombine.low %v770, %v777
      %v1277 = vcombine.low %v784, %v791
      %v1278 = vcombine.low %v798, %v805
      %v1279 = vcombine.low %v812, %v819
      %v1281 = vunpack.c.l.s4 1966171168
      %v1282 = vunpack.c.0.s8 %v1281
      %v1283 = vlaneseq
      %v1284 = vshrl.u32 %v1283, 7
      %v1285 = vsub.s32 %v1282, %v1284
      %v1286 = vrot.slane %v1276, %v1285
      %v1288 = vunpack.c.l.s4 1966171168
      %v1289 = vunpack.c.0.s8 %v1288
      %v1290 = vlaneseq
      %v1291 = vshrl.u32 %v1290, 7
      %v1292 = vsub.s32 %v1289, %v1291
      %v1293 = vrot.slane %v1277, %v1292
      %v1295 = vunpack.c.l.s4 1966171168
      %v1296 = vunpack.c.0.s8 %v1295
      %v1297 = vlaneseq
      %v1298 = vshrl.u32 %v1297, 7
      %v1299 = vsub.s32 %v1296, %v1298
      %v1300 = vrot.slane %v1278, %v1299
      %v1302 = vunpack.c.l.s4 1966171168
      %v1303 = vunpack.c.0.s8 %v1302
      %v1304 = vlaneseq
      %v1305 = vshrl.u32 %v1304, 7
      %v1306 = vsub.s32 %v1303, %v1305
      %v1307 = vrot.slane %v1279, %v1306
      %v1308 = vcombine.low %v1286, %v1293
      %v1309 = vcombine.low %v1300, %v1307
      %v1311 = vunpack.c.l.s4 1966171168
      %v1312 = vunpack.c.0.s8 %v1311
      %v1313 = vlaneseq
      %v1314 = vshrl.u32 %v1313, 7
      %v1315 = vsub.s32 %v1312, %v1314
      %v1316 = vrot.slane %v1308, %v1315
      %v1318 = vunpack.c.l.s4 1966171168
      %v1319 = vunpack.c.0.s8 %v1318
      %v1320 = vlaneseq
      %v1321 = vshrl.u32 %v1320, 7
      %v1322 = vsub.s32 %v1319, %v1321
      %v1323 = vrot.slane %v1309, %v1322
      %v1324 = vcombine.low %v1316, %v1323
      %v1325 = vcombine.low %v826, %v833
      %v1326 = vcombine.low %v840, %v847
      %v1327 = vcombine.low %v854, %v861
      %v1328 = vcombine.low %v868, %v875
      %v1330 = vunpack.c.l.s4 1966171168
      %v1331 = vunpack.c.0.s8 %v1330
      %v1332 = vlaneseq
      %v1333 = vshrl.u32 %v1332, 7
      %v1334 = vsub.s32 %v1331, %v1333
      %v1335 = vrot.slane %v1325, %v1334
      %v1337 = vunpack.c.l.s4 1966171168
      %v1338 = vunpack.c.0.s8 %v1337
      %v1339 = vlaneseq
      %v1340 = vshrl.u32 %v1339, 7
      %v1341 = vsub.s32 %v1338, %v1340
      %v1342 = vrot.slane %v1326, %v1341
      %v1344 = vunpack.c.l.s4 1966171168
      %v1345 = vunpack.c.0.s8 %v1344
      %v1346 = vlaneseq
      %v1347 = vshrl.u32 %v1346, 7
      %v1348 = vsub.s32 %v1345, %v1347
      %v1349 = vrot.slane %v1327, %v1348
      %v1351 = vunpack.c.l.s4 1966171168
      %v1352 = vunpack.c.0.s8 %v1351
      %v1353 = vlaneseq
      %v1354 = vshrl.u32 %v1353, 7
      %v1355 = vsub.s32 %v1352, %v1354
      %v1356 = vrot.slane %v1328, %v1355
      %v1357 = vcombine.low %v1335, %v1342
      %v1358 = vcombine.low %v1349, %v1356
      %v1360 = vunpack.c.l.s4 1966171168
      %v1361 = vunpack.c.0.s8 %v1360
      %v1362 = vlaneseq
      %v1363 = vshrl.u32 %v1362, 7
      %v1364 = vsub.s32 %v1361, %v1363
      %v1365 = vrot.slane %v1357, %v1364
      %v1367 = vunpack.c.l.s4 1966171168
      %v1368 = vunpack.c.0.s8 %v1367
      %v1369 = vlaneseq
      %v1370 = vshrl.u32 %v1369, 7
      %v1371 = vsub.s32 %v1368, %v1370
      %v1372 = vrot.slane %v1358, %v1371
      %v1373 = vcombine.low %v1365, %v1372
      %v1374 = vcombine.low %v882, %v889
      %v1375 = vcombine.low %v896, %v903
      %v1376 = vcombine.low %v910, %v917
      %v1377 = vcombine.low %v924, %v931
      %v1379 = vunpack.c.l.s4 1966171168
      %v1380 = vunpack.c.0.s8 %v1379
      %v1381 = vlaneseq
      %v1382 = vshrl.u32 %v1381, 7
      %v1383 = vsub.s32 %v1380, %v1382
      %v1384 = vrot.slane %v1374, %v1383
      %v1386 = vunpack.c.l.s4 1966171168
      %v1387 = vunpack.c.0.s8 %v1386
      %v1388 = vlaneseq
      %v1389 = vshrl.u32 %v1388, 7
      %v1390 = vsub.s32 %v1387, %v1389
      %v1391 = vrot.slane %v1375, %v1390
      %v1393 = vunpack.c.l.s4 1966171168
      %v1394 = vunpack.c.0.s8 %v1393
      %v1395 = vlaneseq
      %v1396 = vshrl.u32 %v1395, 7
      %v1397 = vsub.s32 %v1394, %v1396
      %v1398 = vrot.slane %v1376, %v1397
      %v1400 = vunpack.c.l.s4 1966171168
      %v1401 = vunpack.c.0.s8 %v1400
      %v1402 = vlaneseq
      %v1403 = vshrl.u32 %v1402, 7
      %v1404 = vsub.s32 %v1401, %v1403
      %v1405 = vrot.slane %v1377, %v1404
      %v1406 = vcombine.low %v1384, %v1391
      %v1407 = vcombine.low %v1398, %v1405
      %v1409 = vunpack.c.l.s4 1966171168
      %v1410 = vunpack.c.0.s8 %v1409
      %v1411 = vlaneseq
      %v1412 = vshrl.u32 %v1411, 7
      %v1413 = vsub.s32 %v1410, %v1412
      %v1414 = vrot.slane %v1406, %v1413
      %v1416 = vunpack.c.l.s4 1966171168
      %v1417 = vunpack.c.0.s8 %v1416
      %v1418 = vlaneseq
      %v1419 = vshrl.u32 %v1418, 7
      %v1420 = vsub.s32 %v1417, %v1419
      %v1421 = vrot.slane %v1407, %v1420
      %v1422 = vcombine.low %v1414, %v1421
      %v1423 = vcombine.low %v938, %v945
      %v1424 = vcombine.low %v952, %v959
      %v1425 = vcombine.low %v966, %v973
      %v1426 = vcombine.low %v980, %v987
      %v1428 = vunpack.c.l.s4 1966171168
      %v1429 = vunpack.c.0.s8 %v1428
      %v1430 = vlaneseq
      %v1431 = vshrl.u32 %v1430, 7
      %v1432 = vsub.s32 %v1429, %v1431
      %v1433 = vrot.slane %v1423, %v1432
      %v1435 = vunpack.c.l.s4 1966171168
      %v1436 = vunpack.c.0.s8 %v1435
      %v1437 = vlaneseq
      %v1438 = vshrl.u32 %v1437, 7
      %v1439 = vsub.s32 %v1436, %v1438
      %v1440 = vrot.slane %v1424, %v1439
      %v1442 = vunpack.c.l.s4 1966171168
      %v1443 = vunpack.c.0.s8 %v1442
      %v1444 = vlaneseq
      %v1445 = vshrl.u32 %v1444, 7
      %v1446 = vsub.s32 %v1443, %v1445
      %v1447 = vrot.slane %v1425, %v1446
      %v1449 = vunpack.c.l.s4 1966171168
      %v1450 = vunpack.c.0.s8 %v1449
      %v1451 = vlaneseq
      %v1452 = vshrl.u32 %v1451, 7
      %v1453 = vsub.s32 %v1450, %v1452
      %v1454 = vrot.slane %v1426, %v1453
      %v1455 = vcombine.low %v1433, %v1440
      %v1456 = vcombine.low %v1447, %v1454
      %v1458 = vunpack.c.l.s4 1966171168
      %v1459 = vunpack.c.0.s8 %v1458
      %v1460 = vlaneseq
      %v1461 = vshrl.u32 %v1460, 7
      %v1462 = vsub.s32 %v1459, %v1461
      %v1463 = vrot.slane %v1455, %v1462
      %v1465 = vunpack.c.l.s4 1966171168
      %v1466 = vunpack.c.0.s8 %v1465
      %v1467 = vlaneseq
      %v1468 = vshrl.u32 %v1467, 7
      %v1469 = vsub.s32 %v1466, %v1468
      %v1470 = vrot.slane %v1456, %v1469
      %v1471 = vcombine.low %v1463, %v1470
      %v1472 = vcombine.low %v994, %v1001
      %v1473 = vcombine.low %v1008, %v1015
      %v1474 = vcombine.low %v1022, %v1029
      %v1475 = vcombine.low %v1036, %v1043
      %v1477 = vunpack.c.l.s4 1966171168
      %v1478 = vunpack.c.0.s8 %v1477
      %v1479 = vlaneseq
      %v1480 = vshrl.u32 %v1479, 7
      %v1481 = vsub.s32 %v1478, %v1480
      %v1482 = vrot.slane %v1472, %v1481
      %v1484 = vunpack.c.l.s4 1966171168
      %v1485 = vunpack.c.0.s8 %v1484
      %v1486 = vlaneseq
      %v1487 = vshrl.u32 %v1486, 7
      %v1488 = vsub.s32 %v1485, %v1487
      %v1489 = vrot.slane %v1473, %v1488
      %v1491 = vunpack.c.l.s4 1966171168
      %v1492 = vunpack.c.0.s8 %v1491
      %v1493 = vlaneseq
      %v1494 = vshrl.u32 %v1493, 7
      %v1495 = vsub.s32 %v1492, %v1494
      %v1496 = vrot.slane %v1474, %v1495
      %v1498 = vunpack.c.l.s4 1966171168
      %v1499 = vunpack.c.0.s8 %v1498
      %v1500 = vlaneseq
      %v1501 = vshrl.u32 %v1500, 7
      %v1502 = vsub.s32 %v1499, %v1501
      %v1503 = vrot.slane %v1475, %v1502
      %v1504 = vcombine.low %v1482, %v1489
      %v1505 = vcombine.low %v1496, %v1503
      %v1507 = vunpack.c.l.s4 1966171168
      %v1508 = vunpack.c.0.s8 %v1507
      %v1509 = vlaneseq
      %v1510 = vshrl.u32 %v1509, 7
      %v1511 = vsub.s32 %v1508, %v1510
      %v1512 = vrot.slane %v1504, %v1511
      %v1514 = vunpack.c.l.s4 1966171168
      %v1515 = vunpack.c.0.s8 %v1514
      %v1516 = vlaneseq
      %v1517 = vshrl.u32 %v1516, 7
      %v1518 = vsub.s32 %v1515, %v1517
      %v1519 = vrot.slane %v1505, %v1518
      %v1520 = vcombine.low %v1512, %v1519
      %v1521 = vcombine.low %v1050, %v1057
      %v1522 = vcombine.low %v1064, %v1071
      %v1523 = vcombine.low %v1078, %v1085
      %v1524 = vcombine.low %v1092, %v1099
      %v1526 = vunpack.c.l.s4 1966171168
      %v1527 = vunpack.c.0.s8 %v1526
      %v1528 = vlaneseq
      %v1529 = vshrl.u32 %v1528, 7
      %v1530 = vsub.s32 %v1527, %v1529
      %v1531 = vrot.slane %v1521, %v1530
      %v1533 = vunpack.c.l.s4 1966171168
      %v1534 = vunpack.c.0.s8 %v1533
      %v1535 = vlaneseq
      %v1536 = vshrl.u32 %v1535, 7
      %v1537 = vsub.s32 %v1534, %v1536
      %v1538 = vrot.slane %v1522, %v1537
      %v1540 = vunpack.c.l.s4 1966171168
      %v1541 = vunpack.c.0.s8 %v1540
      %v1542 = vlaneseq
      %v1543 = vshrl.u32 %v1542, 7
      %v1544 = vsub.s32 %v1541, %v1543
      %v1545 = vrot.slane %v1523, %v1544
      %v1547 = vunpack.c.l.s4 1966171168
      %v1548 = vunpack.c.0.s8 %v1547
      %v1549 = vlaneseq
      %v1550 = vshrl.u32 %v1549, 7
      %v1551 = vsub.s32 %v1548, %v1550
      %v1552 = vrot.slane %v1524, %v1551
      %v1553 = vcombine.low %v1531, %v1538
      %v1554 = vcombine.low %v1545, %v1552
      %v1556 = vunpack.c.l.s4 1966171168
      %v1557 = vunpack.c.0.s8 %v1556
      %v1558 = vlaneseq
      %v1559 = vshrl.u32 %v1558, 7
      %v1560 = vsub.s32 %v1557, %v1559
      %v1561 = vrot.slane %v1553, %v1560
      %v1563 = vunpack.c.l.s4 1966171168
      %v1564 = vunpack.c.0.s8 %v1563
      %v1565 = vlaneseq
      %v1566 = vshrl.u32 %v1565, 7
      %v1567 = vsub.s32 %v1564, %v1566
      %v1568 = vrot.slane %v1554, %v1567
      %v1569 = vcombine.low %v1561, %v1568
      %v1570 = vcombine.low %v1106, %v1113
      %v1571 = vcombine.low %v1120, %v1127
      %v1572 = vcombine.low %v1134, %v1141
      %v1573 = vcombine.low %v1148, %v1155
      %v1575 = vunpack.c.l.s4 1966171168
      %v1576 = vunpack.c.0.s8 %v1575
      %v1577 = vlaneseq
      %v1578 = vshrl.u32 %v1577, 7
      %v1579 = vsub.s32 %v1576, %v1578
      %v1580 = vrot.slane %v1570, %v1579
      %v1582 = vunpack.c.l.s4 1966171168
      %v1583 = vunpack.c.0.s8 %v1582
      %v1584 = vlaneseq
      %v1585 = vshrl.u32 %v1584, 7
      %v1586 = vsub.s32 %v1583, %v1585
      %v1587 = vrot.slane %v1571, %v1586
      %v1589 = vunpack.c.l.s4 1966171168
      %v1590 = vunpack.c.0.s8 %v1589
      %v1591 = vlaneseq
      %v1592 = vshrl.u32 %v1591, 7
      %v1593 = vsub.s32 %v1590, %v1592
      %v1594 = vrot.slane %v1572, %v1593
      %v1596 = vunpack.c.l.s4 1966171168
      %v1597 = vunpack.c.0.s8 %v1596
      %v1598 = vlaneseq
      %v1599 = vshrl.u32 %v1598, 7
      %v1600 = vsub.s32 %v1597, %v1599
      %v1601 = vrot.slane %v1573, %v1600
      %v1602 = vcombine.low %v1580, %v1587
      %v1603 = vcombine.low %v1594, %v1601
      %v1605 = vunpack.c.l.s4 1966171168
      %v1606 = vunpack.c.0.s8 %v1605
      %v1607 = vlaneseq
      %v1608 = vshrl.u32 %v1607, 7
      %v1609 = vsub.s32 %v1606, %v1608
      %v1610 = vrot.slane %v1602, %v1609
      %v1612 = vunpack.c.l.s4 1966171168
      %v1613 = vunpack.c.0.s8 %v1612
      %v1614 = vlaneseq
      %v1615 = vshrl.u32 %v1614, 7
      %v1616 = vsub.s32 %v1613, %v1615
      %v1617 = vrot.slane %v1603, %v1616
      %v1618 = vcombine.low %v1610, %v1617
      %v1619 = vcombine.low %v1162, %v1169
      %v1620 = vcombine.low %v1176, %v1183
      %v1621 = vcombine.low %v1190, %v1197
      %v1622 = vcombine.low %v1204, %v1211
      %v1624 = vunpack.c.l.s4 1966171168
      %v1625 = vunpack.c.0.s8 %v1624
      %v1626 = vlaneseq
      %v1627 = vshrl.u32 %v1626, 7
      %v1628 = vsub.s32 %v1625, %v1627
      %v1629 = vrot.slane %v1619, %v1628
      %v1631 = vunpack.c.l.s4 1966171168
      %v1632 = vunpack.c.0.s8 %v1631
      %v1633 = vlaneseq
      %v1634 = vshrl.u32 %v1633, 7
      %v1635 = vsub.s32 %v1632, %v1634
      %v1636 = vrot.slane %v1620, %v1635
      %v1638 = vunpack.c.l.s4 1966171168
      %v1639 = vunpack.c.0.s8 %v1638
      %v1640 = vlaneseq
      %v1641 = vshrl.u32 %v1640, 7
      %v1642 = vsub.s32 %v1639, %v1641
      %v1643 = vrot.slane %v1621, %v1642
      %v1645 = vunpack.c.l.s4 1966171168
      %v1646 = vunpack.c.0.s8 %v1645
      %v1647 = vlaneseq
      %v1648 = vshrl.u32 %v1647, 7
      %v1649 = vsub.s32 %v1646, %v1648
      %v1650 = vrot.slane %v1622, %v1649
      %v1651 = vcombine.low %v1629, %v1636
      %v1652 = vcombine.low %v1643, %v1650
      %v1654 = vunpack.c.l.s4 1966171168
      %v1655 = vunpack.c.0.s8 %v1654
      %v1656 = vlaneseq
      %v1657 = vshrl.u32 %v1656, 7
      %v1658 = vsub.s32 %v1655, %v1657
      %v1659 = vrot.slane %v1651, %v1658
      %v1661 = vunpack.c.l.s4 1966171168
      %v1662 = vunpack.c.0.s8 %v1661
      %v1663 = vlaneseq
      %v1664 = vshrl.u32 %v1663, 7
      %v1665 = vsub.s32 %v1662, %v1664
      %v1666 = vrot.slane %v1652, %v1665
      %v1667 = vcombine.low %v1659, %v1666
      %1668 = vrot.lane.b32.xlu0 %v1324, 32
      %v1669 = vpop.permute.xlu0 %1668
      %1670 = vrot.lane.b32.xlu0 %v1373, 32
      %v1671 = vpop.permute.xlu0 %1670
      %1672 = vrot.lane.b32.xlu0 %v1422, 32
      %v1673 = vpop.permute.xlu0 %1672
      %1674 = vrot.lane.b32.xlu0 %v1471, 32
      %v1675 = vpop.permute.xlu0 %1674
      %1676 = vrot.lane.b32.xlu0 %v1520, 32
      %v1677 = vpop.permute.xlu0 %1676
      %1678 = vrot.lane.b32.xlu0 %v1569, 32
      %v1679 = vpop.permute.xlu0 %1678
      %1680 = vrot.lane.b32.xlu0 %v1618, 32
      %v1681 = vpop.permute.xlu0 %1680
      %1682 = vrot.lane.b32.xlu0 %v1667, 32
      %v1683 = vpop.permute.xlu0 %1682
      %v1685 = vcombine.low 0, 0
      %v1687 = vunpack.c.l.s4 1966171168
      %v1688 = vunpack.c.0.s8 %v1687
      %v1689 = vlaneseq
      %v1690 = vshrl.u32 %v1689, 7
      %v1691 = vsub.s32 %v1688, %v1690
      %v1692 = vrot.slane %v1685, %v1691
      %v1693 = vcombine.low %v1692, %v1692
      %v1695 = vunpack.c.l.s4 1966171168
      %v1696 = vunpack.c.0.s8 %v1695
      %v1697 = vlaneseq
      %v1698 = vshrl.u32 %v1697, 7
      %v1699 = vsub.s32 %v1696, %v1698
      %v1700 = vrot.slane %v1693, %v1699
      %v1701 = vcombine.low %v1700, %v1700
      %1702 = vrot.lane.b32.xlu0 %v1324, 64
      %v1703 = vpop.permute.xlu0 %1702
      %1704 = vrot.lane.b32.xlu0 %v1373, 64
      %v1705 = vpop.permute.xlu0 %1704
      %1706 = vrot.lane.b32.xlu0 %v1422, 64
      %v1707 = vpop.permute.xlu0 %1706
      %1708 = vrot.lane.b32.xlu0 %v1471, 64
      %v1709 = vpop.permute.xlu0 %1708
      %1710 = vrot.lane.b32.xlu0 %v1520, 64
      %v1711 = vpop.permute.xlu0 %1710
      %1712 = vrot.lane.b32.xlu0 %v1569, 64
      %v1713 = vpop.permute.xlu0 %1712
      %1714 = vrot.lane.b32.xlu0 %v1618, 64
      %v1715 = vpop.permute.xlu0 %1714
      %1716 = vrot.lane.b32.xlu0 %v1667, 64
      %v1717 = vpop.permute.xlu0 %1716
      %1718 = vrot.lane.b32.xlu0 %v1701, 64
      %v1719 = vpop.permute.xlu0 %1718
      %vm1720 = vcmask 261120
      %v1723 = vsel %vm1720, 0, %v1669
      %v1725 = vsel %vm1720, %v1324, %v1669
      %v1727 = vsel %vm1720, %v1324, %v1671
      %v1729 = vsel %vm1720, %v1373, %v1671
      %v1731 = vsel %vm1720, %v1373, %v1673
      %v1733 = vsel %vm1720, %v1422, %v1673
      %v1735 = vsel %vm1720, %v1422, %v1675
      %v1737 = vsel %vm1720, %v1471, %v1675
      %v1739 = vsel %vm1720, %v1471, %v1677
      %v1741 = vsel %vm1720, %v1520, %v1677
      %v1743 = vsel %vm1720, %v1520, %v1679
      %v1745 = vsel %vm1720, %v1569, %v1679
      %v1747 = vsel %vm1720, %v1569, %v1681
      %v1749 = vsel %vm1720, %v1618, %v1681
      %v1751 = vsel %vm1720, %v1618, %v1683
      %v1753 = vsel %vm1720, %v1667, %v1683
      %vm1754 = vcmask 523264
      %v1756 = vsel %vm1754, %v1723, %v1703
      %v1758 = vsel %vm1754, %v1725, %v1705
      %v1759 = vsel %vm1754, %v1727, %v1705
      %v1761 = vsel %vm1754, %v1729, %v1707
      %v1762 = vsel %vm1754, %v1731, %v1707
      %v1764 = vsel %vm1754, %v1733, %v1709
      %v1765 = vsel %vm1754, %v1735, %v1709
      %v1767 = vsel %vm1754, %v1737, %v1711
      %v1768 = vsel %vm1754, %v1739, %v1711
      %v1770 = vsel %vm1754, %v1741, %v1713
      %v1771 = vsel %vm1754, %v1743, %v1713
      %v1773 = vsel %vm1754, %v1745, %v1715
      %v1774 = vsel %vm1754, %v1747, %v1715
      %v1776 = vsel %vm1754, %v1749, %v1717
      %v1777 = vsel %vm1754, %v1751, %v1717
      %v1779 = vsel %vm1754, %v1753, %v1719
      %v1780 = vld [vmem:[%s1] sm:$0xf]
      %v1781 = vld [vmem:[%s1 + $0x4] sm:$0xf]
      %v1782 = vld [vmem:[%s1 + $0x8] sm:$0xf]
      %v1783 = vld [vmem:[%s1 + $0xc] sm:$0xf]
      %v1784 = vld [vmem:[%s1 + $0x10] sm:$0xf]
      %v1785 = vld [vmem:[%s1 + $0x14] sm:$0xf]
      %v1786 = vld [vmem:[%s1 + $0x18] sm:$0xf]
      %v1787 = vld [vmem:[%s1 + $0x1c] sm:$0xf]
      %v1788 = vld [vmem:[%s1 + $0x20] sm:$0xf]
      %v1789 = vld [vmem:[%s1 + $0x24] sm:$0xf]
      %v1790 = vld [vmem:[%s1 + $0x28] sm:$0xf]
      %v1791 = vld [vmem:[%s1 + $0x2c] sm:$0xf]
      %v1804 = vunpack.c.l.b16 %v1780
      %v1805 = vunpack.c.l.b16 %v1781
      %v1806 = vunpack.c.l.b16 %v1782
      %v1807 = vunpack.c.l.b16 %v1783
      %v1808 = vunpack.c.l.b16 %v1784
      %v1809 = vunpack.c.l.b16 %v1785
      %v1810 = vunpack.c.l.b16 %v1786
      %v1811 = vunpack.c.l.b16 %v1787
      %v1812 = vunpack.c.l.b16 %v1788
      %v1813 = vunpack.c.l.b16 %v1789
      %v1814 = vunpack.c.l.b16 %v1790
      %v1815 = vunpack.c.l.b16 %v1791
      %v1816 = vpack.c.b16 %v1805, %v1804
      %v1817 = vpack.c.b16 %v1807, %v1806
      %v1818 = vpack.c.b16 %v1809, %v1808
      %v1819 = vpack.c.b16 %v1811, %v1810
      %v1820 = vpack.c.b16 %v1813, %v1812
      %v1821 = vpack.c.b16 %v1815, %v1814
      %vm1828 = vcmask 785408
      %v1829 = vsel %vm1828, %v1756, 0
      %v1831 = vsel %vm1828, %v1758, 0
      %v1833 = vsel %vm1828, %v1759, 0
      %v1835 = vsel %vm1828, %v1761, 0
      %v1837 = vsel %vm1828, %v1762, 0
      %v1839 = vsel %vm1828, %v1764, 0
      %v1841 = vsel %vm1828, %v1765, 0
      %v1843 = vsel %vm1828, %v1767, 0
      %v1845 = vsel %vm1828, %v1768, 0
      %v1847 = vsel %vm1828, %v1770, 0
      %v1849 = vsel %vm1828, %v1771, 0
      %v1851 = vsel %vm1828, %v1773, 0
      %v1853 = vsel %vm1828, %v1774, 0
      %v1855 = vsel %vm1828, %v1776, 0
      %v1857 = vsel %vm1828, %v1777, 0
      %v1859 = vsel %vm1828, %v1779, 0
      %1861 = vmatprep.subr.bf16.mxu0 0
      %1862 = vmatpush1.bf16.msra.mxu0 0
      %1863 = vmatprep.subr.bf16.mxu0 0
      %1864 = vmatpush1.bf16.msra.mxu0 0
      %1865 = vmatprep.subr.bf16.mxu0 0
      %1866 = vmatpush1.bf16.msra.mxu0 %v1821
      %1867 = vmatprep.subr.bf16.mxu0 0
      %1868 = vmatpush1.bf16.msra.mxu0 %v1820
      %1869 = vmatprep.subr.bf16.mxu0 0
      %1870 = vmatpush1.bf16.msra.mxu0 %v1819
      %1871 = vmatprep.subr.bf16.mxu0 0
      %1872 = vmatpush1.bf16.msra.mxu0 %v1818
      %1873 = vmatprep.subr.bf16.mxu0 0
      %1874 = vmatpush1.bf16.msra.mxu0 %v1817
      %1875 = vmatprep.subr.bf16.mxu0 0
      %1876 = vmatpush1.bf16.msra.mxu0 %v1816
      %1877 = vmatprep.subr.bf16.mxu0 0
      %1878 = vmatpush2.bf16.msra.mxu0 0
      %1879 = vmatprep.subr.bf16.mxu0 0
      %1880 = vmatpush2.bf16.msra.mxu0 0
      %1881 = vmatprep.subr.bf16.mxu0 0
      %1882 = vmatpush2.bf16.msra.mxu0 0
      %1883 = vmatprep.subr.bf16.mxu0 0
      %1884 = vmatpush2.bf16.msra.mxu0 0
      %1885 = vmatprep.subr.bf16.mxu0 0
      %1886 = vmatpush2.bf16.msra.mxu0 0
      %1887 = vmatprep.subr.bf16.mxu0 0
      %1888 = vmatpush2.bf16.msra.mxu0 0
      %1889 = vmatprep.subr.bf16.mxu0 0
      %1890 = vmatpush2.bf16.msra.mxu0 0
      %1891 = vmatprep.subr.bf16.mxu0 0
      %1892 = vmatpush2.bf16.msra.mxu0 0
      %1893 = vmatprep.mubr.bf16.mxu0 0
      %1894 = vmatmul.mubr.bf16.gmra.mxu0 %v1829
      %v1895 = vpop.f32.mrf.mxu0
      %v1896 = vadd.f32 0.0, %v1895
      %v1897 = vpop.f32.mrf.mxu0
      %v1898 = vpop.f32.mrf.mxu0
      %v1899 = vadd.f32 0.0, %v1898
      %v1900 = vpop.f32.mrf.mxu0
      %1901 = vmatprep.mubr.bf16.mxu0 0
      %1902 = vmatmul.mubr.bf16.gmra.mxu0 %v1831
      %v1903 = vpop.f32.mrf.mxu0
      %v1904 = vadd.f32 0.0, %v1903
      %v1905 = vpop.f32.mrf.mxu0
      %v1906 = vpop.f32.mrf.mxu0
      %v1907 = vadd.f32 0.0, %v1906
      %v1908 = vpop.f32.mrf.mxu0
      %1909 = vmatprep.mubr.bf16.mxu0 0
      %1910 = vmatmul.mubr.bf16.gmra.mxu0 %v1833
      %v1911 = vpop.f32.mrf.mxu0
      %v1912 = vadd.f32 0.0, %v1911
      %v1913 = vpop.f32.mrf.mxu0
      %v1914 = vpop.f32.mrf.mxu0
      %v1915 = vadd.f32 0.0, %v1914
      %v1916 = vpop.f32.mrf.mxu0
      %1917 = vmatprep.mubr.bf16.mxu0 0
      %1918 = vmatmul.mubr.bf16.gmra.mxu0 %v1835
      %v1919 = vpop.f32.mrf.mxu0
      %v1920 = vadd.f32 0.0, %v1919
      %v1921 = vpop.f32.mrf.mxu0
      %v1922 = vpop.f32.mrf.mxu0
      %v1923 = vadd.f32 0.0, %v1922
      %v1924 = vpop.f32.mrf.mxu0
      %1925 = vmatprep.mubr.bf16.mxu0 0
      %1926 = vmatmul.mubr.bf16.gmra.mxu0 %v1837
      %v1927 = vpop.f32.mrf.mxu0
      %v1928 = vadd.f32 0.0, %v1927
      %v1929 = vpop.f32.mrf.mxu0
      %v1930 = vpop.f32.mrf.mxu0
      %v1931 = vadd.f32 0.0, %v1930
      %v1932 = vpop.f32.mrf.mxu0
      %1933 = vmatprep.mubr.bf16.mxu0 0
      %1934 = vmatmul.mubr.bf16.gmra.mxu0 %v1839
      %v1935 = vpop.f32.mrf.mxu0
      %v1936 = vadd.f32 0.0, %v1935
      %v1937 = vpop.f32.mrf.mxu0
      %v1938 = vpop.f32.mrf.mxu0
      %v1939 = vadd.f32 0.0, %v1938
      %v1940 = vpop.f32.mrf.mxu0
      %1941 = vmatprep.mubr.bf16.mxu0 0
      %1942 = vmatmul.mubr.bf16.gmra.mxu0 %v1841
      %v1943 = vpop.f32.mrf.mxu0
      %v1944 = vadd.f32 0.0, %v1943
      %v1945 = vpop.f32.mrf.mxu0
      %v1946 = vpop.f32.mrf.mxu0
      %v1947 = vadd.f32 0.0, %v1946
      %v1948 = vpop.f32.mrf.mxu0
      %1949 = vmatprep.mubr.bf16.mxu0 0
      %1950 = vmatmul.mubr.bf16.gmra.mxu0 %v1843
      %v1951 = vpop.f32.mrf.mxu0
      %v1952 = vadd.f32 0.0, %v1951
      %v1953 = vpop.f32.mrf.mxu0
      %v1954 = vpop.f32.mrf.mxu0
      %v1955 = vadd.f32 0.0, %v1954
      %v1956 = vpop.f32.mrf.mxu0
      %1957 = vmatprep.mubr.bf16.mxu0 0
      %1958 = vmatmul.mubr.bf16.gmra.mxu0 %v1845
      %v1959 = vpop.f32.mrf.mxu0
      %v1960 = vadd.f32 0.0, %v1959
      %v1961 = vpop.f32.mrf.mxu0
      %v1962 = vpop.f32.mrf.mxu0
      %v1963 = vadd.f32 0.0, %v1962
      %v1964 = vpop.f32.mrf.mxu0
      %1965 = vmatprep.mubr.bf16.mxu0 0
      %1966 = vmatmul.mubr.bf16.gmra.mxu0 %v1847
      %v1967 = vpop.f32.mrf.mxu0
      %v1968 = vadd.f32 0.0, %v1967
      %v1969 = vpop.f32.mrf.mxu0
      %v1970 = vpop.f32.mrf.mxu0
      %v1971 = vadd.f32 0.0, %v1970
      %v1972 = vpop.f32.mrf.mxu0
      %1973 = vmatprep.mubr.bf16.mxu0 0
      %1974 = vmatmul.mubr.bf16.gmra.mxu0 %v1849
      %v1975 = vpop.f32.mrf.mxu0
      %v1976 = vadd.f32 0.0, %v1975
      %v1977 = vpop.f32.mrf.mxu0
      %v1978 = vpop.f32.mrf.mxu0
      %v1979 = vadd.f32 0.0, %v1978
      %v1980 = vpop.f32.mrf.mxu0
      %1981 = vmatprep.mubr.bf16.mxu0 0
      %1982 = vmatmul.mubr.bf16.gmra.mxu0 %v1851
      %v1983 = vpop.f32.mrf.mxu0
      %v1984 = vadd.f32 0.0, %v1983
      %v1985 = vpop.f32.mrf.mxu0
      %v1986 = vpop.f32.mrf.mxu0
      %v1987 = vadd.f32 0.0, %v1986
      %v1988 = vpop.f32.mrf.mxu0
      %1989 = vmatprep.mubr.bf16.mxu0 0
      %1990 = vmatmul.mubr.bf16.gmra.mxu0 %v1853
      %v1991 = vpop.f32.mrf.mxu0
      %v1992 = vadd.f32 0.0, %v1991
      %v1993 = vpop.f32.mrf.mxu0
      %v1994 = vpop.f32.mrf.mxu0
      %v1995 = vadd.f32 0.0, %v1994
      %v1996 = vpop.f32.mrf.mxu0
      %1997 = vmatprep.mubr.bf16.mxu0 0
      %1998 = vmatmul.mubr.bf16.gmra.mxu0 %v1855
      %v1999 = vpop.f32.mrf.mxu0
      %v2000 = vadd.f32 0.0, %v1999
      %v2001 = vpop.f32.mrf.mxu0
      %v2002 = vpop.f32.mrf.mxu0
      %v2003 = vadd.f32 0.0, %v2002
      %v2004 = vpop.f32.mrf.mxu0
      %2005 = vmatprep.mubr.bf16.mxu0 0
      %2006 = vmatmul.mubr.bf16.gmra.mxu0 %v1857
      %v2007 = vpop.f32.mrf.mxu0
      %v2008 = vadd.f32 0.0, %v2007
      %v2009 = vpop.f32.mrf.mxu0
      %v2010 = vpop.f32.mrf.mxu0
      %v2011 = vadd.f32 0.0, %v2010
      %v2012 = vpop.f32.mrf.mxu0
      %2013 = vmatprep.mubr.bf16.mxu0 0
      %2014 = vmatmul.mubr.bf16.gmra.mxu0 %v1859
      %v2015 = vpop.f32.mrf.mxu0
      %v2016 = vadd.f32 0.0, %v2015
      %v2017 = vpop.f32.mrf.mxu0
      %v2018 = vpop.f32.mrf.mxu0
      %v2019 = vadd.f32 0.0, %v2018
      %v2020 = vpop.f32.mrf.mxu0
      %2021 = vdwg.mxu0
      %vm2054 = vcmask 1040384
      %v2055 = vrot.slane %v1896, 7
      %v2056 = vrot.slane %v1899, 7
      %v2057 = vsel %vm2054, %v2055, %v2056
      %v2058 = vrot.slane %v1904, 7
      %v2059 = vrot.slane %v1907, 7
      %v2060 = vsel %vm2054, %v2058, %v2059
      %v2061 = vrot.slane %v1912, 7
      %v2062 = vrot.slane %v1915, 7
      %v2063 = vsel %vm2054, %v2061, %v2062
      %v2064 = vrot.slane %v1920, 7
      %v2065 = vrot.slane %v1923, 7
      %v2066 = vsel %vm2054, %v2064, %v2065
      %v2067 = vrot.slane %v1928, 7
      %v2068 = vrot.slane %v1931, 7
      %v2069 = vsel %vm2054, %v2067, %v2068
      %v2070 = vrot.slane %v1936, 7
      %v2071 = vrot.slane %v1939, 7
      %v2072 = vsel %vm2054, %v2070, %v2071
      %v2073 = vrot.slane %v1944, 7
      %v2074 = vrot.slane %v1947, 7
      %v2075 = vsel %vm2054, %v2073, %v2074
      %v2076 = vrot.slane %v1952, 7
      %v2077 = vrot.slane %v1955, 7
      %v2078 = vsel %vm2054, %v2076, %v2077
      %v2079 = vrot.slane %v1960, 7
      %v2080 = vrot.slane %v1963, 7
      %v2081 = vsel %vm2054, %v2079, %v2080
      %v2082 = vrot.slane %v1968, 7
      %v2083 = vrot.slane %v1971, 7
      %v2084 = vsel %vm2054, %v2082, %v2083
      %v2085 = vrot.slane %v1976, 7
      %v2086 = vrot.slane %v1979, 7
      %v2087 = vsel %vm2054, %v2085, %v2086
      %v2088 = vrot.slane %v1984, 7
      %v2089 = vrot.slane %v1987, 7
      %v2090 = vsel %vm2054, %v2088, %v2089
      %v2091 = vrot.slane %v1992, 7
      %v2092 = vrot.slane %v1995, 7
      %v2093 = vsel %vm2054, %v2091, %v2092
      %v2094 = vrot.slane %v2000, 7
      %v2095 = vrot.slane %v2003, 7
      %v2096 = vsel %vm2054, %v2094, %v2095
      %v2097 = vrot.slane %v2008, 7
      %v2098 = vrot.slane %v2011, 7
      %v2099 = vsel %vm2054, %v2097, %v2098
      %v2100 = vrot.slane %v2016, 7
      %v2101 = vrot.slane %v2019, 7
      %v2102 = vsel %vm2054, %v2100, %v2101
      %v2119 = vsel %vm2054, 0.0, %v2055
      %v2120 = vsel %vm2054, 0.0, %v2058
      %v2121 = vsel %vm2054, 0.0, %v2061
      %v2122 = vsel %vm2054, 0.0, %v2064
      %v2123 = vsel %vm2054, 0.0, %v2067
      %v2124 = vsel %vm2054, 0.0, %v2070
      %v2125 = vsel %vm2054, 0.0, %v2073
      %v2126 = vsel %vm2054, 0.0, %v2076
      %v2127 = vsel %vm2054, 0.0, %v2079
      %v2128 = vsel %vm2054, 0.0, %v2082
      %v2129 = vsel %vm2054, 0.0, %v2085
      %v2130 = vsel %vm2054, 0.0, %v2088
      %v2131 = vsel %vm2054, 0.0, %v2091
      %v2132 = vsel %vm2054, 0.0, %v2094
      %v2133 = vsel %vm2054, 0.0, %v2097
      %v2134 = vsel %vm2054, 0.0, %v2100
      %2151 = vrot.lane.b32.xlu0 %v2119, 32
      %v2152 = vpop.permute.xlu0 %2151
      %2153 = vrot.lane.b32.xlu0 %v2057, 32
      %v2154 = vpop.permute.xlu0 %2153
      %2155 = vrot.lane.b32.xlu0 %v2120, 32
      %v2156 = vpop.permute.xlu0 %2155
      %2157 = vrot.lane.b32.xlu0 %v2060, 32
      %v2158 = vpop.permute.xlu0 %2157
      %2159 = vrot.lane.b32.xlu0 %v2121, 32
      %v2160 = vpop.permute.xlu0 %2159
      %2161 = vrot.lane.b32.xlu0 %v2063, 32
      %v2162 = vpop.permute.xlu0 %2161
      %2163 = vrot.lane.b32.xlu0 %v2122, 32
      %v2164 = vpop.permute.xlu0 %2163
      %2165 = vrot.lane.b32.xlu0 %v2066, 32
      %v2166 = vpop.permute.xlu0 %2165
      %2167 = vrot.lane.b32.xlu0 %v2123, 32
      %v2168 = vpop.permute.xlu0 %2167
      %2169 = vrot.lane.b32.xlu0 %v2069, 32
      %v2170 = vpop.permute.xlu0 %2169
      %2171 = vrot.lane.b32.xlu0 %v2124, 32
      %v2172 = vpop.permute.xlu0 %2171
      %2173 = vrot.lane.b32.xlu0 %v2072, 32
      %v2174 = vpop.permute.xlu0 %2173
      %2175 = vrot.lane.b32.xlu0 %v2125, 32
      %v2176 = vpop.permute.xlu0 %2175
      %2177 = vrot.lane.b32.xlu0 %v2075, 32
      %v2178 = vpop.permute.xlu0 %2177
      %2179 = vrot.lane.b32.xlu0 %v2126, 32
      %v2180 = vpop.permute.xlu0 %2179
      %2181 = vrot.lane.b32.xlu0 %v2078, 32
      %v2182 = vpop.permute.xlu0 %2181
      %2183 = vrot.lane.b32.xlu0 %v2127, 32
      %v2184 = vpop.permute.xlu0 %2183
      %2185 = vrot.lane.b32.xlu0 %v2081, 32
      %v2186 = vpop.permute.xlu0 %2185
      %2187 = vrot.lane.b32.xlu0 %v2128, 32
      %v2188 = vpop.permute.xlu0 %2187
      %2189 = vrot.lane.b32.xlu0 %v2084, 32
      %v2190 = vpop.permute.xlu0 %2189
      %2191 = vrot.lane.b32.xlu0 %v2129, 32
      %v2192 = vpop.permute.xlu0 %2191
      %2193 = vrot.lane.b32.xlu0 %v2087, 32
      %v2194 = vpop.permute.xlu0 %2193
      %2195 = vrot.lane.b32.xlu0 %v2130, 32
      %v2196 = vpop.permute.xlu0 %2195
      %2197 = vrot.lane.b32.xlu0 %v2090, 32
      %v2198 = vpop.permute.xlu0 %2197
      %2199 = vrot.lane.b32.xlu0 %v2131, 32
      %v2200 = vpop.permute.xlu0 %2199
      %2201 = vrot.lane.b32.xlu0 %v2093, 32
      %v2202 = vpop.permute.xlu0 %2201
      %2203 = vrot.lane.b32.xlu0 %v2132, 32
      %v2204 = vpop.permute.xlu0 %2203
      %2205 = vrot.lane.b32.xlu0 %v2096, 32
      %v2206 = vpop.permute.xlu0 %2205
      %2207 = vrot.lane.b32.xlu0 %v2133, 32
      %v2208 = vpop.permute.xlu0 %2207
      %2209 = vrot.lane.b32.xlu0 %v2099, 32
      %v2210 = vpop.permute.xlu0 %2209
      %2211 = vrot.lane.b32.xlu0 %v2134, 32
      %v2212 = vpop.permute.xlu0 %2211
      %2213 = vrot.lane.b32.xlu0 %v2102, 32
      %v2214 = vpop.permute.xlu0 %2213
      %v2247 = vadd.f32 %v1896, %v2152
      %v2248 = vadd.f32 %v1899, %v2154
      %v2249 = vadd.f32 %v1904, %v2156
      %v2250 = vadd.f32 %v1907, %v2158
      %v2251 = vadd.f32 %v1912, %v2160
      %v2252 = vadd.f32 %v1915, %v2162
      %v2253 = vadd.f32 %v1920, %v2164
      %v2254 = vadd.f32 %v1923, %v2166
      %v2255 = vadd.f32 %v1928, %v2168
      %v2256 = vadd.f32 %v1931, %v2170
      %v2257 = vadd.f32 %v1936, %v2172
      %v2258 = vadd.f32 %v1939, %v2174
      %v2259 = vadd.f32 %v1944, %v2176
      %v2260 = vadd.f32 %v1947, %v2178
      %v2261 = vadd.f32 %v1952, %v2180
      %v2262 = vadd.f32 %v1955, %v2182
      %v2263 = vadd.f32 %v1960, %v2184
      %v2264 = vadd.f32 %v1963, %v2186
      %v2265 = vadd.f32 %v1968, %v2188
      %v2266 = vadd.f32 %v1971, %v2190
      %v2267 = vadd.f32 %v1976, %v2192
      %v2268 = vadd.f32 %v1979, %v2194
      %v2269 = vadd.f32 %v1984, %v2196
      %v2270 = vadd.f32 %v1987, %v2198
      %v2271 = vadd.f32 %v1992, %v2200
      %v2272 = vadd.f32 %v1995, %v2202
      %v2273 = vadd.f32 %v2000, %v2204
      %v2274 = vadd.f32 %v2003, %v2206
      %v2275 = vadd.f32 %v2008, %v2208
      %v2276 = vadd.f32 %v2011, %v2210
      %v2277 = vadd.f32 %v2016, %v2212
      %v2278 = vadd.f32 %v2019, %v2214
      %vm2279 = vcmask 1046528
      %v2280 = vrot.slane %v1896, 1
      %v2281 = vrot.slane %v1899, 1
      %v2282 = vsel %vm2279, %v2280, %v2281
      %v2283 = vrot.slane %v1904, 1
      %v2284 = vrot.slane %v1907, 1
      %v2285 = vsel %vm2279, %v2283, %v2284
      %v2286 = vrot.slane %v1912, 1
      %v2287 = vrot.slane %v1915, 1
      %v2288 = vsel %vm2279, %v2286, %v2287
      %v2289 = vrot.slane %v1920, 1
      %v2290 = vrot.slane %v1923, 1
      %v2291 = vsel %vm2279, %v2289, %v2290
      %v2292 = vrot.slane %v1928, 1
      %v2293 = vrot.slane %v1931, 1
      %v2294 = vsel %vm2279, %v2292, %v2293
      %v2295 = vrot.slane %v1936, 1
      %v2296 = vrot.slane %v1939, 1
      %v2297 = vsel %vm2279, %v2295, %v2296
      %v2298 = vrot.slane %v1944, 1
      %v2299 = vrot.slane %v1947, 1
      %v2300 = vsel %vm2279, %v2298, %v2299
      %v2301 = vrot.slane %v1952, 1
      %v2302 = vrot.slane %v1955, 1
      %v2303 = vsel %vm2279, %v2301, %v2302
      %v2304 = vrot.slane %v1960, 1
      %v2305 = vrot.slane %v1963, 1
      %v2306 = vsel %vm2279, %v2304, %v2305
      %v2307 = vrot.slane %v1968, 1
      %v2308 = vrot.slane %v1971, 1
      %v2309 = vsel %vm2279, %v2307, %v2308
      %v2310 = vrot.slane %v1976, 1
      %v2311 = vrot.slane %v1979, 1
      %v2312 = vsel %vm2279, %v2310, %v2311
      %v2313 = vrot.slane %v1984, 1
      %v2314 = vrot.slane %v1987, 1
      %v2315 = vsel %vm2279, %v2313, %v2314
      %v2316 = vrot.slane %v1992, 1
      %v2317 = vrot.slane %v1995, 1
      %v2318 = vsel %vm2279, %v2316, %v2317
      %v2319 = vrot.slane %v2000, 1
      %v2320 = vrot.slane %v2003, 1
      %v2321 = vsel %vm2279, %v2319, %v2320
      %v2322 = vrot.slane %v2008, 1
      %v2323 = vrot.slane %v2011, 1
      %v2324 = vsel %vm2279, %v2322, %v2323
      %v2325 = vrot.slane %v2016, 1
      %v2326 = vrot.slane %v2019, 1
      %v2327 = vsel %vm2279, %v2325, %v2326
      %v2344 = vsel %vm2279, %v2281, 0.0
      %v2345 = vsel %vm2279, %v2284, 0.0
      %v2346 = vsel %vm2279, %v2287, 0.0
      %v2347 = vsel %vm2279, %v2290, 0.0
      %v2348 = vsel %vm2279, %v2293, 0.0
      %v2349 = vsel %vm2279, %v2296, 0.0
      %v2350 = vsel %vm2279, %v2299, 0.0
      %v2351 = vsel %vm2279, %v2302, 0.0
      %v2352 = vsel %vm2279, %v2305, 0.0
      %v2353 = vsel %vm2279, %v2308, 0.0
      %v2354 = vsel %vm2279, %v2311, 0.0
      %v2355 = vsel %vm2279, %v2314, 0.0
      %v2356 = vsel %vm2279, %v2317, 0.0
      %v2357 = vsel %vm2279, %v2320, 0.0
      %v2358 = vsel %vm2279, %v2323, 0.0
      %v2359 = vsel %vm2279, %v2326, 0.0
      %2376 = vrot.lane.b32.xlu0 %v2282, 96
      %v2377 = vpop.permute.xlu0 %2376
      %2378 = vrot.lane.b32.xlu0 %v2344, 96
      %v2379 = vpop.permute.xlu0 %2378
      %2380 = vrot.lane.b32.xlu0 %v2285, 96
      %v2381 = vpop.permute.xlu0 %2380
      %2382 = vrot.lane.b32.xlu0 %v2345, 96
      %v2383 = vpop.permute.xlu0 %2382
      %2384 = vrot.lane.b32.xlu0 %v2288, 96
      %v2385 = vpop.permute.xlu0 %2384
      %2386 = vrot.lane.b32.xlu0 %v2346, 96
      %v2387 = vpop.permute.xlu0 %2386
      %2388 = vrot.lane.b32.xlu0 %v2291, 96
      %v2389 = vpop.permute.xlu0 %2388
      %2390 = vrot.lane.b32.xlu0 %v2347, 96
      %v2391 = vpop.permute.xlu0 %2390
      %2392 = vrot.lane.b32.xlu0 %v2294, 96
      %v2393 = vpop.permute.xlu0 %2392
      %2394 = vrot.lane.b32.xlu0 %v2348, 96
      %v2395 = vpop.permute.xlu0 %2394
      %2396 = vrot.lane.b32.xlu0 %v2297, 96
      %v2397 = vpop.permute.xlu0 %2396
      %2398 = vrot.lane.b32.xlu0 %v2349, 96
      %v2399 = vpop.permute.xlu0 %2398
      %2400 = vrot.lane.b32.xlu0 %v2300, 96
      %v2401 = vpop.permute.xlu0 %2400
      %2402 = vrot.lane.b32.xlu0 %v2350, 96
      %v2403 = vpop.permute.xlu0 %2402
      %2404 = vrot.lane.b32.xlu0 %v2303, 96
      %v2405 = vpop.permute.xlu0 %2404
      %2406 = vrot.lane.b32.xlu0 %v2351, 96
      %v2407 = vpop.permute.xlu0 %2406
      %2408 = vrot.lane.b32.xlu0 %v2306, 96
      %v2409 = vpop.permute.xlu0 %2408
      %2410 = vrot.lane.b32.xlu0 %v2352, 96
      %v2411 = vpop.permute.xlu0 %2410
      %2412 = vrot.lane.b32.xlu0 %v2309, 96
      %v2413 = vpop.permute.xlu0 %2412
      %2414 = vrot.lane.b32.xlu0 %v2353, 96
      %v2415 = vpop.permute.xlu0 %2414
      %2416 = vrot.lane.b32.xlu0 %v2312, 96
      %v2417 = vpop.permute.xlu0 %2416
      %2418 = vrot.lane.b32.xlu0 %v2354, 96
      %v2419 = vpop.permute.xlu0 %2418
      %2420 = vrot.lane.b32.xlu0 %v2315, 96
      %v2421 = vpop.permute.xlu0 %2420
      %2422 = vrot.lane.b32.xlu0 %v2355, 96
      %v2423 = vpop.permute.xlu0 %2422
      %2424 = vrot.lane.b32.xlu0 %v2318, 96
      %v2425 = vpop.permute.xlu0 %2424
      %2426 = vrot.lane.b32.xlu0 %v2356, 96
      %v2427 = vpop.permute.xlu0 %2426
      %2428 = vrot.lane.b32.xlu0 %v2321, 96
      %v2429 = vpop.permute.xlu0 %2428
      %2430 = vrot.lane.b32.xlu0 %v2357, 96
      %v2431 = vpop.permute.xlu0 %2430
      %2432 = vrot.lane.b32.xlu0 %v2324, 96
      %v2433 = vpop.permute.xlu0 %2432
      %2434 = vrot.lane.b32.xlu0 %v2358, 96
      %v2435 = vpop.permute.xlu0 %2434
      %2436 = vrot.lane.b32.xlu0 %v2327, 96
      %v2437 = vpop.permute.xlu0 %2436
      %2438 = vrot.lane.b32.xlu0 %v2359, 96
      %v2439 = vpop.permute.xlu0 %2438
      %v2472 = vadd.f32 %v2247, %v2377
      %v2473 = vadd.f32 %v2248, %v2379
      %v2474 = vadd.f32 %v2249, %v2381
      %v2475 = vadd.f32 %v2250, %v2383
      %v2476 = vadd.f32 %v2251, %v2385
      %v2477 = vadd.f32 %v2252, %v2387
      %v2478 = vadd.f32 %v2253, %v2389
      %v2479 = vadd.f32 %v2254, %v2391
      %v2480 = vadd.f32 %v2255, %v2393
      %v2481 = vadd.f32 %v2256, %v2395
      %v2482 = vadd.f32 %v2257, %v2397
      %v2483 = vadd.f32 %v2258, %v2399
      %v2484 = vadd.f32 %v2259, %v2401
      %v2485 = vadd.f32 %v2260, %v2403
      %v2486 = vadd.f32 %v2261, %v2405
      %v2487 = vadd.f32 %v2262, %v2407
      %v2488 = vadd.f32 %v2263, %v2409
      %v2489 = vadd.f32 %v2264, %v2411
      %v2490 = vadd.f32 %v2265, %v2413
      %v2491 = vadd.f32 %v2266, %v2415
      %v2492 = vadd.f32 %v2267, %v2417
      %v2493 = vadd.f32 %v2268, %v2419
      %v2494 = vadd.f32 %v2269, %v2421
      %v2495 = vadd.f32 %v2270, %v2423
      %v2496 = vadd.f32 %v2271, %v2425
      %v2497 = vadd.f32 %v2272, %v2427
      %v2498 = vadd.f32 %v2273, %v2429
      %v2499 = vadd.f32 %v2274, %v2431
      %v2500 = vadd.f32 %v2275, %v2433
      %v2501 = vadd.f32 %v2276, %v2435
      %v2502 = vadd.f32 %v2277, %v2437
      %v2503 = vadd.f32 %v2278, %v2439
      %v2504 = vld [vmem:[%s2] sm:$0x1]
      %v2506 = vlaneseq
      %v2507 = vshrl.u32 %v2506, 7
      %v2508 = vsub.s32 0, %v2507
      %v2509 = vrot.slane %v2504, %v2508
      %2510 = vrot.lane.b32.xlu0 %v2509, 32
      %v2511 = vpop.permute.xlu0 %2510
      %v2513 = vadd.f32 %v2472, %v2511
      %v2514 = vadd.f32 %v2473, %v2511
      %v2515 = vadd.f32 %v2474, %v2511
      %v2516 = vadd.f32 %v2475, %v2511
      %v2517 = vadd.f32 %v2476, %v2511
      %v2518 = vadd.f32 %v2477, %v2511
      %v2519 = vadd.f32 %v2478, %v2511
      %v2520 = vadd.f32 %v2479, %v2511
      %v2521 = vadd.f32 %v2480, %v2511
      %v2522 = vadd.f32 %v2481, %v2511
      %v2523 = vadd.f32 %v2482, %v2511
      %v2524 = vadd.f32 %v2483, %v2511
      %v2525 = vadd.f32 %v2484, %v2511
      %v2526 = vadd.f32 %v2485, %v2511
      %v2527 = vadd.f32 %v2486, %v2511
      %v2528 = vadd.f32 %v2487, %v2511
      %v2529 = vadd.f32 %v2488, %v2511
      %v2530 = vadd.f32 %v2489, %v2511
      %v2531 = vadd.f32 %v2490, %v2511
      %v2532 = vadd.f32 %v2491, %v2511
      %v2533 = vadd.f32 %v2492, %v2511
      %v2534 = vadd.f32 %v2493, %v2511
      %v2535 = vadd.f32 %v2494, %v2511
      %v2536 = vadd.f32 %v2495, %v2511
      %v2537 = vadd.f32 %v2496, %v2511
      %v2538 = vadd.f32 %v2497, %v2511
      %v2539 = vadd.f32 %v2498, %v2511
      %v2540 = vadd.f32 %v2499, %v2511
      %v2541 = vadd.f32 %v2500, %v2511
      %v2542 = vadd.f32 %v2501, %v2511
      %v2543 = vadd.f32 %v2502, %v2511
      %v2544 = vadd.f32 %v2503, %v2511
      %v2545 = vpack.c.bf16 %v2514, %v2513
      %v2546 = vpack.c.bf16 %v2516, %v2515
      %v2547 = vpack.c.bf16 %v2518, %v2517
      %v2548 = vpack.c.bf16 %v2520, %v2519
      %v2549 = vpack.c.bf16 %v2522, %v2521
      %v2550 = vpack.c.bf16 %v2524, %v2523
      %v2551 = vpack.c.bf16 %v2526, %v2525
      %v2552 = vpack.c.bf16 %v2528, %v2527
      %v2553 = vpack.c.bf16 %v2530, %v2529
      %v2554 = vpack.c.bf16 %v2532, %v2531
      %v2555 = vpack.c.bf16 %v2534, %v2533
      %v2556 = vpack.c.bf16 %v2536, %v2535
      %v2557 = vpack.c.bf16 %v2538, %v2537
      %v2558 = vpack.c.bf16 %v2540, %v2539
      %v2559 = vpack.c.bf16 %v2542, %v2541
      %v2560 = vpack.c.bf16 %v2544, %v2543
      %v2577 = vunpack.c.l.b16 %v2545
      %v2578 = vunpack.c.h.b16 %v2545
      %v2579 = vunpack.c.l.b16 %v2546
      %v2580 = vunpack.c.h.b16 %v2546
      %v2581 = vunpack.c.l.b16 %v2547
      %v2582 = vunpack.c.h.b16 %v2547
      %v2583 = vunpack.c.l.b16 %v2548
      %v2584 = vunpack.c.h.b16 %v2548
      %v2585 = vunpack.c.l.b16 %v2549
      %v2586 = vunpack.c.h.b16 %v2549
      %v2587 = vunpack.c.l.b16 %v2550
      %v2588 = vunpack.c.h.b16 %v2550
      %v2589 = vunpack.c.l.b16 %v2551
      %v2590 = vunpack.c.h.b16 %v2551
      %v2591 = vunpack.c.l.b16 %v2552
      %v2592 = vunpack.c.h.b16 %v2552
      %v2593 = vunpack.c.l.b16 %v2553
      %v2594 = vunpack.c.h.b16 %v2553
      %v2595 = vunpack.c.l.b16 %v2554
      %v2596 = vunpack.c.h.b16 %v2554
      %v2597 = vunpack.c.l.b16 %v2555
      %v2598 = vunpack.c.h.b16 %v2555
      %v2599 = vunpack.c.l.b16 %v2556
      %v2600 = vunpack.c.h.b16 %v2556
      %v2601 = vunpack.c.l.b16 %v2557
      %v2602 = vunpack.c.h.b16 %v2557
      %v2603 = vunpack.c.l.b16 %v2558
      %v2604 = vunpack.c.h.b16 %v2558
      %v2605 = vunpack.c.l.b16 %v2559
      %v2606 = vunpack.c.h.b16 %v2559
      %v2607 = vunpack.c.l.b16 %v2560
      %v2608 = vunpack.c.h.b16 %v2560
      %v2609 = vpack.c.b16 %v2577, %v2577
      %v2610 = vpack.c.b16 %v2578, %v2578
      %v2611 = vpack.c.b16 %v2579, %v2579
      %v2612 = vpack.c.b16 %v2580, %v2580
      %v2613 = vpack.c.b16 %v2581, %v2581
      %v2614 = vpack.c.b16 %v2582, %v2582
      %v2615 = vpack.c.b16 %v2583, %v2583
      %v2616 = vpack.c.b16 %v2584, %v2584
      %v2617 = vpack.c.b16 %v2585, %v2585
      %v2618 = vpack.c.b16 %v2586, %v2586
      %v2619 = vpack.c.b16 %v2587, %v2587
      %v2620 = vpack.c.b16 %v2588, %v2588
      %v2621 = vpack.c.b16 %v2589, %v2589
      %v2622 = vpack.c.b16 %v2590, %v2590
      %v2623 = vpack.c.b16 %v2591, %v2591
      %v2624 = vpack.c.b16 %v2592, %v2592
      %v2625 = vpack.c.b16 %v2593, %v2593
      %v2626 = vpack.c.b16 %v2594, %v2594
      %v2627 = vpack.c.b16 %v2595, %v2595
      %v2628 = vpack.c.b16 %v2596, %v2596
      %v2629 = vpack.c.b16 %v2597, %v2597
      %v2630 = vpack.c.b16 %v2598, %v2598
      %v2631 = vpack.c.b16 %v2599, %v2599
      %v2632 = vpack.c.b16 %v2600, %v2600
      %v2633 = vpack.c.b16 %v2601, %v2601
      %v2634 = vpack.c.b16 %v2602, %v2602
      %v2635 = vpack.c.b16 %v2603, %v2603
      %v2636 = vpack.c.b16 %v2604, %v2604
      %v2637 = vpack.c.b16 %v2605, %v2605
      %v2638 = vpack.c.b16 %v2606, %v2606
      %v2639 = vpack.c.b16 %v2607, %v2607
      %v2640 = vpack.c.b16 %v2608, %v2608
      %2641 = vrot.lane.b32.xlu0 %v2609, 96
      %v2642 = vpop.permute.xlu0 %2641
      %2643 = vrot.lane.b32.xlu0 %v2610, 96
      %v2644 = vpop.permute.xlu0 %2643
      %2645 = vrot.lane.b32.xlu0 %v2611, 96
      %v2646 = vpop.permute.xlu0 %2645
      %2647 = vrot.lane.b32.xlu0 %v2612, 96
      %v2648 = vpop.permute.xlu0 %2647
      %2649 = vrot.lane.b32.xlu0 %v2613, 96
      %v2650 = vpop.permute.xlu0 %2649
      %2651 = vrot.lane.b32.xlu0 %v2614, 96
      %v2652 = vpop.permute.xlu0 %2651
      %2653 = vrot.lane.b32.xlu0 %v2615, 96
      %v2654 = vpop.permute.xlu0 %2653
      %2655 = vrot.lane.b32.xlu0 %v2616, 96
      %v2656 = vpop.permute.xlu0 %2655
      %2657 = vrot.lane.b32.xlu0 %v2617, 96
      %v2658 = vpop.permute.xlu0 %2657
      %2659 = vrot.lane.b32.xlu0 %v2618, 96
      %v2660 = vpop.permute.xlu0 %2659
      %2661 = vrot.lane.b32.xlu0 %v2619, 96
      %v2662 = vpop.permute.xlu0 %2661
      %2663 = vrot.lane.b32.xlu0 %v2620, 96
      %v2664 = vpop.permute.xlu0 %2663
      %2665 = vrot.lane.b32.xlu0 %v2621, 96
      %v2666 = vpop.permute.xlu0 %2665
      %2667 = vrot.lane.b32.xlu0 %v2622, 96
      %v2668 = vpop.permute.xlu0 %2667
      %2669 = vrot.lane.b32.xlu0 %v2623, 96
      %v2670 = vpop.permute.xlu0 %2669
      %2671 = vrot.lane.b32.xlu0 %v2624, 96
      %v2672 = vpop.permute.xlu0 %2671
      %2673 = vrot.lane.b32.xlu0 %v2625, 96
      %v2674 = vpop.permute.xlu0 %2673
      %2675 = vrot.lane.b32.xlu0 %v2626, 96
      %v2676 = vpop.permute.xlu0 %2675
      %2677 = vrot.lane.b32.xlu0 %v2627, 96
      %v2678 = vpop.permute.xlu0 %2677
      %2679 = vrot.lane.b32.xlu0 %v2628, 96
      %v2680 = vpop.permute.xlu0 %2679
      %2681 = vrot.lane.b32.xlu0 %v2629, 96
      %v2682 = vpop.permute.xlu0 %2681
      %2683 = vrot.lane.b32.xlu0 %v2630, 96
      %v2684 = vpop.permute.xlu0 %2683
      %2685 = vrot.lane.b32.xlu0 %v2631, 96
      %v2686 = vpop.permute.xlu0 %2685
      %2687 = vrot.lane.b32.xlu0 %v2632, 96
      %v2688 = vpop.permute.xlu0 %2687
      %2689 = vrot.lane.b32.xlu0 %v2633, 96
      %v2690 = vpop.permute.xlu0 %2689
      %2691 = vrot.lane.b32.xlu0 %v2634, 96
      %v2692 = vpop.permute.xlu0 %2691
      %2693 = vrot.lane.b32.xlu0 %v2635, 96
      %v2694 = vpop.permute.xlu0 %2693
      %2695 = vrot.lane.b32.xlu0 %v2636, 96
      %v2696 = vpop.permute.xlu0 %2695
      %2697 = vrot.lane.b32.xlu0 %v2637, 96
      %v2698 = vpop.permute.xlu0 %2697
      %2699 = vrot.lane.b32.xlu0 %v2638, 96
      %v2700 = vpop.permute.xlu0 %2699
      %2701 = vrot.lane.b32.xlu0 %v2639, 96
      %v2702 = vpop.permute.xlu0 %2701
      %2703 = vrot.lane.b32.xlu0 %v2640, 96
      %v2704 = vpop.permute.xlu0 %2703
      %vm2737 = vcmask 257024
      %2738 = vst.msk [vmem:[%s170] sm:$0xf] %vm2737, %v2642
      %2739 = vst.msk [vmem:[%s170 + $0x4] sm:$0xf] %vm2737, %v2644
      %2740 = vst.msk [vmem:[%s170 + $0x8] sm:$0xf] %vm2737, %v2646
      %2741 = vst.msk [vmem:[%s170 + $0xc] sm:$0xf] %vm2737, %v2648
      %2742 = vst.msk [vmem:[%s170 + $0x10] sm:$0xf] %vm2737, %v2650
      %2743 = vst.msk [vmem:[%s170 + $0x14] sm:$0xf] %vm2737, %v2652
      %2744 = vst.msk [vmem:[%s170 + $0x18] sm:$0xf] %vm2737, %v2654
      %2745 = vst.msk [vmem:[%s170 + $0x1c] sm:$0xf] %vm2737, %v2656
      %2746 = vst.msk [vmem:[%s170 + $0x20] sm:$0xf] %vm2737, %v2658
      %2747 = vst.msk [vmem:[%s170 + $0x24] sm:$0xf] %vm2737, %v2660
      %2748 = vst.msk [vmem:[%s170 + $0x28] sm:$0xf] %vm2737, %v2662
      %2749 = vst.msk [vmem:[%s170 + $0x2c] sm:$0xf] %vm2737, %v2664
      %2750 = vst.msk [vmem:[%s170 + $0x30] sm:$0xf] %vm2737, %v2666
      %2751 = vst.msk [vmem:[%s170 + $0x34] sm:$0xf] %vm2737, %v2668
      %2752 = vst.msk [vmem:[%s170 + $0x38] sm:$0xf] %vm2737, %v2670
      %2753 = vst.msk [vmem:[%s170 + $0x3c] sm:$0xf] %vm2737, %v2672
      %2754 = vst.msk [vmem:[%s170 + $0x40] sm:$0xf] %vm2737, %v2674
      %2755 = vst.msk [vmem:[%s170 + $0x44] sm:$0xf] %vm2737, %v2676
      %2756 = vst.msk [vmem:[%s170 + $0x48] sm:$0xf] %vm2737, %v2678
      %2757 = vst.msk [vmem:[%s170 + $0x4c] sm:$0xf] %vm2737, %v2680
      %2758 = vst.msk [vmem:[%s170 + $0x50] sm:$0xf] %vm2737, %v2682
      %2759 = vst.msk [vmem:[%s170 + $0x54] sm:$0xf] %vm2737, %v2684
      %2760 = vst.msk [vmem:[%s170 + $0x58] sm:$0xf] %vm2737, %v2686
      %2761 = vst.msk [vmem:[%s170 + $0x5c] sm:$0xf] %vm2737, %v2688
      %2762 = vst.msk [vmem:[%s170 + $0x60] sm:$0xf] %vm2737, %v2690
      %2763 = vst.msk [vmem:[%s170 + $0x64] sm:$0xf] %vm2737, %v2692
      %2764 = vst.msk [vmem:[%s170 + $0x68] sm:$0xf] %vm2737, %v2694
      %2765 = vst.msk [vmem:[%s170 + $0x6c] sm:$0xf] %vm2737, %v2696
      %2766 = vst.msk [vmem:[%s170 + $0x70] sm:$0xf] %vm2737, %v2698
      %2767 = vst.msk [vmem:[%s170 + $0x74] sm:$0xf] %vm2737, %v2700
      %2768 = vst.msk [vmem:[%s170 + $0x78] sm:$0xf] %vm2737, %v2702
      %2769 = vst.msk [vmem:[%s170 + $0x7c] sm:$0xf] %vm2737, %v2704
      %p2770 = scmp.lt.s32.totalorder %s14, 1
      %s2771 = scalar_select %p2770, %s14, 1
      %s2772 = smul.addr %s2771, 32
      %s2773 = smul.addr %s2772, 4
      %s2774 = scalar_lea.vmem %s3, %s2773
      // Predicated region
      $region33: #{decoder_forward.14} parent=31 // pred_check
        %p2775 = pneg %p100
      $region34: #{decoder_forward.14} parent=31 // pred_check_branch
        %2777 = sbr.rel (%p2775) target = $region36
      $region35: #{decoder_forward.14} parent=31 // pred_region
        _
      $region36: #{decoder_forward.14} parent=31 // pred_fallthru
        _
    $region32: #{decoder_forward.14} parent=5 // pred_fallthru
      _
    %p2778 = scmp.le.s32.totalorder 2, %s9
    // Predicated region
    $region37: #{decoder_forward.14} parent=5 // pred_check
      %p2779 = pneg %p2778
    $region38: #{decoder_forward.14} parent=5 // pred_check_branch
      %2781 = sbr.rel (%p2779) target = $region40
    $region39: #{decoder_forward.14} parent=5 // pred_region
      %s2782 = ssub.s32 %s9, 2
      // Predicated region
      $region41: #{decoder_forward.14} parent=39 // pred_check
        %p2783 = pneg %p106
      $region42: #{decoder_forward.14} parent=39 // pred_check_branch
        %2785 = sbr.rel (%p2783) target = $region44
      $region43: #{decoder_forward.14} parent=39 // pred_region
        %p2786 = scmp.lt.s32.totalorder %s15, 1
        %s2787 = scalar_select %p2786, %s15, 1
        %s2788 = smul.addr %s2787, 32
        %s2789 = smul.addr %s2788, 4
        %s2790 = scalar_lea.vmem %s3, %s2789
      $region44: #{decoder_forward.14} parent=39 // pred_fallthru
        _
    $region40: #{decoder_forward.14} parent=5 // pred_fallthru
      _
  $region6: #{decoder_forward.14} parent=0 // loop_footer
    %s13 = sadd.s32 1, %s9
  $region7: #{decoder_forward.14} parent=0 // loop_footer_branch
    %8 = sbr.rel target = $region3
  $region8: #{decoder_forward.14} parent=0 // loop_exit
    _

</llo_original>
